<compile_context>
chip_gen: v5e
topology: v5e:2x2
jax: 0.10.0
libtpu: 0.0.40
codegen_flags: <defaults>
</compile_context>

<pallas_src>
import jax
import jax.numpy as jnp
from jax.experimental import pallas as pl
from jax.experimental.pallas import tpu as pltpu

HIDDEN = 128          # must be divisible by NUM_HEADS
NUM_HEADS = 8
N_LAYERS = 3
EPS = 1e-12           # LayerNorm eps from the PyTorch module


# ---------------------------------------------------------------------------
# Fused kernel: for each layer l:  y1 = LN1(x + GRU(x));  x = LN2(y1 + MHA(y1))
# ---------------------------------------------------------------------------
def _gru_att_fused_kernel(x_ref,
                          wih_ref, whh_ref, bih_ref, bhh_ref, g1_ref, be1_ref,
                          wqkv_ref, bqkv_ref, wo_ref, bo_ref, g2_ref, be2_ref,
                          out_ref):
    B, S, H = x_ref.shape
    L = wih_ref.shape[0]
    heads = NUM_HEADS
    hd = H // heads
    scale = float(hd) ** -0.5

    # Work on a 2-D (B*S, H) batch-major view; single lane-dense store at end.
    x2d = x_ref[...].reshape(B * S, H)

    for l in range(L):                              # static unroll over layers
        wih = wih_ref[l]          # (H, 3H)
        whh = whh_ref[l]          # (H, 3H)
        bih = bih_ref[l]          # (1, 3H)
        bhh = bhh_ref[l]          # (1, 3H)
        gamma1 = g1_ref[l]        # (1, H)
        beta1 = be1_ref[l]
        wqkv = wqkv_ref[l]        # (H, 3H)
        bqkv = bqkv_ref[l]        # (1, 3H)
        wo = wo_ref[l]            # (H, H)
        bo = bo_ref[l]            # (1, H)
        gamma2 = g2_ref[l]
        beta2 = be2_ref[l]

        # ---- GRU: one big input projection for all timesteps, then a
        #      statically unrolled recurrence held entirely in registers. ----
        gx_all = (jnp.dot(x2d, wih, preferred_element_type=jnp.float32)
                  + bih).reshape(B, S, 3 * H)

        h = jnp.zeros((B, H), jnp.float32)
        hs = []
        for t in range(S):                          # static unroll over time
            gx = gx_all[:, t, :]                    # (B, 3H)
            gh = jnp.dot(h, whh, preferred_element_type=jnp.float32) + bhh
            r = jax.nn.sigmoid(gx[:, 0:H] + gh[:, 0:H])
            z = jax.nn.sigmoid(gx[:, H:2 * H] + gh[:, H:2 * H])
            n = jnp.tanh(gx[:, 2 * H:3 * H] + r * gh[:, 2 * H:3 * H])
            h = n + z * (h - n)                     # == (1-z)*n + z*h
            hs.append(h)

        # Assemble batch-major (B*S, H) GRU output once, in registers.
        gru2d = jnp.concatenate(
            [hs[t][b:b + 1, :] for b in range(B) for t in range(S)], axis=0)

        # residual (dropout == identity in eval) + LayerNorm1
        s1 = x2d + gru2d
        mu1 = jnp.mean(s1, axis=-1, keepdims=True)
        var1 = jnp.mean((s1 - mu1) ** 2, axis=-1, keepdims=True)
        y1 = gamma1 * ((s1 - mu1) * jax.lax.rsqrt(var1 + EPS)) + beta1

        # ---- multi-head attention (8 heads, head dim = H/8) ----
        qkv = (jnp.dot(y1, wqkv, preferred_element_type=jnp.float32)
               + bqkv).reshape(B, S, 3 * H)

        ctx_heads = []
        for hh in range(heads):                     # static unroll over heads
            lo = hh * hd
            qh = qkv[:, :, lo:lo + hd] * scale                  # (B, S, hd)
            kh = qkv[:, :, H + lo:H + lo + hd]
            vh = qkv[:, :, 2 * H + lo:2 * H + lo + hd]
            logits = jnp.einsum('bqd,bkd->bqk', qh, kh,
                                preferred_element_type=jnp.float32)
            m = jnp.max(logits, axis=-1, keepdims=True)
            e = jnp.exp(logits - m)
            w = e * pl.reciprocal(jnp.sum(e, axis=-1, keepdims=True),
                                  approx=True)
            ctx_heads.append(jnp.einsum('bqk,bkd->bqd', w, vh,
                                        preferred_element_type=jnp.float32))
        ctx = jnp.concatenate(ctx_heads, axis=-1).reshape(B * S, H)
        attn = jnp.dot(ctx, wo, preferred_element_type=jnp.float32) + bo

        # residual + LayerNorm2
        s2 = y1 + attn
        mu2 = jnp.mean(s2, axis=-1, keepdims=True)
        var2 = jnp.mean((s2 - mu2) ** 2, axis=-1, keepdims=True)
        x2d = gamma2 * ((s2 - mu2) * jax.lax.rsqrt(var2 + EPS)) + beta2

    out_ref[...] = x2d.reshape(B, S, H)             # single lane-dense store


# ---------------------------------------------------------------------------
# Wrapper: ONE pallas_call for the whole 3-layer stack
# ---------------------------------------------------------------------------
def _vmem():
    return pl.BlockSpec(memory_space=pltpu.MemorySpace.VMEM)


def gru_att_forward(x, params):
    """x: (B, S, H) float32; params: list of per-layer dicts."""
    stk = lambda name: jnp.stack([p[name] for p in params], axis=0)
    args = (x,
            stk("w_ih"), stk("w_hh"), stk("b_ih"), stk("b_hh"),
            stk("gamma1"), stk("beta1"),
            stk("w_qkv"), stk("b_qkv"), stk("w_o"), stk("b_o"),
            stk("gamma2"), stk("beta2"))
    B, S, H = x.shape
    return pl.pallas_call(
        _gru_att_fused_kernel,
        out_shape=jax.ShapeDtypeStruct((B, S, H), jnp.float32),
        in_specs=[_vmem()] * len(args),
        out_specs=_vmem(),
    )(*args)


# ---------------------------------------------------------------------------
# Deterministic parameter init (shapes follow the PyTorch __init__)
# ---------------------------------------------------------------------------
def init_params(key, hidden, n_layers):
    params = []
    scale = 1.0 / (hidden ** 0.5)
    for _ in range(n_layers):
        key, *ks = jax.random.split(key, 9)
        u = lambda k, shp: jax.random.uniform(k, shp, jnp.float32, -scale, scale)
        params.append(dict(
            # nn.GRU(hidden, hidden, 1): weight_ih/hh stored transposed (H, 3H)
            w_ih=u(ks[0], (hidden, 3 * hidden)),
            w_hh=u(ks[1], (hidden, 3 * hidden)),
            b_ih=u(ks[2], (1, 3 * hidden)),
            b_hh=u(ks[3], (1, 3 * hidden)),
            gamma1=jnp.ones((1, hidden), jnp.float32),
            beta1=jnp.zeros((1, hidden), jnp.float32),
            # attention: qkv_transform (H, 3H), o_transform (H, H) (transposed)
            w_qkv=u(ks[4], (hidden, 3 * hidden)),
            b_qkv=u(ks[5], (1, 3 * hidden)),
            w_o=u(ks[6], (hidden, hidden)),
            b_o=u(ks[7], (1, hidden)),
            gamma2=jnp.ones((1, hidden), jnp.float32),
            beta2=jnp.zeros((1, hidden), jnp.float32),
        ))
    return params


# ---------------------------------------------------------------------------
# Pure-JAX reference (mirrors the PyTorch forward in eval mode)
# ---------------------------------------------------------------------------
def _layer_norm(x, gamma, beta):
    mean = x.mean(-1, keepdims=True)
    var = ((x - mean) ** 2).mean(-1, keepdims=True)
    return gamma * (x - mean) / jnp.sqrt(var + EPS) + beta


def reference_forward(x, params):
    B, S, H = x.shape
    heads, hd = NUM_HEADS, HIDDEN // NUM_HEADS
    for p in params:
        gx_all = x @ p["w_ih"] + p["b_ih"]
        h = jnp.zeros((B, H), jnp.float32)
        outs = []
        for t in range(S):
            gx = gx_all[:, t, :]
            gh = h @ p["w_hh"] + p["b_hh"]
            r = jax.nn.sigmoid(gx[:, :H] + gh[:, :H])
            z = jax.nn.sigmoid(gx[:, H:2 * H] + gh[:, H:2 * H])
            n = jnp.tanh(gx[:, 2 * H:] + r * gh[:, 2 * H:])
            h = (1.0 - z) * n + z * h
            outs.append(h)
        gru_out = jnp.stack(outs, axis=1)
        y1 = _layer_norm(x + gru_out, p["gamma1"], p["beta1"])

        qkv = y1 @ p["w_qkv"] + p["b_qkv"]
        q, k, v = qkv[..., :H], qkv[..., H:2 * H], qkv[..., 2 * H:]
        qh = q.reshape(B, S, heads, hd).transpose(0, 2, 1, 3) * hd ** -0.5
        kh = k.reshape(B, S, heads, hd).transpose(0, 2, 1, 3)
        vh = v.reshape(B, S, heads, hd).transpose(0, 2, 1, 3)
        logits = jnp.einsum("bhqd,bhkd->bhqk", qh, kh)
        w = jax.nn.softmax(logits, axis=-1)
        ctx = jnp.einsum("bhqk,bhkd->bhqd", w, vh)
        ctx = ctx.transpose(0, 2, 1, 3).reshape(B, S, H)
        attn_out = ctx @ p["w_o"] + p["b_o"]
        x = _layer_norm(y1 + attn_out, p["gamma2"], p["beta2"])
    return x


if __name__ == "__main__":
    key = jax.random.PRNGKey(0)
    kx, kp = jax.random.split(key)
    B, S, H = 2, 8, HIDDEN
    x = jax.random.normal(kx, (B, S, H), jnp.float32)
    params = init_params(kp, H, N_LAYERS)

    out = jax.block_until_ready(gru_att_forward(x, params))
    assert out.shape == (B, S, H)

    ref = reference_forward(x, params)
    if not bool(jnp.allclose(out, ref, atol=3e-2, rtol=3e-2)):
        raise ValueError("Pallas output does not match JAX reference")

    print("KERNEL_OK")
</pallas_src>

<mosaic_0001>
module attributes {stable_mosaic.version = 11 : i64} {
  func.func @_gru_att_fused_kernel(%arg0: memref<2x8x128xf32, #tpu.memory_space<vmem>>, %arg1: memref<3x128x384xf32, #tpu.memory_space<vmem>>, %arg2: memref<3x128x384xf32, #tpu.memory_space<vmem>>, %arg3: memref<3x1x384xf32, #tpu.memory_space<vmem>>, %arg4: memref<3x1x384xf32, #tpu.memory_space<vmem>>, %arg5: memref<3x1x128xf32, #tpu.memory_space<vmem>>, %arg6: memref<3x1x128xf32, #tpu.memory_space<vmem>>, %arg7: memref<3x128x384xf32, #tpu.memory_space<vmem>>, %arg8: memref<3x1x384xf32, #tpu.memory_space<vmem>>, %arg9: memref<3x128x128xf32, #tpu.memory_space<vmem>>, %arg10: memref<3x1x128xf32, #tpu.memory_space<vmem>>, %arg11: memref<3x1x128xf32, #tpu.memory_space<vmem>>, %arg12: memref<3x1x128xf32, #tpu.memory_space<vmem>>, %arg13: memref<2x8x128xf32, #tpu.memory_space<vmem>>) attributes {dimension_semantics = [], scalar_prefetch = 0 : i64, scratch_operands = 0 : i64, tpu.core_type = #tpu.core_type<tc>} {
    %c0 = arith.constant 0 : index
    %c0_0 = arith.constant 0 : index
    %c0_1 = arith.constant 0 : index
    %0 = vector.load %arg0[%c0, %c0_0, %c0_1] : memref<2x8x128xf32, #tpu.memory_space<vmem>>, vector<2x8x128xf32>
    %1 = vector.shape_cast %0 : vector<2x8x128xf32> to vector<16x128xf32>
    %c0_2 = arith.constant 0 : index
    %c0_3 = arith.constant 0 : index
    %c0_4 = arith.constant 0 : index
    %2 = vector.load %arg1[%c0_2, %c0_3, %c0_4] : memref<3x128x384xf32, #tpu.memory_space<vmem>>, vector<1x128x384xf32>
    %3 = vector.shape_cast %2 : vector<1x128x384xf32> to vector<128x384xf32>
    %c0_5 = arith.constant 0 : index
    %c0_6 = arith.constant 0 : index
    %c0_7 = arith.constant 0 : index
    %4 = vector.load %arg2[%c0_5, %c0_6, %c0_7] : memref<3x128x384xf32, #tpu.memory_space<vmem>>, vector<1x128x384xf32>
    %5 = vector.shape_cast %4 : vector<1x128x384xf32> to vector<128x384xf32>
    %c0_8 = arith.constant 0 : index
    %c0_9 = arith.constant 0 : index
    %c0_10 = arith.constant 0 : index
    %6 = vector.load %arg3[%c0_8, %c0_9, %c0_10] : memref<3x1x384xf32, #tpu.memory_space<vmem>>, vector<1x1x384xf32>
    %7 = vector.shape_cast %6 : vector<1x1x384xf32> to vector<1x384xf32>
    %c0_11 = arith.constant 0 : index
    %c0_12 = arith.constant 0 : index
    %c0_13 = arith.constant 0 : index
    %8 = vector.load %arg4[%c0_11, %c0_12, %c0_13] : memref<3x1x384xf32, #tpu.memory_space<vmem>>, vector<1x1x384xf32>
    %9 = vector.shape_cast %8 : vector<1x1x384xf32> to vector<1x384xf32>
    %c0_14 = arith.constant 0 : index
    %c0_15 = arith.constant 0 : index
    %c0_16 = arith.constant 0 : index
    %10 = vector.load %arg5[%c0_14, %c0_15, %c0_16] : memref<3x1x128xf32, #tpu.memory_space<vmem>>, vector<1x1x128xf32>
    %11 = vector.shape_cast %10 : vector<1x1x128xf32> to vector<1x128xf32>
    %c0_17 = arith.constant 0 : index
    %c0_18 = arith.constant 0 : index
    %c0_19 = arith.constant 0 : index
    %12 = vector.load %arg6[%c0_17, %c0_18, %c0_19] : memref<3x1x128xf32, #tpu.memory_space<vmem>>, vector<1x1x128xf32>
    %13 = vector.shape_cast %12 : vector<1x1x128xf32> to vector<1x128xf32>
    %c0_20 = arith.constant 0 : index
    %c0_21 = arith.constant 0 : index
    %c0_22 = arith.constant 0 : index
    %14 = vector.load %arg7[%c0_20, %c0_21, %c0_22] : memref<3x128x384xf32, #tpu.memory_space<vmem>>, vector<1x128x384xf32>
    %15 = vector.shape_cast %14 : vector<1x128x384xf32> to vector<128x384xf32>
    %c0_23 = arith.constant 0 : index
    %c0_24 = arith.constant 0 : index
    %c0_25 = arith.constant 0 : index
    %16 = vector.load %arg8[%c0_23, %c0_24, %c0_25] : memref<3x1x384xf32, #tpu.memory_space<vmem>>, vector<1x1x384xf32>
    %17 = vector.shape_cast %16 : vector<1x1x384xf32> to vector<1x384xf32>
    %c0_26 = arith.constant 0 : index
    %c0_27 = arith.constant 0 : index
    %c0_28 = arith.constant 0 : index
    %18 = vector.load %arg9[%c0_26, %c0_27, %c0_28] : memref<3x128x128xf32, #tpu.memory_space<vmem>>, vector<1x128x128xf32>
    %19 = vector.shape_cast %18 : vector<1x128x128xf32> to vector<128x128xf32>
    %c0_29 = arith.constant 0 : index
    %c0_30 = arith.constant 0 : index
    %c0_31 = arith.constant 0 : index
    %20 = vector.load %arg10[%c0_29, %c0_30, %c0_31] : memref<3x1x128xf32, #tpu.memory_space<vmem>>, vector<1x1x128xf32>
    %21 = vector.shape_cast %20 : vector<1x1x128xf32> to vector<1x128xf32>
    %c0_32 = arith.constant 0 : index
    %c0_33 = arith.constant 0 : index
    %c0_34 = arith.constant 0 : index
    %22 = vector.load %arg11[%c0_32, %c0_33, %c0_34] : memref<3x1x128xf32, #tpu.memory_space<vmem>>, vector<1x1x128xf32>
    %23 = vector.shape_cast %22 : vector<1x1x128xf32> to vector<1x128xf32>
    %c0_35 = arith.constant 0 : index
    %c0_36 = arith.constant 0 : index
    %c0_37 = arith.constant 0 : index
    %24 = vector.load %arg12[%c0_35, %c0_36, %c0_37] : memref<3x1x128xf32, #tpu.memory_space<vmem>>, vector<1x1x128xf32>
    %25 = vector.shape_cast %24 : vector<1x1x128xf32> to vector<1x128xf32>
    %cst = arith.constant dense<0.000000e+00> : vector<16x384xf32>
    %26 = tpu.matmul %1, %3, %cst {dimension_numbers = #tpu.dot_dimension_numbers<[1], [0], [0], [1], [0, 0, 1, 1], [], []>} : vector<16x128xf32>, vector<128x384xf32>, vector<16x384xf32> -> vector<16x384xf32>
    %27 = vector.broadcast %7 : vector<1x384xf32> to vector<16x384xf32>
    %28 = arith.addf %26, %27 : vector<16x384xf32>
    %29 = vector.shape_cast %28 : vector<16x384xf32> to vector<2x8x384xf32>
    %cst_38 = arith.constant 0.000000e+00 : f32
    %30 = vector.broadcast %cst_38 : f32 to vector<2x128xf32>
    %31 = vector.extract_strided_slice %29 {offsets = [0, 0, 0], sizes = [2, 1, 384], strides = [1, 1, 1]} : vector<2x8x384xf32> to vector<2x1x384xf32>
    %32 = vector.shape_cast %31 : vector<2x1x384xf32> to vector<2x384xf32>
    %cst_39 = arith.constant dense<0.000000e+00> : vector<2x384xf32>
    %33 = tpu.matmul %30, %5, %cst_39 {dimension_numbers = #tpu.dot_dimension_numbers<[1], [0], [0], [1], [0, 0, 1, 1], [], []>} : vector<2x128xf32>, vector<128x384xf32>, vector<2x384xf32> -> vector<2x384xf32>
    %34 = vector.broadcast %9 : vector<1x384xf32> to vector<2x384xf32>
    %35 = arith.addf %33, %34 : vector<2x384xf32>
    %36 = vector.extract_strided_slice %32 {offsets = [0, 0], sizes = [2, 128], strides = [1, 1]} : vector<2x384xf32> to vector<2x128xf32>
    %37 = vector.extract_strided_slice %35 {offsets = [0, 0], sizes = [2, 128], strides = [1, 1]} : vector<2x384xf32> to vector<2x128xf32>
    %38 = arith.addf %36, %37 : vector<2x128xf32>
    %39 = arith.negf %38 : vector<2x128xf32>
    %40 = math.exp %39 : vector<2x128xf32>
    %cst_40 = arith.constant 1.000000e+00 : f32
    %41 = vector.broadcast %cst_40 : f32 to vector<2x128xf32>
    %42 = arith.addf %41, %40 : vector<2x128xf32>
    %43 = arith.divf %41, %42 : vector<2x128xf32>
    %44 = vector.extract_strided_slice %32 {offsets = [0, 128], sizes = [2, 128], strides = [1, 1]} : vector<2x384xf32> to vector<2x128xf32>
    %45 = vector.extract_strided_slice %35 {offsets = [0, 128], sizes = [2, 128], strides = [1, 1]} : vector<2x384xf32> to vector<2x128xf32>
    %46 = arith.addf %44, %45 : vector<2x128xf32>
    %47 = arith.negf %46 : vector<2x128xf32>
    %48 = math.exp %47 : vector<2x128xf32>
    %cst_41 = arith.constant 1.000000e+00 : f32
    %49 = vector.broadcast %cst_41 : f32 to vector<2x128xf32>
    %50 = arith.addf %49, %48 : vector<2x128xf32>
    %51 = arith.divf %49, %50 : vector<2x128xf32>
    %52 = vector.extract_strided_slice %32 {offsets = [0, 256], sizes = [2, 128], strides = [1, 1]} : vector<2x384xf32> to vector<2x128xf32>
    %53 = vector.extract_strided_slice %35 {offsets = [0, 256], sizes = [2, 128], strides = [1, 1]} : vector<2x384xf32> to vector<2x128xf32>
    %54 = arith.mulf %43, %53 : vector<2x128xf32>
    %55 = arith.addf %52, %54 : vector<2x128xf32>
    %56 = math.tanh %55 : vector<2x128xf32>
    %57 = arith.subf %30, %56 : vector<2x128xf32>
    %58 = arith.mulf %51, %57 : vector<2x128xf32>
    %59 = arith.addf %56, %58 : vector<2x128xf32>
    %60 = vector.extract_strided_slice %29 {offsets = [0, 1, 0], sizes = [2, 1, 384], strides = [1, 1, 1]} : vector<2x8x384xf32> to vector<2x1x384xf32>
    %61 = vector.shape_cast %60 : vector<2x1x384xf32> to vector<2x384xf32>
    %cst_42 = arith.constant dense<0.000000e+00> : vector<2x384xf32>
    %62 = tpu.matmul %59, %5, %cst_42 {dimension_numbers = #tpu.dot_dimension_numbers<[1], [0], [0], [1], [0, 0, 1, 1], [], []>} : vector<2x128xf32>, vector<128x384xf32>, vector<2x384xf32> -> vector<2x384xf32>
    %63 = vector.broadcast %9 : vector<1x384xf32> to vector<2x384xf32>
    %64 = arith.addf %62, %63 : vector<2x384xf32>
    %65 = vector.extract_strided_slice %61 {offsets = [0, 0], sizes = [2, 128], strides = [1, 1]} : vector<2x384xf32> to vector<2x128xf32>
    %66 = vector.extract_strided_slice %64 {offsets = [0, 0], sizes = [2, 128], strides = [1, 1]} : vector<2x384xf32> to vector<2x128xf32>
    %67 = arith.addf %65, %66 : vector<2x128xf32>
    %68 = arith.negf %67 : vector<2x128xf32>
    %69 = math.exp %68 : vector<2x128xf32>
    %cst_43 = arith.constant 1.000000e+00 : f32
    %70 = vector.broadcast %cst_43 : f32 to vector<2x128xf32>
    %71 = arith.addf %70, %69 : vector<2x128xf32>
    %72 = arith.divf %70, %71 : vector<2x128xf32>
    %73 = vector.extract_strided_slice %61 {offsets = [0, 128], sizes = [2, 128], strides = [1, 1]} : vector<2x384xf32> to vector<2x128xf32>
    %74 = vector.extract_strided_slice %64 {offsets = [0, 128], sizes = [2, 128], strides = [1, 1]} : vector<2x384xf32> to vector<2x128xf32>
    %75 = arith.addf %73, %74 : vector<2x128xf32>
    %76 = arith.negf %75 : vector<2x128xf32>
    %77 = math.exp %76 : vector<2x128xf32>
    %cst_44 = arith.constant 1.000000e+00 : f32
    %78 = vector.broadcast %cst_44 : f32 to vector<2x128xf32>
    %79 = arith.addf %78, %77 : vector<2x128xf32>
    %80 = arith.divf %78, %79 : vector<2x128xf32>
    %81 = vector.extract_strided_slice %61 {offsets = [0, 256], sizes = [2, 128], strides = [1, 1]} : vector<2x384xf32> to vector<2x128xf32>
    %82 = vector.extract_strided_slice %64 {offsets = [0, 256], sizes = [2, 128], strides = [1, 1]} : vector<2x384xf32> to vector<2x128xf32>
    %83 = arith.mulf %72, %82 : vector<2x128xf32>
    %84 = arith.addf %81, %83 : vector<2x128xf32>
    %85 = math.tanh %84 : vector<2x128xf32>
    %86 = arith.subf %59, %85 : vector<2x128xf32>
    %87 = arith.mulf %80, %86 : vector<2x128xf32>
    %88 = arith.addf %85, %87 : vector<2x128xf32>
    %89 = vector.extract_strided_slice %29 {offsets = [0, 2, 0], sizes = [2, 1, 384], strides = [1, 1, 1]} : vector<2x8x384xf32> to vector<2x1x384xf32>
    %90 = vector.shape_cast %89 : vector<2x1x384xf32> to vector<2x384xf32>
    %cst_45 = arith.constant dense<0.000000e+00> : vector<2x384xf32>
    %91 = tpu.matmul %88, %5, %cst_45 {dimension_numbers = #tpu.dot_dimension_numbers<[1], [0], [0], [1], [0, 0, 1, 1], [], []>} : vector<2x128xf32>, vector<128x384xf32>, vector<2x384xf32> -> vector<2x384xf32>
    %92 = vector.broadcast %9 : vector<1x384xf32> to vector<2x384xf32>
    %93 = arith.addf %91, %92 : vector<2x384xf32>
    %94 = vector.extract_strided_slice %90 {offsets = [0, 0], sizes = [2, 128], strides = [1, 1]} : vector<2x384xf32> to vector<2x128xf32>
    %95 = vector.extract_strided_slice %93 {offsets = [0, 0], sizes = [2, 128], strides = [1, 1]} : vector<2x384xf32> to vector<2x128xf32>
    %96 = arith.addf %94, %95 : vector<2x128xf32>
    %97 = arith.negf %96 : vector<2x128xf32>
    %98 = math.exp %97 : vector<2x128xf32>
    %cst_46 = arith.constant 1.000000e+00 : f32
    %99 = vector.broadcast %cst_46 : f32 to vector<2x128xf32>
    %100 = arith.addf %99, %98 : vector<2x128xf32>
    %101 = arith.divf %99, %100 : vector<2x128xf32>
    %102 = vector.extract_strided_slice %90 {offsets = [0, 128], sizes = [2, 128], strides = [1, 1]} : vector<2x384xf32> to vector<2x128xf32>
    %103 = vector.extract_strided_slice %93 {offsets = [0, 128], sizes = [2, 128], strides = [1, 1]} : vector<2x384xf32> to vector<2x128xf32>
    %104 = arith.addf %102, %103 : vector<2x128xf32>
    %105 = arith.negf %104 : vector<2x128xf32>
    %106 = math.exp %105 : vector<2x128xf32>
    %cst_47 = arith.constant 1.000000e+00 : f32
    %107 = vector.broadcast %cst_47 : f32 to vector<2x128xf32>
    %108 = arith.addf %107, %106 : vector<2x128xf32>
    %109 = arith.divf %107, %108 : vector<2x128xf32>
    %110 = vector.extract_strided_slice %90 {offsets = [0, 256], sizes = [2, 128], strides = [1, 1]} : vector<2x384xf32> to vector<2x128xf32>
    %111 = vector.extract_strided_slice %93 {offsets = [0, 256], sizes = [2, 128], strides = [1, 1]} : vector<2x384xf32> to vector<2x128xf32>
    %112 = arith.mulf %101, %111 : vector<2x128xf32>
    %113 = arith.addf %110, %112 : vector<2x128xf32>
    %114 = math.tanh %113 : vector<2x128xf32>
    %115 = arith.subf %88, %114 : vector<2x128xf32>
    %116 = arith.mulf %109, %115 : vector<2x128xf32>
    %117 = arith.addf %114, %116 : vector<2x128xf32>
    %118 = vector.extract_strided_slice %29 {offsets = [0, 3, 0], sizes = [2, 1, 384], strides = [1, 1, 1]} : vector<2x8x384xf32> to vector<2x1x384xf32>
    %119 = vector.shape_cast %118 : vector<2x1x384xf32> to vector<2x384xf32>
    %cst_48 = arith.constant dense<0.000000e+00> : vector<2x384xf32>
    %120 = tpu.matmul %117, %5, %cst_48 {dimension_numbers = #tpu.dot_dimension_numbers<[1], [0], [0], [1], [0, 0, 1, 1], [], []>} : vector<2x128xf32>, vector<128x384xf32>, vector<2x384xf32> -> vector<2x384xf32>
    %121 = vector.broadcast %9 : vector<1x384xf32> to vector<2x384xf32>
    %122 = arith.addf %120, %121 : vector<2x384xf32>
    %123 = vector.extract_strided_slice %119 {offsets = [0, 0], sizes = [2, 128], strides = [1, 1]} : vector<2x384xf32> to vector<2x128xf32>
    %124 = vector.extract_strided_slice %122 {offsets = [0, 0], sizes = [2, 128], strides = [1, 1]} : vector<2x384xf32> to vector<2x128xf32>
    %125 = arith.addf %123, %124 : vector<2x128xf32>
    %126 = arith.negf %125 : vector<2x128xf32>
    %127 = math.exp %126 : vector<2x128xf32>
    %cst_49 = arith.constant 1.000000e+00 : f32
    %128 = vector.broadcast %cst_49 : f32 to vector<2x128xf32>
    %129 = arith.addf %128, %127 : vector<2x128xf32>
    %130 = arith.divf %128, %129 : vector<2x128xf32>
    %131 = vector.extract_strided_slice %119 {offsets = [0, 128], sizes = [2, 128], strides = [1, 1]} : vector<2x384xf32> to vector<2x128xf32>
    %132 = vector.extract_strided_slice %122 {offsets = [0, 128], sizes = [2, 128], strides = [1, 1]} : vector<2x384xf32> to vector<2x128xf32>
    %133 = arith.addf %131, %132 : vector<2x128xf32>
    %134 = arith.negf %133 : vector<2x128xf32>
    %135 = math.exp %134 : vector<2x128xf32>
    %cst_50 = arith.constant 1.000000e+00 : f32
    %136 = vector.broadcast %cst_50 : f32 to vector<2x128xf32>
    %137 = arith.addf %136, %135 : vector<2x128xf32>
    %138 = arith.divf %136, %137 : vector<2x128xf32>
    %139 = vector.extract_strided_slice %119 {offsets = [0, 256], sizes = [2, 128], strides = [1, 1]} : vector<2x384xf32> to vector<2x128xf32>
    %140 = vector.extract_strided_slice %122 {offsets = [0, 256], sizes = [2, 128], strides = [1, 1]} : vector<2x384xf32> to vector<2x128xf32>
    %141 = arith.mulf %130, %140 : vector<2x128xf32>
    %142 = arith.addf %139, %141 : vector<2x128xf32>
    %143 = math.tanh %142 : vector<2x128xf32>
    %144 = arith.subf %117, %143 : vector<2x128xf32>
    %145 = arith.mulf %138, %144 : vector<2x128xf32>
    %146 = arith.addf %143, %145 : vector<2x128xf32>
    %147 = vector.extract_strided_slice %29 {offsets = [0, 4, 0], sizes = [2, 1, 384], strides = [1, 1, 1]} : vector<2x8x384xf32> to vector<2x1x384xf32>
    %148 = vector.shape_cast %147 : vector<2x1x384xf32> to vector<2x384xf32>
    %cst_51 = arith.constant dense<0.000000e+00> : vector<2x384xf32>
    %149 = tpu.matmul %146, %5, %cst_51 {dimension_numbers = #tpu.dot_dimension_numbers<[1], [0], [0], [1], [0, 0, 1, 1], [], []>} : vector<2x128xf32>, vector<128x384xf32>, vector<2x384xf32> -> vector<2x384xf32>
    %150 = vector.broadcast %9 : vector<1x384xf32> to vector<2x384xf32>
    %151 = arith.addf %149, %150 : vector<2x384xf32>
    %152 = vector.extract_strided_slice %148 {offsets = [0, 0], sizes = [2, 128], strides = [1, 1]} : vector<2x384xf32> to vector<2x128xf32>
    %153 = vector.extract_strided_slice %151 {offsets = [0, 0], sizes = [2, 128], strides = [1, 1]} : vector<2x384xf32> to vector<2x128xf32>
    %154 = arith.addf %152, %153 : vector<2x128xf32>
    %155 = arith.negf %154 : vector<2x128xf32>
    %156 = math.exp %155 : vector<2x128xf32>
    %cst_52 = arith.constant 1.000000e+00 : f32
    %157 = vector.broadcast %cst_52 : f32 to vector<2x128xf32>
    %158 = arith.addf %157, %156 : vector<2x128xf32>
    %159 = arith.divf %157, %158 : vector<2x128xf32>
    %160 = vector.extract_strided_slice %148 {offsets = [0, 128], sizes = [2, 128], strides = [1, 1]} : vector<2x384xf32> to vector<2x128xf32>
    %161 = vector.extract_strided_slice %151 {offsets = [0, 128], sizes = [2, 128], strides = [1, 1]} : vector<2x384xf32> to vector<2x128xf32>
    %162 = arith.addf %160, %161 : vector<2x128xf32>
    %163 = arith.negf %162 : vector<2x128xf32>
    %164 = math.exp %163 : vector<2x128xf32>
    %cst_53 = arith.constant 1.000000e+00 : f32
    %165 = vector.broadcast %cst_53 : f32 to vector<2x128xf32>
    %166 = arith.addf %165, %164 : vector<2x128xf32>
    %167 = arith.divf %165, %166 : vector<2x128xf32>
    %168 = vector.extract_strided_slice %148 {offsets = [0, 256], sizes = [2, 128], strides = [1, 1]} : vector<2x384xf32> to vector<2x128xf32>
    %169 = vector.extract_strided_slice %151 {offsets = [0, 256], sizes = [2, 128], strides = [1, 1]} : vector<2x384xf32> to vector<2x128xf32>
    %170 = arith.mulf %159, %169 : vector<2x128xf32>
    %171 = arith.addf %168, %170 : vector<2x128xf32>
    %172 = math.tanh %171 : vector<2x128xf32>
    %173 = arith.subf %146, %172 : vector<2x128xf32>
    %174 = arith.mulf %167, %173 : vector<2x128xf32>
    %175 = arith.addf %172, %174 : vector<2x128xf32>
    %176 = vector.extract_strided_slice %29 {offsets = [0, 5, 0], sizes = [2, 1, 384], strides = [1, 1, 1]} : vector<2x8x384xf32> to vector<2x1x384xf32>
    %177 = vector.shape_cast %176 : vector<2x1x384xf32> to vector<2x384xf32>
    %cst_54 = arith.constant dense<0.000000e+00> : vector<2x384xf32>
    %178 = tpu.matmul %175, %5, %cst_54 {dimension_numbers = #tpu.dot_dimension_numbers<[1], [0], [0], [1], [0, 0, 1, 1], [], []>} : vector<2x128xf32>, vector<128x384xf32>, vector<2x384xf32> -> vector<2x384xf32>
    %179 = vector.broadcast %9 : vector<1x384xf32> to vector<2x384xf32>
    %180 = arith.addf %178, %179 : vector<2x384xf32>
    %181 = vector.extract_strided_slice %177 {offsets = [0, 0], sizes = [2, 128], strides = [1, 1]} : vector<2x384xf32> to vector<2x128xf32>
    %182 = vector.extract_strided_slice %180 {offsets = [0, 0], sizes = [2, 128], strides = [1, 1]} : vector<2x384xf32> to vector<2x128xf32>
    %183 = arith.addf %181, %182 : vector<2x128xf32>
    %184 = arith.negf %183 : vector<2x128xf32>
    %185 = math.exp %184 : vector<2x128xf32>
    %cst_55 = arith.constant 1.000000e+00 : f32
    %186 = vector.broadcast %cst_55 : f32 to vector<2x128xf32>
    %187 = arith.addf %186, %185 : vector<2x128xf32>
    %188 = arith.divf %186, %187 : vector<2x128xf32>
    %189 = vector.extract_strided_slice %177 {offsets = [0, 128], sizes = [2, 128], strides = [1, 1]} : vector<2x384xf32> to vector<2x128xf32>
    %190 = vector.extract_strided_slice %180 {offsets = [0, 128], sizes = [2, 128], strides = [1, 1]} : vector<2x384xf32> to vector<2x128xf32>
    %191 = arith.addf %189, %190 : vector<2x128xf32>
    %192 = arith.negf %191 : vector<2x128xf32>
    %193 = math.exp %192 : vector<2x128xf32>
    %cst_56 = arith.constant 1.000000e+00 : f32
    %194 = vector.broadcast %cst_56 : f32 to vector<2x128xf32>
    %195 = arith.addf %194, %193 : vector<2x128xf32>
    %196 = arith.divf %194, %195 : vector<2x128xf32>
    %197 = vector.extract_strided_slice %177 {offsets = [0, 256], sizes = [2, 128], strides = [1, 1]} : vector<2x384xf32> to vector<2x128xf32>
    %198 = vector.extract_strided_slice %180 {offsets = [0, 256], sizes = [2, 128], strides = [1, 1]} : vector<2x384xf32> to vector<2x128xf32>
    %199 = arith.mulf %188, %198 : vector<2x128xf32>
    %200 = arith.addf %197, %199 : vector<2x128xf32>
    %201 = math.tanh %200 : vector<2x128xf32>
    %202 = arith.subf %175, %201 : vector<2x128xf32>
    %203 = arith.mulf %196, %202 : vector<2x128xf32>
    %204 = arith.addf %201, %203 : vector<2x128xf32>
    %205 = vector.extract_strided_slice %29 {offsets = [0, 6, 0], sizes = [2, 1, 384], strides = [1, 1, 1]} : vector<2x8x384xf32> to vector<2x1x384xf32>
    %206 = vector.shape_cast %205 : vector<2x1x384xf32> to vector<2x384xf32>
    %cst_57 = arith.constant dense<0.000000e+00> : vector<2x384xf32>
    %207 = tpu.matmul %204, %5, %cst_57 {dimension_numbers = #tpu.dot_dimension_numbers<[1], [0], [0], [1], [0, 0, 1, 1], [], []>} : vector<2x128xf32>, vector<128x384xf32>, vector<2x384xf32> -> vector<2x384xf32>
    %208 = vector.broadcast %9 : vector<1x384xf32> to vector<2x384xf32>
    %209 = arith.addf %207, %208 : vector<2x384xf32>
    %210 = vector.extract_strided_slice %206 {offsets = [0, 0], sizes = [2, 128], strides = [1, 1]} : vector<2x384xf32> to vector<2x128xf32>
    %211 = vector.extract_strided_slice %209 {offsets = [0, 0], sizes = [2, 128], strides = [1, 1]} : vector<2x384xf32> to vector<2x128xf32>
    %212 = arith.addf %210, %211 : vector<2x128xf32>
    %213 = arith.negf %212 : vector<2x128xf32>
    %214 = math.exp %213 : vector<2x128xf32>
    %cst_58 = arith.constant 1.000000e+00 : f32
    %215 = vector.broadcast %cst_58 : f32 to vector<2x128xf32>
    %216 = arith.addf %215, %214 : vector<2x128xf32>
    %217 = arith.divf %215, %216 : vector<2x128xf32>
    %218 = vector.extract_strided_slice %206 {offsets = [0, 128], sizes = [2, 128], strides = [1, 1]} : vector<2x384xf32> to vector<2x128xf32>
    %219 = vector.extract_strided_slice %209 {offsets = [0, 128], sizes = [2, 128], strides = [1, 1]} : vector<2x384xf32> to vector<2x128xf32>
    %220 = arith.addf %218, %219 : vector<2x128xf32>
    %221 = arith.negf %220 : vector<2x128xf32>
    %222 = math.exp %221 : vector<2x128xf32>
    %cst_59 = arith.constant 1.000000e+00 : f32
    %223 = vector.broadcast %cst_59 : f32 to vector<2x128xf32>
    %224 = arith.addf %223, %222 : vector<2x128xf32>
    %225 = arith.divf %223, %224 : vector<2x128xf32>
    %226 = vector.extract_strided_slice %206 {offsets = [0, 256], sizes = [2, 128], strides = [1, 1]} : vector<2x384xf32> to vector<2x128xf32>
    %227 = vector.extract_strided_slice %209 {offsets = [0, 256], sizes = [2, 128], strides = [1, 1]} : vector<2x384xf32> to vector<2x128xf32>
    %228 = arith.mulf %217, %227 : vector<2x128xf32>
    %229 = arith.addf %226, %228 : vector<2x128xf32>
    %230 = math.tanh %229 : vector<2x128xf32>
    %231 = arith.subf %204, %230 : vector<2x128xf32>
    %232 = arith.mulf %225, %231 : vector<2x128xf32>
    %233 = arith.addf %230, %232 : vector<2x128xf32>
    %234 = vector.extract_strided_slice %29 {offsets = [0, 7, 0], sizes = [2, 1, 384], strides = [1, 1, 1]} : vector<2x8x384xf32> to vector<2x1x384xf32>
    %235 = vector.shape_cast %234 : vector<2x1x384xf32> to vector<2x384xf32>
    %cst_60 = arith.constant dense<0.000000e+00> : vector<2x384xf32>
    %236 = tpu.matmul %233, %5, %cst_60 {dimension_numbers = #tpu.dot_dimension_numbers<[1], [0], [0], [1], [0, 0, 1, 1], [], []>} : vector<2x128xf32>, vector<128x384xf32>, vector<2x384xf32> -> vector<2x384xf32>
    %237 = vector.broadcast %9 : vector<1x384xf32> to vector<2x384xf32>
    %238 = arith.addf %236, %237 : vector<2x384xf32>
    %239 = vector.extract_strided_slice %235 {offsets = [0, 0], sizes = [2, 128], strides = [1, 1]} : vector<2x384xf32> to vector<2x128xf32>
    %240 = vector.extract_strided_slice %238 {offsets = [0, 0], sizes = [2, 128], strides = [1, 1]} : vector<2x384xf32> to vector<2x128xf32>
    %241 = arith.addf %239, %240 : vector<2x128xf32>
    %242 = arith.negf %241 : vector<2x128xf32>
    %243 = math.exp %242 : vector<2x128xf32>
    %cst_61 = arith.constant 1.000000e+00 : f32
    %244 = vector.broadcast %cst_61 : f32 to vector<2x128xf32>
    %245 = arith.addf %244, %243 : vector<2x128xf32>
    %246 = arith.divf %244, %245 : vector<2x128xf32>
    %247 = vector.extract_strided_slice %235 {offsets = [0, 128], sizes = [2, 128], strides = [1, 1]} : vector<2x384xf32> to vector<2x128xf32>
    %248 = vector.extract_strided_slice %238 {offsets = [0, 128], sizes = [2, 128], strides = [1, 1]} : vector<2x384xf32> to vector<2x128xf32>
    %249 = arith.addf %247, %248 : vector<2x128xf32>
    %250 = arith.negf %249 : vector<2x128xf32>
    %251 = math.exp %250 : vector<2x128xf32>
    %cst_62 = arith.constant 1.000000e+00 : f32
    %252 = vector.broadcast %cst_62 : f32 to vector<2x128xf32>
    %253 = arith.addf %252, %251 : vector<2x128xf32>
    %254 = arith.divf %252, %253 : vector<2x128xf32>
    %255 = vector.extract_strided_slice %235 {offsets = [0, 256], sizes = [2, 128], strides = [1, 1]} : vector<2x384xf32> to vector<2x128xf32>
    %256 = vector.extract_strided_slice %238 {offsets = [0, 256], sizes = [2, 128], strides = [1, 1]} : vector<2x384xf32> to vector<2x128xf32>
    %257 = arith.mulf %246, %256 : vector<2x128xf32>
    %258 = arith.addf %255, %257 : vector<2x128xf32>
    %259 = math.tanh %258 : vector<2x128xf32>
    %260 = arith.subf %233, %259 : vector<2x128xf32>
    %261 = arith.mulf %254, %260 : vector<2x128xf32>
    %262 = arith.addf %259, %261 : vector<2x128xf32>
    %263 = vector.extract_strided_slice %59 {offsets = [0, 0], sizes = [1, 128], strides = [1, 1]} : vector<2x128xf32> to vector<1x128xf32>
    %264 = vector.extract_strided_slice %88 {offsets = [0, 0], sizes = [1, 128], strides = [1, 1]} : vector<2x128xf32> to vector<1x128xf32>
    %265 = vector.extract_strided_slice %117 {offsets = [0, 0], sizes = [1, 128], strides = [1, 1]} : vector<2x128xf32> to vector<1x128xf32>
    %266 = vector.extract_strided_slice %146 {offsets = [0, 0], sizes = [1, 128], strides = [1, 1]} : vector<2x128xf32> to vector<1x128xf32>
    %267 = vector.extract_strided_slice %175 {offsets = [0, 0], sizes = [1, 128], strides = [1, 1]} : vector<2x128xf32> to vector<1x128xf32>
    %268 = vector.extract_strided_slice %204 {offsets = [0, 0], sizes = [1, 128], strides = [1, 1]} : vector<2x128xf32> to vector<1x128xf32>
    %269 = vector.extract_strided_slice %233 {offsets = [0, 0], sizes = [1, 128], strides = [1, 1]} : vector<2x128xf32> to vector<1x128xf32>
    %270 = vector.extract_strided_slice %262 {offsets = [0, 0], sizes = [1, 128], strides = [1, 1]} : vector<2x128xf32> to vector<1x128xf32>
    %271 = vector.extract_strided_slice %59 {offsets = [1, 0], sizes = [1, 128], strides = [1, 1]} : vector<2x128xf32> to vector<1x128xf32>
    %272 = vector.extract_strided_slice %88 {offsets = [1, 0], sizes = [1, 128], strides = [1, 1]} : vector<2x128xf32> to vector<1x128xf32>
    %273 = vector.extract_strided_slice %117 {offsets = [1, 0], sizes = [1, 128], strides = [1, 1]} : vector<2x128xf32> to vector<1x128xf32>
    %274 = vector.extract_strided_slice %146 {offsets = [1, 0], sizes = [1, 128], strides = [1, 1]} : vector<2x128xf32> to vector<1x128xf32>
    %275 = vector.extract_strided_slice %175 {offsets = [1, 0], sizes = [1, 128], strides = [1, 1]} : vector<2x128xf32> to vector<1x128xf32>
    %276 = vector.extract_strided_slice %204 {offsets = [1, 0], sizes = [1, 128], strides = [1, 1]} : vector<2x128xf32> to vector<1x128xf32>
    %277 = vector.extract_strided_slice %233 {offsets = [1, 0], sizes = [1, 128], strides = [1, 1]} : vector<2x128xf32> to vector<1x128xf32>
    %278 = vector.extract_strided_slice %262 {offsets = [1, 0], sizes = [1, 128], strides = [1, 1]} : vector<2x128xf32> to vector<1x128xf32>
    %279 = tpu.concatenate %263, %264, %265, %266, %267, %268, %269, %270, %271, %272, %273, %274, %275, %276, %277, %278 in 0 : vector<1x128xf32>, vector<1x128xf32>, vector<1x128xf32>, vector<1x128xf32>, vector<1x128xf32>, vector<1x128xf32>, vector<1x128xf32>, vector<1x128xf32>, vector<1x128xf32>, vector<1x128xf32>, vector<1x128xf32>, vector<1x128xf32>, vector<1x128xf32>, vector<1x128xf32>, vector<1x128xf32>, vector<1x128xf32> -> vector<16x128xf32>
    %280 = arith.addf %1, %279 : vector<16x128xf32>
    %cst_63 = arith.constant dense<0.000000e+00> : vector<16xf32>
    %281 = vector.multi_reduction <add>, %280, %cst_63 [1] : vector<16x128xf32> to vector<16xf32>
    %282 = vector.shape_cast %281 : vector<16xf32> to vector<16x1xf32>
    %cst_64 = arith.constant 1.280000e+02 : f32
    %283 = vector.broadcast %cst_64 : f32 to vector<16x1xf32>
    %284 = arith.divf %282, %283 : vector<16x1xf32>
    %285 = vector.broadcast %284 : vector<16x1xf32> to vector<16x128xf32>
    %286 = arith.subf %280, %285 : vector<16x128xf32>
    %287 = arith.mulf %286, %286 : vector<16x128xf32>
    %cst_65 = arith.constant dense<0.000000e+00> : vector<16xf32>
    %288 = vector.multi_reduction <add>, %287, %cst_65 [1] : vector<16x128xf32> to vector<16xf32>
    %289 = vector.shape_cast %288 : vector<16xf32> to vector<16x1xf32>
    %cst_66 = arith.constant 1.280000e+02 : f32
    %290 = vector.broadcast %cst_66 : f32 to vector<16x1xf32>
    %291 = arith.divf %289, %290 : vector<16x1xf32>
    %292 = vector.broadcast %284 : vector<16x1xf32> to vector<16x128xf32>
    %293 = arith.subf %280, %292 : vector<16x128xf32>
    %cst_67 = arith.constant 9.99999996E-13 : f32
    %294 = vector.broadcast %cst_67 : f32 to vector<16x1xf32>
    %295 = arith.addf %291, %294 : vector<16x1xf32>
    %296 = math.rsqrt %295 : vector<16x1xf32>
    %297 = vector.broadcast %296 : vector<16x1xf32> to vector<16x128xf32>
    %298 = arith.mulf %293, %297 : vector<16x128xf32>
    %299 = vector.broadcast %11 : vector<1x128xf32> to vector<16x128xf32>
    %300 = arith.mulf %299, %298 : vector<16x128xf32>
    %301 = vector.broadcast %13 : vector<1x128xf32> to vector<16x128xf32>
    %302 = arith.addf %300, %301 : vector<16x128xf32>
    %cst_68 = arith.constant dense<0.000000e+00> : vector<16x384xf32>
    %303 = tpu.matmul %302, %15, %cst_68 {dimension_numbers = #tpu.dot_dimension_numbers<[1], [0], [0], [1], [0, 0, 1, 1], [], []>} : vector<16x128xf32>, vector<128x384xf32>, vector<16x384xf32> -> vector<16x384xf32>
    %304 = vector.broadcast %17 : vector<1x384xf32> to vector<16x384xf32>
    %305 = arith.addf %303, %304 : vector<16x384xf32>
    %306 = vector.shape_cast %305 : vector<16x384xf32> to vector<2x8x384xf32>
    %307 = vector.extract_strided_slice %306 {offsets = [0, 0, 0], sizes = [2, 8, 16], strides = [1, 1, 1]} : vector<2x8x384xf32> to vector<2x8x16xf32>
    %cst_69 = arith.constant 2.500000e-01 : f32
    %308 = vector.broadcast %cst_69 : f32 to vector<2x8x16xf32>
    %309 = arith.mulf %307, %308 : vector<2x8x16xf32>
    %310 = vector.extract_strided_slice %306 {offsets = [0, 0, 128], sizes = [2, 8, 16], strides = [1, 1, 1]} : vector<2x8x384xf32> to vector<2x8x16xf32>
    %311 = vector.extract_strided_slice %306 {offsets = [0, 0, 256], sizes = [2, 8, 16], strides = [1, 1, 1]} : vector<2x8x384xf32> to vector<2x8x16xf32>
    "tpu.trace_start"() <{level = 10 : i32, message = "bqd,bkd->bqk"}> : () -> ()
    %cst_70 = arith.constant dense<0.000000e+00> : vector<2x8x8xf32>
    %312 = tpu.matmul %309, %310, %cst_70 {dimension_numbers = #tpu.dot_dimension_numbers<[2], [2], [1], [1], [0, 0, 0, 1, 1, 1], [0], [0]>} : vector<2x8x16xf32>, vector<2x8x16xf32>, vector<2x8x8xf32> -> vector<2x8x8xf32>
    "tpu.trace_stop"() : () -> ()
    %cst_71 = arith.constant dense<0xFF800000> : vector<2x8xf32>
    %313 = vector.multi_reduction <maximumf>, %312, %cst_71 [2] : vector<2x8x8xf32> to vector<2x8xf32>
    %314 = vector.shape_cast %313 : vector<2x8xf32> to vector<2x8x1xf32>
    %315 = vector.broadcast %314 : vector<2x8x1xf32> to vector<2x8x8xf32>
    %316 = arith.subf %312, %315 : vector<2x8x8xf32>
    %317 = math.exp %316 : vector<2x8x8xf32>
    %cst_72 = arith.constant dense<0.000000e+00> : vector<2x8xf32>
    %318 = vector.multi_reduction <add>, %317, %cst_72 [2] : vector<2x8x8xf32> to vector<2x8xf32>
    %319 = vector.shape_cast %318 : vector<2x8xf32> to vector<2x8x1xf32>
    %320 = tpu.reciprocal %319 {approx = true} : vector<2x8x1xf32> -> vector<2x8x1xf32>
    %321 = vector.broadcast %320 : vector<2x8x1xf32> to vector<2x8x8xf32>
    %322 = arith.mulf %317, %321 : vector<2x8x8xf32>
    "tpu.trace_start"() <{level = 10 : i32, message = "bqk,bkd->bqd"}> : () -> ()
    %cst_73 = arith.constant dense<0.000000e+00> : vector<2x8x16xf32>
    %323 = tpu.matmul %322, %311, %cst_73 {dimension_numbers = #tpu.dot_dimension_numbers<[2], [1], [1], [2], [0, 0, 0, 1, 1, 2], [0], [0]>} : vector<2x8x8xf32>, vector<2x8x16xf32>, vector<2x8x16xf32> -> vector<2x8x16xf32>
    "tpu.trace_stop"() : () -> ()
    %324 = vector.extract_strided_slice %306 {offsets = [0, 0, 16], sizes = [2, 8, 16], strides = [1, 1, 1]} : vector<2x8x384xf32> to vector<2x8x16xf32>
    %cst_74 = arith.constant 2.500000e-01 : f32
    %325 = vector.broadcast %cst_74 : f32 to vector<2x8x16xf32>
    %326 = arith.mulf %324, %325 : vector<2x8x16xf32>
    %327 = vector.extract_strided_slice %306 {offsets = [0, 0, 144], sizes = [2, 8, 16], strides = [1, 1, 1]} : vector<2x8x384xf32> to vector<2x8x16xf32>
    %328 = vector.extract_strided_slice %306 {offsets = [0, 0, 272], sizes = [2, 8, 16], strides = [1, 1, 1]} : vector<2x8x384xf32> to vector<2x8x16xf32>
    "tpu.trace_start"() <{level = 10 : i32, message = "bqd,bkd->bqk"}> : () -> ()
    %cst_75 = arith.constant dense<0.000000e+00> : vector<2x8x8xf32>
    %329 = tpu.matmul %326, %327, %cst_75 {dimension_numbers = #tpu.dot_dimension_numbers<[2], [2], [1], [1], [0, 0, 0, 1, 1, 1], [0], [0]>} : vector<2x8x16xf32>, vector<2x8x16xf32>, vector<2x8x8xf32> -> vector<2x8x8xf32>
    "tpu.trace_stop"() : () -> ()
    %cst_76 = arith.constant dense<0xFF800000> : vector<2x8xf32>
    %330 = vector.multi_reduction <maximumf>, %329, %cst_76 [2] : vector<2x8x8xf32> to vector<2x8xf32>
    %331 = vector.shape_cast %330 : vector<2x8xf32> to vector<2x8x1xf32>
    %332 = vector.broadcast %331 : vector<2x8x1xf32> to vector<2x8x8xf32>
    %333 = arith.subf %329, %332 : vector<2x8x8xf32>
    %334 = math.exp %333 : vector<2x8x8xf32>
    %cst_77 = arith.constant dense<0.000000e+00> : vector<2x8xf32>
    %335 = vector.multi_reduction <add>, %334, %cst_77 [2] : vector<2x8x8xf32> to vector<2x8xf32>
    %336 = vector.shape_cast %335 : vector<2x8xf32> to vector<2x8x1xf32>
    %337 = tpu.reciprocal %336 {approx = true} : vector<2x8x1xf32> -> vector<2x8x1xf32>
    %338 = vector.broadcast %337 : vector<2x8x1xf32> to vector<2x8x8xf32>
    %339 = arith.mulf %334, %338 : vector<2x8x8xf32>
    "tpu.trace_start"() <{level = 10 : i32, message = "bqk,bkd->bqd"}> : () -> ()
    %cst_78 = arith.constant dense<0.000000e+00> : vector<2x8x16xf32>
    %340 = tpu.matmul %339, %328, %cst_78 {dimension_numbers = #tpu.dot_dimension_numbers<[2], [1], [1], [2], [0, 0, 0, 1, 1, 2], [0], [0]>} : vector<2x8x8xf32>, vector<2x8x16xf32>, vector<2x8x16xf32> -> vector<2x8x16xf32>
    "tpu.trace_stop"() : () -> ()
    %341 = vector.extract_strided_slice %306 {offsets = [0, 0, 32], sizes = [2, 8, 16], strides = [1, 1, 1]} : vector<2x8x384xf32> to vector<2x8x16xf32>
    %cst_79 = arith.constant 2.500000e-01 : f32
    %342 = vector.broadcast %cst_79 : f32 to vector<2x8x16xf32>
    %343 = arith.mulf %341, %342 : vector<2x8x16xf32>
    %344 = vector.extract_strided_slice %306 {offsets = [0, 0, 160], sizes = [2, 8, 16], strides = [1, 1, 1]} : vector<2x8x384xf32> to vector<2x8x16xf32>
    %345 = vector.extract_strided_slice %306 {offsets = [0, 0, 288], sizes = [2, 8, 16], strides = [1, 1, 1]} : vector<2x8x384xf32> to vector<2x8x16xf32>
    "tpu.trace_start"() <{level = 10 : i32, message = "bqd,bkd->bqk"}> : () -> ()
    %cst_80 = arith.constant dense<0.000000e+00> : vector<2x8x8xf32>
    %346 = tpu.matmul %343, %344, %cst_80 {dimension_numbers = #tpu.dot_dimension_numbers<[2], [2], [1], [1], [0, 0, 0, 1, 1, 1], [0], [0]>} : vector<2x8x16xf32>, vector<2x8x16xf32>, vector<2x8x8xf32> -> vector<2x8x8xf32>
    "tpu.trace_stop"() : () -> ()
    %cst_81 = arith.constant dense<0xFF800000> : vector<2x8xf32>
    %347 = vector.multi_reduction <maximumf>, %346, %cst_81 [2] : vector<2x8x8xf32> to vector<2x8xf32>
    %348 = vector.shape_cast %347 : vector<2x8xf32> to vector<2x8x1xf32>
    %349 = vector.broadcast %348 : vector<2x8x1xf32> to vector<2x8x8xf32>
    %350 = arith.subf %346, %349 : vector<2x8x8xf32>
    %351 = math.exp %350 : vector<2x8x8xf32>
    %cst_82 = arith.constant dense<0.000000e+00> : vector<2x8xf32>
    %352 = vector.multi_reduction <add>, %351, %cst_82 [2] : vector<2x8x8xf32> to vector<2x8xf32>
    %353 = vector.shape_cast %352 : vector<2x8xf32> to vector<2x8x1xf32>
    %354 = tpu.reciprocal %353 {approx = true} : vector<2x8x1xf32> -> vector<2x8x1xf32>
    %355 = vector.broadcast %354 : vector<2x8x1xf32> to vector<2x8x8xf32>
    %356 = arith.mulf %351, %355 : vector<2x8x8xf32>
    "tpu.trace_start"() <{level = 10 : i32, message = "bqk,bkd->bqd"}> : () -> ()
    %cst_83 = arith.constant dense<0.000000e+00> : vector<2x8x16xf32>
    %357 = tpu.matmul %356, %345, %cst_83 {dimension_numbers = #tpu.dot_dimension_numbers<[2], [1], [1], [2], [0, 0, 0, 1, 1, 2], [0], [0]>} : vector<2x8x8xf32>, vector<2x8x16xf32>, vector<2x8x16xf32> -> vector<2x8x16xf32>
    "tpu.trace_stop"() : () -> ()
    %358 = vector.extract_strided_slice %306 {offsets = [0, 0, 48], sizes = [2, 8, 16], strides = [1, 1, 1]} : vector<2x8x384xf32> to vector<2x8x16xf32>
    %cst_84 = arith.constant 2.500000e-01 : f32
    %359 = vector.broadcast %cst_84 : f32 to vector<2x8x16xf32>
    %360 = arith.mulf %358, %359 : vector<2x8x16xf32>
    %361 = vector.extract_strided_slice %306 {offsets = [0, 0, 176], sizes = [2, 8, 16], strides = [1, 1, 1]} : vector<2x8x384xf32> to vector<2x8x16xf32>
    %362 = vector.extract_strided_slice %306 {offsets = [0, 0, 304], sizes = [2, 8, 16], strides = [1, 1, 1]} : vector<2x8x384xf32> to vector<2x8x16xf32>
    "tpu.trace_start"() <{level = 10 : i32, message = "bqd,bkd->bqk"}> : () -> ()
    %cst_85 = arith.constant dense<0.000000e+00> : vector<2x8x8xf32>
    %363 = tpu.matmul %360, %361, %cst_85 {dimension_numbers = #tpu.dot_dimension_numbers<[2], [2], [1], [1], [0, 0, 0, 1, 1, 1], [0], [0]>} : vector<2x8x16xf32>, vector<2x8x16xf32>, vector<2x8x8xf32> -> vector<2x8x8xf32>
    "tpu.trace_stop"() : () -> ()
    %cst_86 = arith.constant dense<0xFF800000> : vector<2x8xf32>
    %364 = vector.multi_reduction <maximumf>, %363, %cst_86 [2] : vector<2x8x8xf32> to vector<2x8xf32>
    %365 = vector.shape_cast %364 : vector<2x8xf32> to vector<2x8x1xf32>
    %366 = vector.broadcast %365 : vector<2x8x1xf32> to vector<2x8x8xf32>
    %367 = arith.subf %363, %366 : vector<2x8x8xf32>
    %368 = math.exp %367 : vector<2x8x8xf32>
    %cst_87 = arith.constant dense<0.000000e+00> : vector<2x8xf32>
    %369 = vector.multi_reduction <add>, %368, %cst_87 [2] : vector<2x8x8xf32> to vector<2x8xf32>
    %370 = vector.shape_cast %369 : vector<2x8xf32> to vector<2x8x1xf32>
    %371 = tpu.reciprocal %370 {approx = true} : vector<2x8x1xf32> -> vector<2x8x1xf32>
    %372 = vector.broadcast %371 : vector<2x8x1xf32> to vector<2x8x8xf32>
    %373 = arith.mulf %368, %372 : vector<2x8x8xf32>
    "tpu.trace_start"() <{level = 10 : i32, message = "bqk,bkd->bqd"}> : () -> ()
    %cst_88 = arith.constant dense<0.000000e+00> : vector<2x8x16xf32>
    %374 = tpu.matmul %373, %362, %cst_88 {dimension_numbers = #tpu.dot_dimension_numbers<[2], [1], [1], [2], [0, 0, 0, 1, 1, 2], [0], [0]>} : vector<2x8x8xf32>, vector<2x8x16xf32>, vector<2x8x16xf32> -> vector<2x8x16xf32>
    "tpu.trace_stop"() : () -> ()
    %375 = vector.extract_strided_slice %306 {offsets = [0, 0, 64], sizes = [2, 8, 16], strides = [1, 1, 1]} : vector<2x8x384xf32> to vector<2x8x16xf32>
    %cst_89 = arith.constant 2.500000e-01 : f32
    %376 = vector.broadcast %cst_89 : f32 to vector<2x8x16xf32>
    %377 = arith.mulf %375, %376 : vector<2x8x16xf32>
    %378 = vector.extract_strided_slice %306 {offsets = [0, 0, 192], sizes = [2, 8, 16], strides = [1, 1, 1]} : vector<2x8x384xf32> to vector<2x8x16xf32>
    %379 = vector.extract_strided_slice %306 {offsets = [0, 0, 320], sizes = [2, 8, 16], strides = [1, 1, 1]} : vector<2x8x384xf32> to vector<2x8x16xf32>
    "tpu.trace_start"() <{level = 10 : i32, message = "bqd,bkd->bqk"}> : () -> ()
    %cst_90 = arith.constant dense<0.000000e+00> : vector<2x8x8xf32>
    %380 = tpu.matmul %377, %378, %cst_90 {dimension_numbers = #tpu.dot_dimension_numbers<[2], [2], [1], [1], [0, 0, 0, 1, 1, 1], [0], [0]>} : vector<2x8x16xf32>, vector<2x8x16xf32>, vector<2x8x8xf32> -> vector<2x8x8xf32>
    "tpu.trace_stop"() : () -> ()
    %cst_91 = arith.constant dense<0xFF800000> : vector<2x8xf32>
    %381 = vector.multi_reduction <maximumf>, %380, %cst_91 [2] : vector<2x8x8xf32> to vector<2x8xf32>
    %382 = vector.shape_cast %381 : vector<2x8xf32> to vector<2x8x1xf32>
    %383 = vector.broadcast %382 : vector<2x8x1xf32> to vector<2x8x8xf32>
    %384 = arith.subf %380, %383 : vector<2x8x8xf32>
    %385 = math.exp %384 : vector<2x8x8xf32>
    %cst_92 = arith.constant dense<0.000000e+00> : vector<2x8xf32>
    %386 = vector.multi_reduction <add>, %385, %cst_92 [2] : vector<2x8x8xf32> to vector<2x8xf32>
    %387 = vector.shape_cast %386 : vector<2x8xf32> to vector<2x8x1xf32>
    %388 = tpu.reciprocal %387 {approx = true} : vector<2x8x1xf32> -> vector<2x8x1xf32>
    %389 = vector.broadcast %388 : vector<2x8x1xf32> to vector<2x8x8xf32>
    %390 = arith.mulf %385, %389 : vector<2x8x8xf32>
    "tpu.trace_start"() <{level = 10 : i32, message = "bqk,bkd->bqd"}> : () -> ()
    %cst_93 = arith.constant dense<0.000000e+00> : vector<2x8x16xf32>
    %391 = tpu.matmul %390, %379, %cst_93 {dimension_numbers = #tpu.dot_dimension_numbers<[2], [1], [1], [2], [0, 0, 0, 1, 1, 2], [0], [0]>} : vector<2x8x8xf32>, vector<2x8x16xf32>, vector<2x8x16xf32> -> vector<2x8x16xf32>
    "tpu.trace_stop"() : () -> ()
    %392 = vector.extract_strided_slice %306 {offsets = [0, 0, 80], sizes = [2, 8, 16], strides = [1, 1, 1]} : vector<2x8x384xf32> to vector<2x8x16xf32>
    %cst_94 = arith.constant 2.500000e-01 : f32
    %393 = vector.broadcast %cst_94 : f32 to vector<2x8x16xf32>
    %394 = arith.mulf %392, %393 : vector<2x8x16xf32>
    %395 = vector.extract_strided_slice %306 {offsets = [0, 0, 208], sizes = [2, 8, 16], strides = [1, 1, 1]} : vector<2x8x384xf32> to vector<2x8x16xf32>
    %396 = vector.extract_strided_slice %306 {offsets = [0, 0, 336], sizes = [2, 8, 16], strides = [1, 1, 1]} : vector<2x8x384xf32> to vector<2x8x16xf32>
    "tpu.trace_start"() <{level = 10 : i32, message = "bqd,bkd->bqk"}> : () -> ()
    %cst_95 = arith.constant dense<0.000000e+00> : vector<2x8x8xf32>
    %397 = tpu.matmul %394, %395, %cst_95 {dimension_numbers = #tpu.dot_dimension_numbers<[2], [2], [1], [1], [0, 0, 0, 1, 1, 1], [0], [0]>} : vector<2x8x16xf32>, vector<2x8x16xf32>, vector<2x8x8xf32> -> vector<2x8x8xf32>
    "tpu.trace_stop"() : () -> ()
    %cst_96 = arith.constant dense<0xFF800000> : vector<2x8xf32>
    %398 = vector.multi_reduction <maximumf>, %397, %cst_96 [2] : vector<2x8x8xf32> to vector<2x8xf32>
    %399 = vector.shape_cast %398 : vector<2x8xf32> to vector<2x8x1xf32>
    %400 = vector.broadcast %399 : vector<2x8x1xf32> to vector<2x8x8xf32>
    %401 = arith.subf %397, %400 : vector<2x8x8xf32>
    %402 = math.exp %401 : vector<2x8x8xf32>
    %cst_97 = arith.constant dense<0.000000e+00> : vector<2x8xf32>
    %403 = vector.multi_reduction <add>, %402, %cst_97 [2] : vector<2x8x8xf32> to vector<2x8xf32>
    %404 = vector.shape_cast %403 : vector<2x8xf32> to vector<2x8x1xf32>
    %405 = tpu.reciprocal %404 {approx = true} : vector<2x8x1xf32> -> vector<2x8x1xf32>
    %406 = vector.broadcast %405 : vector<2x8x1xf32> to vector<2x8x8xf32>
    %407 = arith.mulf %402, %406 : vector<2x8x8xf32>
    "tpu.trace_start"() <{level = 10 : i32, message = "bqk,bkd->bqd"}> : () -> ()
    %cst_98 = arith.constant dense<0.000000e+00> : vector<2x8x16xf32>
    %408 = tpu.matmul %407, %396, %cst_98 {dimension_numbers = #tpu.dot_dimension_numbers<[2], [1], [1], [2], [0, 0, 0, 1, 1, 2], [0], [0]>} : vector<2x8x8xf32>, vector<2x8x16xf32>, vector<2x8x16xf32> -> vector<2x8x16xf32>
    "tpu.trace_stop"() : () -> ()
    %409 = vector.extract_strided_slice %306 {offsets = [0, 0, 96], sizes = [2, 8, 16], strides = [1, 1, 1]} : vector<2x8x384xf32> to vector<2x8x16xf32>
    %cst_99 = arith.constant 2.500000e-01 : f32
    %410 = vector.broadcast %cst_99 : f32 to vector<2x8x16xf32>
    %411 = arith.mulf %409, %410 : vector<2x8x16xf32>
    %412 = vector.extract_strided_slice %306 {offsets = [0, 0, 224], sizes = [2, 8, 16], strides = [1, 1, 1]} : vector<2x8x384xf32> to vector<2x8x16xf32>
    %413 = vector.extract_strided_slice %306 {offsets = [0, 0, 352], sizes = [2, 8, 16], strides = [1, 1, 1]} : vector<2x8x384xf32> to vector<2x8x16xf32>
    "tpu.trace_start"() <{level = 10 : i32, message = "bqd,bkd->bqk"}> : () -> ()
    %cst_100 = arith.constant dense<0.000000e+00> : vector<2x8x8xf32>
    %414 = tpu.matmul %411, %412, %cst_100 {dimension_numbers = #tpu.dot_dimension_numbers<[2], [2], [1], [1], [0, 0, 0, 1, 1, 1], [0], [0]>} : vector<2x8x16xf32>, vector<2x8x16xf32>, vector<2x8x8xf32> -> vector<2x8x8xf32>
    "tpu.trace_stop"() : () -> ()
    %cst_101 = arith.constant dense<0xFF800000> : vector<2x8xf32>
    %415 = vector.multi_reduction <maximumf>, %414, %cst_101 [2] : vector<2x8x8xf32> to vector<2x8xf32>
    %416 = vector.shape_cast %415 : vector<2x8xf32> to vector<2x8x1xf32>
    %417 = vector.broadcast %416 : vector<2x8x1xf32> to vector<2x8x8xf32>
    %418 = arith.subf %414, %417 : vector<2x8x8xf32>
    %419 = math.exp %418 : vector<2x8x8xf32>
    %cst_102 = arith.constant dense<0.000000e+00> : vector<2x8xf32>
    %420 = vector.multi_reduction <add>, %419, %cst_102 [2] : vector<2x8x8xf32> to vector<2x8xf32>
    %421 = vector.shape_cast %420 : vector<2x8xf32> to vector<2x8x1xf32>
    %422 = tpu.reciprocal %421 {approx = true} : vector<2x8x1xf32> -> vector<2x8x1xf32>
    %423 = vector.broadcast %422 : vector<2x8x1xf32> to vector<2x8x8xf32>
    %424 = arith.mulf %419, %423 : vector<2x8x8xf32>
    "tpu.trace_start"() <{level = 10 : i32, message = "bqk,bkd->bqd"}> : () -> ()
    %cst_103 = arith.constant dense<0.000000e+00> : vector<2x8x16xf32>
    %425 = tpu.matmul %424, %413, %cst_103 {dimension_numbers = #tpu.dot_dimension_numbers<[2], [1], [1], [2], [0, 0, 0, 1, 1, 2], [0], [0]>} : vector<2x8x8xf32>, vector<2x8x16xf32>, vector<2x8x16xf32> -> vector<2x8x16xf32>
    "tpu.trace_stop"() : () -> ()
    %426 = vector.extract_strided_slice %306 {offsets = [0, 0, 112], sizes = [2, 8, 16], strides = [1, 1, 1]} : vector<2x8x384xf32> to vector<2x8x16xf32>
    %cst_104 = arith.constant 2.500000e-01 : f32
    %427 = vector.broadcast %cst_104 : f32 to vector<2x8x16xf32>
    %428 = arith.mulf %426, %427 : vector<2x8x16xf32>
    %429 = vector.extract_strided_slice %306 {offsets = [0, 0, 240], sizes = [2, 8, 16], strides = [1, 1, 1]} : vector<2x8x384xf32> to vector<2x8x16xf32>
    %430 = vector.extract_strided_slice %306 {offsets = [0, 0, 368], sizes = [2, 8, 16], strides = [1, 1, 1]} : vector<2x8x384xf32> to vector<2x8x16xf32>
    "tpu.trace_start"() <{level = 10 : i32, message = "bqd,bkd->bqk"}> : () -> ()
    %cst_105 = arith.constant dense<0.000000e+00> : vector<2x8x8xf32>
    %431 = tpu.matmul %428, %429, %cst_105 {dimension_numbers = #tpu.dot_dimension_numbers<[2], [2], [1], [1], [0, 0, 0, 1, 1, 1], [0], [0]>} : vector<2x8x16xf32>, vector<2x8x16xf32>, vector<2x8x8xf32> -> vector<2x8x8xf32>
    "tpu.trace_stop"() : () -> ()
    %cst_106 = arith.constant dense<0xFF800000> : vector<2x8xf32>
    %432 = vector.multi_reduction <maximumf>, %431, %cst_106 [2] : vector<2x8x8xf32> to vector<2x8xf32>
    %433 = vector.shape_cast %432 : vector<2x8xf32> to vector<2x8x1xf32>
    %434 = vector.broadcast %433 : vector<2x8x1xf32> to vector<2x8x8xf32>
    %435 = arith.subf %431, %434 : vector<2x8x8xf32>
    %436 = math.exp %435 : vector<2x8x8xf32>
    %cst_107 = arith.constant dense<0.000000e+00> : vector<2x8xf32>
    %437 = vector.multi_reduction <add>, %436, %cst_107 [2] : vector<2x8x8xf32> to vector<2x8xf32>
    %438 = vector.shape_cast %437 : vector<2x8xf32> to vector<2x8x1xf32>
    %439 = tpu.reciprocal %438 {approx = true} : vector<2x8x1xf32> -> vector<2x8x1xf32>
    %440 = vector.broadcast %439 : vector<2x8x1xf32> to vector<2x8x8xf32>
    %441 = arith.mulf %436, %440 : vector<2x8x8xf32>
    "tpu.trace_start"() <{level = 10 : i32, message = "bqk,bkd->bqd"}> : () -> ()
    %cst_108 = arith.constant dense<0.000000e+00> : vector<2x8x16xf32>
    %442 = tpu.matmul %441, %430, %cst_108 {dimension_numbers = #tpu.dot_dimension_numbers<[2], [1], [1], [2], [0, 0, 0, 1, 1, 2], [0], [0]>} : vector<2x8x8xf32>, vector<2x8x16xf32>, vector<2x8x16xf32> -> vector<2x8x16xf32>
    "tpu.trace_stop"() : () -> ()
    %443 = tpu.concatenate %323, %340, %357, %374, %391, %408, %425, %442 in 2 : vector<2x8x16xf32>, vector<2x8x16xf32>, vector<2x8x16xf32>, vector<2x8x16xf32>, vector<2x8x16xf32>, vector<2x8x16xf32>, vector<2x8x16xf32>, vector<2x8x16xf32> -> vector<2x8x128xf32>
    %444 = vector.shape_cast %443 : vector<2x8x128xf32> to vector<16x128xf32>
    %cst_109 = arith.constant dense<0.000000e+00> : vector<16x128xf32>
    %445 = tpu.matmul %444, %19, %cst_109 {dimension_numbers = #tpu.dot_dimension_numbers<[1], [0], [0], [1], [0, 0, 1, 1], [], []>} : vector<16x128xf32>, vector<128x128xf32>, vector<16x128xf32> -> vector<16x128xf32>
    %446 = vector.broadcast %21 : vector<1x128xf32> to vector<16x128xf32>
    %447 = arith.addf %445, %446 : vector<16x128xf32>
    %448 = arith.addf %302, %447 : vector<16x128xf32>
    %cst_110 = arith.constant dense<0.000000e+00> : vector<16xf32>
    %449 = vector.multi_reduction <add>, %448, %cst_110 [1] : vector<16x128xf32> to vector<16xf32>
    %450 = vector.shape_cast %449 : vector<16xf32> to vector<16x1xf32>
    %cst_111 = arith.constant 1.280000e+02 : f32
    %451 = vector.broadcast %cst_111 : f32 to vector<16x1xf32>
    %452 = arith.divf %450, %451 : vector<16x1xf32>
    %453 = vector.broadcast %452 : vector<16x1xf32> to vector<16x128xf32>
    %454 = arith.subf %448, %453 : vector<16x128xf32>
    %455 = arith.mulf %454, %454 : vector<16x128xf32>
    %cst_112 = arith.constant dense<0.000000e+00> : vector<16xf32>
    %456 = vector.multi_reduction <add>, %455, %cst_112 [1] : vector<16x128xf32> to vector<16xf32>
    %457 = vector.shape_cast %456 : vector<16xf32> to vector<16x1xf32>
    %cst_113 = arith.constant 1.280000e+02 : f32
    %458 = vector.broadcast %cst_113 : f32 to vector<16x1xf32>
    %459 = arith.divf %457, %458 : vector<16x1xf32>
    %460 = vector.broadcast %452 : vector<16x1xf32> to vector<16x128xf32>
    %461 = arith.subf %448, %460 : vector<16x128xf32>
    %cst_114 = arith.constant 9.99999996E-13 : f32
    %462 = vector.broadcast %cst_114 : f32 to vector<16x1xf32>
    %463 = arith.addf %459, %462 : vector<16x1xf32>
    %464 = math.rsqrt %463 : vector<16x1xf32>
    %465 = vector.broadcast %464 : vector<16x1xf32> to vector<16x128xf32>
    %466 = arith.mulf %461, %465 : vector<16x128xf32>
    %467 = vector.broadcast %23 : vector<1x128xf32> to vector<16x128xf32>
    %468 = arith.mulf %467, %466 : vector<16x128xf32>
    %469 = vector.broadcast %25 : vector<1x128xf32> to vector<16x128xf32>
    %470 = arith.addf %468, %469 : vector<16x128xf32>
    %c1 = arith.constant 1 : index
    %c0_115 = arith.constant 0 : index
    %c0_116 = arith.constant 0 : index
    %471 = vector.load %arg1[%c1, %c0_115, %c0_116] : memref<3x128x384xf32, #tpu.memory_space<vmem>>, vector<1x128x384xf32>
    %472 = vector.shape_cast %471 : vector<1x128x384xf32> to vector<128x384xf32>
    %c1_117 = arith.constant 1 : index
    %c0_118 = arith.constant 0 : index
    %c0_119 = arith.constant 0 : index
    %473 = vector.load %arg2[%c1_117, %c0_118, %c0_119] : memref<3x128x384xf32, #tpu.memory_space<vmem>>, vector<1x128x384xf32>
    %474 = vector.shape_cast %473 : vector<1x128x384xf32> to vector<128x384xf32>
    %c1_120 = arith.constant 1 : index
    %c0_121 = arith.constant 0 : index
    %c0_122 = arith.constant 0 : index
    %475 = vector.load %arg3[%c1_120, %c0_121, %c0_122] : memref<3x1x384xf32, #tpu.memory_space<vmem>>, vector<1x1x384xf32>
    %476 = vector.shape_cast %475 : vector<1x1x384xf32> to vector<1x384xf32>
    %c1_123 = arith.constant 1 : index
    %c0_124 = arith.constant 0 : index
    %c0_125 = arith.constant 0 : index
    %477 = vector.load %arg4[%c1_123, %c0_124, %c0_125] : memref<3x1x384xf32, #tpu.memory_space<vmem>>, vector<1x1x384xf32>
    %478 = vector.shape_cast %477 : vector<1x1x384xf32> to vector<1x384xf32>
    %c1_126 = arith.constant 1 : index
    %c0_127 = arith.constant 0 : index
    %c0_128 = arith.constant 0 : index
    %479 = vector.load %arg5[%c1_126, %c0_127, %c0_128] : memref<3x1x128xf32, #tpu.memory_space<vmem>>, vector<1x1x128xf32>
    %480 = vector.shape_cast %479 : vector<1x1x128xf32> to vector<1x128xf32>
    %c1_129 = arith.constant 1 : index
    %c0_130 = arith.constant 0 : index
    %c0_131 = arith.constant 0 : index
    %481 = vector.load %arg6[%c1_129, %c0_130, %c0_131] : memref<3x1x128xf32, #tpu.memory_space<vmem>>, vector<1x1x128xf32>
    %482 = vector.shape_cast %481 : vector<1x1x128xf32> to vector<1x128xf32>
    %c1_132 = arith.constant 1 : index
    %c0_133 = arith.constant 0 : index
    %c0_134 = arith.constant 0 : index
    %483 = vector.load %arg7[%c1_132, %c0_133, %c0_134] : memref<3x128x384xf32, #tpu.memory_space<vmem>>, vector<1x128x384xf32>
    %484 = vector.shape_cast %483 : vector<1x128x384xf32> to vector<128x384xf32>
    %c1_135 = arith.constant 1 : index
    %c0_136 = arith.constant 0 : index
    %c0_137 = arith.constant 0 : index
    %485 = vector.load %arg8[%c1_135, %c0_136, %c0_137] : memref<3x1x384xf32, #tpu.memory_space<vmem>>, vector<1x1x384xf32>
    %486 = vector.shape_cast %485 : vector<1x1x384xf32> to vector<1x384xf32>
    %c1_138 = arith.constant 1 : index
    %c0_139 = arith.constant 0 : index
    %c0_140 = arith.constant 0 : index
    %487 = vector.load %arg9[%c1_138, %c0_139, %c0_140] : memref<3x128x128xf32, #tpu.memory_space<vmem>>, vector<1x128x128xf32>
    %488 = vector.shape_cast %487 : vector<1x128x128xf32> to vector<128x128xf32>
    %c1_141 = arith.constant 1 : index
    %c0_142 = arith.constant 0 : index
    %c0_143 = arith.constant 0 : index
    %489 = vector.load %arg10[%c1_141, %c0_142, %c0_143] : memref<3x1x128xf32, #tpu.memory_space<vmem>>, vector<1x1x128xf32>
    %490 = vector.shape_cast %489 : vector<1x1x128xf32> to vector<1x128xf32>
    %c1_144 = arith.constant 1 : index
    %c0_145 = arith.constant 0 : index
    %c0_146 = arith.constant 0 : index
    %491 = vector.load %arg11[%c1_144, %c0_145, %c0_146] : memref<3x1x128xf32, #tpu.memory_space<vmem>>, vector<1x1x128xf32>
    %492 = vector.shape_cast %491 : vector<1x1x128xf32> to vector<1x128xf32>
    %c1_147 = arith.constant 1 : index
    %c0_148 = arith.constant 0 : index
    %c0_149 = arith.constant 0 : index
    %493 = vector.load %arg12[%c1_147, %c0_148, %c0_149] : memref<3x1x128xf32, #tpu.memory_space<vmem>>, vector<1x1x128xf32>
    %494 = vector.shape_cast %493 : vector<1x1x128xf32> to vector<1x128xf32>
    %cst_150 = arith.constant dense<0.000000e+00> : vector<16x384xf32>
    %495 = tpu.matmul %470, %472, %cst_150 {dimension_numbers = #tpu.dot_dimension_numbers<[1], [0], [0], [1], [0, 0, 1, 1], [], []>} : vector<16x128xf32>, vector<128x384xf32>, vector<16x384xf32> -> vector<16x384xf32>
    %496 = vector.broadcast %476 : vector<1x384xf32> to vector<16x384xf32>
    %497 = arith.addf %495, %496 : vector<16x384xf32>
    %498 = vector.shape_cast %497 : vector<16x384xf32> to vector<2x8x384xf32>
    %cst_151 = arith.constant 0.000000e+00 : f32
    %499 = vector.broadcast %cst_151 : f32 to vector<2x128xf32>
    %500 = vector.extract_strided_slice %498 {offsets = [0, 0, 0], sizes = [2, 1, 384], strides = [1, 1, 1]} : vector<2x8x384xf32> to vector<2x1x384xf32>
    %501 = vector.shape_cast %500 : vector<2x1x384xf32> to vector<2x384xf32>
    %cst_152 = arith.constant dense<0.000000e+00> : vector<2x384xf32>
    %502 = tpu.matmul %499, %474, %cst_152 {dimension_numbers = #tpu.dot_dimension_numbers<[1], [0], [0], [1], [0, 0, 1, 1], [], []>} : vector<2x128xf32>, vector<128x384xf32>, vector<2x384xf32> -> vector<2x384xf32>
    %503 = vector.broadcast %478 : vector<1x384xf32> to vector<2x384xf32>
    %504 = arith.addf %502, %503 : vector<2x384xf32>
    %505 = vector.extract_strided_slice %501 {offsets = [0, 0], sizes = [2, 128], strides = [1, 1]} : vector<2x384xf32> to vector<2x128xf32>
    %506 = vector.extract_strided_slice %504 {offsets = [0, 0], sizes = [2, 128], strides = [1, 1]} : vector<2x384xf32> to vector<2x128xf32>
    %507 = arith.addf %505, %506 : vector<2x128xf32>
    %508 = arith.negf %507 : vector<2x128xf32>
    %509 = math.exp %508 : vector<2x128xf32>
    %cst_153 = arith.constant 1.000000e+00 : f32
    %510 = vector.broadcast %cst_153 : f32 to vector<2x128xf32>
    %511 = arith.addf %510, %509 : vector<2x128xf32>
    %512 = arith.divf %510, %511 : vector<2x128xf32>
    %513 = vector.extract_strided_slice %501 {offsets = [0, 128], sizes = [2, 128], strides = [1, 1]} : vector<2x384xf32> to vector<2x128xf32>
    %514 = vector.extract_strided_slice %504 {offsets = [0, 128], sizes = [2, 128], strides = [1, 1]} : vector<2x384xf32> to vector<2x128xf32>
    %515 = arith.addf %513, %514 : vector<2x128xf32>
    %516 = arith.negf %515 : vector<2x128xf32>
    %517 = math.exp %516 : vector<2x128xf32>
    %cst_154 = arith.constant 1.000000e+00 : f32
    %518 = vector.broadcast %cst_154 : f32 to vector<2x128xf32>
    %519 = arith.addf %518, %517 : vector<2x128xf32>
    %520 = arith.divf %518, %519 : vector<2x128xf32>
    %521 = vector.extract_strided_slice %501 {offsets = [0, 256], sizes = [2, 128], strides = [1, 1]} : vector<2x384xf32> to vector<2x128xf32>
    %522 = vector.extract_strided_slice %504 {offsets = [0, 256], sizes = [2, 128], strides = [1, 1]} : vector<2x384xf32> to vector<2x128xf32>
    %523 = arith.mulf %512, %522 : vector<2x128xf32>
    %524 = arith.addf %521, %523 : vector<2x128xf32>
    %525 = math.tanh %524 : vector<2x128xf32>
    %526 = arith.subf %499, %525 : vector<2x128xf32>
    %527 = arith.mulf %520, %526 : vector<2x128xf32>
    %528 = arith.addf %525, %527 : vector<2x128xf32>
    %529 = vector.extract_strided_slice %498 {offsets = [0, 1, 0], sizes = [2, 1, 384], strides = [1, 1, 1]} : vector<2x8x384xf32> to vector<2x1x384xf32>
    %530 = vector.shape_cast %529 : vector<2x1x384xf32> to vector<2x384xf32>
    %cst_155 = arith.constant dense<0.000000e+00> : vector<2x384xf32>
    %531 = tpu.matmul %528, %474, %cst_155 {dimension_numbers = #tpu.dot_dimension_numbers<[1], [0], [0], [1], [0, 0, 1, 1], [], []>} : vector<2x128xf32>, vector<128x384xf32>, vector<2x384xf32> -> vector<2x384xf32>
    %532 = vector.broadcast %478 : vector<1x384xf32> to vector<2x384xf32>
    %533 = arith.addf %531, %532 : vector<2x384xf32>
    %534 = vector.extract_strided_slice %530 {offsets = [0, 0], sizes = [2, 128], strides = [1, 1]} : vector<2x384xf32> to vector<2x128xf32>
    %535 = vector.extract_strided_slice %533 {offsets = [0, 0], sizes = [2, 128], strides = [1, 1]} : vector<2x384xf32> to vector<2x128xf32>
    %536 = arith.addf %534, %535 : vector<2x128xf32>
    %537 = arith.negf %536 : vector<2x128xf32>
    %538 = math.exp %537 : vector<2x128xf32>
    %cst_156 = arith.constant 1.000000e+00 : f32
    %539 = vector.broadcast %cst_156 : f32 to vector<2x128xf32>
    %540 = arith.addf %539, %538 : vector<2x128xf32>
    %541 = arith.divf %539, %540 : vector<2x128xf32>
    %542 = vector.extract_strided_slice %530 {offsets = [0, 128], sizes = [2, 128], strides = [1, 1]} : vector<2x384xf32> to vector<2x128xf32>
    %543 = vector.extract_strided_slice %533 {offsets = [0, 128], sizes = [2, 128], strides = [1, 1]} : vector<2x384xf32> to vector<2x128xf32>
    %544 = arith.addf %542, %543 : vector<2x128xf32>
    %545 = arith.negf %544 : vector<2x128xf32>
    %546 = math.exp %545 : vector<2x128xf32>
    %cst_157 = arith.constant 1.000000e+00 : f32
    %547 = vector.broadcast %cst_157 : f32 to vector<2x128xf32>
    %548 = arith.addf %547, %546 : vector<2x128xf32>
    %549 = arith.divf %547, %548 : vector<2x128xf32>
    %550 = vector.extract_strided_slice %530 {offsets = [0, 256], sizes = [2, 128], strides = [1, 1]} : vector<2x384xf32> to vector<2x128xf32>
    %551 = vector.extract_strided_slice %533 {offsets = [0, 256], sizes = [2, 128], strides = [1, 1]} : vector<2x384xf32> to vector<2x128xf32>
    %552 = arith.mulf %541, %551 : vector<2x128xf32>
    %553 = arith.addf %550, %552 : vector<2x128xf32>
    %554 = math.tanh %553 : vector<2x128xf32>
    %555 = arith.subf %528, %554 : vector<2x128xf32>
    %556 = arith.mulf %549, %555 : vector<2x128xf32>
    %557 = arith.addf %554, %556 : vector<2x128xf32>
    %558 = vector.extract_strided_slice %498 {offsets = [0, 2, 0], sizes = [2, 1, 384], strides = [1, 1, 1]} : vector<2x8x384xf32> to vector<2x1x384xf32>
    %559 = vector.shape_cast %558 : vector<2x1x384xf32> to vector<2x384xf32>
    %cst_158 = arith.constant dense<0.000000e+00> : vector<2x384xf32>
    %560 = tpu.matmul %557, %474, %cst_158 {dimension_numbers = #tpu.dot_dimension_numbers<[1], [0], [0], [1], [0, 0, 1, 1], [], []>} : vector<2x128xf32>, vector<128x384xf32>, vector<2x384xf32> -> vector<2x384xf32>
    %561 = vector.broadcast %478 : vector<1x384xf32> to vector<2x384xf32>
    %562 = arith.addf %560, %561 : vector<2x384xf32>
    %563 = vector.extract_strided_slice %559 {offsets = [0, 0], sizes = [2, 128], strides = [1, 1]} : vector<2x384xf32> to vector<2x128xf32>
    %564 = vector.extract_strided_slice %562 {offsets = [0, 0], sizes = [2, 128], strides = [1, 1]} : vector<2x384xf32> to vector<2x128xf32>
    %565 = arith.addf %563, %564 : vector<2x128xf32>
    %566 = arith.negf %565 : vector<2x128xf32>
    %567 = math.exp %566 : vector<2x128xf32>
    %cst_159 = arith.constant 1.000000e+00 : f32
    %568 = vector.broadcast %cst_159 : f32 to vector<2x128xf32>
    %569 = arith.addf %568, %567 : vector<2x128xf32>
    %570 = arith.divf %568, %569 : vector<2x128xf32>
    %571 = vector.extract_strided_slice %559 {offsets = [0, 128], sizes = [2, 128], strides = [1, 1]} : vector<2x384xf32> to vector<2x128xf32>
    %572 = vector.extract_strided_slice %562 {offsets = [0, 128], sizes = [2, 128], strides = [1, 1]} : vector<2x384xf32> to vector<2x128xf32>
    %573 = arith.addf %571, %572 : vector<2x128xf32>
    %574 = arith.negf %573 : vector<2x128xf32>
    %575 = math.exp %574 : vector<2x128xf32>
    %cst_160 = arith.constant 1.000000e+00 : f32
    %576 = vector.broadcast %cst_160 : f32 to vector<2x128xf32>
    %577 = arith.addf %576, %575 : vector<2x128xf32>
    %578 = arith.divf %576, %577 : vector<2x128xf32>
    %579 = vector.extract_strided_slice %559 {offsets = [0, 256], sizes = [2, 128], strides = [1, 1]} : vector<2x384xf32> to vector<2x128xf32>
    %580 = vector.extract_strided_slice %562 {offsets = [0, 256], sizes = [2, 128], strides = [1, 1]} : vector<2x384xf32> to vector<2x128xf32>
    %581 = arith.mulf %570, %580 : vector<2x128xf32>
    %582 = arith.addf %579, %581 : vector<2x128xf32>
    %583 = math.tanh %582 : vector<2x128xf32>
    %584 = arith.subf %557, %583 : vector<2x128xf32>
    %585 = arith.mulf %578, %584 : vector<2x128xf32>
    %586 = arith.addf %583, %585 : vector<2x128xf32>
    %587 = vector.extract_strided_slice %498 {offsets = [0, 3, 0], sizes = [2, 1, 384], strides = [1, 1, 1]} : vector<2x8x384xf32> to vector<2x1x384xf32>
    %588 = vector.shape_cast %587 : vector<2x1x384xf32> to vector<2x384xf32>
    %cst_161 = arith.constant dense<0.000000e+00> : vector<2x384xf32>
    %589 = tpu.matmul %586, %474, %cst_161 {dimension_numbers = #tpu.dot_dimension_numbers<[1], [0], [0], [1], [0, 0, 1, 1], [], []>} : vector<2x128xf32>, vector<128x384xf32>, vector<2x384xf32> -> vector<2x384xf32>
    %590 = vector.broadcast %478 : vector<1x384xf32> to vector<2x384xf32>
    %591 = arith.addf %589, %590 : vector<2x384xf32>
    %592 = vector.extract_strided_slice %588 {offsets = [0, 0], sizes = [2, 128], strides = [1, 1]} : vector<2x384xf32> to vector<2x128xf32>
    %593 = vector.extract_strided_slice %591 {offsets = [0, 0], sizes = [2, 128], strides = [1, 1]} : vector<2x384xf32> to vector<2x128xf32>
    %594 = arith.addf %592, %593 : vector<2x128xf32>
    %595 = arith.negf %594 : vector<2x128xf32>
    %596 = math.exp %595 : vector<2x128xf32>
    %cst_162 = arith.constant 1.000000e+00 : f32
    %597 = vector.broadcast %cst_162 : f32 to vector<2x128xf32>
    %598 = arith.addf %597, %596 : vector<2x128xf32>
    %599 = arith.divf %597, %598 : vector<2x128xf32>
    %600 = vector.extract_strided_slice %588 {offsets = [0, 128], sizes = [2, 128], strides = [1, 1]} : vector<2x384xf32> to vector<2x128xf32>
    %601 = vector.extract_strided_slice %591 {offsets = [0, 128], sizes = [2, 128], strides = [1, 1]} : vector<2x384xf32> to vector<2x128xf32>
    %602 = arith.addf %600, %601 : vector<2x128xf32>
    %603 = arith.negf %602 : vector<2x128xf32>
    %604 = math.exp %603 : vector<2x128xf32>
    %cst_163 = arith.constant 1.000000e+00 : f32
    %605 = vector.broadcast %cst_163 : f32 to vector<2x128xf32>
    %606 = arith.addf %605, %604 : vector<2x128xf32>
    %607 = arith.divf %605, %606 : vector<2x128xf32>
    %608 = vector.extract_strided_slice %588 {offsets = [0, 256], sizes = [2, 128], strides = [1, 1]} : vector<2x384xf32> to vector<2x128xf32>
    %609 = vector.extract_strided_slice %591 {offsets = [0, 256], sizes = [2, 128], strides = [1, 1]} : vector<2x384xf32> to vector<2x128xf32>
    %610 = arith.mulf %599, %609 : vector<2x128xf32>
    %611 = arith.addf %608, %610 : vector<2x128xf32>
    %612 = math.tanh %611 : vector<2x128xf32>
    %613 = arith.subf %586, %612 : vector<2x128xf32>
    %614 = arith.mulf %607, %613 : vector<2x128xf32>
    %615 = arith.addf %612, %614 : vector<2x128xf32>
    %616 = vector.extract_strided_slice %498 {offsets = [0, 4, 0], sizes = [2, 1, 384], strides = [1, 1, 1]} : vector<2x8x384xf32> to vector<2x1x384xf32>
    %617 = vector.shape_cast %616 : vector<2x1x384xf32> to vector<2x384xf32>
    %cst_164 = arith.constant dense<0.000000e+00> : vector<2x384xf32>
    %618 = tpu.matmul %615, %474, %cst_164 {dimension_numbers = #tpu.dot_dimension_numbers<[1], [0], [0], [1], [0, 0, 1, 1], [], []>} : vector<2x128xf32>, vector<128x384xf32>, vector<2x384xf32> -> vector<2x384xf32>
    %619 = vector.broadcast %478 : vector<1x384xf32> to vector<2x384xf32>
    %620 = arith.addf %618, %619 : vector<2x384xf32>
    %621 = vector.extract_strided_slice %617 {offsets = [0, 0], sizes = [2, 128], strides = [1, 1]} : vector<2x384xf32> to vector<2x128xf32>
    %622 = vector.extract_strided_slice %620 {offsets = [0, 0], sizes = [2, 128], strides = [1, 1]} : vector<2x384xf32> to vector<2x128xf32>
    %623 = arith.addf %621, %622 : vector<2x128xf32>
    %624 = arith.negf %623 : vector<2x128xf32>
    %625 = math.exp %624 : vector<2x128xf32>
    %cst_165 = arith.constant 1.000000e+00 : f32
    %626 = vector.broadcast %cst_165 : f32 to vector<2x128xf32>
    %627 = arith.addf %626, %625 : vector<2x128xf32>
    %628 = arith.divf %626, %627 : vector<2x128xf32>
    %629 = vector.extract_strided_slice %617 {offsets = [0, 128], sizes = [2, 128], strides = [1, 1]} : vector<2x384xf32> to vector<2x128xf32>
    %630 = vector.extract_strided_slice %620 {offsets = [0, 128], sizes = [2, 128], strides = [1, 1]} : vector<2x384xf32> to vector<2x128xf32>
    %631 = arith.addf %629, %630 : vector<2x128xf32>
    %632 = arith.negf %631 : vector<2x128xf32>
    %633 = math.exp %632 : vector<2x128xf32>
    %cst_166 = arith.constant 1.000000e+00 : f32
    %634 = vector.broadcast %cst_166 : f32 to vector<2x128xf32>
    %635 = arith.addf %634, %633 : vector<2x128xf32>
    %636 = arith.divf %634, %635 : vector<2x128xf32>
    %637 = vector.extract_strided_slice %617 {offsets = [0, 256], sizes = [2, 128], strides = [1, 1]} : vector<2x384xf32> to vector<2x128xf32>
    %638 = vector.extract_strided_slice %620 {offsets = [0, 256], sizes = [2, 128], strides = [1, 1]} : vector<2x384xf32> to vector<2x128xf32>
    %639 = arith.mulf %628, %638 : vector<2x128xf32>
    %640 = arith.addf %637, %639 : vector<2x128xf32>
    %641 = math.tanh %640 : vector<2x128xf32>
    %642 = arith.subf %615, %641 : vector<2x128xf32>
    %643 = arith.mulf %636, %642 : vector<2x128xf32>
    %644 = arith.addf %641, %643 : vector<2x128xf32>
    %645 = vector.extract_strided_slice %498 {offsets = [0, 5, 0], sizes = [2, 1, 384], strides = [1, 1, 1]} : vector<2x8x384xf32> to vector<2x1x384xf32>
    %646 = vector.shape_cast %645 : vector<2x1x384xf32> to vector<2x384xf32>
    %cst_167 = arith.constant dense<0.000000e+00> : vector<2x384xf32>
    %647 = tpu.matmul %644, %474, %cst_167 {dimension_numbers = #tpu.dot_dimension_numbers<[1], [0], [0], [1], [0, 0, 1, 1], [], []>} : vector<2x128xf32>, vector<128x384xf32>, vector<2x384xf32> -> vector<2x384xf32>
    %648 = vector.broadcast %478 : vector<1x384xf32> to vector<2x384xf32>
    %649 = arith.addf %647, %648 : vector<2x384xf32>
    %650 = vector.extract_strided_slice %646 {offsets = [0, 0], sizes = [2, 128], strides = [1, 1]} : vector<2x384xf32> to vector<2x128xf32>
    %651 = vector.extract_strided_slice %649 {offsets = [0, 0], sizes = [2, 128], strides = [1, 1]} : vector<2x384xf32> to vector<2x128xf32>
    %652 = arith.addf %650, %651 : vector<2x128xf32>
    %653 = arith.negf %652 : vector<2x128xf32>
    %654 = math.exp %653 : vector<2x128xf32>
    %cst_168 = arith.constant 1.000000e+00 : f32
    %655 = vector.broadcast %cst_168 : f32 to vector<2x128xf32>
    %656 = arith.addf %655, %654 : vector<2x128xf32>
    %657 = arith.divf %655, %656 : vector<2x128xf32>
    %658 = vector.extract_strided_slice %646 {offsets = [0, 128], sizes = [2, 128], strides = [1, 1]} : vector<2x384xf32> to vector<2x128xf32>
    %659 = vector.extract_strided_slice %649 {offsets = [0, 128], sizes = [2, 128], strides = [1, 1]} : vector<2x384xf32> to vector<2x128xf32>
    %660 = arith.addf %658, %659 : vector<2x128xf32>
    %661 = arith.negf %660 : vector<2x128xf32>
    %662 = math.exp %661 : vector<2x128xf32>
    %cst_169 = arith.constant 1.000000e+00 : f32
    %663 = vector.broadcast %cst_169 : f32 to vector<2x128xf32>
    %664 = arith.addf %663, %662 : vector<2x128xf32>
    %665 = arith.divf %663, %664 : vector<2x128xf32>
    %666 = vector.extract_strided_slice %646 {offsets = [0, 256], sizes = [2, 128], strides = [1, 1]} : vector<2x384xf32> to vector<2x128xf32>
    %667 = vector.extract_strided_slice %649 {offsets = [0, 256], sizes = [2, 128], strides = [1, 1]} : vector<2x384xf32> to vector<2x128xf32>
    %668 = arith.mulf %657, %667 : vector<2x128xf32>
    %669 = arith.addf %666, %668 : vector<2x128xf32>
    %670 = math.tanh %669 : vector<2x128xf32>
    %671 = arith.subf %644, %670 : vector<2x128xf32>
    %672 = arith.mulf %665, %671 : vector<2x128xf32>
    %673 = arith.addf %670, %672 : vector<2x128xf32>
    %674 = vector.extract_strided_slice %498 {offsets = [0, 6, 0], sizes = [2, 1, 384], strides = [1, 1, 1]} : vector<2x8x384xf32> to vector<2x1x384xf32>
    %675 = vector.shape_cast %674 : vector<2x1x384xf32> to vector<2x384xf32>
    %cst_170 = arith.constant dense<0.000000e+00> : vector<2x384xf32>
    %676 = tpu.matmul %673, %474, %cst_170 {dimension_numbers = #tpu.dot_dimension_numbers<[1], [0], [0], [1], [0, 0, 1, 1], [], []>} : vector<2x128xf32>, vector<128x384xf32>, vector<2x384xf32> -> vector<2x384xf32>
    %677 = vector.broadcast %478 : vector<1x384xf32> to vector<2x384xf32>
    %678 = arith.addf %676, %677 : vector<2x384xf32>
    %679 = vector.extract_strided_slice %675 {offsets = [0, 0], sizes = [2, 128], strides = [1, 1]} : vector<2x384xf32> to vector<2x128xf32>
    %680 = vector.extract_strided_slice %678 {offsets = [0, 0], sizes = [2, 128], strides = [1, 1]} : vector<2x384xf32> to vector<2x128xf32>
    %681 = arith.addf %679, %680 : vector<2x128xf32>
    %682 = arith.negf %681 : vector<2x128xf32>
    %683 = math.exp %682 : vector<2x128xf32>
    %cst_171 = arith.constant 1.000000e+00 : f32
    %684 = vector.broadcast %cst_171 : f32 to vector<2x128xf32>
    %685 = arith.addf %684, %683 : vector<2x128xf32>
    %686 = arith.divf %684, %685 : vector<2x128xf32>
    %687 = vector.extract_strided_slice %675 {offsets = [0, 128], sizes = [2, 128], strides = [1, 1]} : vector<2x384xf32> to vector<2x128xf32>
    %688 = vector.extract_strided_slice %678 {offsets = [0, 128], sizes = [2, 128], strides = [1, 1]} : vector<2x384xf32> to vector<2x128xf32>
    %689 = arith.addf %687, %688 : vector<2x128xf32>
    %690 = arith.negf %689 : vector<2x128xf32>
    %691 = math.exp %690 : vector<2x128xf32>
    %cst_172 = arith.constant 1.000000e+00 : f32
    %692 = vector.broadcast %cst_172 : f32 to vector<2x128xf32>
    %693 = arith.addf %692, %691 : vector<2x128xf32>
    %694 = arith.divf %692, %693 : vector<2x128xf32>
    %695 = vector.extract_strided_slice %675 {offsets = [0, 256], sizes = [2, 128], strides = [1, 1]} : vector<2x384xf32> to vector<2x128xf32>
    %696 = vector.extract_strided_slice %678 {offsets = [0, 256], sizes = [2, 128], strides = [1, 1]} : vector<2x384xf32> to vector<2x128xf32>
    %697 = arith.mulf %686, %696 : vector<2x128xf32>
    %698 = arith.addf %695, %697 : vector<2x128xf32>
    %699 = math.tanh %698 : vector<2x128xf32>
    %700 = arith.subf %673, %699 : vector<2x128xf32>
    %701 = arith.mulf %694, %700 : vector<2x128xf32>
    %702 = arith.addf %699, %701 : vector<2x128xf32>
    %703 = vector.extract_strided_slice %498 {offsets = [0, 7, 0], sizes = [2, 1, 384], strides = [1, 1, 1]} : vector<2x8x384xf32> to vector<2x1x384xf32>
    %704 = vector.shape_cast %703 : vector<2x1x384xf32> to vector<2x384xf32>
    %cst_173 = arith.constant dense<0.000000e+00> : vector<2x384xf32>
    %705 = tpu.matmul %702, %474, %cst_173 {dimension_numbers = #tpu.dot_dimension_numbers<[1], [0], [0], [1], [0, 0, 1, 1], [], []>} : vector<2x128xf32>, vector<128x384xf32>, vector<2x384xf32> -> vector<2x384xf32>
    %706 = vector.broadcast %478 : vector<1x384xf32> to vector<2x384xf32>
    %707 = arith.addf %705, %706 : vector<2x384xf32>
    %708 = vector.extract_strided_slice %704 {offsets = [0, 0], sizes = [2, 128], strides = [1, 1]} : vector<2x384xf32> to vector<2x128xf32>
    %709 = vector.extract_strided_slice %707 {offsets = [0, 0], sizes = [2, 128], strides = [1, 1]} : vector<2x384xf32> to vector<2x128xf32>
    %710 = arith.addf %708, %709 : vector<2x128xf32>
    %711 = arith.negf %710 : vector<2x128xf32>
    %712 = math.exp %711 : vector<2x128xf32>
    %cst_174 = arith.constant 1.000000e+00 : f32
    %713 = vector.broadcast %cst_174 : f32 to vector<2x128xf32>
    %714 = arith.addf %713, %712 : vector<2x128xf32>
    %715 = arith.divf %713, %714 : vector<2x128xf32>
    %716 = vector.extract_strided_slice %704 {offsets = [0, 128], sizes = [2, 128], strides = [1, 1]} : vector<2x384xf32> to vector<2x128xf32>
    %717 = vector.extract_strided_slice %707 {offsets = [0, 128], sizes = [2, 128], strides = [1, 1]} : vector<2x384xf32> to vector<2x128xf32>
    %718 = arith.addf %716, %717 : vector<2x128xf32>
    %719 = arith.negf %718 : vector<2x128xf32>
    %720 = math.exp %719 : vector<2x128xf32>
    %cst_175 = arith.constant 1.000000e+00 : f32
    %721 = vector.broadcast %cst_175 : f32 to vector<2x128xf32>
    %722 = arith.addf %721, %720 : vector<2x128xf32>
    %723 = arith.divf %721, %722 : vector<2x128xf32>
    %724 = vector.extract_strided_slice %704 {offsets = [0, 256], sizes = [2, 128], strides = [1, 1]} : vector<2x384xf32> to vector<2x128xf32>
    %725 = vector.extract_strided_slice %707 {offsets = [0, 256], sizes = [2, 128], strides = [1, 1]} : vector<2x384xf32> to vector<2x128xf32>
    %726 = arith.mulf %715, %725 : vector<2x128xf32>
    %727 = arith.addf %724, %726 : vector<2x128xf32>
    %728 = math.tanh %727 : vector<2x128xf32>
    %729 = arith.subf %702, %728 : vector<2x128xf32>
    %730 = arith.mulf %723, %729 : vector<2x128xf32>
    %731 = arith.addf %728, %730 : vector<2x128xf32>
    %732 = vector.extract_strided_slice %528 {offsets = [0, 0], sizes = [1, 128], strides = [1, 1]} : vector<2x128xf32> to vector<1x128xf32>
    %733 = vector.extract_strided_slice %557 {offsets = [0, 0], sizes = [1, 128], strides = [1, 1]} : vector<2x128xf32> to vector<1x128xf32>
    %734 = vector.extract_strided_slice %586 {offsets = [0, 0], sizes = [1, 128], strides = [1, 1]} : vector<2x128xf32> to vector<1x128xf32>
    %735 = vector.extract_strided_slice %615 {offsets = [0, 0], sizes = [1, 128], strides = [1, 1]} : vector<2x128xf32> to vector<1x128xf32>
    %736 = vector.extract_strided_slice %644 {offsets = [0, 0], sizes = [1, 128], strides = [1, 1]} : vector<2x128xf32> to vector<1x128xf32>
    %737 = vector.extract_strided_slice %673 {offsets = [0, 0], sizes = [1, 128], strides = [1, 1]} : vector<2x128xf32> to vector<1x128xf32>
    %738 = vector.extract_strided_slice %702 {offsets = [0, 0], sizes = [1, 128], strides = [1, 1]} : vector<2x128xf32> to vector<1x128xf32>
    %739 = vector.extract_strided_slice %731 {offsets = [0, 0], sizes = [1, 128], strides = [1, 1]} : vector<2x128xf32> to vector<1x128xf32>
    %740 = vector.extract_strided_slice %528 {offsets = [1, 0], sizes = [1, 128], strides = [1, 1]} : vector<2x128xf32> to vector<1x128xf32>
    %741 = vector.extract_strided_slice %557 {offsets = [1, 0], sizes = [1, 128], strides = [1, 1]} : vector<2x128xf32> to vector<1x128xf32>
    %742 = vector.extract_strided_slice %586 {offsets = [1, 0], sizes = [1, 128], strides = [1, 1]} : vector<2x128xf32> to vector<1x128xf32>
    %743 = vector.extract_strided_slice %615 {offsets = [1, 0], sizes = [1, 128], strides = [1, 1]} : vector<2x128xf32> to vector<1x128xf32>
    %744 = vector.extract_strided_slice %644 {offsets = [1, 0], sizes = [1, 128], strides = [1, 1]} : vector<2x128xf32> to vector<1x128xf32>
    %745 = vector.extract_strided_slice %673 {offsets = [1, 0], sizes = [1, 128], strides = [1, 1]} : vector<2x128xf32> to vector<1x128xf32>
    %746 = vector.extract_strided_slice %702 {offsets = [1, 0], sizes = [1, 128], strides = [1, 1]} : vector<2x128xf32> to vector<1x128xf32>
    %747 = vector.extract_strided_slice %731 {offsets = [1, 0], sizes = [1, 128], strides = [1, 1]} : vector<2x128xf32> to vector<1x128xf32>
    %748 = tpu.concatenate %732, %733, %734, %735, %736, %737, %738, %739, %740, %741, %742, %743, %744, %745, %746, %747 in 0 : vector<1x128xf32>, vector<1x128xf32>, vector<1x128xf32>, vector<1x128xf32>, vector<1x128xf32>, vector<1x128xf32>, vector<1x128xf32>, vector<1x128xf32>, vector<1x128xf32>, vector<1x128xf32>, vector<1x128xf32>, vector<1x128xf32>, vector<1x128xf32>, vector<1x128xf32>, vector<1x128xf32>, vector<1x128xf32> -> vector<16x128xf32>
    %749 = arith.addf %470, %748 : vector<16x128xf32>
    %cst_176 = arith.constant dense<0.000000e+00> : vector<16xf32>
    %750 = vector.multi_reduction <add>, %749, %cst_176 [1] : vector<16x128xf32> to vector<16xf32>
    %751 = vector.shape_cast %750 : vector<16xf32> to vector<16x1xf32>
    %cst_177 = arith.constant 1.280000e+02 : f32
    %752 = vector.broadcast %cst_177 : f32 to vector<16x1xf32>
    %753 = arith.divf %751, %752 : vector<16x1xf32>
    %754 = vector.broadcast %753 : vector<16x1xf32> to vector<16x128xf32>
    %755 = arith.subf %749, %754 : vector<16x128xf32>
    %756 = arith.mulf %755, %755 : vector<16x128xf32>
    %cst_178 = arith.constant dense<0.000000e+00> : vector<16xf32>
    %757 = vector.multi_reduction <add>, %756, %cst_178 [1] : vector<16x128xf32> to vector<16xf32>
    %758 = vector.shape_cast %757 : vector<16xf32> to vector<16x1xf32>
    %cst_179 = arith.constant 1.280000e+02 : f32
    %759 = vector.broadcast %cst_179 : f32 to vector<16x1xf32>
    %760 = arith.divf %758, %759 : vector<16x1xf32>
    %761 = vector.broadcast %753 : vector<16x1xf32> to vector<16x128xf32>
    %762 = arith.subf %749, %761 : vector<16x128xf32>
    %cst_180 = arith.constant 9.99999996E-13 : f32
    %763 = vector.broadcast %cst_180 : f32 to vector<16x1xf32>
    %764 = arith.addf %760, %763 : vector<16x1xf32>
    %765 = math.rsqrt %764 : vector<16x1xf32>
    %766 = vector.broadcast %765 : vector<16x1xf32> to vector<16x128xf32>
    %767 = arith.mulf %762, %766 : vector<16x128xf32>
    %768 = vector.broadcast %480 : vector<1x128xf32> to vector<16x128xf32>
    %769 = arith.mulf %768, %767 : vector<16x128xf32>
    %770 = vector.broadcast %482 : vector<1x128xf32> to vector<16x128xf32>
    %771 = arith.addf %769, %770 : vector<16x128xf32>
    %cst_181 = arith.constant dense<0.000000e+00> : vector<16x384xf32>
    %772 = tpu.matmul %771, %484, %cst_181 {dimension_numbers = #tpu.dot_dimension_numbers<[1], [0], [0], [1], [0, 0, 1, 1], [], []>} : vector<16x128xf32>, vector<128x384xf32>, vector<16x384xf32> -> vector<16x384xf32>
    %773 = vector.broadcast %486 : vector<1x384xf32> to vector<16x384xf32>
    %774 = arith.addf %772, %773 : vector<16x384xf32>
    %775 = vector.shape_cast %774 : vector<16x384xf32> to vector<2x8x384xf32>
    %776 = vector.extract_strided_slice %775 {offsets = [0, 0, 0], sizes = [2, 8, 16], strides = [1, 1, 1]} : vector<2x8x384xf32> to vector<2x8x16xf32>
    %cst_182 = arith.constant 2.500000e-01 : f32
    %777 = vector.broadcast %cst_182 : f32 to vector<2x8x16xf32>
    %778 = arith.mulf %776, %777 : vector<2x8x16xf32>
    %779 = vector.extract_strided_slice %775 {offsets = [0, 0, 128], sizes = [2, 8, 16], strides = [1, 1, 1]} : vector<2x8x384xf32> to vector<2x8x16xf32>
    %780 = vector.extract_strided_slice %775 {offsets = [0, 0, 256], sizes = [2, 8, 16], strides = [1, 1, 1]} : vector<2x8x384xf32> to vector<2x8x16xf32>
    "tpu.trace_start"() <{level = 10 : i32, message = "bqd,bkd->bqk"}> : () -> ()
    %cst_183 = arith.constant dense<0.000000e+00> : vector<2x8x8xf32>
    %781 = tpu.matmul %778, %779, %cst_183 {dimension_numbers = #tpu.dot_dimension_numbers<[2], [2], [1], [1], [0, 0, 0, 1, 1, 1], [0], [0]>} : vector<2x8x16xf32>, vector<2x8x16xf32>, vector<2x8x8xf32> -> vector<2x8x8xf32>
    "tpu.trace_stop"() : () -> ()
    %cst_184 = arith.constant dense<0xFF800000> : vector<2x8xf32>
    %782 = vector.multi_reduction <maximumf>, %781, %cst_184 [2] : vector<2x8x8xf32> to vector<2x8xf32>
    %783 = vector.shape_cast %782 : vector<2x8xf32> to vector<2x8x1xf32>
    %784 = vector.broadcast %783 : vector<2x8x1xf32> to vector<2x8x8xf32>
    %785 = arith.subf %781, %784 : vector<2x8x8xf32>
    %786 = math.exp %785 : vector<2x8x8xf32>
    %cst_185 = arith.constant dense<0.000000e+00> : vector<2x8xf32>
    %787 = vector.multi_reduction <add>, %786, %cst_185 [2] : vector<2x8x8xf32> to vector<2x8xf32>
    %788 = vector.shape_cast %787 : vector<2x8xf32> to vector<2x8x1xf32>
    %789 = tpu.reciprocal %788 {approx = true} : vector<2x8x1xf32> -> vector<2x8x1xf32>
    %790 = vector.broadcast %789 : vector<2x8x1xf32> to vector<2x8x8xf32>
    %791 = arith.mulf %786, %790 : vector<2x8x8xf32>
    "tpu.trace_start"() <{level = 10 : i32, message = "bqk,bkd->bqd"}> : () -> ()
    %cst_186 = arith.constant dense<0.000000e+00> : vector<2x8x16xf32>
    %792 = tpu.matmul %791, %780, %cst_186 {dimension_numbers = #tpu.dot_dimension_numbers<[2], [1], [1], [2], [0, 0, 0, 1, 1, 2], [0], [0]>} : vector<2x8x8xf32>, vector<2x8x16xf32>, vector<2x8x16xf32> -> vector<2x8x16xf32>
    "tpu.trace_stop"() : () -> ()
    %793 = vector.extract_strided_slice %775 {offsets = [0, 0, 16], sizes = [2, 8, 16], strides = [1, 1, 1]} : vector<2x8x384xf32> to vector<2x8x16xf32>
    %cst_187 = arith.constant 2.500000e-01 : f32
    %794 = vector.broadcast %cst_187 : f32 to vector<2x8x16xf32>
    %795 = arith.mulf %793, %794 : vector<2x8x16xf32>
    %796 = vector.extract_strided_slice %775 {offsets = [0, 0, 144], sizes = [2, 8, 16], strides = [1, 1, 1]} : vector<2x8x384xf32> to vector<2x8x16xf32>
    %797 = vector.extract_strided_slice %775 {offsets = [0, 0, 272], sizes = [2, 8, 16], strides = [1, 1, 1]} : vector<2x8x384xf32> to vector<2x8x16xf32>
    "tpu.trace_start"() <{level = 10 : i32, message = "bqd,bkd->bqk"}> : () -> ()
    %cst_188 = arith.constant dense<0.000000e+00> : vector<2x8x8xf32>
    %798 = tpu.matmul %795, %796, %cst_188 {dimension_numbers = #tpu.dot_dimension_numbers<[2], [2], [1], [1], [0, 0, 0, 1, 1, 1], [0], [0]>} : vector<2x8x16xf32>, vector<2x8x16xf32>, vector<2x8x8xf32> -> vector<2x8x8xf32>
    "tpu.trace_stop"() : () -> ()
    %cst_189 = arith.constant dense<0xFF800000> : vector<2x8xf32>
    %799 = vector.multi_reduction <maximumf>, %798, %cst_189 [2] : vector<2x8x8xf32> to vector<2x8xf32>
    %800 = vector.shape_cast %799 : vector<2x8xf32> to vector<2x8x1xf32>
    %801 = vector.broadcast %800 : vector<2x8x1xf32> to vector<2x8x8xf32>
    %802 = arith.subf %798, %801 : vector<2x8x8xf32>
    %803 = math.exp %802 : vector<2x8x8xf32>
    %cst_190 = arith.constant dense<0.000000e+00> : vector<2x8xf32>
    %804 = vector.multi_reduction <add>, %803, %cst_190 [2] : vector<2x8x8xf32> to vector<2x8xf32>
    %805 = vector.shape_cast %804 : vector<2x8xf32> to vector<2x8x1xf32>
    %806 = tpu.reciprocal %805 {approx = true} : vector<2x8x1xf32> -> vector<2x8x1xf32>
    %807 = vector.broadcast %806 : vector<2x8x1xf32> to vector<2x8x8xf32>
    %808 = arith.mulf %803, %807 : vector<2x8x8xf32>
    "tpu.trace_start"() <{level = 10 : i32, message = "bqk,bkd->bqd"}> : () -> ()
    %cst_191 = arith.constant dense<0.000000e+00> : vector<2x8x16xf32>
    %809 = tpu.matmul %808, %797, %cst_191 {dimension_numbers = #tpu.dot_dimension_numbers<[2], [1], [1], [2], [0, 0, 0, 1, 1, 2], [0], [0]>} : vector<2x8x8xf32>, vector<2x8x16xf32>, vector<2x8x16xf32> -> vector<2x8x16xf32>
    "tpu.trace_stop"() : () -> ()
    %810 = vector.extract_strided_slice %775 {offsets = [0, 0, 32], sizes = [2, 8, 16], strides = [1, 1, 1]} : vector<2x8x384xf32> to vector<2x8x16xf32>
    %cst_192 = arith.constant 2.500000e-01 : f32
    %811 = vector.broadcast %cst_192 : f32 to vector<2x8x16xf32>
    %812 = arith.mulf %810, %811 : vector<2x8x16xf32>
    %813 = vector.extract_strided_slice %775 {offsets = [0, 0, 160], sizes = [2, 8, 16], strides = [1, 1, 1]} : vector<2x8x384xf32> to vector<2x8x16xf32>
    %814 = vector.extract_strided_slice %775 {offsets = [0, 0, 288], sizes = [2, 8, 16], strides = [1, 1, 1]} : vector<2x8x384xf32> to vector<2x8x16xf32>
    "tpu.trace_start"() <{level = 10 : i32, message = "bqd,bkd->bqk"}> : () -> ()
    %cst_193 = arith.constant dense<0.000000e+00> : vector<2x8x8xf32>
    %815 = tpu.matmul %812, %813, %cst_193 {dimension_numbers = #tpu.dot_dimension_numbers<[2], [2], [1], [1], [0, 0, 0, 1, 1, 1], [0], [0]>} : vector<2x8x16xf32>, vector<2x8x16xf32>, vector<2x8x8xf32> -> vector<2x8x8xf32>
    "tpu.trace_stop"() : () -> ()
    %cst_194 = arith.constant dense<0xFF800000> : vector<2x8xf32>
    %816 = vector.multi_reduction <maximumf>, %815, %cst_194 [2] : vector<2x8x8xf32> to vector<2x8xf32>
    %817 = vector.shape_cast %816 : vector<2x8xf32> to vector<2x8x1xf32>
    %818 = vector.broadcast %817 : vector<2x8x1xf32> to vector<2x8x8xf32>
    %819 = arith.subf %815, %818 : vector<2x8x8xf32>
    %820 = math.exp %819 : vector<2x8x8xf32>
    %cst_195 = arith.constant dense<0.000000e+00> : vector<2x8xf32>
    %821 = vector.multi_reduction <add>, %820, %cst_195 [2] : vector<2x8x8xf32> to vector<2x8xf32>
    %822 = vector.shape_cast %821 : vector<2x8xf32> to vector<2x8x1xf32>
    %823 = tpu.reciprocal %822 {approx = true} : vector<2x8x1xf32> -> vector<2x8x1xf32>
    %824 = vector.broadcast %823 : vector<2x8x1xf32> to vector<2x8x8xf32>
    %825 = arith.mulf %820, %824 : vector<2x8x8xf32>
    "tpu.trace_start"() <{level = 10 : i32, message = "bqk,bkd->bqd"}> : () -> ()
    %cst_196 = arith.constant dense<0.000000e+00> : vector<2x8x16xf32>
    %826 = tpu.matmul %825, %814, %cst_196 {dimension_numbers = #tpu.dot_dimension_numbers<[2], [1], [1], [2], [0, 0, 0, 1, 1, 2], [0], [0]>} : vector<2x8x8xf32>, vector<2x8x16xf32>, vector<2x8x16xf32> -> vector<2x8x16xf32>
    "tpu.trace_stop"() : () -> ()
    %827 = vector.extract_strided_slice %775 {offsets = [0, 0, 48], sizes = [2, 8, 16], strides = [1, 1, 1]} : vector<2x8x384xf32> to vector<2x8x16xf32>
    %cst_197 = arith.constant 2.500000e-01 : f32
    %828 = vector.broadcast %cst_197 : f32 to vector<2x8x16xf32>
    %829 = arith.mulf %827, %828 : vector<2x8x16xf32>
    %830 = vector.extract_strided_slice %775 {offsets = [0, 0, 176], sizes = [2, 8, 16], strides = [1, 1, 1]} : vector<2x8x384xf32> to vector<2x8x16xf32>
    %831 = vector.extract_strided_slice %775 {offsets = [0, 0, 304], sizes = [2, 8, 16], strides = [1, 1, 1]} : vector<2x8x384xf32> to vector<2x8x16xf32>
    "tpu.trace_start"() <{level = 10 : i32, message = "bqd,bkd->bqk"}> : () -> ()
    %cst_198 = arith.constant dense<0.000000e+00> : vector<2x8x8xf32>
    %832 = tpu.matmul %829, %830, %cst_198 {dimension_numbers = #tpu.dot_dimension_numbers<[2], [2], [1], [1], [0, 0, 0, 1, 1, 1], [0], [0]>} : vector<2x8x16xf32>, vector<2x8x16xf32>, vector<2x8x8xf32> -> vector<2x8x8xf32>
    "tpu.trace_stop"() : () -> ()
    %cst_199 = arith.constant dense<0xFF800000> : vector<2x8xf32>
    %833 = vector.multi_reduction <maximumf>, %832, %cst_199 [2] : vector<2x8x8xf32> to vector<2x8xf32>
    %834 = vector.shape_cast %833 : vector<2x8xf32> to vector<2x8x1xf32>
    %835 = vector.broadcast %834 : vector<2x8x1xf32> to vector<2x8x8xf32>
    %836 = arith.subf %832, %835 : vector<2x8x8xf32>
    %837 = math.exp %836 : vector<2x8x8xf32>
    %cst_200 = arith.constant dense<0.000000e+00> : vector<2x8xf32>
    %838 = vector.multi_reduction <add>, %837, %cst_200 [2] : vector<2x8x8xf32> to vector<2x8xf32>
    %839 = vector.shape_cast %838 : vector<2x8xf32> to vector<2x8x1xf32>
    %840 = tpu.reciprocal %839 {approx = true} : vector<2x8x1xf32> -> vector<2x8x1xf32>
    %841 = vector.broadcast %840 : vector<2x8x1xf32> to vector<2x8x8xf32>
    %842 = arith.mulf %837, %841 : vector<2x8x8xf32>
    "tpu.trace_start"() <{level = 10 : i32, message = "bqk,bkd->bqd"}> : () -> ()
    %cst_201 = arith.constant dense<0.000000e+00> : vector<2x8x16xf32>
    %843 = tpu.matmul %842, %831, %cst_201 {dimension_numbers = #tpu.dot_dimension_numbers<[2], [1], [1], [2], [0, 0, 0, 1, 1, 2], [0], [0]>} : vector<2x8x8xf32>, vector<2x8x16xf32>, vector<2x8x16xf32> -> vector<2x8x16xf32>
    "tpu.trace_stop"() : () -> ()
    %844 = vector.extract_strided_slice %775 {offsets = [0, 0, 64], sizes = [2, 8, 16], strides = [1, 1, 1]} : vector<2x8x384xf32> to vector<2x8x16xf32>
    %cst_202 = arith.constant 2.500000e-01 : f32
    %845 = vector.broadcast %cst_202 : f32 to vector<2x8x16xf32>
    %846 = arith.mulf %844, %845 : vector<2x8x16xf32>
    %847 = vector.extract_strided_slice %775 {offsets = [0, 0, 192], sizes = [2, 8, 16], strides = [1, 1, 1]} : vector<2x8x384xf32> to vector<2x8x16xf32>
    %848 = vector.extract_strided_slice %775 {offsets = [0, 0, 320], sizes = [2, 8, 16], strides = [1, 1, 1]} : vector<2x8x384xf32> to vector<2x8x16xf32>
    "tpu.trace_start"() <{level = 10 : i32, message = "bqd,bkd->bqk"}> : () -> ()
    %cst_203 = arith.constant dense<0.000000e+00> : vector<2x8x8xf32>
    %849 = tpu.matmul %846, %847, %cst_203 {dimension_numbers = #tpu.dot_dimension_numbers<[2], [2], [1], [1], [0, 0, 0, 1, 1, 1], [0], [0]>} : vector<2x8x16xf32>, vector<2x8x16xf32>, vector<2x8x8xf32> -> vector<2x8x8xf32>
    "tpu.trace_stop"() : () -> ()
    %cst_204 = arith.constant dense<0xFF800000> : vector<2x8xf32>
    %850 = vector.multi_reduction <maximumf>, %849, %cst_204 [2] : vector<2x8x8xf32> to vector<2x8xf32>
    %851 = vector.shape_cast %850 : vector<2x8xf32> to vector<2x8x1xf32>
    %852 = vector.broadcast %851 : vector<2x8x1xf32> to vector<2x8x8xf32>
    %853 = arith.subf %849, %852 : vector<2x8x8xf32>
    %854 = math.exp %853 : vector<2x8x8xf32>
    %cst_205 = arith.constant dense<0.000000e+00> : vector<2x8xf32>
    %855 = vector.multi_reduction <add>, %854, %cst_205 [2] : vector<2x8x8xf32> to vector<2x8xf32>
    %856 = vector.shape_cast %855 : vector<2x8xf32> to vector<2x8x1xf32>
    %857 = tpu.reciprocal %856 {approx = true} : vector<2x8x1xf32> -> vector<2x8x1xf32>
    %858 = vector.broadcast %857 : vector<2x8x1xf32> to vector<2x8x8xf32>
    %859 = arith.mulf %854, %858 : vector<2x8x8xf32>
    "tpu.trace_start"() <{level = 10 : i32, message = "bqk,bkd->bqd"}> : () -> ()
    %cst_206 = arith.constant dense<0.000000e+00> : vector<2x8x16xf32>
    %860 = tpu.matmul %859, %848, %cst_206 {dimension_numbers = #tpu.dot_dimension_numbers<[2], [1], [1], [2], [0, 0, 0, 1, 1, 2], [0], [0]>} : vector<2x8x8xf32>, vector<2x8x16xf32>, vector<2x8x16xf32> -> vector<2x8x16xf32>
    "tpu.trace_stop"() : () -> ()
    %861 = vector.extract_strided_slice %775 {offsets = [0, 0, 80], sizes = [2, 8, 16], strides = [1, 1, 1]} : vector<2x8x384xf32> to vector<2x8x16xf32>
    %cst_207 = arith.constant 2.500000e-01 : f32
    %862 = vector.broadcast %cst_207 : f32 to vector<2x8x16xf32>
    %863 = arith.mulf %861, %862 : vector<2x8x16xf32>
    %864 = vector.extract_strided_slice %775 {offsets = [0, 0, 208], sizes = [2, 8, 16], strides = [1, 1, 1]} : vector<2x8x384xf32> to vector<2x8x16xf32>
    %865 = vector.extract_strided_slice %775 {offsets = [0, 0, 336], sizes = [2, 8, 16], strides = [1, 1, 1]} : vector<2x8x384xf32> to vector<2x8x16xf32>
    "tpu.trace_start"() <{level = 10 : i32, message = "bqd,bkd->bqk"}> : () -> ()
    %cst_208 = arith.constant dense<0.000000e+00> : vector<2x8x8xf32>
    %866 = tpu.matmul %863, %864, %cst_208 {dimension_numbers = #tpu.dot_dimension_numbers<[2], [2], [1], [1], [0, 0, 0, 1, 1, 1], [0], [0]>} : vector<2x8x16xf32>, vector<2x8x16xf32>, vector<2x8x8xf32> -> vector<2x8x8xf32>
    "tpu.trace_stop"() : () -> ()
    %cst_209 = arith.constant dense<0xFF800000> : vector<2x8xf32>
    %867 = vector.multi_reduction <maximumf>, %866, %cst_209 [2] : vector<2x8x8xf32> to vector<2x8xf32>
    %868 = vector.shape_cast %867 : vector<2x8xf32> to vector<2x8x1xf32>
    %869 = vector.broadcast %868 : vector<2x8x1xf32> to vector<2x8x8xf32>
    %870 = arith.subf %866, %869 : vector<2x8x8xf32>
    %871 = math.exp %870 : vector<2x8x8xf32>
    %cst_210 = arith.constant dense<0.000000e+00> : vector<2x8xf32>
    %872 = vector.multi_reduction <add>, %871, %cst_210 [2] : vector<2x8x8xf32> to vector<2x8xf32>
    %873 = vector.shape_cast %872 : vector<2x8xf32> to vector<2x8x1xf32>
    %874 = tpu.reciprocal %873 {approx = true} : vector<2x8x1xf32> -> vector<2x8x1xf32>
    %875 = vector.broadcast %874 : vector<2x8x1xf32> to vector<2x8x8xf32>
    %876 = arith.mulf %871, %875 : vector<2x8x8xf32>
    "tpu.trace_start"() <{level = 10 : i32, message = "bqk,bkd->bqd"}> : () -> ()
    %cst_211 = arith.constant dense<0.000000e+00> : vector<2x8x16xf32>
    %877 = tpu.matmul %876, %865, %cst_211 {dimension_numbers = #tpu.dot_dimension_numbers<[2], [1], [1], [2], [0, 0, 0, 1, 1, 2], [0], [0]>} : vector<2x8x8xf32>, vector<2x8x16xf32>, vector<2x8x16xf32> -> vector<2x8x16xf32>
    "tpu.trace_stop"() : () -> ()
    %878 = vector.extract_strided_slice %775 {offsets = [0, 0, 96], sizes = [2, 8, 16], strides = [1, 1, 1]} : vector<2x8x384xf32> to vector<2x8x16xf32>
    %cst_212 = arith.constant 2.500000e-01 : f32
    %879 = vector.broadcast %cst_212 : f32 to vector<2x8x16xf32>
    %880 = arith.mulf %878, %879 : vector<2x8x16xf32>
    %881 = vector.extract_strided_slice %775 {offsets = [0, 0, 224], sizes = [2, 8, 16], strides = [1, 1, 1]} : vector<2x8x384xf32> to vector<2x8x16xf32>
    %882 = vector.extract_strided_slice %775 {offsets = [0, 0, 352], sizes = [2, 8, 16], strides = [1, 1, 1]} : vector<2x8x384xf32> to vector<2x8x16xf32>
    "tpu.trace_start"() <{level = 10 : i32, message = "bqd,bkd->bqk"}> : () -> ()
    %cst_213 = arith.constant dense<0.000000e+00> : vector<2x8x8xf32>
    %883 = tpu.matmul %880, %881, %cst_213 {dimension_numbers = #tpu.dot_dimension_numbers<[2], [2], [1], [1], [0, 0, 0, 1, 1, 1], [0], [0]>} : vector<2x8x16xf32>, vector<2x8x16xf32>, vector<2x8x8xf32> -> vector<2x8x8xf32>
    "tpu.trace_stop"() : () -> ()
    %cst_214 = arith.constant dense<0xFF800000> : vector<2x8xf32>
    %884 = vector.multi_reduction <maximumf>, %883, %cst_214 [2] : vector<2x8x8xf32> to vector<2x8xf32>
    %885 = vector.shape_cast %884 : vector<2x8xf32> to vector<2x8x1xf32>
    %886 = vector.broadcast %885 : vector<2x8x1xf32> to vector<2x8x8xf32>
    %887 = arith.subf %883, %886 : vector<2x8x8xf32>
    %888 = math.exp %887 : vector<2x8x8xf32>
    %cst_215 = arith.constant dense<0.000000e+00> : vector<2x8xf32>
    %889 = vector.multi_reduction <add>, %888, %cst_215 [2] : vector<2x8x8xf32> to vector<2x8xf32>
    %890 = vector.shape_cast %889 : vector<2x8xf32> to vector<2x8x1xf32>
    %891 = tpu.reciprocal %890 {approx = true} : vector<2x8x1xf32> -> vector<2x8x1xf32>
    %892 = vector.broadcast %891 : vector<2x8x1xf32> to vector<2x8x8xf32>
    %893 = arith.mulf %888, %892 : vector<2x8x8xf32>
    "tpu.trace_start"() <{level = 10 : i32, message = "bqk,bkd->bqd"}> : () -> ()
    %cst_216 = arith.constant dense<0.000000e+00> : vector<2x8x16xf32>
    %894 = tpu.matmul %893, %882, %cst_216 {dimension_numbers = #tpu.dot_dimension_numbers<[2], [1], [1], [2], [0, 0, 0, 1, 1, 2], [0], [0]>} : vector<2x8x8xf32>, vector<2x8x16xf32>, vector<2x8x16xf32> -> vector<2x8x16xf32>
    "tpu.trace_stop"() : () -> ()
    %895 = vector.extract_strided_slice %775 {offsets = [0, 0, 112], sizes = [2, 8, 16], strides = [1, 1, 1]} : vector<2x8x384xf32> to vector<2x8x16xf32>
    %cst_217 = arith.constant 2.500000e-01 : f32
    %896 = vector.broadcast %cst_217 : f32 to vector<2x8x16xf32>
    %897 = arith.mulf %895, %896 : vector<2x8x16xf32>
    %898 = vector.extract_strided_slice %775 {offsets = [0, 0, 240], sizes = [2, 8, 16], strides = [1, 1, 1]} : vector<2x8x384xf32> to vector<2x8x16xf32>
    %899 = vector.extract_strided_slice %775 {offsets = [0, 0, 368], sizes = [2, 8, 16], strides = [1, 1, 1]} : vector<2x8x384xf32> to vector<2x8x16xf32>
    "tpu.trace_start"() <{level = 10 : i32, message = "bqd,bkd->bqk"}> : () -> ()
    %cst_218 = arith.constant dense<0.000000e+00> : vector<2x8x8xf32>
    %900 = tpu.matmul %897, %898, %cst_218 {dimension_numbers = #tpu.dot_dimension_numbers<[2], [2], [1], [1], [0, 0, 0, 1, 1, 1], [0], [0]>} : vector<2x8x16xf32>, vector<2x8x16xf32>, vector<2x8x8xf32> -> vector<2x8x8xf32>
    "tpu.trace_stop"() : () -> ()
    %cst_219 = arith.constant dense<0xFF800000> : vector<2x8xf32>
    %901 = vector.multi_reduction <maximumf>, %900, %cst_219 [2] : vector<2x8x8xf32> to vector<2x8xf32>
    %902 = vector.shape_cast %901 : vector<2x8xf32> to vector<2x8x1xf32>
    %903 = vector.broadcast %902 : vector<2x8x1xf32> to vector<2x8x8xf32>
    %904 = arith.subf %900, %903 : vector<2x8x8xf32>
    %905 = math.exp %904 : vector<2x8x8xf32>
    %cst_220 = arith.constant dense<0.000000e+00> : vector<2x8xf32>
    %906 = vector.multi_reduction <add>, %905, %cst_220 [2] : vector<2x8x8xf32> to vector<2x8xf32>
    %907 = vector.shape_cast %906 : vector<2x8xf32> to vector<2x8x1xf32>
    %908 = tpu.reciprocal %907 {approx = true} : vector<2x8x1xf32> -> vector<2x8x1xf32>
    %909 = vector.broadcast %908 : vector<2x8x1xf32> to vector<2x8x8xf32>
    %910 = arith.mulf %905, %909 : vector<2x8x8xf32>
    "tpu.trace_start"() <{level = 10 : i32, message = "bqk,bkd->bqd"}> : () -> ()
    %cst_221 = arith.constant dense<0.000000e+00> : vector<2x8x16xf32>
    %911 = tpu.matmul %910, %899, %cst_221 {dimension_numbers = #tpu.dot_dimension_numbers<[2], [1], [1], [2], [0, 0, 0, 1, 1, 2], [0], [0]>} : vector<2x8x8xf32>, vector<2x8x16xf32>, vector<2x8x16xf32> -> vector<2x8x16xf32>
    "tpu.trace_stop"() : () -> ()
    %912 = tpu.concatenate %792, %809, %826, %843, %860, %877, %894, %911 in 2 : vector<2x8x16xf32>, vector<2x8x16xf32>, vector<2x8x16xf32>, vector<2x8x16xf32>, vector<2x8x16xf32>, vector<2x8x16xf32>, vector<2x8x16xf32>, vector<2x8x16xf32> -> vector<2x8x128xf32>
    %913 = vector.shape_cast %912 : vector<2x8x128xf32> to vector<16x128xf32>
    %cst_222 = arith.constant dense<0.000000e+00> : vector<16x128xf32>
    %914 = tpu.matmul %913, %488, %cst_222 {dimension_numbers = #tpu.dot_dimension_numbers<[1], [0], [0], [1], [0, 0, 1, 1], [], []>} : vector<16x128xf32>, vector<128x128xf32>, vector<16x128xf32> -> vector<16x128xf32>
    %915 = vector.broadcast %490 : vector<1x128xf32> to vector<16x128xf32>
    %916 = arith.addf %914, %915 : vector<16x128xf32>
    %917 = arith.addf %771, %916 : vector<16x128xf32>
    %cst_223 = arith.constant dense<0.000000e+00> : vector<16xf32>
    %918 = vector.multi_reduction <add>, %917, %cst_223 [1] : vector<16x128xf32> to vector<16xf32>
    %919 = vector.shape_cast %918 : vector<16xf32> to vector<16x1xf32>
    %cst_224 = arith.constant 1.280000e+02 : f32
    %920 = vector.broadcast %cst_224 : f32 to vector<16x1xf32>
    %921 = arith.divf %919, %920 : vector<16x1xf32>
    %922 = vector.broadcast %921 : vector<16x1xf32> to vector<16x128xf32>
    %923 = arith.subf %917, %922 : vector<16x128xf32>
    %924 = arith.mulf %923, %923 : vector<16x128xf32>
    %cst_225 = arith.constant dense<0.000000e+00> : vector<16xf32>
    %925 = vector.multi_reduction <add>, %924, %cst_225 [1] : vector<16x128xf32> to vector<16xf32>
    %926 = vector.shape_cast %925 : vector<16xf32> to vector<16x1xf32>
    %cst_226 = arith.constant 1.280000e+02 : f32
    %927 = vector.broadcast %cst_226 : f32 to vector<16x1xf32>
    %928 = arith.divf %926, %927 : vector<16x1xf32>
    %929 = vector.broadcast %921 : vector<16x1xf32> to vector<16x128xf32>
    %930 = arith.subf %917, %929 : vector<16x128xf32>
    %cst_227 = arith.constant 9.99999996E-13 : f32
    %931 = vector.broadcast %cst_227 : f32 to vector<16x1xf32>
    %932 = arith.addf %928, %931 : vector<16x1xf32>
    %933 = math.rsqrt %932 : vector<16x1xf32>
    %934 = vector.broadcast %933 : vector<16x1xf32> to vector<16x128xf32>
    %935 = arith.mulf %930, %934 : vector<16x128xf32>
    %936 = vector.broadcast %492 : vector<1x128xf32> to vector<16x128xf32>
    %937 = arith.mulf %936, %935 : vector<16x128xf32>
    %938 = vector.broadcast %494 : vector<1x128xf32> to vector<16x128xf32>
    %939 = arith.addf %937, %938 : vector<16x128xf32>
    %c2 = arith.constant 2 : index
    %c0_228 = arith.constant 0 : index
    %c0_229 = arith.constant 0 : index
    %940 = vector.load %arg1[%c2, %c0_228, %c0_229] : memref<3x128x384xf32, #tpu.memory_space<vmem>>, vector<1x128x384xf32>
    %941 = vector.shape_cast %940 : vector<1x128x384xf32> to vector<128x384xf32>
    %c2_230 = arith.constant 2 : index
    %c0_231 = arith.constant 0 : index
    %c0_232 = arith.constant 0 : index
    %942 = vector.load %arg2[%c2_230, %c0_231, %c0_232] : memref<3x128x384xf32, #tpu.memory_space<vmem>>, vector<1x128x384xf32>
    %943 = vector.shape_cast %942 : vector<1x128x384xf32> to vector<128x384xf32>
    %c2_233 = arith.constant 2 : index
    %c0_234 = arith.constant 0 : index
    %c0_235 = arith.constant 0 : index
    %944 = vector.load %arg3[%c2_233, %c0_234, %c0_235] : memref<3x1x384xf32, #tpu.memory_space<vmem>>, vector<1x1x384xf32>
    %945 = vector.shape_cast %944 : vector<1x1x384xf32> to vector<1x384xf32>
    %c2_236 = arith.constant 2 : index
    %c0_237 = arith.constant 0 : index
    %c0_238 = arith.constant 0 : index
    %946 = vector.load %arg4[%c2_236, %c0_237, %c0_238] : memref<3x1x384xf32, #tpu.memory_space<vmem>>, vector<1x1x384xf32>
    %947 = vector.shape_cast %946 : vector<1x1x384xf32> to vector<1x384xf32>
    %c2_239 = arith.constant 2 : index
    %c0_240 = arith.constant 0 : index
    %c0_241 = arith.constant 0 : index
    %948 = vector.load %arg5[%c2_239, %c0_240, %c0_241] : memref<3x1x128xf32, #tpu.memory_space<vmem>>, vector<1x1x128xf32>
    %949 = vector.shape_cast %948 : vector<1x1x128xf32> to vector<1x128xf32>
    %c2_242 = arith.constant 2 : index
    %c0_243 = arith.constant 0 : index
    %c0_244 = arith.constant 0 : index
    %950 = vector.load %arg6[%c2_242, %c0_243, %c0_244] : memref<3x1x128xf32, #tpu.memory_space<vmem>>, vector<1x1x128xf32>
    %951 = vector.shape_cast %950 : vector<1x1x128xf32> to vector<1x128xf32>
    %c2_245 = arith.constant 2 : index
    %c0_246 = arith.constant 0 : index
    %c0_247 = arith.constant 0 : index
    %952 = vector.load %arg7[%c2_245, %c0_246, %c0_247] : memref<3x128x384xf32, #tpu.memory_space<vmem>>, vector<1x128x384xf32>
    %953 = vector.shape_cast %952 : vector<1x128x384xf32> to vector<128x384xf32>
    %c2_248 = arith.constant 2 : index
    %c0_249 = arith.constant 0 : index
    %c0_250 = arith.constant 0 : index
    %954 = vector.load %arg8[%c2_248, %c0_249, %c0_250] : memref<3x1x384xf32, #tpu.memory_space<vmem>>, vector<1x1x384xf32>
    %955 = vector.shape_cast %954 : vector<1x1x384xf32> to vector<1x384xf32>
    %c2_251 = arith.constant 2 : index
    %c0_252 = arith.constant 0 : index
    %c0_253 = arith.constant 0 : index
    %956 = vector.load %arg9[%c2_251, %c0_252, %c0_253] : memref<3x128x128xf32, #tpu.memory_space<vmem>>, vector<1x128x128xf32>
    %957 = vector.shape_cast %956 : vector<1x128x128xf32> to vector<128x128xf32>
    %c2_254 = arith.constant 2 : index
    %c0_255 = arith.constant 0 : index
    %c0_256 = arith.constant 0 : index
    %958 = vector.load %arg10[%c2_254, %c0_255, %c0_256] : memref<3x1x128xf32, #tpu.memory_space<vmem>>, vector<1x1x128xf32>
    %959 = vector.shape_cast %958 : vector<1x1x128xf32> to vector<1x128xf32>
    %c2_257 = arith.constant 2 : index
    %c0_258 = arith.constant 0 : index
    %c0_259 = arith.constant 0 : index
    %960 = vector.load %arg11[%c2_257, %c0_258, %c0_259] : memref<3x1x128xf32, #tpu.memory_space<vmem>>, vector<1x1x128xf32>
    %961 = vector.shape_cast %960 : vector<1x1x128xf32> to vector<1x128xf32>
    %c2_260 = arith.constant 2 : index
    %c0_261 = arith.constant 0 : index
    %c0_262 = arith.constant 0 : index
    %962 = vector.load %arg12[%c2_260, %c0_261, %c0_262] : memref<3x1x128xf32, #tpu.memory_space<vmem>>, vector<1x1x128xf32>
    %963 = vector.shape_cast %962 : vector<1x1x128xf32> to vector<1x128xf32>
    %cst_263 = arith.constant dense<0.000000e+00> : vector<16x384xf32>
    %964 = tpu.matmul %939, %941, %cst_263 {dimension_numbers = #tpu.dot_dimension_numbers<[1], [0], [0], [1], [0, 0, 1, 1], [], []>} : vector<16x128xf32>, vector<128x384xf32>, vector<16x384xf32> -> vector<16x384xf32>
    %965 = vector.broadcast %945 : vector<1x384xf32> to vector<16x384xf32>
    %966 = arith.addf %964, %965 : vector<16x384xf32>
    %967 = vector.shape_cast %966 : vector<16x384xf32> to vector<2x8x384xf32>
    %cst_264 = arith.constant 0.000000e+00 : f32
    %968 = vector.broadcast %cst_264 : f32 to vector<2x128xf32>
    %969 = vector.extract_strided_slice %967 {offsets = [0, 0, 0], sizes = [2, 1, 384], strides = [1, 1, 1]} : vector<2x8x384xf32> to vector<2x1x384xf32>
    %970 = vector.shape_cast %969 : vector<2x1x384xf32> to vector<2x384xf32>
    %cst_265 = arith.constant dense<0.000000e+00> : vector<2x384xf32>
    %971 = tpu.matmul %968, %943, %cst_265 {dimension_numbers = #tpu.dot_dimension_numbers<[1], [0], [0], [1], [0, 0, 1, 1], [], []>} : vector<2x128xf32>, vector<128x384xf32>, vector<2x384xf32> -> vector<2x384xf32>
    %972 = vector.broadcast %947 : vector<1x384xf32> to vector<2x384xf32>
    %973 = arith.addf %971, %972 : vector<2x384xf32>
    %974 = vector.extract_strided_slice %970 {offsets = [0, 0], sizes = [2, 128], strides = [1, 1]} : vector<2x384xf32> to vector<2x128xf32>
    %975 = vector.extract_strided_slice %973 {offsets = [0, 0], sizes = [2, 128], strides = [1, 1]} : vector<2x384xf32> to vector<2x128xf32>
    %976 = arith.addf %974, %975 : vector<2x128xf32>
    %977 = arith.negf %976 : vector<2x128xf32>
    %978 = math.exp %977 : vector<2x128xf32>
    %cst_266 = arith.constant 1.000000e+00 : f32
    %979 = vector.broadcast %cst_266 : f32 to vector<2x128xf32>
    %980 = arith.addf %979, %978 : vector<2x128xf32>
    %981 = arith.divf %979, %980 : vector<2x128xf32>
    %982 = vector.extract_strided_slice %970 {offsets = [0, 128], sizes = [2, 128], strides = [1, 1]} : vector<2x384xf32> to vector<2x128xf32>
    %983 = vector.extract_strided_slice %973 {offsets = [0, 128], sizes = [2, 128], strides = [1, 1]} : vector<2x384xf32> to vector<2x128xf32>
    %984 = arith.addf %982, %983 : vector<2x128xf32>
    %985 = arith.negf %984 : vector<2x128xf32>
    %986 = math.exp %985 : vector<2x128xf32>
    %cst_267 = arith.constant 1.000000e+00 : f32
    %987 = vector.broadcast %cst_267 : f32 to vector<2x128xf32>
    %988 = arith.addf %987, %986 : vector<2x128xf32>
    %989 = arith.divf %987, %988 : vector<2x128xf32>
    %990 = vector.extract_strided_slice %970 {offsets = [0, 256], sizes = [2, 128], strides = [1, 1]} : vector<2x384xf32> to vector<2x128xf32>
    %991 = vector.extract_strided_slice %973 {offsets = [0, 256], sizes = [2, 128], strides = [1, 1]} : vector<2x384xf32> to vector<2x128xf32>
    %992 = arith.mulf %981, %991 : vector<2x128xf32>
    %993 = arith.addf %990, %992 : vector<2x128xf32>
    %994 = math.tanh %993 : vector<2x128xf32>
    %995 = arith.subf %968, %994 : vector<2x128xf32>
    %996 = arith.mulf %989, %995 : vector<2x128xf32>
    %997 = arith.addf %994, %996 : vector<2x128xf32>
    %998 = vector.extract_strided_slice %967 {offsets = [0, 1, 0], sizes = [2, 1, 384], strides = [1, 1, 1]} : vector<2x8x384xf32> to vector<2x1x384xf32>
    %999 = vector.shape_cast %998 : vector<2x1x384xf32> to vector<2x384xf32>
    %cst_268 = arith.constant dense<0.000000e+00> : vector<2x384xf32>
    %1000 = tpu.matmul %997, %943, %cst_268 {dimension_numbers = #tpu.dot_dimension_numbers<[1], [0], [0], [1], [0, 0, 1, 1], [], []>} : vector<2x128xf32>, vector<128x384xf32>, vector<2x384xf32> -> vector<2x384xf32>
    %1001 = vector.broadcast %947 : vector<1x384xf32> to vector<2x384xf32>
    %1002 = arith.addf %1000, %1001 : vector<2x384xf32>
    %1003 = vector.extract_strided_slice %999 {offsets = [0, 0], sizes = [2, 128], strides = [1, 1]} : vector<2x384xf32> to vector<2x128xf32>
    %1004 = vector.extract_strided_slice %1002 {offsets = [0, 0], sizes = [2, 128], strides = [1, 1]} : vector<2x384xf32> to vector<2x128xf32>
    %1005 = arith.addf %1003, %1004 : vector<2x128xf32>
    %1006 = arith.negf %1005 : vector<2x128xf32>
    %1007 = math.exp %1006 : vector<2x128xf32>
    %cst_269 = arith.constant 1.000000e+00 : f32
    %1008 = vector.broadcast %cst_269 : f32 to vector<2x128xf32>
    %1009 = arith.addf %1008, %1007 : vector<2x128xf32>
    %1010 = arith.divf %1008, %1009 : vector<2x128xf32>
    %1011 = vector.extract_strided_slice %999 {offsets = [0, 128], sizes = [2, 128], strides = [1, 1]} : vector<2x384xf32> to vector<2x128xf32>
    %1012 = vector.extract_strided_slice %1002 {offsets = [0, 128], sizes = [2, 128], strides = [1, 1]} : vector<2x384xf32> to vector<2x128xf32>
    %1013 = arith.addf %1011, %1012 : vector<2x128xf32>
    %1014 = arith.negf %1013 : vector<2x128xf32>
    %1015 = math.exp %1014 : vector<2x128xf32>
    %cst_270 = arith.constant 1.000000e+00 : f32
    %1016 = vector.broadcast %cst_270 : f32 to vector<2x128xf32>
    %1017 = arith.addf %1016, %1015 : vector<2x128xf32>
    %1018 = arith.divf %1016, %1017 : vector<2x128xf32>
    %1019 = vector.extract_strided_slice %999 {offsets = [0, 256], sizes = [2, 128], strides = [1, 1]} : vector<2x384xf32> to vector<2x128xf32>
    %1020 = vector.extract_strided_slice %1002 {offsets = [0, 256], sizes = [2, 128], strides = [1, 1]} : vector<2x384xf32> to vector<2x128xf32>
    %1021 = arith.mulf %1010, %1020 : vector<2x128xf32>
    %1022 = arith.addf %1019, %1021 : vector<2x128xf32>
    %1023 = math.tanh %1022 : vector<2x128xf32>
    %1024 = arith.subf %997, %1023 : vector<2x128xf32>
    %1025 = arith.mulf %1018, %1024 : vector<2x128xf32>
    %1026 = arith.addf %1023, %1025 : vector<2x128xf32>
    %1027 = vector.extract_strided_slice %967 {offsets = [0, 2, 0], sizes = [2, 1, 384], strides = [1, 1, 1]} : vector<2x8x384xf32> to vector<2x1x384xf32>
    %1028 = vector.shape_cast %1027 : vector<2x1x384xf32> to vector<2x384xf32>
    %cst_271 = arith.constant dense<0.000000e+00> : vector<2x384xf32>
    %1029 = tpu.matmul %1026, %943, %cst_271 {dimension_numbers = #tpu.dot_dimension_numbers<[1], [0], [0], [1], [0, 0, 1, 1], [], []>} : vector<2x128xf32>, vector<128x384xf32>, vector<2x384xf32> -> vector<2x384xf32>
    %1030 = vector.broadcast %947 : vector<1x384xf32> to vector<2x384xf32>
    %1031 = arith.addf %1029, %1030 : vector<2x384xf32>
    %1032 = vector.extract_strided_slice %1028 {offsets = [0, 0], sizes = [2, 128], strides = [1, 1]} : vector<2x384xf32> to vector<2x128xf32>
    %1033 = vector.extract_strided_slice %1031 {offsets = [0, 0], sizes = [2, 128], strides = [1, 1]} : vector<2x384xf32> to vector<2x128xf32>
    %1034 = arith.addf %1032, %1033 : vector<2x128xf32>
    %1035 = arith.negf %1034 : vector<2x128xf32>
    %1036 = math.exp %1035 : vector<2x128xf32>
    %cst_272 = arith.constant 1.000000e+00 : f32
    %1037 = vector.broadcast %cst_272 : f32 to vector<2x128xf32>
    %1038 = arith.addf %1037, %1036 : vector<2x128xf32>
    %1039 = arith.divf %1037, %1038 : vector<2x128xf32>
    %1040 = vector.extract_strided_slice %1028 {offsets = [0, 128], sizes = [2, 128], strides = [1, 1]} : vector<2x384xf32> to vector<2x128xf32>
    %1041 = vector.extract_strided_slice %1031 {offsets = [0, 128], sizes = [2, 128], strides = [1, 1]} : vector<2x384xf32> to vector<2x128xf32>
    %1042 = arith.addf %1040, %1041 : vector<2x128xf32>
    %1043 = arith.negf %1042 : vector<2x128xf32>
    %1044 = math.exp %1043 : vector<2x128xf32>
    %cst_273 = arith.constant 1.000000e+00 : f32
    %1045 = vector.broadcast %cst_273 : f32 to vector<2x128xf32>
    %1046 = arith.addf %1045, %1044 : vector<2x128xf32>
    %1047 = arith.divf %1045, %1046 : vector<2x128xf32>
    %1048 = vector.extract_strided_slice %1028 {offsets = [0, 256], sizes = [2, 128], strides = [1, 1]} : vector<2x384xf32> to vector<2x128xf32>
    %1049 = vector.extract_strided_slice %1031 {offsets = [0, 256], sizes = [2, 128], strides = [1, 1]} : vector<2x384xf32> to vector<2x128xf32>
    %1050 = arith.mulf %1039, %1049 : vector<2x128xf32>
    %1051 = arith.addf %1048, %1050 : vector<2x128xf32>
    %1052 = math.tanh %1051 : vector<2x128xf32>
    %1053 = arith.subf %1026, %1052 : vector<2x128xf32>
    %1054 = arith.mulf %1047, %1053 : vector<2x128xf32>
    %1055 = arith.addf %1052, %1054 : vector<2x128xf32>
    %1056 = vector.extract_strided_slice %967 {offsets = [0, 3, 0], sizes = [2, 1, 384], strides = [1, 1, 1]} : vector<2x8x384xf32> to vector<2x1x384xf32>
    %1057 = vector.shape_cast %1056 : vector<2x1x384xf32> to vector<2x384xf32>
    %cst_274 = arith.constant dense<0.000000e+00> : vector<2x384xf32>
    %1058 = tpu.matmul %1055, %943, %cst_274 {dimension_numbers = #tpu.dot_dimension_numbers<[1], [0], [0], [1], [0, 0, 1, 1], [], []>} : vector<2x128xf32>, vector<128x384xf32>, vector<2x384xf32> -> vector<2x384xf32>
    %1059 = vector.broadcast %947 : vector<1x384xf32> to vector<2x384xf32>
    %1060 = arith.addf %1058, %1059 : vector<2x384xf32>
    %1061 = vector.extract_strided_slice %1057 {offsets = [0, 0], sizes = [2, 128], strides = [1, 1]} : vector<2x384xf32> to vector<2x128xf32>
    %1062 = vector.extract_strided_slice %1060 {offsets = [0, 0], sizes = [2, 128], strides = [1, 1]} : vector<2x384xf32> to vector<2x128xf32>
    %1063 = arith.addf %1061, %1062 : vector<2x128xf32>
    %1064 = arith.negf %1063 : vector<2x128xf32>
    %1065 = math.exp %1064 : vector<2x128xf32>
    %cst_275 = arith.constant 1.000000e+00 : f32
    %1066 = vector.broadcast %cst_275 : f32 to vector<2x128xf32>
    %1067 = arith.addf %1066, %1065 : vector<2x128xf32>
    %1068 = arith.divf %1066, %1067 : vector<2x128xf32>
    %1069 = vector.extract_strided_slice %1057 {offsets = [0, 128], sizes = [2, 128], strides = [1, 1]} : vector<2x384xf32> to vector<2x128xf32>
    %1070 = vector.extract_strided_slice %1060 {offsets = [0, 128], sizes = [2, 128], strides = [1, 1]} : vector<2x384xf32> to vector<2x128xf32>
    %1071 = arith.addf %1069, %1070 : vector<2x128xf32>
    %1072 = arith.negf %1071 : vector<2x128xf32>
    %1073 = math.exp %1072 : vector<2x128xf32>
    %cst_276 = arith.constant 1.000000e+00 : f32
    %1074 = vector.broadcast %cst_276 : f32 to vector<2x128xf32>
    %1075 = arith.addf %1074, %1073 : vector<2x128xf32>
    %1076 = arith.divf %1074, %1075 : vector<2x128xf32>
    %1077 = vector.extract_strided_slice %1057 {offsets = [0, 256], sizes = [2, 128], strides = [1, 1]} : vector<2x384xf32> to vector<2x128xf32>
    %1078 = vector.extract_strided_slice %1060 {offsets = [0, 256], sizes = [2, 128], strides = [1, 1]} : vector<2x384xf32> to vector<2x128xf32>
    %1079 = arith.mulf %1068, %1078 : vector<2x128xf32>
    %1080 = arith.addf %1077, %1079 : vector<2x128xf32>
    %1081 = math.tanh %1080 : vector<2x128xf32>
    %1082 = arith.subf %1055, %1081 : vector<2x128xf32>
    %1083 = arith.mulf %1076, %1082 : vector<2x128xf32>
    %1084 = arith.addf %1081, %1083 : vector<2x128xf32>
    %1085 = vector.extract_strided_slice %967 {offsets = [0, 4, 0], sizes = [2, 1, 384], strides = [1, 1, 1]} : vector<2x8x384xf32> to vector<2x1x384xf32>
    %1086 = vector.shape_cast %1085 : vector<2x1x384xf32> to vector<2x384xf32>
    %cst_277 = arith.constant dense<0.000000e+00> : vector<2x384xf32>
    %1087 = tpu.matmul %1084, %943, %cst_277 {dimension_numbers = #tpu.dot_dimension_numbers<[1], [0], [0], [1], [0, 0, 1, 1], [], []>} : vector<2x128xf32>, vector<128x384xf32>, vector<2x384xf32> -> vector<2x384xf32>
    %1088 = vector.broadcast %947 : vector<1x384xf32> to vector<2x384xf32>
    %1089 = arith.addf %1087, %1088 : vector<2x384xf32>
    %1090 = vector.extract_strided_slice %1086 {offsets = [0, 0], sizes = [2, 128], strides = [1, 1]} : vector<2x384xf32> to vector<2x128xf32>
    %1091 = vector.extract_strided_slice %1089 {offsets = [0, 0], sizes = [2, 128], strides = [1, 1]} : vector<2x384xf32> to vector<2x128xf32>
    %1092 = arith.addf %1090, %1091 : vector<2x128xf32>
    %1093 = arith.negf %1092 : vector<2x128xf32>
    %1094 = math.exp %1093 : vector<2x128xf32>
    %cst_278 = arith.constant 1.000000e+00 : f32
    %1095 = vector.broadcast %cst_278 : f32 to vector<2x128xf32>
    %1096 = arith.addf %1095, %1094 : vector<2x128xf32>
    %1097 = arith.divf %1095, %1096 : vector<2x128xf32>
    %1098 = vector.extract_strided_slice %1086 {offsets = [0, 128], sizes = [2, 128], strides = [1, 1]} : vector<2x384xf32> to vector<2x128xf32>
    %1099 = vector.extract_strided_slice %1089 {offsets = [0, 128], sizes = [2, 128], strides = [1, 1]} : vector<2x384xf32> to vector<2x128xf32>
    %1100 = arith.addf %1098, %1099 : vector<2x128xf32>
    %1101 = arith.negf %1100 : vector<2x128xf32>
    %1102 = math.exp %1101 : vector<2x128xf32>
    %cst_279 = arith.constant 1.000000e+00 : f32
    %1103 = vector.broadcast %cst_279 : f32 to vector<2x128xf32>
    %1104 = arith.addf %1103, %1102 : vector<2x128xf32>
    %1105 = arith.divf %1103, %1104 : vector<2x128xf32>
    %1106 = vector.extract_strided_slice %1086 {offsets = [0, 256], sizes = [2, 128], strides = [1, 1]} : vector<2x384xf32> to vector<2x128xf32>
    %1107 = vector.extract_strided_slice %1089 {offsets = [0, 256], sizes = [2, 128], strides = [1, 1]} : vector<2x384xf32> to vector<2x128xf32>
    %1108 = arith.mulf %1097, %1107 : vector<2x128xf32>
    %1109 = arith.addf %1106, %1108 : vector<2x128xf32>
    %1110 = math.tanh %1109 : vector<2x128xf32>
    %1111 = arith.subf %1084, %1110 : vector<2x128xf32>
    %1112 = arith.mulf %1105, %1111 : vector<2x128xf32>
    %1113 = arith.addf %1110, %1112 : vector<2x128xf32>
    %1114 = vector.extract_strided_slice %967 {offsets = [0, 5, 0], sizes = [2, 1, 384], strides = [1, 1, 1]} : vector<2x8x384xf32> to vector<2x1x384xf32>
    %1115 = vector.shape_cast %1114 : vector<2x1x384xf32> to vector<2x384xf32>
    %cst_280 = arith.constant dense<0.000000e+00> : vector<2x384xf32>
    %1116 = tpu.matmul %1113, %943, %cst_280 {dimension_numbers = #tpu.dot_dimension_numbers<[1], [0], [0], [1], [0, 0, 1, 1], [], []>} : vector<2x128xf32>, vector<128x384xf32>, vector<2x384xf32> -> vector<2x384xf32>
    %1117 = vector.broadcast %947 : vector<1x384xf32> to vector<2x384xf32>
    %1118 = arith.addf %1116, %1117 : vector<2x384xf32>
    %1119 = vector.extract_strided_slice %1115 {offsets = [0, 0], sizes = [2, 128], strides = [1, 1]} : vector<2x384xf32> to vector<2x128xf32>
    %1120 = vector.extract_strided_slice %1118 {offsets = [0, 0], sizes = [2, 128], strides = [1, 1]} : vector<2x384xf32> to vector<2x128xf32>
    %1121 = arith.addf %1119, %1120 : vector<2x128xf32>
    %1122 = arith.negf %1121 : vector<2x128xf32>
    %1123 = math.exp %1122 : vector<2x128xf32>
    %cst_281 = arith.constant 1.000000e+00 : f32
    %1124 = vector.broadcast %cst_281 : f32 to vector<2x128xf32>
    %1125 = arith.addf %1124, %1123 : vector<2x128xf32>
    %1126 = arith.divf %1124, %1125 : vector<2x128xf32>
    %1127 = vector.extract_strided_slice %1115 {offsets = [0, 128], sizes = [2, 128], strides = [1, 1]} : vector<2x384xf32> to vector<2x128xf32>
    %1128 = vector.extract_strided_slice %1118 {offsets = [0, 128], sizes = [2, 128], strides = [1, 1]} : vector<2x384xf32> to vector<2x128xf32>
    %1129 = arith.addf %1127, %1128 : vector<2x128xf32>
    %1130 = arith.negf %1129 : vector<2x128xf32>
    %1131 = math.exp %1130 : vector<2x128xf32>
    %cst_282 = arith.constant 1.000000e+00 : f32
    %1132 = vector.broadcast %cst_282 : f32 to vector<2x128xf32>
    %1133 = arith.addf %1132, %1131 : vector<2x128xf32>
    %1134 = arith.divf %1132, %1133 : vector<2x128xf32>
    %1135 = vector.extract_strided_slice %1115 {offsets = [0, 256], sizes = [2, 128], strides = [1, 1]} : vector<2x384xf32> to vector<2x128xf32>
    %1136 = vector.extract_strided_slice %1118 {offsets = [0, 256], sizes = [2, 128], strides = [1, 1]} : vector<2x384xf32> to vector<2x128xf32>
    %1137 = arith.mulf %1126, %1136 : vector<2x128xf32>
    %1138 = arith.addf %1135, %1137 : vector<2x128xf32>
    %1139 = math.tanh %1138 : vector<2x128xf32>
    %1140 = arith.subf %1113, %1139 : vector<2x128xf32>
    %1141 = arith.mulf %1134, %1140 : vector<2x128xf32>
    %1142 = arith.addf %1139, %1141 : vector<2x128xf32>
    %1143 = vector.extract_strided_slice %967 {offsets = [0, 6, 0], sizes = [2, 1, 384], strides = [1, 1, 1]} : vector<2x8x384xf32> to vector<2x1x384xf32>
    %1144 = vector.shape_cast %1143 : vector<2x1x384xf32> to vector<2x384xf32>
    %cst_283 = arith.constant dense<0.000000e+00> : vector<2x384xf32>
    %1145 = tpu.matmul %1142, %943, %cst_283 {dimension_numbers = #tpu.dot_dimension_numbers<[1], [0], [0], [1], [0, 0, 1, 1], [], []>} : vector<2x128xf32>, vector<128x384xf32>, vector<2x384xf32> -> vector<2x384xf32>
    %1146 = vector.broadcast %947 : vector<1x384xf32> to vector<2x384xf32>
    %1147 = arith.addf %1145, %1146 : vector<2x384xf32>
    %1148 = vector.extract_strided_slice %1144 {offsets = [0, 0], sizes = [2, 128], strides = [1, 1]} : vector<2x384xf32> to vector<2x128xf32>
    %1149 = vector.extract_strided_slice %1147 {offsets = [0, 0], sizes = [2, 128], strides = [1, 1]} : vector<2x384xf32> to vector<2x128xf32>
    %1150 = arith.addf %1148, %1149 : vector<2x128xf32>
    %1151 = arith.negf %1150 : vector<2x128xf32>
    %1152 = math.exp %1151 : vector<2x128xf32>
    %cst_284 = arith.constant 1.000000e+00 : f32
    %1153 = vector.broadcast %cst_284 : f32 to vector<2x128xf32>
    %1154 = arith.addf %1153, %1152 : vector<2x128xf32>
    %1155 = arith.divf %1153, %1154 : vector<2x128xf32>
    %1156 = vector.extract_strided_slice %1144 {offsets = [0, 128], sizes = [2, 128], strides = [1, 1]} : vector<2x384xf32> to vector<2x128xf32>
    %1157 = vector.extract_strided_slice %1147 {offsets = [0, 128], sizes = [2, 128], strides = [1, 1]} : vector<2x384xf32> to vector<2x128xf32>
    %1158 = arith.addf %1156, %1157 : vector<2x128xf32>
    %1159 = arith.negf %1158 : vector<2x128xf32>
    %1160 = math.exp %1159 : vector<2x128xf32>
    %cst_285 = arith.constant 1.000000e+00 : f32
    %1161 = vector.broadcast %cst_285 : f32 to vector<2x128xf32>
    %1162 = arith.addf %1161, %1160 : vector<2x128xf32>
    %1163 = arith.divf %1161, %1162 : vector<2x128xf32>
    %1164 = vector.extract_strided_slice %1144 {offsets = [0, 256], sizes = [2, 128], strides = [1, 1]} : vector<2x384xf32> to vector<2x128xf32>
    %1165 = vector.extract_strided_slice %1147 {offsets = [0, 256], sizes = [2, 128], strides = [1, 1]} : vector<2x384xf32> to vector<2x128xf32>
    %1166 = arith.mulf %1155, %1165 : vector<2x128xf32>
    %1167 = arith.addf %1164, %1166 : vector<2x128xf32>
    %1168 = math.tanh %1167 : vector<2x128xf32>
    %1169 = arith.subf %1142, %1168 : vector<2x128xf32>
    %1170 = arith.mulf %1163, %1169 : vector<2x128xf32>
    %1171 = arith.addf %1168, %1170 : vector<2x128xf32>
    %1172 = vector.extract_strided_slice %967 {offsets = [0, 7, 0], sizes = [2, 1, 384], strides = [1, 1, 1]} : vector<2x8x384xf32> to vector<2x1x384xf32>
    %1173 = vector.shape_cast %1172 : vector<2x1x384xf32> to vector<2x384xf32>
    %cst_286 = arith.constant dense<0.000000e+00> : vector<2x384xf32>
    %1174 = tpu.matmul %1171, %943, %cst_286 {dimension_numbers = #tpu.dot_dimension_numbers<[1], [0], [0], [1], [0, 0, 1, 1], [], []>} : vector<2x128xf32>, vector<128x384xf32>, vector<2x384xf32> -> vector<2x384xf32>
    %1175 = vector.broadcast %947 : vector<1x384xf32> to vector<2x384xf32>
    %1176 = arith.addf %1174, %1175 : vector<2x384xf32>
    %1177 = vector.extract_strided_slice %1173 {offsets = [0, 0], sizes = [2, 128], strides = [1, 1]} : vector<2x384xf32> to vector<2x128xf32>
    %1178 = vector.extract_strided_slice %1176 {offsets = [0, 0], sizes = [2, 128], strides = [1, 1]} : vector<2x384xf32> to vector<2x128xf32>
    %1179 = arith.addf %1177, %1178 : vector<2x128xf32>
    %1180 = arith.negf %1179 : vector<2x128xf32>
    %1181 = math.exp %1180 : vector<2x128xf32>
    %cst_287 = arith.constant 1.000000e+00 : f32
    %1182 = vector.broadcast %cst_287 : f32 to vector<2x128xf32>
    %1183 = arith.addf %1182, %1181 : vector<2x128xf32>
    %1184 = arith.divf %1182, %1183 : vector<2x128xf32>
    %1185 = vector.extract_strided_slice %1173 {offsets = [0, 128], sizes = [2, 128], strides = [1, 1]} : vector<2x384xf32> to vector<2x128xf32>
    %1186 = vector.extract_strided_slice %1176 {offsets = [0, 128], sizes = [2, 128], strides = [1, 1]} : vector<2x384xf32> to vector<2x128xf32>
    %1187 = arith.addf %1185, %1186 : vector<2x128xf32>
    %1188 = arith.negf %1187 : vector<2x128xf32>
    %1189 = math.exp %1188 : vector<2x128xf32>
    %cst_288 = arith.constant 1.000000e+00 : f32
    %1190 = vector.broadcast %cst_288 : f32 to vector<2x128xf32>
    %1191 = arith.addf %1190, %1189 : vector<2x128xf32>
    %1192 = arith.divf %1190, %1191 : vector<2x128xf32>
    %1193 = vector.extract_strided_slice %1173 {offsets = [0, 256], sizes = [2, 128], strides = [1, 1]} : vector<2x384xf32> to vector<2x128xf32>
    %1194 = vector.extract_strided_slice %1176 {offsets = [0, 256], sizes = [2, 128], strides = [1, 1]} : vector<2x384xf32> to vector<2x128xf32>
    %1195 = arith.mulf %1184, %1194 : vector<2x128xf32>
    %1196 = arith.addf %1193, %1195 : vector<2x128xf32>
    %1197 = math.tanh %1196 : vector<2x128xf32>
    %1198 = arith.subf %1171, %1197 : vector<2x128xf32>
    %1199 = arith.mulf %1192, %1198 : vector<2x128xf32>
    %1200 = arith.addf %1197, %1199 : vector<2x128xf32>
    %1201 = vector.extract_strided_slice %997 {offsets = [0, 0], sizes = [1, 128], strides = [1, 1]} : vector<2x128xf32> to vector<1x128xf32>
    %1202 = vector.extract_strided_slice %1026 {offsets = [0, 0], sizes = [1, 128], strides = [1, 1]} : vector<2x128xf32> to vector<1x128xf32>
    %1203 = vector.extract_strided_slice %1055 {offsets = [0, 0], sizes = [1, 128], strides = [1, 1]} : vector<2x128xf32> to vector<1x128xf32>
    %1204 = vector.extract_strided_slice %1084 {offsets = [0, 0], sizes = [1, 128], strides = [1, 1]} : vector<2x128xf32> to vector<1x128xf32>
    %1205 = vector.extract_strided_slice %1113 {offsets = [0, 0], sizes = [1, 128], strides = [1, 1]} : vector<2x128xf32> to vector<1x128xf32>
    %1206 = vector.extract_strided_slice %1142 {offsets = [0, 0], sizes = [1, 128], strides = [1, 1]} : vector<2x128xf32> to vector<1x128xf32>
    %1207 = vector.extract_strided_slice %1171 {offsets = [0, 0], sizes = [1, 128], strides = [1, 1]} : vector<2x128xf32> to vector<1x128xf32>
    %1208 = vector.extract_strided_slice %1200 {offsets = [0, 0], sizes = [1, 128], strides = [1, 1]} : vector<2x128xf32> to vector<1x128xf32>
    %1209 = vector.extract_strided_slice %997 {offsets = [1, 0], sizes = [1, 128], strides = [1, 1]} : vector<2x128xf32> to vector<1x128xf32>
    %1210 = vector.extract_strided_slice %1026 {offsets = [1, 0], sizes = [1, 128], strides = [1, 1]} : vector<2x128xf32> to vector<1x128xf32>
    %1211 = vector.extract_strided_slice %1055 {offsets = [1, 0], sizes = [1, 128], strides = [1, 1]} : vector<2x128xf32> to vector<1x128xf32>
    %1212 = vector.extract_strided_slice %1084 {offsets = [1, 0], sizes = [1, 128], strides = [1, 1]} : vector<2x128xf32> to vector<1x128xf32>
    %1213 = vector.extract_strided_slice %1113 {offsets = [1, 0], sizes = [1, 128], strides = [1, 1]} : vector<2x128xf32> to vector<1x128xf32>
    %1214 = vector.extract_strided_slice %1142 {offsets = [1, 0], sizes = [1, 128], strides = [1, 1]} : vector<2x128xf32> to vector<1x128xf32>
    %1215 = vector.extract_strided_slice %1171 {offsets = [1, 0], sizes = [1, 128], strides = [1, 1]} : vector<2x128xf32> to vector<1x128xf32>
    %1216 = vector.extract_strided_slice %1200 {offsets = [1, 0], sizes = [1, 128], strides = [1, 1]} : vector<2x128xf32> to vector<1x128xf32>
    %1217 = tpu.concatenate %1201, %1202, %1203, %1204, %1205, %1206, %1207, %1208, %1209, %1210, %1211, %1212, %1213, %1214, %1215, %1216 in 0 : vector<1x128xf32>, vector<1x128xf32>, vector<1x128xf32>, vector<1x128xf32>, vector<1x128xf32>, vector<1x128xf32>, vector<1x128xf32>, vector<1x128xf32>, vector<1x128xf32>, vector<1x128xf32>, vector<1x128xf32>, vector<1x128xf32>, vector<1x128xf32>, vector<1x128xf32>, vector<1x128xf32>, vector<1x128xf32> -> vector<16x128xf32>
    %1218 = arith.addf %939, %1217 : vector<16x128xf32>
    %cst_289 = arith.constant dense<0.000000e+00> : vector<16xf32>
    %1219 = vector.multi_reduction <add>, %1218, %cst_289 [1] : vector<16x128xf32> to vector<16xf32>
    %1220 = vector.shape_cast %1219 : vector<16xf32> to vector<16x1xf32>
    %cst_290 = arith.constant 1.280000e+02 : f32
    %1221 = vector.broadcast %cst_290 : f32 to vector<16x1xf32>
    %1222 = arith.divf %1220, %1221 : vector<16x1xf32>
    %1223 = vector.broadcast %1222 : vector<16x1xf32> to vector<16x128xf32>
    %1224 = arith.subf %1218, %1223 : vector<16x128xf32>
    %1225 = arith.mulf %1224, %1224 : vector<16x128xf32>
    %cst_291 = arith.constant dense<0.000000e+00> : vector<16xf32>
    %1226 = vector.multi_reduction <add>, %1225, %cst_291 [1] : vector<16x128xf32> to vector<16xf32>
    %1227 = vector.shape_cast %1226 : vector<16xf32> to vector<16x1xf32>
    %cst_292 = arith.constant 1.280000e+02 : f32
    %1228 = vector.broadcast %cst_292 : f32 to vector<16x1xf32>
    %1229 = arith.divf %1227, %1228 : vector<16x1xf32>
    %1230 = vector.broadcast %1222 : vector<16x1xf32> to vector<16x128xf32>
    %1231 = arith.subf %1218, %1230 : vector<16x128xf32>
    %cst_293 = arith.constant 9.99999996E-13 : f32
    %1232 = vector.broadcast %cst_293 : f32 to vector<16x1xf32>
    %1233 = arith.addf %1229, %1232 : vector<16x1xf32>
    %1234 = math.rsqrt %1233 : vector<16x1xf32>
    %1235 = vector.broadcast %1234 : vector<16x1xf32> to vector<16x128xf32>
    %1236 = arith.mulf %1231, %1235 : vector<16x128xf32>
    %1237 = vector.broadcast %949 : vector<1x128xf32> to vector<16x128xf32>
    %1238 = arith.mulf %1237, %1236 : vector<16x128xf32>
    %1239 = vector.broadcast %951 : vector<1x128xf32> to vector<16x128xf32>
    %1240 = arith.addf %1238, %1239 : vector<16x128xf32>
    %cst_294 = arith.constant dense<0.000000e+00> : vector<16x384xf32>
    %1241 = tpu.matmul %1240, %953, %cst_294 {dimension_numbers = #tpu.dot_dimension_numbers<[1], [0], [0], [1], [0, 0, 1, 1], [], []>} : vector<16x128xf32>, vector<128x384xf32>, vector<16x384xf32> -> vector<16x384xf32>
    %1242 = vector.broadcast %955 : vector<1x384xf32> to vector<16x384xf32>
    %1243 = arith.addf %1241, %1242 : vector<16x384xf32>
    %1244 = vector.shape_cast %1243 : vector<16x384xf32> to vector<2x8x384xf32>
    %1245 = vector.extract_strided_slice %1244 {offsets = [0, 0, 0], sizes = [2, 8, 16], strides = [1, 1, 1]} : vector<2x8x384xf32> to vector<2x8x16xf32>
    %cst_295 = arith.constant 2.500000e-01 : f32
    %1246 = vector.broadcast %cst_295 : f32 to vector<2x8x16xf32>
    %1247 = arith.mulf %1245, %1246 : vector<2x8x16xf32>
    %1248 = vector.extract_strided_slice %1244 {offsets = [0, 0, 128], sizes = [2, 8, 16], strides = [1, 1, 1]} : vector<2x8x384xf32> to vector<2x8x16xf32>
    %1249 = vector.extract_strided_slice %1244 {offsets = [0, 0, 256], sizes = [2, 8, 16], strides = [1, 1, 1]} : vector<2x8x384xf32> to vector<2x8x16xf32>
    "tpu.trace_start"() <{level = 10 : i32, message = "bqd,bkd->bqk"}> : () -> ()
    %cst_296 = arith.constant dense<0.000000e+00> : vector<2x8x8xf32>
    %1250 = tpu.matmul %1247, %1248, %cst_296 {dimension_numbers = #tpu.dot_dimension_numbers<[2], [2], [1], [1], [0, 0, 0, 1, 1, 1], [0], [0]>} : vector<2x8x16xf32>, vector<2x8x16xf32>, vector<2x8x8xf32> -> vector<2x8x8xf32>
    "tpu.trace_stop"() : () -> ()
    %cst_297 = arith.constant dense<0xFF800000> : vector<2x8xf32>
    %1251 = vector.multi_reduction <maximumf>, %1250, %cst_297 [2] : vector<2x8x8xf32> to vector<2x8xf32>
    %1252 = vector.shape_cast %1251 : vector<2x8xf32> to vector<2x8x1xf32>
    %1253 = vector.broadcast %1252 : vector<2x8x1xf32> to vector<2x8x8xf32>
    %1254 = arith.subf %1250, %1253 : vector<2x8x8xf32>
    %1255 = math.exp %1254 : vector<2x8x8xf32>
    %cst_298 = arith.constant dense<0.000000e+00> : vector<2x8xf32>
    %1256 = vector.multi_reduction <add>, %1255, %cst_298 [2] : vector<2x8x8xf32> to vector<2x8xf32>
    %1257 = vector.shape_cast %1256 : vector<2x8xf32> to vector<2x8x1xf32>
    %1258 = tpu.reciprocal %1257 {approx = true} : vector<2x8x1xf32> -> vector<2x8x1xf32>
    %1259 = vector.broadcast %1258 : vector<2x8x1xf32> to vector<2x8x8xf32>
    %1260 = arith.mulf %1255, %1259 : vector<2x8x8xf32>
    "tpu.trace_start"() <{level = 10 : i32, message = "bqk,bkd->bqd"}> : () -> ()
    %cst_299 = arith.constant dense<0.000000e+00> : vector<2x8x16xf32>
    %1261 = tpu.matmul %1260, %1249, %cst_299 {dimension_numbers = #tpu.dot_dimension_numbers<[2], [1], [1], [2], [0, 0, 0, 1, 1, 2], [0], [0]>} : vector<2x8x8xf32>, vector<2x8x16xf32>, vector<2x8x16xf32> -> vector<2x8x16xf32>
    "tpu.trace_stop"() : () -> ()
    %1262 = vector.extract_strided_slice %1244 {offsets = [0, 0, 16], sizes = [2, 8, 16], strides = [1, 1, 1]} : vector<2x8x384xf32> to vector<2x8x16xf32>
    %cst_300 = arith.constant 2.500000e-01 : f32
    %1263 = vector.broadcast %cst_300 : f32 to vector<2x8x16xf32>
    %1264 = arith.mulf %1262, %1263 : vector<2x8x16xf32>
    %1265 = vector.extract_strided_slice %1244 {offsets = [0, 0, 144], sizes = [2, 8, 16], strides = [1, 1, 1]} : vector<2x8x384xf32> to vector<2x8x16xf32>
    %1266 = vector.extract_strided_slice %1244 {offsets = [0, 0, 272], sizes = [2, 8, 16], strides = [1, 1, 1]} : vector<2x8x384xf32> to vector<2x8x16xf32>
    "tpu.trace_start"() <{level = 10 : i32, message = "bqd,bkd->bqk"}> : () -> ()
    %cst_301 = arith.constant dense<0.000000e+00> : vector<2x8x8xf32>
    %1267 = tpu.matmul %1264, %1265, %cst_301 {dimension_numbers = #tpu.dot_dimension_numbers<[2], [2], [1], [1], [0, 0, 0, 1, 1, 1], [0], [0]>} : vector<2x8x16xf32>, vector<2x8x16xf32>, vector<2x8x8xf32> -> vector<2x8x8xf32>
    "tpu.trace_stop"() : () -> ()
    %cst_302 = arith.constant dense<0xFF800000> : vector<2x8xf32>
    %1268 = vector.multi_reduction <maximumf>, %1267, %cst_302 [2] : vector<2x8x8xf32> to vector<2x8xf32>
    %1269 = vector.shape_cast %1268 : vector<2x8xf32> to vector<2x8x1xf32>
    %1270 = vector.broadcast %1269 : vector<2x8x1xf32> to vector<2x8x8xf32>
    %1271 = arith.subf %1267, %1270 : vector<2x8x8xf32>
    %1272 = math.exp %1271 : vector<2x8x8xf32>
    %cst_303 = arith.constant dense<0.000000e+00> : vector<2x8xf32>
    %1273 = vector.multi_reduction <add>, %1272, %cst_303 [2] : vector<2x8x8xf32> to vector<2x8xf32>
    %1274 = vector.shape_cast %1273 : vector<2x8xf32> to vector<2x8x1xf32>
    %1275 = tpu.reciprocal %1274 {approx = true} : vector<2x8x1xf32> -> vector<2x8x1xf32>
    %1276 = vector.broadcast %1275 : vector<2x8x1xf32> to vector<2x8x8xf32>
    %1277 = arith.mulf %1272, %1276 : vector<2x8x8xf32>
    "tpu.trace_start"() <{level = 10 : i32, message = "bqk,bkd->bqd"}> : () -> ()
    %cst_304 = arith.constant dense<0.000000e+00> : vector<2x8x16xf32>
    %1278 = tpu.matmul %1277, %1266, %cst_304 {dimension_numbers = #tpu.dot_dimension_numbers<[2], [1], [1], [2], [0, 0, 0, 1, 1, 2], [0], [0]>} : vector<2x8x8xf32>, vector<2x8x16xf32>, vector<2x8x16xf32> -> vector<2x8x16xf32>
    "tpu.trace_stop"() : () -> ()
    %1279 = vector.extract_strided_slice %1244 {offsets = [0, 0, 32], sizes = [2, 8, 16], strides = [1, 1, 1]} : vector<2x8x384xf32> to vector<2x8x16xf32>
    %cst_305 = arith.constant 2.500000e-01 : f32
    %1280 = vector.broadcast %cst_305 : f32 to vector<2x8x16xf32>
    %1281 = arith.mulf %1279, %1280 : vector<2x8x16xf32>
    %1282 = vector.extract_strided_slice %1244 {offsets = [0, 0, 160], sizes = [2, 8, 16], strides = [1, 1, 1]} : vector<2x8x384xf32> to vector<2x8x16xf32>
    %1283 = vector.extract_strided_slice %1244 {offsets = [0, 0, 288], sizes = [2, 8, 16], strides = [1, 1, 1]} : vector<2x8x384xf32> to vector<2x8x16xf32>
    "tpu.trace_start"() <{level = 10 : i32, message = "bqd,bkd->bqk"}> : () -> ()
    %cst_306 = arith.constant dense<0.000000e+00> : vector<2x8x8xf32>
    %1284 = tpu.matmul %1281, %1282, %cst_306 {dimension_numbers = #tpu.dot_dimension_numbers<[2], [2], [1], [1], [0, 0, 0, 1, 1, 1], [0], [0]>} : vector<2x8x16xf32>, vector<2x8x16xf32>, vector<2x8x8xf32> -> vector<2x8x8xf32>
    "tpu.trace_stop"() : () -> ()
    %cst_307 = arith.constant dense<0xFF800000> : vector<2x8xf32>
    %1285 = vector.multi_reduction <maximumf>, %1284, %cst_307 [2] : vector<2x8x8xf32> to vector<2x8xf32>
    %1286 = vector.shape_cast %1285 : vector<2x8xf32> to vector<2x8x1xf32>
    %1287 = vector.broadcast %1286 : vector<2x8x1xf32> to vector<2x8x8xf32>
    %1288 = arith.subf %1284, %1287 : vector<2x8x8xf32>
    %1289 = math.exp %1288 : vector<2x8x8xf32>
    %cst_308 = arith.constant dense<0.000000e+00> : vector<2x8xf32>
    %1290 = vector.multi_reduction <add>, %1289, %cst_308 [2] : vector<2x8x8xf32> to vector<2x8xf32>
    %1291 = vector.shape_cast %1290 : vector<2x8xf32> to vector<2x8x1xf32>
    %1292 = tpu.reciprocal %1291 {approx = true} : vector<2x8x1xf32> -> vector<2x8x1xf32>
    %1293 = vector.broadcast %1292 : vector<2x8x1xf32> to vector<2x8x8xf32>
    %1294 = arith.mulf %1289, %1293 : vector<2x8x8xf32>
    "tpu.trace_start"() <{level = 10 : i32, message = "bqk,bkd->bqd"}> : () -> ()
    %cst_309 = arith.constant dense<0.000000e+00> : vector<2x8x16xf32>
    %1295 = tpu.matmul %1294, %1283, %cst_309 {dimension_numbers = #tpu.dot_dimension_numbers<[2], [1], [1], [2], [0, 0, 0, 1, 1, 2], [0], [0]>} : vector<2x8x8xf32>, vector<2x8x16xf32>, vector<2x8x16xf32> -> vector<2x8x16xf32>
    "tpu.trace_stop"() : () -> ()
    %1296 = vector.extract_strided_slice %1244 {offsets = [0, 0, 48], sizes = [2, 8, 16], strides = [1, 1, 1]} : vector<2x8x384xf32> to vector<2x8x16xf32>
    %cst_310 = arith.constant 2.500000e-01 : f32
    %1297 = vector.broadcast %cst_310 : f32 to vector<2x8x16xf32>
    %1298 = arith.mulf %1296, %1297 : vector<2x8x16xf32>
    %1299 = vector.extract_strided_slice %1244 {offsets = [0, 0, 176], sizes = [2, 8, 16], strides = [1, 1, 1]} : vector<2x8x384xf32> to vector<2x8x16xf32>
    %1300 = vector.extract_strided_slice %1244 {offsets = [0, 0, 304], sizes = [2, 8, 16], strides = [1, 1, 1]} : vector<2x8x384xf32> to vector<2x8x16xf32>
    "tpu.trace_start"() <{level = 10 : i32, message = "bqd,bkd->bqk"}> : () -> ()
    %cst_311 = arith.constant dense<0.000000e+00> : vector<2x8x8xf32>
    %1301 = tpu.matmul %1298, %1299, %cst_311 {dimension_numbers = #tpu.dot_dimension_numbers<[2], [2], [1], [1], [0, 0, 0, 1, 1, 1], [0], [0]>} : vector<2x8x16xf32>, vector<2x8x16xf32>, vector<2x8x8xf32> -> vector<2x8x8xf32>
    "tpu.trace_stop"() : () -> ()
    %cst_312 = arith.constant dense<0xFF800000> : vector<2x8xf32>
    %1302 = vector.multi_reduction <maximumf>, %1301, %cst_312 [2] : vector<2x8x8xf32> to vector<2x8xf32>
    %1303 = vector.shape_cast %1302 : vector<2x8xf32> to vector<2x8x1xf32>
    %1304 = vector.broadcast %1303 : vector<2x8x1xf32> to vector<2x8x8xf32>
    %1305 = arith.subf %1301, %1304 : vector<2x8x8xf32>
    %1306 = math.exp %1305 : vector<2x8x8xf32>
    %cst_313 = arith.constant dense<0.000000e+00> : vector<2x8xf32>
    %1307 = vector.multi_reduction <add>, %1306, %cst_313 [2] : vector<2x8x8xf32> to vector<2x8xf32>
    %1308 = vector.shape_cast %1307 : vector<2x8xf32> to vector<2x8x1xf32>
    %1309 = tpu.reciprocal %1308 {approx = true} : vector<2x8x1xf32> -> vector<2x8x1xf32>
    %1310 = vector.broadcast %1309 : vector<2x8x1xf32> to vector<2x8x8xf32>
    %1311 = arith.mulf %1306, %1310 : vector<2x8x8xf32>
    "tpu.trace_start"() <{level = 10 : i32, message = "bqk,bkd->bqd"}> : () -> ()
    %cst_314 = arith.constant dense<0.000000e+00> : vector<2x8x16xf32>
    %1312 = tpu.matmul %1311, %1300, %cst_314 {dimension_numbers = #tpu.dot_dimension_numbers<[2], [1], [1], [2], [0, 0, 0, 1, 1, 2], [0], [0]>} : vector<2x8x8xf32>, vector<2x8x16xf32>, vector<2x8x16xf32> -> vector<2x8x16xf32>
    "tpu.trace_stop"() : () -> ()
    %1313 = vector.extract_strided_slice %1244 {offsets = [0, 0, 64], sizes = [2, 8, 16], strides = [1, 1, 1]} : vector<2x8x384xf32> to vector<2x8x16xf32>
    %cst_315 = arith.constant 2.500000e-01 : f32
    %1314 = vector.broadcast %cst_315 : f32 to vector<2x8x16xf32>
    %1315 = arith.mulf %1313, %1314 : vector<2x8x16xf32>
    %1316 = vector.extract_strided_slice %1244 {offsets = [0, 0, 192], sizes = [2, 8, 16], strides = [1, 1, 1]} : vector<2x8x384xf32> to vector<2x8x16xf32>
    %1317 = vector.extract_strided_slice %1244 {offsets = [0, 0, 320], sizes = [2, 8, 16], strides = [1, 1, 1]} : vector<2x8x384xf32> to vector<2x8x16xf32>
    "tpu.trace_start"() <{level = 10 : i32, message = "bqd,bkd->bqk"}> : () -> ()
    %cst_316 = arith.constant dense<0.000000e+00> : vector<2x8x8xf32>
    %1318 = tpu.matmul %1315, %1316, %cst_316 {dimension_numbers = #tpu.dot_dimension_numbers<[2], [2], [1], [1], [0, 0, 0, 1, 1, 1], [0], [0]>} : vector<2x8x16xf32>, vector<2x8x16xf32>, vector<2x8x8xf32> -> vector<2x8x8xf32>
    "tpu.trace_stop"() : () -> ()
    %cst_317 = arith.constant dense<0xFF800000> : vector<2x8xf32>
    %1319 = vector.multi_reduction <maximumf>, %1318, %cst_317 [2] : vector<2x8x8xf32> to vector<2x8xf32>
    %1320 = vector.shape_cast %1319 : vector<2x8xf32> to vector<2x8x1xf32>
    %1321 = vector.broadcast %1320 : vector<2x8x1xf32> to vector<2x8x8xf32>
    %1322 = arith.subf %1318, %1321 : vector<2x8x8xf32>
    %1323 = math.exp %1322 : vector<2x8x8xf32>
    %cst_318 = arith.constant dense<0.000000e+00> : vector<2x8xf32>
    %1324 = vector.multi_reduction <add>, %1323, %cst_318 [2] : vector<2x8x8xf32> to vector<2x8xf32>
    %1325 = vector.shape_cast %1324 : vector<2x8xf32> to vector<2x8x1xf32>
    %1326 = tpu.reciprocal %1325 {approx = true} : vector<2x8x1xf32> -> vector<2x8x1xf32>
    %1327 = vector.broadcast %1326 : vector<2x8x1xf32> to vector<2x8x8xf32>
    %1328 = arith.mulf %1323, %1327 : vector<2x8x8xf32>
    "tpu.trace_start"() <{level = 10 : i32, message = "bqk,bkd->bqd"}> : () -> ()
    %cst_319 = arith.constant dense<0.000000e+00> : vector<2x8x16xf32>
    %1329 = tpu.matmul %1328, %1317, %cst_319 {dimension_numbers = #tpu.dot_dimension_numbers<[2], [1], [1], [2], [0, 0, 0, 1, 1, 2], [0], [0]>} : vector<2x8x8xf32>, vector<2x8x16xf32>, vector<2x8x16xf32> -> vector<2x8x16xf32>
    "tpu.trace_stop"() : () -> ()
    %1330 = vector.extract_strided_slice %1244 {offsets = [0, 0, 80], sizes = [2, 8, 16], strides = [1, 1, 1]} : vector<2x8x384xf32> to vector<2x8x16xf32>
    %cst_320 = arith.constant 2.500000e-01 : f32
    %1331 = vector.broadcast %cst_320 : f32 to vector<2x8x16xf32>
    %1332 = arith.mulf %1330, %1331 : vector<2x8x16xf32>
    %1333 = vector.extract_strided_slice %1244 {offsets = [0, 0, 208], sizes = [2, 8, 16], strides = [1, 1, 1]} : vector<2x8x384xf32> to vector<2x8x16xf32>
    %1334 = vector.extract_strided_slice %1244 {offsets = [0, 0, 336], sizes = [2, 8, 16], strides = [1, 1, 1]} : vector<2x8x384xf32> to vector<2x8x16xf32>
    "tpu.trace_start"() <{level = 10 : i32, message = "bqd,bkd->bqk"}> : () -> ()
    %cst_321 = arith.constant dense<0.000000e+00> : vector<2x8x8xf32>
    %1335 = tpu.matmul %1332, %1333, %cst_321 {dimension_numbers = #tpu.dot_dimension_numbers<[2], [2], [1], [1], [0, 0, 0, 1, 1, 1], [0], [0]>} : vector<2x8x16xf32>, vector<2x8x16xf32>, vector<2x8x8xf32> -> vector<2x8x8xf32>
    "tpu.trace_stop"() : () -> ()
    %cst_322 = arith.constant dense<0xFF800000> : vector<2x8xf32>
    %1336 = vector.multi_reduction <maximumf>, %1335, %cst_322 [2] : vector<2x8x8xf32> to vector<2x8xf32>
    %1337 = vector.shape_cast %1336 : vector<2x8xf32> to vector<2x8x1xf32>
    %1338 = vector.broadcast %1337 : vector<2x8x1xf32> to vector<2x8x8xf32>
    %1339 = arith.subf %1335, %1338 : vector<2x8x8xf32>
    %1340 = math.exp %1339 : vector<2x8x8xf32>
    %cst_323 = arith.constant dense<0.000000e+00> : vector<2x8xf32>
    %1341 = vector.multi_reduction <add>, %1340, %cst_323 [2] : vector<2x8x8xf32> to vector<2x8xf32>
    %1342 = vector.shape_cast %1341 : vector<2x8xf32> to vector<2x8x1xf32>
    %1343 = tpu.reciprocal %1342 {approx = true} : vector<2x8x1xf32> -> vector<2x8x1xf32>
    %1344 = vector.broadcast %1343 : vector<2x8x1xf32> to vector<2x8x8xf32>
    %1345 = arith.mulf %1340, %1344 : vector<2x8x8xf32>
    "tpu.trace_start"() <{level = 10 : i32, message = "bqk,bkd->bqd"}> : () -> ()
    %cst_324 = arith.constant dense<0.000000e+00> : vector<2x8x16xf32>
    %1346 = tpu.matmul %1345, %1334, %cst_324 {dimension_numbers = #tpu.dot_dimension_numbers<[2], [1], [1], [2], [0, 0, 0, 1, 1, 2], [0], [0]>} : vector<2x8x8xf32>, vector<2x8x16xf32>, vector<2x8x16xf32> -> vector<2x8x16xf32>
    "tpu.trace_stop"() : () -> ()
    %1347 = vector.extract_strided_slice %1244 {offsets = [0, 0, 96], sizes = [2, 8, 16], strides = [1, 1, 1]} : vector<2x8x384xf32> to vector<2x8x16xf32>
    %cst_325 = arith.constant 2.500000e-01 : f32
    %1348 = vector.broadcast %cst_325 : f32 to vector<2x8x16xf32>
    %1349 = arith.mulf %1347, %1348 : vector<2x8x16xf32>
    %1350 = vector.extract_strided_slice %1244 {offsets = [0, 0, 224], sizes = [2, 8, 16], strides = [1, 1, 1]} : vector<2x8x384xf32> to vector<2x8x16xf32>
    %1351 = vector.extract_strided_slice %1244 {offsets = [0, 0, 352], sizes = [2, 8, 16], strides = [1, 1, 1]} : vector<2x8x384xf32> to vector<2x8x16xf32>
    "tpu.trace_start"() <{level = 10 : i32, message = "bqd,bkd->bqk"}> : () -> ()
    %cst_326 = arith.constant dense<0.000000e+00> : vector<2x8x8xf32>
    %1352 = tpu.matmul %1349, %1350, %cst_326 {dimension_numbers = #tpu.dot_dimension_numbers<[2], [2], [1], [1], [0, 0, 0, 1, 1, 1], [0], [0]>} : vector<2x8x16xf32>, vector<2x8x16xf32>, vector<2x8x8xf32> -> vector<2x8x8xf32>
    "tpu.trace_stop"() : () -> ()
    %cst_327 = arith.constant dense<0xFF800000> : vector<2x8xf32>
    %1353 = vector.multi_reduction <maximumf>, %1352, %cst_327 [2] : vector<2x8x8xf32> to vector<2x8xf32>
    %1354 = vector.shape_cast %1353 : vector<2x8xf32> to vector<2x8x1xf32>
    %1355 = vector.broadcast %1354 : vector<2x8x1xf32> to vector<2x8x8xf32>
    %1356 = arith.subf %1352, %1355 : vector<2x8x8xf32>
    %1357 = math.exp %1356 : vector<2x8x8xf32>
    %cst_328 = arith.constant dense<0.000000e+00> : vector<2x8xf32>
    %1358 = vector.multi_reduction <add>, %1357, %cst_328 [2] : vector<2x8x8xf32> to vector<2x8xf32>
    %1359 = vector.shape_cast %1358 : vector<2x8xf32> to vector<2x8x1xf32>
    %1360 = tpu.reciprocal %1359 {approx = true} : vector<2x8x1xf32> -> vector<2x8x1xf32>
    %1361 = vector.broadcast %1360 : vector<2x8x1xf32> to vector<2x8x8xf32>
    %1362 = arith.mulf %1357, %1361 : vector<2x8x8xf32>
    "tpu.trace_start"() <{level = 10 : i32, message = "bqk,bkd->bqd"}> : () -> ()
    %cst_329 = arith.constant dense<0.000000e+00> : vector<2x8x16xf32>
    %1363 = tpu.matmul %1362, %1351, %cst_329 {dimension_numbers = #tpu.dot_dimension_numbers<[2], [1], [1], [2], [0, 0, 0, 1, 1, 2], [0], [0]>} : vector<2x8x8xf32>, vector<2x8x16xf32>, vector<2x8x16xf32> -> vector<2x8x16xf32>
    "tpu.trace_stop"() : () -> ()
    %1364 = vector.extract_strided_slice %1244 {offsets = [0, 0, 112], sizes = [2, 8, 16], strides = [1, 1, 1]} : vector<2x8x384xf32> to vector<2x8x16xf32>
    %cst_330 = arith.constant 2.500000e-01 : f32
    %1365 = vector.broadcast %cst_330 : f32 to vector<2x8x16xf32>
    %1366 = arith.mulf %1364, %1365 : vector<2x8x16xf32>
    %1367 = vector.extract_strided_slice %1244 {offsets = [0, 0, 240], sizes = [2, 8, 16], strides = [1, 1, 1]} : vector<2x8x384xf32> to vector<2x8x16xf32>
    %1368 = vector.extract_strided_slice %1244 {offsets = [0, 0, 368], sizes = [2, 8, 16], strides = [1, 1, 1]} : vector<2x8x384xf32> to vector<2x8x16xf32>
    "tpu.trace_start"() <{level = 10 : i32, message = "bqd,bkd->bqk"}> : () -> ()
    %cst_331 = arith.constant dense<0.000000e+00> : vector<2x8x8xf32>
    %1369 = tpu.matmul %1366, %1367, %cst_331 {dimension_numbers = #tpu.dot_dimension_numbers<[2], [2], [1], [1], [0, 0, 0, 1, 1, 1], [0], [0]>} : vector<2x8x16xf32>, vector<2x8x16xf32>, vector<2x8x8xf32> -> vector<2x8x8xf32>
    "tpu.trace_stop"() : () -> ()
    %cst_332 = arith.constant dense<0xFF800000> : vector<2x8xf32>
    %1370 = vector.multi_reduction <maximumf>, %1369, %cst_332 [2] : vector<2x8x8xf32> to vector<2x8xf32>
    %1371 = vector.shape_cast %1370 : vector<2x8xf32> to vector<2x8x1xf32>
    %1372 = vector.broadcast %1371 : vector<2x8x1xf32> to vector<2x8x8xf32>
    %1373 = arith.subf %1369, %1372 : vector<2x8x8xf32>
    %1374 = math.exp %1373 : vector<2x8x8xf32>
    %cst_333 = arith.constant dense<0.000000e+00> : vector<2x8xf32>
    %1375 = vector.multi_reduction <add>, %1374, %cst_333 [2] : vector<2x8x8xf32> to vector<2x8xf32>
    %1376 = vector.shape_cast %1375 : vector<2x8xf32> to vector<2x8x1xf32>
    %1377 = tpu.reciprocal %1376 {approx = true} : vector<2x8x1xf32> -> vector<2x8x1xf32>
    %1378 = vector.broadcast %1377 : vector<2x8x1xf32> to vector<2x8x8xf32>
    %1379 = arith.mulf %1374, %1378 : vector<2x8x8xf32>
    "tpu.trace_start"() <{level = 10 : i32, message = "bqk,bkd->bqd"}> : () -> ()
    %cst_334 = arith.constant dense<0.000000e+00> : vector<2x8x16xf32>
    %1380 = tpu.matmul %1379, %1368, %cst_334 {dimension_numbers = #tpu.dot_dimension_numbers<[2], [1], [1], [2], [0, 0, 0, 1, 1, 2], [0], [0]>} : vector<2x8x8xf32>, vector<2x8x16xf32>, vector<2x8x16xf32> -> vector<2x8x16xf32>
    "tpu.trace_stop"() : () -> ()
    %1381 = tpu.concatenate %1261, %1278, %1295, %1312, %1329, %1346, %1363, %1380 in 2 : vector<2x8x16xf32>, vector<2x8x16xf32>, vector<2x8x16xf32>, vector<2x8x16xf32>, vector<2x8x16xf32>, vector<2x8x16xf32>, vector<2x8x16xf32>, vector<2x8x16xf32> -> vector<2x8x128xf32>
    %1382 = vector.shape_cast %1381 : vector<2x8x128xf32> to vector<16x128xf32>
    %cst_335 = arith.constant dense<0.000000e+00> : vector<16x128xf32>
    %1383 = tpu.matmul %1382, %957, %cst_335 {dimension_numbers = #tpu.dot_dimension_numbers<[1], [0], [0], [1], [0, 0, 1, 1], [], []>} : vector<16x128xf32>, vector<128x128xf32>, vector<16x128xf32> -> vector<16x128xf32>
    %1384 = vector.broadcast %959 : vector<1x128xf32> to vector<16x128xf32>
    %1385 = arith.addf %1383, %1384 : vector<16x128xf32>
    %1386 = arith.addf %1240, %1385 : vector<16x128xf32>
    %cst_336 = arith.constant dense<0.000000e+00> : vector<16xf32>
    %1387 = vector.multi_reduction <add>, %1386, %cst_336 [1] : vector<16x128xf32> to vector<16xf32>
    %1388 = vector.shape_cast %1387 : vector<16xf32> to vector<16x1xf32>
    %cst_337 = arith.constant 1.280000e+02 : f32
    %1389 = vector.broadcast %cst_337 : f32 to vector<16x1xf32>
    %1390 = arith.divf %1388, %1389 : vector<16x1xf32>
    %1391 = vector.broadcast %1390 : vector<16x1xf32> to vector<16x128xf32>
    %1392 = arith.subf %1386, %1391 : vector<16x128xf32>
    %1393 = arith.mulf %1392, %1392 : vector<16x128xf32>
    %cst_338 = arith.constant dense<0.000000e+00> : vector<16xf32>
    %1394 = vector.multi_reduction <add>, %1393, %cst_338 [1] : vector<16x128xf32> to vector<16xf32>
    %1395 = vector.shape_cast %1394 : vector<16xf32> to vector<16x1xf32>
    %cst_339 = arith.constant 1.280000e+02 : f32
    %1396 = vector.broadcast %cst_339 : f32 to vector<16x1xf32>
    %1397 = arith.divf %1395, %1396 : vector<16x1xf32>
    %1398 = vector.broadcast %1390 : vector<16x1xf32> to vector<16x128xf32>
    %1399 = arith.subf %1386, %1398 : vector<16x128xf32>
    %cst_340 = arith.constant 9.99999996E-13 : f32
    %1400 = vector.broadcast %cst_340 : f32 to vector<16x1xf32>
    %1401 = arith.addf %1397, %1400 : vector<16x1xf32>
    %1402 = math.rsqrt %1401 : vector<16x1xf32>
    %1403 = vector.broadcast %1402 : vector<16x1xf32> to vector<16x128xf32>
    %1404 = arith.mulf %1399, %1403 : vector<16x128xf32>
    %1405 = vector.broadcast %961 : vector<1x128xf32> to vector<16x128xf32>
    %1406 = arith.mulf %1405, %1404 : vector<16x128xf32>
    %1407 = vector.broadcast %963 : vector<1x128xf32> to vector<16x128xf32>
    %1408 = arith.addf %1406, %1407 : vector<16x128xf32>
    %1409 = vector.shape_cast %1408 : vector<16x128xf32> to vector<2x8x128xf32>
    %c0_341 = arith.constant 0 : index
    %c0_342 = arith.constant 0 : index
    %c0_343 = arith.constant 0 : index
    %1410 = vector.load %arg13[%c0_341, %c0_342, %c0_343] : memref<2x8x128xf32, #tpu.memory_space<vmem>>, vector<2x8x128xf32>
    tpu.vector_store %arg13[%c0_341, %c0_342, %c0_343], %1409 {strides = array<i32>} : memref<2x8x128xf32, #tpu.memory_space<vmem>>, vector<2x8x128xf32>,
    return
  }
}

</mosaic_0001>

<llo_original>
// kernel: tpu_custom_call.1
$region0: #{tpu_custom_call.1}
  #allocation0 [shape = 'u32[]', space=smem, size = 0x4, offset = 0x4, fixed_abs, tag = 'smem constant byte address 0x4 - core index']
  #allocation1 [shape = 'u32[72,128]{1,0:T(1,128)}', space=vmem, size = 0x9000, scoped, tag = 'internal scratch']
  %s0 = inlined_call_operand.hbm [shape: f32[2,8,128], index: 0, kind: input, shape index: {}]
  %s1 = inlined_call_operand.hbm [shape: f32[3,128,384], index: 1, kind: input, shape index: {}]
  %s2 = inlined_call_operand.hbm [shape: f32[3,128,384], index: 2, kind: input, shape index: {}]
  %s3 = inlined_call_operand.hbm [shape: f32[3,1,384], index: 3, kind: input, shape index: {}]
  %s4 = inlined_call_operand.hbm [shape: f32[3,1,384], index: 4, kind: input, shape index: {}]
  %s5 = inlined_call_operand.vmem [shape: f32[3,1,128], index: 5, kind: input, shape index: {}]
  %s6 = inlined_call_operand.hbm [shape: f32[3,1,128], index: 6, kind: input, shape index: {}]
  %s7 = inlined_call_operand.hbm [shape: f32[3,128,384], index: 7, kind: input, shape index: {}]
  %s8 = inlined_call_operand.hbm [shape: f32[3,1,384], index: 8, kind: input, shape index: {}]
  %s9 = inlined_call_operand.hbm [shape: f32[3,128,128], index: 9, kind: input, shape index: {}]
  %s10 = inlined_call_operand.vmem [shape: f32[3,1,128], index: 10, kind: input, shape index: {}]
  %s11 = inlined_call_operand.vmem [shape: f32[3,1,128], index: 11, kind: input, shape index: {}]
  %s12 = inlined_call_operand.hbm [shape: f32[3,1,128], index: 12, kind: input, shape index: {}]
  %s13 = inlined_call_operand.hbm [shape: f32[2,8,128], index: 13, kind: output, shape index: {}]
  %s14 = sld [smem:[#allocation0]]
  $region102: #{tpu_custom_call.1} parent=0
    _
  %s16 = ssub.s32 1, %s14
  %s17 = scalar_select 0, %s16, %s14
  $region1: #{tpu_custom_call.1} parent=0
    #allocation2 [shape = 'u8[8192]{0}', space=vmem, size = 0x2000, scoped, tag = 'input window, operand 0, single buffered']
    #allocation3 [shape = 's32[1]{0}', space=sflag, size = 0x4, scoped, tag = 'scoped memory for tpu_custom_call.1']
    #allocation4 [shape = 's32[1]{0}', space=sflag, size = 0x4, scoped, tag = 'scoped memory for tpu_custom_call.1']
    #allocation5 [shape = 'u8[589824]{0}', space=vmem, size = 0x90000, scoped, tag = 'input window, operand 1, single buffered']
    #allocation6 [shape = 's32[1]{0}', space=sflag, size = 0x4, scoped, tag = 'scoped memory for tpu_custom_call.1']
    #allocation7 [shape = 'u8[589824]{0}', space=vmem, size = 0x90000, scoped, tag = 'input window, operand 2, single buffered']
    #allocation8 [shape = 'u8[4608]{0}', space=vmem, size = 0x1400, scoped, tag = 'input window, operand 3, single buffered']
    #allocation9 [shape = 's32[1]{0}', space=sflag, size = 0x4, scoped, tag = 'scoped memory for tpu_custom_call.1']
    #allocation10 [shape = 'u8[4608]{0}', space=vmem, size = 0x1400, scoped, tag = 'input window, operand 4, single buffered']
    #allocation11 [shape = 'u8[1536]{0}', space=vmem, size = 0x800, scoped, tag = 'input window, operand 6, single buffered']
    #allocation12 [shape = 's32[1]{0}', space=sflag, size = 0x4, scoped, tag = 'scoped memory for tpu_custom_call.1']
    #allocation13 [shape = 'u8[589824]{0}', space=vmem, size = 0x90000, scoped, tag = 'input window, operand 7, single buffered']
    #allocation14 [shape = 'u8[4608]{0}', space=vmem, size = 0x1400, scoped, tag = 'input window, operand 8, single buffered']
    #allocation15 [shape = 's32[1]{0}', space=sflag, size = 0x4, scoped, tag = 'scoped memory for tpu_custom_call.1']
    #allocation16 [shape = 'u8[196608]{0}', space=vmem, size = 0x30000, scoped, tag = 'input window, operand 9, single buffered']
    #allocation17 [shape = 'u8[1536]{0}', space=vmem, size = 0x800, scoped, tag = 'input window, operand 12, single buffered']
    #allocation18 [shape = 's32[1]{0}', space=sflag, size = 0x4, scoped, tag = 'scoped memory for tpu_custom_call.1']
    #allocation19 [shape = 'u8[8192]{0}', space=vmem, size = 0x2000, scoped, tag = 'output window, operand 0, single buffered']
    %18 = vsyncpa [#allocation3], 0
    %19 = vsyncpa [#allocation6], 0
    %20 = vsyncpa [#allocation9], 0
    %21 = vsyncpa [#allocation12], 0
    %22 = vsyncpa [#allocation15], 0
    %23 = vsyncpa [#allocation18], 0
    %24 = vsyncpa [#allocation4], 0
    // Predicated region
    $region2: #{tpu_custom_call.1} parent=1 // pred_check
      _
    $region3: #{tpu_custom_call.1} parent=1 // pred_check_branch
      %26 = sbr.rel (0) target = $region5
    $region4: #{tpu_custom_call.1} parent=1 // pred_region
      %28 = vsyncadd [#allocation3], 0
      %s29 = sshll.u32 %s0, 4
      %s30 = int_to_ptr.hbm [resolvable:$true] %s29
      %s31 = sshll.u32 [#allocation2], 4
      %s32 = int_to_ptr.vmem [resolvable:$true] %s31
      %37 = dma.hbm_to_vmem [thread:$0]  %s30, 256, %s32, [#allocation3], 128, 128, 8
    $region5: #{tpu_custom_call.1} parent=1 // pred_fallthru
      _
    // Predicated region
    $region6: #{tpu_custom_call.1} parent=1 // pred_check
      _
    $region7: #{tpu_custom_call.1} parent=1 // pred_check_branch
      %39 = sbr.rel (0) target = $region9
    $region8: #{tpu_custom_call.1} parent=1 // pred_region
      %41 = vsyncadd [#allocation6], 0
      %s42 = sshll.u32 %s1, 4
      %s43 = int_to_ptr.hbm [resolvable:$true] %s42
      %s44 = sshll.u32 [#allocation5], 4
      %s45 = int_to_ptr.vmem [resolvable:$true] %s44
      %50 = dma.hbm_to_vmem [thread:$0]  %s43, 18432, %s45, [#allocation6], 384, 384, 24
    $region9: #{tpu_custom_call.1} parent=1 // pred_fallthru
      _
    // Predicated region
    $region10: #{tpu_custom_call.1} parent=1 // pred_check
      _
    $region11: #{tpu_custom_call.1} parent=1 // pred_check_branch
      %52 = sbr.rel (0) target = $region13
    $region12: #{tpu_custom_call.1} parent=1 // pred_region
      %54 = vsyncadd [#allocation6], 0
      %s55 = sshll.u32 %s2, 4
      %s56 = int_to_ptr.hbm [resolvable:$true] %s55
      %s57 = sshll.u32 [#allocation7], 4
      %s58 = int_to_ptr.vmem [resolvable:$true] %s57
      %63 = dma.hbm_to_vmem [thread:$0]  %s56, 18432, %s58, [#allocation6], 384, 384, 24
    $region13: #{tpu_custom_call.1} parent=1 // pred_fallthru
      _
    // Predicated region
    $region14: #{tpu_custom_call.1} parent=1 // pred_check
      _
    $region15: #{tpu_custom_call.1} parent=1 // pred_check_branch
      %65 = sbr.rel (0) target = $region17
    $region16: #{tpu_custom_call.1} parent=1 // pred_region
      %67 = vsyncadd [#allocation9], 0
      %s68 = sshll.u32 %s3, 4
      %s69 = int_to_ptr.hbm [resolvable:$true] %s68
      %s70 = sshll.u32 [#allocation8], 4
      %s71 = int_to_ptr.vmem [resolvable:$true] %s70
      %76 = dma.hbm_to_vmem [thread:$0]  %s69, 144, %s71, [#allocation9], 48, 48, 3
    $region17: #{tpu_custom_call.1} parent=1 // pred_fallthru
      _
    // Predicated region
    $region18: #{tpu_custom_call.1} parent=1 // pred_check
      _
    $region19: #{tpu_custom_call.1} parent=1 // pred_check_branch
      %78 = sbr.rel (0) target = $region21
    $region20: #{tpu_custom_call.1} parent=1 // pred_region
      %80 = vsyncadd [#allocation9], 0
      %s81 = sshll.u32 %s4, 4
      %s82 = int_to_ptr.hbm [resolvable:$true] %s81
      %s83 = sshll.u32 [#allocation10], 4
      %s84 = int_to_ptr.vmem [resolvable:$true] %s83
      %89 = dma.hbm_to_vmem [thread:$0]  %s82, 144, %s84, [#allocation9], 48, 48, 3
    $region21: #{tpu_custom_call.1} parent=1 // pred_fallthru
      _
    // Predicated region
    $region22: #{tpu_custom_call.1} parent=1 // pred_check
      _
    $region23: #{tpu_custom_call.1} parent=1 // pred_check_branch
      %91 = sbr.rel (0) target = $region25
    $region24: #{tpu_custom_call.1} parent=1 // pred_region
      _
    $region25: #{tpu_custom_call.1} parent=1 // pred_fallthru
      _
    // Predicated region
    $region26: #{tpu_custom_call.1} parent=1 // pred_check
      _
    $region27: #{tpu_custom_call.1} parent=1 // pred_check_branch
      %93 = sbr.rel (0) target = $region29
    $region28: #{tpu_custom_call.1} parent=1 // pred_region
      %95 = vsyncadd [#allocation12], 0
      %s96 = sshll.u32 %s6, 4
      %s97 = int_to_ptr.hbm [resolvable:$true] %s96
      %s98 = sshll.u32 [#allocation11], 4
      %s99 = int_to_ptr.vmem [resolvable:$true] %s98
      %104 = dma.hbm_to_vmem [thread:$0]  %s97, 48, %s99, [#allocation12], 16, 16, 1
    $region29: #{tpu_custom_call.1} parent=1 // pred_fallthru
      _
    // Predicated region
    $region30: #{tpu_custom_call.1} parent=1 // pred_check
      _
    $region31: #{tpu_custom_call.1} parent=1 // pred_check_branch
      %106 = sbr.rel (0) target = $region33
    $region32: #{tpu_custom_call.1} parent=1 // pred_region
      %108 = vsyncadd [#allocation12], 0
      %s109 = sshll.u32 %s7, 4
      %s110 = int_to_ptr.hbm [resolvable:$true] %s109
      %s111 = sshll.u32 [#allocation13], 4
      %s112 = int_to_ptr.vmem [resolvable:$true] %s111
      %117 = dma.hbm_to_vmem [thread:$0]  %s110, 18432, %s112, [#allocation12], 384, 384, 24
    $region33: #{tpu_custom_call.1} parent=1 // pred_fallthru
      _
    // Predicated region
    $region34: #{tpu_custom_call.1} parent=1 // pred_check
      _
    $region35: #{tpu_custom_call.1} parent=1 // pred_check_branch
      %119 = sbr.rel (0) target = $region37
    $region36: #{tpu_custom_call.1} parent=1 // pred_region
      %121 = vsyncadd [#allocation15], 0
      %s122 = sshll.u32 %s8, 4
      %s123 = int_to_ptr.hbm [resolvable:$true] %s122
      %s124 = sshll.u32 [#allocation14], 4
      %s125 = int_to_ptr.vmem [resolvable:$true] %s124
      %130 = dma.hbm_to_vmem [thread:$0]  %s123, 144, %s125, [#allocation15], 48, 48, 3
    $region37: #{tpu_custom_call.1} parent=1 // pred_fallthru
      _
    // Predicated region
    $region38: #{tpu_custom_call.1} parent=1 // pred_check
      _
    $region39: #{tpu_custom_call.1} parent=1 // pred_check_branch
      %132 = sbr.rel (0) target = $region41
    $region40: #{tpu_custom_call.1} parent=1 // pred_region
      %134 = vsyncadd [#allocation15], 0
      %s135 = sshll.u32 %s9, 4
      %s136 = int_to_ptr.hbm [resolvable:$true] %s135
      %s137 = sshll.u32 [#allocation16], 4
      %s138 = int_to_ptr.vmem [resolvable:$true] %s137
      %143 = dma.hbm_to_vmem [thread:$0]  %s136, 6144, %s138, [#allocation15], 128, 128, 8
    $region41: #{tpu_custom_call.1} parent=1 // pred_fallthru
      _
    // Predicated region
    $region42: #{tpu_custom_call.1} parent=1 // pred_check
      _
    $region43: #{tpu_custom_call.1} parent=1 // pred_check_branch
      %145 = sbr.rel (0) target = $region45
    $region44: #{tpu_custom_call.1} parent=1 // pred_region
      _
    $region45: #{tpu_custom_call.1} parent=1 // pred_fallthru
      _
    // Predicated region
    $region46: #{tpu_custom_call.1} parent=1 // pred_check
      _
    $region47: #{tpu_custom_call.1} parent=1 // pred_check_branch
      %147 = sbr.rel (0) target = $region49
    $region48: #{tpu_custom_call.1} parent=1 // pred_region
      _
    $region49: #{tpu_custom_call.1} parent=1 // pred_fallthru
      _
    // Predicated region
    $region50: #{tpu_custom_call.1} parent=1 // pred_check
      _
    $region51: #{tpu_custom_call.1} parent=1 // pred_check_branch
      %149 = sbr.rel (0) target = $region53
    $region52: #{tpu_custom_call.1} parent=1 // pred_region
      %151 = vsyncadd [#allocation18], 0
      %s152 = sshll.u32 %s12, 4
      %s153 = int_to_ptr.hbm [resolvable:$true] %s152
      %s154 = sshll.u32 [#allocation17], 4
      %s155 = int_to_ptr.vmem [resolvable:$true] %s154
      %160 = dma.hbm_to_vmem [thread:$0]  %s153, 48, %s155, [#allocation18], 16, 16, 1
    $region53: #{tpu_custom_call.1} parent=1 // pred_fallthru
      _
    // Predicated region
    $region54: #{tpu_custom_call.1} parent=1 // pred_check
      _
    $region55: #{tpu_custom_call.1} parent=1 // pred_check_branch
      %162 = sbr.rel (0) target = $region57
    $region56: #{tpu_custom_call.1} parent=1 // pred_region
      %164 = dma.done [#allocation3], 256
    $region57: #{tpu_custom_call.1} parent=1 // pred_fallthru
      _
    // Predicated region
    $region58: #{tpu_custom_call.1} parent=1 // pred_check
      _
    $region59: #{tpu_custom_call.1} parent=1 // pred_check_branch
      %166 = sbr.rel (0) target = $region61
    $region60: #{tpu_custom_call.1} parent=1 // pred_region
      %168 = dma.done [#allocation6], 18432
    $region61: #{tpu_custom_call.1} parent=1 // pred_fallthru
      _
    // Predicated region
    $region62: #{tpu_custom_call.1} parent=1 // pred_check
      _
    $region63: #{tpu_custom_call.1} parent=1 // pred_check_branch
      %170 = sbr.rel (0) target = $region65
    $region64: #{tpu_custom_call.1} parent=1 // pred_region
      %172 = dma.done [#allocation6], 18432
    $region65: #{tpu_custom_call.1} parent=1 // pred_fallthru
      _
    // Predicated region
    $region66: #{tpu_custom_call.1} parent=1 // pred_check
      _
    $region67: #{tpu_custom_call.1} parent=1 // pred_check_branch
      %174 = sbr.rel (0) target = $region69
    $region68: #{tpu_custom_call.1} parent=1 // pred_region
      %176 = dma.done [#allocation9], 144
    $region69: #{tpu_custom_call.1} parent=1 // pred_fallthru
      _
    // Predicated region
    $region70: #{tpu_custom_call.1} parent=1 // pred_check
      _
    $region71: #{tpu_custom_call.1} parent=1 // pred_check_branch
      %178 = sbr.rel (0) target = $region73
    $region72: #{tpu_custom_call.1} parent=1 // pred_region
      %180 = dma.done [#allocation9], 144
    $region73: #{tpu_custom_call.1} parent=1 // pred_fallthru
      _
    // Predicated region
    $region74: #{tpu_custom_call.1} parent=1 // pred_check
      _
    $region75: #{tpu_custom_call.1} parent=1 // pred_check_branch
      %182 = sbr.rel (0) target = $region77
    $region76: #{tpu_custom_call.1} parent=1 // pred_region
      %184 = dma.done [#allocation12], 48
    $region77: #{tpu_custom_call.1} parent=1 // pred_fallthru
      _
    // Predicated region
    $region78: #{tpu_custom_call.1} parent=1 // pred_check
      _
    $region79: #{tpu_custom_call.1} parent=1 // pred_check_branch
      %186 = sbr.rel (0) target = $region81
    $region80: #{tpu_custom_call.1} parent=1 // pred_region
      %188 = dma.done [#allocation12], 18432
    $region81: #{tpu_custom_call.1} parent=1 // pred_fallthru
      _
    // Predicated region
    $region82: #{tpu_custom_call.1} parent=1 // pred_check
      _
    $region83: #{tpu_custom_call.1} parent=1 // pred_check_branch
      %190 = sbr.rel (0) target = $region85
    $region84: #{tpu_custom_call.1} parent=1 // pred_region
      %192 = dma.done [#allocation15], 144
    $region85: #{tpu_custom_call.1} parent=1 // pred_fallthru
      _
    // Predicated region
    $region86: #{tpu_custom_call.1} parent=1 // pred_check
      _
    $region87: #{tpu_custom_call.1} parent=1 // pred_check_branch
      %194 = sbr.rel (0) target = $region89
    $region88: #{tpu_custom_call.1} parent=1 // pred_region
      %196 = dma.done [#allocation15], 6144
    $region89: #{tpu_custom_call.1} parent=1 // pred_fallthru
      _
    // Predicated region
    $region90: #{tpu_custom_call.1} parent=1 // pred_check
      _
    $region91: #{tpu_custom_call.1} parent=1 // pred_check_branch
      %198 = sbr.rel (0) target = $region93
    $region92: #{tpu_custom_call.1} parent=1 // pred_region
      %200 = dma.done [#allocation18], 48
    $region93: #{tpu_custom_call.1} parent=1 // pred_fallthru
      _
    %v201 = vld [vmem:[#allocation2] sm:$0xff]
    %v202 = vld [vmem:[#allocation2 + $0x8] sm:$0xff]
    %v203 = vld [vmem:[#allocation5] sm:$0xff]
    %v204 = vld [vmem:[#allocation5 + $0x8] sm:$0xff]
    %v205 = vld [vmem:[#allocation5 + $0x10] sm:$0xff]
    %v206 = vld [vmem:[#allocation5 + $0x18] sm:$0xff]
    %v207 = vld [vmem:[#allocation5 + $0x20] sm:$0xff]
    %v208 = vld [vmem:[#allocation5 + $0x28] sm:$0xff]
    %v209 = vld [vmem:[#allocation5 + $0x30] sm:$0xff]
    %v210 = vld [vmem:[#allocation5 + $0x38] sm:$0xff]
    %v211 = vld [vmem:[#allocation5 + $0x40] sm:$0xff]
    %v212 = vld [vmem:[#allocation5 + $0x48] sm:$0xff]
    %v213 = vld [vmem:[#allocation5 + $0x50] sm:$0xff]
    %v214 = vld [vmem:[#allocation5 + $0x58] sm:$0xff]
    %v215 = vld [vmem:[#allocation5 + $0x60] sm:$0xff]
    %v216 = vld [vmem:[#allocation5 + $0x68] sm:$0xff]
    %v217 = vld [vmem:[#allocation5 + $0x70] sm:$0xff]
    %v218 = vld [vmem:[#allocation5 + $0x78] sm:$0xff]
    %v219 = vld [vmem:[#allocation5 + $0x80] sm:$0xff]
    %v220 = vld [vmem:[#allocation5 + $0x88] sm:$0xff]
    %v221 = vld [vmem:[#allocation5 + $0x90] sm:$0xff]
    %v222 = vld [vmem:[#allocation5 + $0x98] sm:$0xff]
    %v223 = vld [vmem:[#allocation5 + $0xa0] sm:$0xff]
    %v224 = vld [vmem:[#allocation5 + $0xa8] sm:$0xff]
    %v225 = vld [vmem:[#allocation5 + $0xb0] sm:$0xff]
    %v226 = vld [vmem:[#allocation5 + $0xb8] sm:$0xff]
    %v227 = vld [vmem:[#allocation5 + $0xc0] sm:$0xff]
    %v228 = vld [vmem:[#allocation5 + $0xc8] sm:$0xff]
    %v229 = vld [vmem:[#allocation5 + $0xd0] sm:$0xff]
    %v230 = vld [vmem:[#allocation5 + $0xd8] sm:$0xff]
    %v231 = vld [vmem:[#allocation5 + $0xe0] sm:$0xff]
    %v232 = vld [vmem:[#allocation5 + $0xe8] sm:$0xff]
    %v233 = vld [vmem:[#allocation5 + $0xf0] sm:$0xff]
    %v234 = vld [vmem:[#allocation5 + $0xf8] sm:$0xff]
    %v235 = vld [vmem:[#allocation5 + $0x100] sm:$0xff]
    %v236 = vld [vmem:[#allocation5 + $0x108] sm:$0xff]
    %v237 = vld [vmem:[#allocation5 + $0x110] sm:$0xff]
    %v238 = vld [vmem:[#allocation5 + $0x118] sm:$0xff]
    %v239 = vld [vmem:[#allocation5 + $0x120] sm:$0xff]
    %v240 = vld [vmem:[#allocation5 + $0x128] sm:$0xff]
    %v241 = vld [vmem:[#allocation5 + $0x130] sm:$0xff]
    %v242 = vld [vmem:[#allocation5 + $0x138] sm:$0xff]
    %v243 = vld [vmem:[#allocation5 + $0x140] sm:$0xff]
    %v244 = vld [vmem:[#allocation5 + $0x148] sm:$0xff]
    %v245 = vld [vmem:[#allocation5 + $0x150] sm:$0xff]
    %v246 = vld [vmem:[#allocation5 + $0x158] sm:$0xff]
    %v247 = vld [vmem:[#allocation5 + $0x160] sm:$0xff]
    %v248 = vld [vmem:[#allocation5 + $0x168] sm:$0xff]
    %v249 = vld [vmem:[#allocation5 + $0x170] sm:$0xff]
    %v250 = vld [vmem:[#allocation5 + $0x178] sm:$0xff]
    %v251 = vld [vmem:[#allocation7] sm:$0xff]
    %v252 = vld [vmem:[#allocation7 + $0x8] sm:$0xff]
    %v253 = vld [vmem:[#allocation7 + $0x10] sm:$0xff]
    %v254 = vld [vmem:[#allocation7 + $0x18] sm:$0xff]
    %v255 = vld [vmem:[#allocation7 + $0x20] sm:$0xff]
    %v256 = vld [vmem:[#allocation7 + $0x28] sm:$0xff]
    %v257 = vld [vmem:[#allocation7 + $0x30] sm:$0xff]
    %v258 = vld [vmem:[#allocation7 + $0x38] sm:$0xff]
    %v259 = vld [vmem:[#allocation7 + $0x40] sm:$0xff]
    %v260 = vld [vmem:[#allocation7 + $0x48] sm:$0xff]
    %v261 = vld [vmem:[#allocation7 + $0x50] sm:$0xff]
    %v262 = vld [vmem:[#allocation7 + $0x58] sm:$0xff]
    %v263 = vld [vmem:[#allocation7 + $0x60] sm:$0xff]
    %v264 = vld [vmem:[#allocation7 + $0x68] sm:$0xff]
    %v265 = vld [vmem:[#allocation7 + $0x70] sm:$0xff]
    %v266 = vld [vmem:[#allocation7 + $0x78] sm:$0xff]
    %v267 = vld [vmem:[#allocation7 + $0x80] sm:$0xff]
    %v268 = vld [vmem:[#allocation7 + $0x88] sm:$0xff]
    %v269 = vld [vmem:[#allocation7 + $0x90] sm:$0xff]
    %v270 = vld [vmem:[#allocation7 + $0x98] sm:$0xff]
    %v271 = vld [vmem:[#allocation7 + $0xa0] sm:$0xff]
    %v272 = vld [vmem:[#allocation7 + $0xa8] sm:$0xff]
    %v273 = vld [vmem:[#allocation7 + $0xb0] sm:$0xff]
    %v274 = vld [vmem:[#allocation7 + $0xb8] sm:$0xff]
    %v275 = vld [vmem:[#allocation7 + $0xc0] sm:$0xff]
    %v276 = vld [vmem:[#allocation7 + $0xc8] sm:$0xff]
    %v277 = vld [vmem:[#allocation7 + $0xd0] sm:$0xff]
    %v278 = vld [vmem:[#allocation7 + $0xd8] sm:$0xff]
    %v279 = vld [vmem:[#allocation7 + $0xe0] sm:$0xff]
    %v280 = vld [vmem:[#allocation7 + $0xe8] sm:$0xff]
    %v281 = vld [vmem:[#allocation7 + $0xf0] sm:$0xff]
    %v282 = vld [vmem:[#allocation7 + $0xf8] sm:$0xff]
    %v283 = vld [vmem:[#allocation7 + $0x100] sm:$0xff]
    %v284 = vld [vmem:[#allocation7 + $0x108] sm:$0xff]
    %v285 = vld [vmem:[#allocation7 + $0x110] sm:$0xff]
    %v286 = vld [vmem:[#allocation7 + $0x118] sm:$0xff]
    %v287 = vld [vmem:[#allocation7 + $0x120] sm:$0xff]
    %v288 = vld [vmem:[#allocation7 + $0x128] sm:$0xff]
    %v289 = vld [vmem:[#allocation7 + $0x130] sm:$0xff]
    %v290 = vld [vmem:[#allocation7 + $0x138] sm:$0xff]
    %v291 = vld [vmem:[#allocation7 + $0x140] sm:$0xff]
    %v292 = vld [vmem:[#allocation7 + $0x148] sm:$0xff]
    %v293 = vld [vmem:[#allocation7 + $0x150] sm:$0xff]
    %v294 = vld [vmem:[#allocation7 + $0x158] sm:$0xff]
    %v295 = vld [vmem:[#allocation7 + $0x160] sm:$0xff]
    %v296 = vld [vmem:[#allocation7 + $0x168] sm:$0xff]
    %v297 = vld [vmem:[#allocation7 + $0x170] sm:$0xff]
    %v298 = vld [vmem:[#allocation7 + $0x178] sm:$0xff]
    %v299 = vld [vmem:[#allocation8] sm:$0x7]
    %v300 = vld [vmem:[#allocation10] sm:$0x7]
    %v301 = vld [vmem:[%s5] sm:$0x1]
    %v302 = vld [vmem:[#allocation11] sm:$0x1]
    %v303 = vld [vmem:[#allocation13] sm:$0xff]
    %v304 = vld [vmem:[#allocation13 + $0x8] sm:$0xff]
    %v305 = vld [vmem:[#allocation13 + $0x10] sm:$0xff]
    %v306 = vld [vmem:[#allocation13 + $0x18] sm:$0xff]
    %v307 = vld [vmem:[#allocation13 + $0x20] sm:$0xff]
    %v308 = vld [vmem:[#allocation13 + $0x28] sm:$0xff]
    %v309 = vld [vmem:[#allocation13 + $0x30] sm:$0xff]
    %v310 = vld [vmem:[#allocation13 + $0x38] sm:$0xff]
    %v311 = vld [vmem:[#allocation13 + $0x40] sm:$0xff]
    %v312 = vld [vmem:[#allocation13 + $0x48] sm:$0xff]
    %v313 = vld [vmem:[#allocation13 + $0x50] sm:$0xff]
    %v314 = vld [vmem:[#allocation13 + $0x58] sm:$0xff]
    %v315 = vld [vmem:[#allocation13 + $0x60] sm:$0xff]
    %v316 = vld [vmem:[#allocation13 + $0x68] sm:$0xff]
    %v317 = vld [vmem:[#allocation13 + $0x70] sm:$0xff]
    %v318 = vld [vmem:[#allocation13 + $0x78] sm:$0xff]
    %v319 = vld [vmem:[#allocation13 + $0x80] sm:$0xff]
    %v320 = vld [vmem:[#allocation13 + $0x88] sm:$0xff]
    %v321 = vld [vmem:[#allocation13 + $0x90] sm:$0xff]
    %v322 = vld [vmem:[#allocation13 + $0x98] sm:$0xff]
    %v323 = vld [vmem:[#allocation13 + $0xa0] sm:$0xff]
    %v324 = vld [vmem:[#allocation13 + $0xa8] sm:$0xff]
    %v325 = vld [vmem:[#allocation13 + $0xb0] sm:$0xff]
    %v326 = vld [vmem:[#allocation13 + $0xb8] sm:$0xff]
    %v327 = vld [vmem:[#allocation13 + $0xc0] sm:$0xff]
    %v328 = vld [vmem:[#allocation13 + $0xc8] sm:$0xff]
    %v329 = vld [vmem:[#allocation13 + $0xd0] sm:$0xff]
    %v330 = vld [vmem:[#allocation13 + $0xd8] sm:$0xff]
    %v331 = vld [vmem:[#allocation13 + $0xe0] sm:$0xff]
    %v332 = vld [vmem:[#allocation13 + $0xe8] sm:$0xff]
    %v333 = vld [vmem:[#allocation13 + $0xf0] sm:$0xff]
    %v334 = vld [vmem:[#allocation13 + $0xf8] sm:$0xff]
    %v335 = vld [vmem:[#allocation13 + $0x100] sm:$0xff]
    %v336 = vld [vmem:[#allocation13 + $0x108] sm:$0xff]
    %v337 = vld [vmem:[#allocation13 + $0x110] sm:$0xff]
    %v338 = vld [vmem:[#allocation13 + $0x118] sm:$0xff]
    %v339 = vld [vmem:[#allocation13 + $0x120] sm:$0xff]
    %v340 = vld [vmem:[#allocation13 + $0x128] sm:$0xff]
    %v341 = vld [vmem:[#allocation13 + $0x130] sm:$0xff]
    %v342 = vld [vmem:[#allocation13 + $0x138] sm:$0xff]
    %v343 = vld [vmem:[#allocation13 + $0x140] sm:$0xff]
    %v344 = vld [vmem:[#allocation13 + $0x148] sm:$0xff]
    %v345 = vld [vmem:[#allocation13 + $0x150] sm:$0xff]
    %v346 = vld [vmem:[#allocation13 + $0x158] sm:$0xff]
    %v347 = vld [vmem:[#allocation13 + $0x160] sm:$0xff]
    %v348 = vld [vmem:[#allocation13 + $0x168] sm:$0xff]
    %v349 = vld [vmem:[#allocation13 + $0x170] sm:$0xff]
    %v350 = vld [vmem:[#allocation13 + $0x178] sm:$0xff]
    %v351 = vld [vmem:[#allocation14] sm:$0x7]
    %v352 = vld [vmem:[#allocation16] sm:$0xff]
    %v353 = vld [vmem:[#allocation16 + $0x8] sm:$0xff]
    %v354 = vld [vmem:[#allocation16 + $0x10] sm:$0xff]
    %v355 = vld [vmem:[#allocation16 + $0x18] sm:$0xff]
    %v356 = vld [vmem:[#allocation16 + $0x20] sm:$0xff]
    %v357 = vld [vmem:[#allocation16 + $0x28] sm:$0xff]
    %v358 = vld [vmem:[#allocation16 + $0x30] sm:$0xff]
    %v359 = vld [vmem:[#allocation16 + $0x38] sm:$0xff]
    %v360 = vld [vmem:[#allocation16 + $0x40] sm:$0xff]
    %v361 = vld [vmem:[#allocation16 + $0x48] sm:$0xff]
    %v362 = vld [vmem:[#allocation16 + $0x50] sm:$0xff]
    %v363 = vld [vmem:[#allocation16 + $0x58] sm:$0xff]
    %v364 = vld [vmem:[#allocation16 + $0x60] sm:$0xff]
    %v365 = vld [vmem:[#allocation16 + $0x68] sm:$0xff]
    %v366 = vld [vmem:[#allocation16 + $0x70] sm:$0xff]
    %v367 = vld [vmem:[#allocation16 + $0x78] sm:$0xff]
    %v368 = vld [vmem:[%s10] sm:$0x1]
    %v369 = vld [vmem:[%s11] sm:$0x1]
    %v370 = vld [vmem:[#allocation17] sm:$0x1]
    %v372 = vperm.slane %v299, 0
    %v373 = vperm.slane %v299, 1
    %v374 = vperm.slane %v299, 2
    %378 = vmatpush.msra.mxu0 %v248
    %379 = vmatpush.msra.mxu0 %v245
    %380 = vmatpush.msra.mxu0 %v242
    %381 = vmatpush.msra.mxu0 %v239
    %382 = vmatpush.msra.mxu0 %v236
    %383 = vmatpush.msra.mxu0 %v233
    %384 = vmatpush.msra.mxu0 %v230
    %385 = vmatpush.msra.mxu0 %v227
    %386 = vmatpush.msra.mxu0 %v224
    %387 = vmatpush.msra.mxu0 %v221
    %388 = vmatpush.msra.mxu0 %v218
    %389 = vmatpush.msra.mxu0 %v215
    %390 = vmatpush.msra.mxu0 %v212
    %391 = vmatpush.msra.mxu0 %v209
    %392 = vmatpush.msra.mxu0 %v206
    %393 = vmatpush.msra.mxu0 %v203
    %394 = vmatmul.f32.gmra.mxu0 %v201
    %v395 = vpop.f32.mrf.mxu0
    %v396 = vadd.f32 %v372, %v395
    %397 = vmatmul.f32.gmra.mxu0 %v202
    %v398 = vpop.f32.mrf.mxu0
    %v399 = vadd.f32 %v372, %v398
    %400 = vdwg.mxu0
    %401 = vmatpush.msra.mxu0 %v249
    %402 = vmatpush.msra.mxu0 %v246
    %403 = vmatpush.msra.mxu0 %v243
    %404 = vmatpush.msra.mxu0 %v240
    %405 = vmatpush.msra.mxu0 %v237
    %406 = vmatpush.msra.mxu0 %v234
    %407 = vmatpush.msra.mxu0 %v231
    %408 = vmatpush.msra.mxu0 %v228
    %409 = vmatpush.msra.mxu0 %v225
    %410 = vmatpush.msra.mxu0 %v222
    %411 = vmatpush.msra.mxu0 %v219
    %412 = vmatpush.msra.mxu0 %v216
    %413 = vmatpush.msra.mxu0 %v213
    %414 = vmatpush.msra.mxu0 %v210
    %415 = vmatpush.msra.mxu0 %v207
    %416 = vmatpush.msra.mxu0 %v204
    %417 = vmatmul.f32.gmra.mxu0 %v201
    %v418 = vpop.f32.mrf.mxu0
    %v419 = vadd.f32 %v373, %v418
    %420 = vmatmul.f32.gmra.mxu0 %v202
    %v421 = vpop.f32.mrf.mxu0
    %v422 = vadd.f32 %v373, %v421
    %423 = vdwg.mxu0
    %424 = vmatpush.msra.mxu0 %v250
    %425 = vmatpush.msra.mxu0 %v247
    %426 = vmatpush.msra.mxu0 %v244
    %427 = vmatpush.msra.mxu0 %v241
    %428 = vmatpush.msra.mxu0 %v238
    %429 = vmatpush.msra.mxu0 %v235
    %430 = vmatpush.msra.mxu0 %v232
    %431 = vmatpush.msra.mxu0 %v229
    %432 = vmatpush.msra.mxu0 %v226
    %433 = vmatpush.msra.mxu0 %v223
    %434 = vmatpush.msra.mxu0 %v220
    %435 = vmatpush.msra.mxu0 %v217
    %436 = vmatpush.msra.mxu0 %v214
    %437 = vmatpush.msra.mxu0 %v211
    %438 = vmatpush.msra.mxu0 %v208
    %439 = vmatpush.msra.mxu0 %v205
    %440 = vmatmul.f32.gmra.mxu0 %v201
    %v441 = vpop.f32.mrf.mxu0
    %v442 = vadd.f32 %v374, %v441
    %443 = vmatmul.f32.gmra.mxu0 %v202
    %v444 = vpop.f32.mrf.mxu0
    %v445 = vadd.f32 %v374, %v444
    %446 = vdwg.mxu0
    %v448 = vperm.slane %v300, 0
    %v449 = vperm.slane %v300, 1
    %v450 = vperm.slane %v300, 2
    %454 = vmatpush.msra.mxu0 %v296
    %455 = vmatpush.msra.mxu0 %v293
    %456 = vmatpush.msra.mxu0 %v290
    %457 = vmatpush.msra.mxu0 %v287
    %458 = vmatpush.msra.mxu0 %v284
    %459 = vmatpush.msra.mxu0 %v281
    %460 = vmatpush.msra.mxu0 %v278
    %461 = vmatpush.msra.mxu0 %v275
    %462 = vmatpush.msra.mxu0 %v272
    %463 = vmatpush.msra.mxu0 %v269
    %464 = vmatpush.msra.mxu0 %v266
    %465 = vmatpush.msra.mxu0 %v263
    %466 = vmatpush.msra.mxu0 %v260
    %467 = vmatpush.msra.mxu0 %v257
    %468 = vmatpush.msra.mxu0 %v254
    %469 = vmatpush.msra.mxu0 %v251
    %470 = vmatmul.f32.gmra.mxu0 0.0
    %v471 = vpop.f32.mrf.mxu0
    %v472 = vadd.f32 %v448, %v471
    %473 = vdwg.mxu0
    %474 = vmatpush.msra.mxu0 %v297
    %475 = vmatpush.msra.mxu0 %v294
    %476 = vmatpush.msra.mxu0 %v291
    %477 = vmatpush.msra.mxu0 %v288
    %478 = vmatpush.msra.mxu0 %v285
    %479 = vmatpush.msra.mxu0 %v282
    %480 = vmatpush.msra.mxu0 %v279
    %481 = vmatpush.msra.mxu0 %v276
    %482 = vmatpush.msra.mxu0 %v273
    %483 = vmatpush.msra.mxu0 %v270
    %484 = vmatpush.msra.mxu0 %v267
    %485 = vmatpush.msra.mxu0 %v264
    %486 = vmatpush.msra.mxu0 %v261
    %487 = vmatpush.msra.mxu0 %v258
    %488 = vmatpush.msra.mxu0 %v255
    %489 = vmatpush.msra.mxu0 %v252
    %490 = vmatmul.f32.gmra.mxu0 0.0
    %v491 = vpop.f32.mrf.mxu0
    %v492 = vadd.f32 %v449, %v491
    %493 = vdwg.mxu0
    %494 = vmatpush.msra.mxu0 %v298
    %495 = vmatpush.msra.mxu0 %v295
    %496 = vmatpush.msra.mxu0 %v292
    %497 = vmatpush.msra.mxu0 %v289
    %498 = vmatpush.msra.mxu0 %v286
    %499 = vmatpush.msra.mxu0 %v283
    %500 = vmatpush.msra.mxu0 %v280
    %501 = vmatpush.msra.mxu0 %v277
    %502 = vmatpush.msra.mxu0 %v274
    %503 = vmatpush.msra.mxu0 %v271
    %504 = vmatpush.msra.mxu0 %v268
    %505 = vmatpush.msra.mxu0 %v265
    %506 = vmatpush.msra.mxu0 %v262
    %507 = vmatpush.msra.mxu0 %v259
    %508 = vmatpush.msra.mxu0 %v256
    %509 = vmatpush.msra.mxu0 %v253
    %510 = vmatmul.f32.gmra.mxu0 0.0
    %v511 = vpop.f32.mrf.mxu0
    %v512 = vadd.f32 %v450, %v511
    %513 = vdwg.mxu0
    %v515 = vrot.slane %v472, 1
    %v518 = vadd.f32 %v396, %v472
    %v519 = vadd.f32 %v399, %v515
    %v520 = vxor.u32 %v518, 2147483648
    %v521 = vxor.u32 %v519, 2147483648
    %v522 = vmul.f32 %v520, 1.442695
    %v523 = vpow.pop %v522
    %v524 = vmul.f32 %v521, 1.442695
    %v525 = vpow.pop %v524
    %v526 = vadd.f32 %v523, 1.0
    %v527 = vadd.f32 %v525, 1.0
    %v528 = vrcp.pop %v526
    %v529 = vmul.f32 %v526, %v528
    %v530 = vsub.f32 1.0, %v529
    %v531 = vmul.f32 %v528, %v530
    %v532 = vadd.f32 %v528, %v531
    %vm533 = vweird.f32 %v526
    %vm534 = vweird.f32 %v528
    %vm535 = vmor %vm533, %vm534
    %v536 = vsel %vm535, %v528, %v532
    %v537 = vand.u32 2147483647, %v526
    %vm538 = vcmp.eq.f32.partialorder %v537, 8.507059e+37
    %v539 = vand.u32 %v526, 2147483648
    %v540 = vor.u32 1.1754944e-38, %v539
    %v541 = vsel %vm538, %v540, %v536
    %v542 = vmul.f32 1.0, %v541
    %v543 = vrcp.pop %v527
    %v544 = vmul.f32 %v527, %v543
    %v545 = vsub.f32 1.0, %v544
    %v546 = vmul.f32 %v543, %v545
    %v547 = vadd.f32 %v543, %v546
    %vm548 = vweird.f32 %v527
    %vm549 = vweird.f32 %v543
    %vm550 = vmor %vm548, %vm549
    %v551 = vsel %vm550, %v543, %v547
    %v552 = vand.u32 2147483647, %v527
    %vm553 = vcmp.eq.f32.partialorder %v552, 8.507059e+37
    %v554 = vand.u32 %v527, 2147483648
    %v555 = vor.u32 1.1754944e-38, %v554
    %v556 = vsel %vm553, %v555, %v551
    %v557 = vmul.f32 1.0, %v556
    %v559 = vrot.slane %v492, 1
    %v562 = vadd.f32 %v419, %v492
    %v563 = vadd.f32 %v422, %v559
    %v564 = vxor.u32 %v562, 2147483648
    %v565 = vxor.u32 %v563, 2147483648
    %v566 = vmul.f32 %v564, 1.442695
    %v567 = vpow.pop %v566
    %v568 = vmul.f32 %v565, 1.442695
    %v569 = vpow.pop %v568
    %v570 = vadd.f32 %v567, 1.0
    %v571 = vadd.f32 %v569, 1.0
    %v572 = vrcp.pop %v570
    %v573 = vmul.f32 %v570, %v572
    %v574 = vsub.f32 1.0, %v573
    %v575 = vmul.f32 %v572, %v574
    %v576 = vadd.f32 %v572, %v575
    %vm577 = vweird.f32 %v570
    %vm578 = vweird.f32 %v572
    %vm579 = vmor %vm577, %vm578
    %v580 = vsel %vm579, %v572, %v576
    %v581 = vand.u32 2147483647, %v570
    %vm582 = vcmp.eq.f32.partialorder %v581, 8.507059e+37
    %v583 = vand.u32 %v570, 2147483648
    %v584 = vor.u32 1.1754944e-38, %v583
    %v585 = vsel %vm582, %v584, %v580
    %v586 = vmul.f32 1.0, %v585
    %v587 = vrcp.pop %v571
    %v588 = vmul.f32 %v571, %v587
    %v589 = vsub.f32 1.0, %v588
    %v590 = vmul.f32 %v587, %v589
    %v591 = vadd.f32 %v587, %v590
    %vm592 = vweird.f32 %v571
    %vm593 = vweird.f32 %v587
    %vm594 = vmor %vm592, %vm593
    %v595 = vsel %vm594, %v587, %v591
    %v596 = vand.u32 2147483647, %v571
    %vm597 = vcmp.eq.f32.partialorder %v596, 8.507059e+37
    %v598 = vand.u32 %v571, 2147483648
    %v599 = vor.u32 1.1754944e-38, %v598
    %v600 = vsel %vm597, %v599, %v595
    %v601 = vmul.f32 1.0, %v600
    %v603 = vrot.slane %v512, 1
    %v606 = vmul.f32 %v542, %v512
    %v607 = vmul.f32 %v557, %v603
    %v608 = vadd.f32 %v442, %v606
    %v609 = vadd.f32 %v445, %v607
    %v610 = vtanh.pop %v608
    %v611 = vtanh.pop %v609
    %v612 = vsub.f32 0.0, %v610
    %v613 = vsub.f32 0.0, %v611
    %v614 = vmul.f32 %v586, %v612
    %v615 = vmul.f32 %v601, %v613
    %v616 = vadd.f32 %v610, %v614
    %v617 = vadd.f32 %v611, %v615
    %v620 = vrot.slane %v617, 7
    %vm621 = vcmask 1041409
    %v622 = vsel %vm621, %v620, %v616
    %624 = vmatpush.msra.mxu0 %v296
    %625 = vmatpush.msra.mxu0 %v293
    %626 = vmatpush.msra.mxu0 %v290
    %627 = vmatpush.msra.mxu0 %v287
    %628 = vmatpush.msra.mxu0 %v284
    %629 = vmatpush.msra.mxu0 %v281
    %630 = vmatpush.msra.mxu0 %v278
    %631 = vmatpush.msra.mxu0 %v275
    %632 = vmatpush.msra.mxu0 %v272
    %633 = vmatpush.msra.mxu0 %v269
    %634 = vmatpush.msra.mxu0 %v266
    %635 = vmatpush.msra.mxu0 %v263
    %636 = vmatpush.msra.mxu0 %v260
    %637 = vmatpush.msra.mxu0 %v257
    %638 = vmatpush.msra.mxu0 %v254
    %639 = vmatpush.msra.mxu0 %v251
    %640 = vmatmul.f32.gmra.mxu0 %v622
    %v641 = vpop.f32.mrf.mxu0
    %v642 = vadd.f32 %v448, %v641
    %643 = vdwg.mxu0
    %644 = vmatpush.msra.mxu0 %v297
    %645 = vmatpush.msra.mxu0 %v294
    %646 = vmatpush.msra.mxu0 %v291
    %647 = vmatpush.msra.mxu0 %v288
    %648 = vmatpush.msra.mxu0 %v285
    %649 = vmatpush.msra.mxu0 %v282
    %650 = vmatpush.msra.mxu0 %v279
    %651 = vmatpush.msra.mxu0 %v276
    %652 = vmatpush.msra.mxu0 %v273
    %653 = vmatpush.msra.mxu0 %v270
    %654 = vmatpush.msra.mxu0 %v267
    %655 = vmatpush.msra.mxu0 %v264
    %656 = vmatpush.msra.mxu0 %v261
    %657 = vmatpush.msra.mxu0 %v258
    %658 = vmatpush.msra.mxu0 %v255
    %659 = vmatpush.msra.mxu0 %v252
    %660 = vmatmul.f32.gmra.mxu0 %v622
    %v661 = vpop.f32.mrf.mxu0
    %v662 = vadd.f32 %v449, %v661
    %663 = vdwg.mxu0
    %664 = vmatpush.msra.mxu0 %v298
    %665 = vmatpush.msra.mxu0 %v295
    %666 = vmatpush.msra.mxu0 %v292
    %667 = vmatpush.msra.mxu0 %v289
    %668 = vmatpush.msra.mxu0 %v286
    %669 = vmatpush.msra.mxu0 %v283
    %670 = vmatpush.msra.mxu0 %v280
    %671 = vmatpush.msra.mxu0 %v277
    %672 = vmatpush.msra.mxu0 %v274
    %673 = vmatpush.msra.mxu0 %v271
    %674 = vmatpush.msra.mxu0 %v268
    %675 = vmatpush.msra.mxu0 %v265
    %676 = vmatpush.msra.mxu0 %v262
    %677 = vmatpush.msra.mxu0 %v259
    %678 = vmatpush.msra.mxu0 %v256
    %679 = vmatpush.msra.mxu0 %v253
    %680 = vmatmul.f32.gmra.mxu0 %v622
    %v681 = vpop.f32.mrf.mxu0
    %v682 = vadd.f32 %v450, %v681
    %683 = vdwg.mxu0
    %v685 = vrot.slane %v642, 7
    %v688 = vadd.f32 %v396, %v685
    %v689 = vadd.f32 %v399, %v642
    %v690 = vxor.u32 %v688, 2147483648
    %v691 = vxor.u32 %v689, 2147483648
    %v692 = vmul.f32 %v690, 1.442695
    %v693 = vpow.pop %v692
    %v694 = vmul.f32 %v691, 1.442695
    %v695 = vpow.pop %v694
    %v696 = vadd.f32 %v693, 1.0
    %v697 = vadd.f32 %v695, 1.0
    %v698 = vrcp.pop %v696
    %v699 = vmul.f32 %v696, %v698
    %v700 = vsub.f32 1.0, %v699
    %v701 = vmul.f32 %v698, %v700
    %v702 = vadd.f32 %v698, %v701
    %vm703 = vweird.f32 %v696
    %vm704 = vweird.f32 %v698
    %vm705 = vmor %vm703, %vm704
    %v706 = vsel %vm705, %v698, %v702
    %v707 = vand.u32 2147483647, %v696
    %vm708 = vcmp.eq.f32.partialorder %v707, 8.507059e+37
    %v709 = vand.u32 %v696, 2147483648
    %v710 = vor.u32 1.1754944e-38, %v709
    %v711 = vsel %vm708, %v710, %v706
    %v712 = vmul.f32 1.0, %v711
    %v713 = vrcp.pop %v697
    %v714 = vmul.f32 %v697, %v713
    %v715 = vsub.f32 1.0, %v714
    %v716 = vmul.f32 %v713, %v715
    %v717 = vadd.f32 %v713, %v716
    %vm718 = vweird.f32 %v697
    %vm719 = vweird.f32 %v713
    %vm720 = vmor %vm718, %vm719
    %v721 = vsel %vm720, %v713, %v717
    %v722 = vand.u32 2147483647, %v697
    %vm723 = vcmp.eq.f32.partialorder %v722, 8.507059e+37
    %v724 = vand.u32 %v697, 2147483648
    %v725 = vor.u32 1.1754944e-38, %v724
    %v726 = vsel %vm723, %v725, %v721
    %v727 = vmul.f32 1.0, %v726
    %v729 = vrot.slane %v662, 7
    %v732 = vadd.f32 %v419, %v729
    %v733 = vadd.f32 %v422, %v662
    %v734 = vxor.u32 %v732, 2147483648
    %v735 = vxor.u32 %v733, 2147483648
    %v736 = vmul.f32 %v734, 1.442695
    %v737 = vpow.pop %v736
    %v738 = vmul.f32 %v735, 1.442695
    %v739 = vpow.pop %v738
    %v740 = vadd.f32 %v737, 1.0
    %v741 = vadd.f32 %v739, 1.0
    %v742 = vrcp.pop %v740
    %v743 = vmul.f32 %v740, %v742
    %v744 = vsub.f32 1.0, %v743
    %v745 = vmul.f32 %v742, %v744
    %v746 = vadd.f32 %v742, %v745
    %vm747 = vweird.f32 %v740
    %vm748 = vweird.f32 %v742
    %vm749 = vmor %vm747, %vm748
    %v750 = vsel %vm749, %v742, %v746
    %v751 = vand.u32 2147483647, %v740
    %vm752 = vcmp.eq.f32.partialorder %v751, 8.507059e+37
    %v753 = vand.u32 %v740, 2147483648
    %v754 = vor.u32 1.1754944e-38, %v753
    %v755 = vsel %vm752, %v754, %v750
    %v756 = vmul.f32 1.0, %v755
    %v757 = vrcp.pop %v741
    %v758 = vmul.f32 %v741, %v757
    %v759 = vsub.f32 1.0, %v758
    %v760 = vmul.f32 %v757, %v759
    %v761 = vadd.f32 %v757, %v760
    %vm762 = vweird.f32 %v741
    %vm763 = vweird.f32 %v757
    %vm764 = vmor %vm762, %vm763
    %v765 = vsel %vm764, %v757, %v761
    %v766 = vand.u32 2147483647, %v741
    %vm767 = vcmp.eq.f32.partialorder %v766, 8.507059e+37
    %v768 = vand.u32 %v741, 2147483648
    %v769 = vor.u32 1.1754944e-38, %v768
    %v770 = vsel %vm767, %v769, %v765
    %v771 = vmul.f32 1.0, %v770
    %v773 = vrot.slane %v682, 7
    %v776 = vmul.f32 %v712, %v773
    %v777 = vmul.f32 %v727, %v682
    %v778 = vadd.f32 %v442, %v776
    %v779 = vadd.f32 %v445, %v777
    %v780 = vtanh.pop %v778
    %v781 = vtanh.pop %v779
    %v784 = vrot.slane %v780, 1
    %v785 = vrot.slane %v781, 1
    %v788 = vsub.f32 %v616, %v784
    %v789 = vsub.f32 %v617, %v785
    %v792 = vrot.slane %v788, 7
    %v793 = vrot.slane %v789, 7
    %v796 = vmul.f32 %v756, %v792
    %v797 = vmul.f32 %v771, %v793
    %v798 = vadd.f32 %v780, %v796
    %v799 = vadd.f32 %v781, %v797
    %v802 = vrot.slane %v798, 1
    %v803 = vsel %vm621, %v799, %v802
    %805 = vmatpush.msra.mxu0 %v296
    %806 = vmatpush.msra.mxu0 %v293
    %807 = vmatpush.msra.mxu0 %v290
    %808 = vmatpush.msra.mxu0 %v287
    %809 = vmatpush.msra.mxu0 %v284
    %810 = vmatpush.msra.mxu0 %v281
    %811 = vmatpush.msra.mxu0 %v278
    %812 = vmatpush.msra.mxu0 %v275
    %813 = vmatpush.msra.mxu0 %v272
    %814 = vmatpush.msra.mxu0 %v269
    %815 = vmatpush.msra.mxu0 %v266
    %816 = vmatpush.msra.mxu0 %v263
    %817 = vmatpush.msra.mxu0 %v260
    %818 = vmatpush.msra.mxu0 %v257
    %819 = vmatpush.msra.mxu0 %v254
    %820 = vmatpush.msra.mxu0 %v251
    %821 = vmatmul.f32.gmra.mxu0 %v803
    %v822 = vpop.f32.mrf.mxu0
    %v823 = vadd.f32 %v448, %v822
    %824 = vdwg.mxu0
    %825 = vmatpush.msra.mxu0 %v297
    %826 = vmatpush.msra.mxu0 %v294
    %827 = vmatpush.msra.mxu0 %v291
    %828 = vmatpush.msra.mxu0 %v288
    %829 = vmatpush.msra.mxu0 %v285
    %830 = vmatpush.msra.mxu0 %v282
    %831 = vmatpush.msra.mxu0 %v279
    %832 = vmatpush.msra.mxu0 %v276
    %833 = vmatpush.msra.mxu0 %v273
    %834 = vmatpush.msra.mxu0 %v270
    %835 = vmatpush.msra.mxu0 %v267
    %836 = vmatpush.msra.mxu0 %v264
    %837 = vmatpush.msra.mxu0 %v261
    %838 = vmatpush.msra.mxu0 %v258
    %839 = vmatpush.msra.mxu0 %v255
    %840 = vmatpush.msra.mxu0 %v252
    %841 = vmatmul.f32.gmra.mxu0 %v803
    %v842 = vpop.f32.mrf.mxu0
    %v843 = vadd.f32 %v449, %v842
    %844 = vdwg.mxu0
    %845 = vmatpush.msra.mxu0 %v298
    %846 = vmatpush.msra.mxu0 %v295
    %847 = vmatpush.msra.mxu0 %v292
    %848 = vmatpush.msra.mxu0 %v289
    %849 = vmatpush.msra.mxu0 %v286
    %850 = vmatpush.msra.mxu0 %v283
    %851 = vmatpush.msra.mxu0 %v280
    %852 = vmatpush.msra.mxu0 %v277
    %853 = vmatpush.msra.mxu0 %v274
    %854 = vmatpush.msra.mxu0 %v271
    %855 = vmatpush.msra.mxu0 %v268
    %856 = vmatpush.msra.mxu0 %v265
    %857 = vmatpush.msra.mxu0 %v262
    %858 = vmatpush.msra.mxu0 %v259
    %859 = vmatpush.msra.mxu0 %v256
    %860 = vmatpush.msra.mxu0 %v253
    %861 = vmatmul.f32.gmra.mxu0 %v803
    %v862 = vpop.f32.mrf.mxu0
    %v863 = vadd.f32 %v450, %v862
    %864 = vdwg.mxu0
    %v866 = vrot.slane %v823, 6
    %v867 = vrot.slane %v823, 7
    %v870 = vadd.f32 %v396, %v866
    %v871 = vadd.f32 %v399, %v867
    %v872 = vxor.u32 %v870, 2147483648
    %v873 = vxor.u32 %v871, 2147483648
    %v874 = vmul.f32 %v872, 1.442695
    %v875 = vpow.pop %v874
    %v876 = vmul.f32 %v873, 1.442695
    %v877 = vpow.pop %v876
    %v878 = vadd.f32 %v875, 1.0
    %v879 = vadd.f32 %v877, 1.0
    %v880 = vrcp.pop %v878
    %v881 = vmul.f32 %v878, %v880
    %v882 = vsub.f32 1.0, %v881
    %v883 = vmul.f32 %v880, %v882
    %v884 = vadd.f32 %v880, %v883
    %vm885 = vweird.f32 %v878
    %vm886 = vweird.f32 %v880
    %vm887 = vmor %vm885, %vm886
    %v888 = vsel %vm887, %v880, %v884
    %v889 = vand.u32 2147483647, %v878
    %vm890 = vcmp.eq.f32.partialorder %v889, 8.507059e+37
    %v891 = vand.u32 %v878, 2147483648
    %v892 = vor.u32 1.1754944e-38, %v891
    %v893 = vsel %vm890, %v892, %v888
    %v894 = vmul.f32 1.0, %v893
    %v895 = vrcp.pop %v879
    %v896 = vmul.f32 %v879, %v895
    %v897 = vsub.f32 1.0, %v896
    %v898 = vmul.f32 %v895, %v897
    %v899 = vadd.f32 %v895, %v898
    %vm900 = vweird.f32 %v879
    %vm901 = vweird.f32 %v895
    %vm902 = vmor %vm900, %vm901
    %v903 = vsel %vm902, %v895, %v899
    %v904 = vand.u32 2147483647, %v879
    %vm905 = vcmp.eq.f32.partialorder %v904, 8.507059e+37
    %v906 = vand.u32 %v879, 2147483648
    %v907 = vor.u32 1.1754944e-38, %v906
    %v908 = vsel %vm905, %v907, %v903
    %v909 = vmul.f32 1.0, %v908
    %v911 = vrot.slane %v843, 6
    %v912 = vrot.slane %v843, 7
    %v915 = vadd.f32 %v419, %v911
    %v916 = vadd.f32 %v422, %v912
    %v917 = vxor.u32 %v915, 2147483648
    %v918 = vxor.u32 %v916, 2147483648
    %v919 = vmul.f32 %v917, 1.442695
    %v920 = vpow.pop %v919
    %v921 = vmul.f32 %v918, 1.442695
    %v922 = vpow.pop %v921
    %v923 = vadd.f32 %v920, 1.0
    %v924 = vadd.f32 %v922, 1.0
    %v925 = vrcp.pop %v923
    %v926 = vmul.f32 %v923, %v925
    %v927 = vsub.f32 1.0, %v926
    %v928 = vmul.f32 %v925, %v927
    %v929 = vadd.f32 %v925, %v928
    %vm930 = vweird.f32 %v923
    %vm931 = vweird.f32 %v925
    %vm932 = vmor %vm930, %vm931
    %v933 = vsel %vm932, %v925, %v929
    %v934 = vand.u32 2147483647, %v923
    %vm935 = vcmp.eq.f32.partialorder %v934, 8.507059e+37
    %v936 = vand.u32 %v923, 2147483648
    %v937 = vor.u32 1.1754944e-38, %v936
    %v938 = vsel %vm935, %v937, %v933
    %v939 = vmul.f32 1.0, %v938
    %v940 = vrcp.pop %v924
    %v941 = vmul.f32 %v924, %v940
    %v942 = vsub.f32 1.0, %v941
    %v943 = vmul.f32 %v940, %v942
    %v944 = vadd.f32 %v940, %v943
    %vm945 = vweird.f32 %v924
    %vm946 = vweird.f32 %v940
    %vm947 = vmor %vm945, %vm946
    %v948 = vsel %vm947, %v940, %v944
    %v949 = vand.u32 2147483647, %v924
    %vm950 = vcmp.eq.f32.partialorder %v949, 8.507059e+37
    %v951 = vand.u32 %v924, 2147483648
    %v952 = vor.u32 1.1754944e-38, %v951
    %v953 = vsel %vm950, %v952, %v948
    %v954 = vmul.f32 1.0, %v953
    %v956 = vrot.slane %v863, 6
    %v957 = vrot.slane %v863, 7
    %v960 = vmul.f32 %v894, %v956
    %v961 = vmul.f32 %v909, %v957
    %v962 = vadd.f32 %v442, %v960
    %v963 = vadd.f32 %v445, %v961
    %v964 = vtanh.pop %v962
    %v965 = vtanh.pop %v963
    %v968 = vrot.slane %v964, 1
    %v969 = vrot.slane %v965, 1
    %v972 = vsub.f32 %v798, %v968
    %v973 = vsub.f32 %v799, %v969
    %v976 = vrot.slane %v972, 7
    %v977 = vrot.slane %v973, 7
    %v980 = vmul.f32 %v939, %v976
    %v981 = vmul.f32 %v954, %v977
    %v982 = vadd.f32 %v964, %v980
    %v983 = vadd.f32 %v965, %v981
    %v986 = vrot.slane %v982, 2
    %v987 = vrot.slane %v983, 1
    %v988 = vsel %vm621, %v987, %v986
    %990 = vmatpush.msra.mxu0 %v296
    %991 = vmatpush.msra.mxu0 %v293
    %992 = vmatpush.msra.mxu0 %v290
    %993 = vmatpush.msra.mxu0 %v287
    %994 = vmatpush.msra.mxu0 %v284
    %995 = vmatpush.msra.mxu0 %v281
    %996 = vmatpush.msra.mxu0 %v278
    %997 = vmatpush.msra.mxu0 %v275
    %998 = vmatpush.msra.mxu0 %v272
    %999 = vmatpush.msra.mxu0 %v269
    %1000 = vmatpush.msra.mxu0 %v266
    %1001 = vmatpush.msra.mxu0 %v263
    %1002 = vmatpush.msra.mxu0 %v260
    %1003 = vmatpush.msra.mxu0 %v257
    %1004 = vmatpush.msra.mxu0 %v254
    %1005 = vmatpush.msra.mxu0 %v251
    %1006 = vmatmul.f32.gmra.mxu0 %v988
    %v1007 = vpop.f32.mrf.mxu0
    %v1008 = vadd.f32 %v448, %v1007
    %1009 = vdwg.mxu0
    %1010 = vmatpush.msra.mxu0 %v297
    %1011 = vmatpush.msra.mxu0 %v294
    %1012 = vmatpush.msra.mxu0 %v291
    %1013 = vmatpush.msra.mxu0 %v288
    %1014 = vmatpush.msra.mxu0 %v285
    %1015 = vmatpush.msra.mxu0 %v282
    %1016 = vmatpush.msra.mxu0 %v279
    %1017 = vmatpush.msra.mxu0 %v276
    %1018 = vmatpush.msra.mxu0 %v273
    %1019 = vmatpush.msra.mxu0 %v270
    %1020 = vmatpush.msra.mxu0 %v267
    %1021 = vmatpush.msra.mxu0 %v264
    %1022 = vmatpush.msra.mxu0 %v261
    %1023 = vmatpush.msra.mxu0 %v258
    %1024 = vmatpush.msra.mxu0 %v255
    %1025 = vmatpush.msra.mxu0 %v252
    %1026 = vmatmul.f32.gmra.mxu0 %v988
    %v1027 = vpop.f32.mrf.mxu0
    %v1028 = vadd.f32 %v449, %v1027
    %1029 = vdwg.mxu0
    %1030 = vmatpush.msra.mxu0 %v298
    %1031 = vmatpush.msra.mxu0 %v295
    %1032 = vmatpush.msra.mxu0 %v292
    %1033 = vmatpush.msra.mxu0 %v289
    %1034 = vmatpush.msra.mxu0 %v286
    %1035 = vmatpush.msra.mxu0 %v283
    %1036 = vmatpush.msra.mxu0 %v280
    %1037 = vmatpush.msra.mxu0 %v277
    %1038 = vmatpush.msra.mxu0 %v274
    %1039 = vmatpush.msra.mxu0 %v271
    %1040 = vmatpush.msra.mxu0 %v268
    %1041 = vmatpush.msra.mxu0 %v265
    %1042 = vmatpush.msra.mxu0 %v262
    %1043 = vmatpush.msra.mxu0 %v259
    %1044 = vmatpush.msra.mxu0 %v256
    %1045 = vmatpush.msra.mxu0 %v253
    %1046 = vmatmul.f32.gmra.mxu0 %v988
    %v1047 = vpop.f32.mrf.mxu0
    %v1048 = vadd.f32 %v450, %v1047
    %1049 = vdwg.mxu0
    %v1051 = vrot.slane %v1008, 5
    %v1052 = vrot.slane %v1008, 6
    %v1055 = vadd.f32 %v396, %v1051
    %v1056 = vadd.f32 %v399, %v1052
    %v1057 = vxor.u32 %v1055, 2147483648
    %v1058 = vxor.u32 %v1056, 2147483648
    %v1059 = vmul.f32 %v1057, 1.442695
    %v1060 = vpow.pop %v1059
    %v1061 = vmul.f32 %v1058, 1.442695
    %v1062 = vpow.pop %v1061
    %v1063 = vadd.f32 %v1060, 1.0
    %v1064 = vadd.f32 %v1062, 1.0
    %v1065 = vrcp.pop %v1063
    %v1066 = vmul.f32 %v1063, %v1065
    %v1067 = vsub.f32 1.0, %v1066
    %v1068 = vmul.f32 %v1065, %v1067
    %v1069 = vadd.f32 %v1065, %v1068
    %vm1070 = vweird.f32 %v1063
    %vm1071 = vweird.f32 %v1065
    %vm1072 = vmor %vm1070, %vm1071
    %v1073 = vsel %vm1072, %v1065, %v1069
    %v1074 = vand.u32 2147483647, %v1063
    %vm1075 = vcmp.eq.f32.partialorder %v1074, 8.507059e+37
    %v1076 = vand.u32 %v1063, 2147483648
    %v1077 = vor.u32 1.1754944e-38, %v1076
    %v1078 = vsel %vm1075, %v1077, %v1073
    %v1079 = vmul.f32 1.0, %v1078
    %v1080 = vrcp.pop %v1064
    %v1081 = vmul.f32 %v1064, %v1080
    %v1082 = vsub.f32 1.0, %v1081
    %v1083 = vmul.f32 %v1080, %v1082
    %v1084 = vadd.f32 %v1080, %v1083
    %vm1085 = vweird.f32 %v1064
    %vm1086 = vweird.f32 %v1080
    %vm1087 = vmor %vm1085, %vm1086
    %v1088 = vsel %vm1087, %v1080, %v1084
    %v1089 = vand.u32 2147483647, %v1064
    %vm1090 = vcmp.eq.f32.partialorder %v1089, 8.507059e+37
    %v1091 = vand.u32 %v1064, 2147483648
    %v1092 = vor.u32 1.1754944e-38, %v1091
    %v1093 = vsel %vm1090, %v1092, %v1088
    %v1094 = vmul.f32 1.0, %v1093
    %v1096 = vrot.slane %v1028, 5
    %v1097 = vrot.slane %v1028, 6
    %v1100 = vadd.f32 %v419, %v1096
    %v1101 = vadd.f32 %v422, %v1097
    %v1102 = vxor.u32 %v1100, 2147483648
    %v1103 = vxor.u32 %v1101, 2147483648
    %v1104 = vmul.f32 %v1102, 1.442695
    %v1105 = vpow.pop %v1104
    %v1106 = vmul.f32 %v1103, 1.442695
    %v1107 = vpow.pop %v1106
    %v1108 = vadd.f32 %v1105, 1.0
    %v1109 = vadd.f32 %v1107, 1.0
    %v1110 = vrcp.pop %v1108
    %v1111 = vmul.f32 %v1108, %v1110
    %v1112 = vsub.f32 1.0, %v1111
    %v1113 = vmul.f32 %v1110, %v1112
    %v1114 = vadd.f32 %v1110, %v1113
    %vm1115 = vweird.f32 %v1108
    %vm1116 = vweird.f32 %v1110
    %vm1117 = vmor %vm1115, %vm1116
    %v1118 = vsel %vm1117, %v1110, %v1114
    %v1119 = vand.u32 2147483647, %v1108
    %vm1120 = vcmp.eq.f32.partialorder %v1119, 8.507059e+37
    %v1121 = vand.u32 %v1108, 2147483648
    %v1122 = vor.u32 1.1754944e-38, %v1121
    %v1123 = vsel %vm1120, %v1122, %v1118
    %v1124 = vmul.f32 1.0, %v1123
    %v1125 = vrcp.pop %v1109
    %v1126 = vmul.f32 %v1109, %v1125
    %v1127 = vsub.f32 1.0, %v1126
    %v1128 = vmul.f32 %v1125, %v1127
    %v1129 = vadd.f32 %v1125, %v1128
    %vm1130 = vweird.f32 %v1109
    %vm1131 = vweird.f32 %v1125
    %vm1132 = vmor %vm1130, %vm1131
    %v1133 = vsel %vm1132, %v1125, %v1129
    %v1134 = vand.u32 2147483647, %v1109
    %vm1135 = vcmp.eq.f32.partialorder %v1134, 8.507059e+37
    %v1136 = vand.u32 %v1109, 2147483648
    %v1137 = vor.u32 1.1754944e-38, %v1136
    %v1138 = vsel %vm1135, %v1137, %v1133
    %v1139 = vmul.f32 1.0, %v1138
    %v1141 = vrot.slane %v1048, 5
    %v1142 = vrot.slane %v1048, 6
    %v1145 = vmul.f32 %v1079, %v1141
    %v1146 = vmul.f32 %v1094, %v1142
    %v1147 = vadd.f32 %v442, %v1145
    %v1148 = vadd.f32 %v445, %v1146
    %v1149 = vtanh.pop %v1147
    %v1150 = vtanh.pop %v1148
    %v1153 = vrot.slane %v1149, 1
    %v1154 = vrot.slane %v1150, 1
    %v1157 = vsub.f32 %v982, %v1153
    %v1158 = vsub.f32 %v983, %v1154
    %v1161 = vrot.slane %v1157, 7
    %v1162 = vrot.slane %v1158, 7
    %v1165 = vmul.f32 %v1124, %v1161
    %v1166 = vmul.f32 %v1139, %v1162
    %v1167 = vadd.f32 %v1149, %v1165
    %v1168 = vadd.f32 %v1150, %v1166
    %v1171 = vrot.slane %v1167, 3
    %v1172 = vrot.slane %v1168, 2
    %v1173 = vsel %vm621, %v1172, %v1171
    %1175 = vmatpush.msra.mxu0 %v296
    %1176 = vmatpush.msra.mxu0 %v293
    %1177 = vmatpush.msra.mxu0 %v290
    %1178 = vmatpush.msra.mxu0 %v287
    %1179 = vmatpush.msra.mxu0 %v284
    %1180 = vmatpush.msra.mxu0 %v281
    %1181 = vmatpush.msra.mxu0 %v278
    %1182 = vmatpush.msra.mxu0 %v275
    %1183 = vmatpush.msra.mxu0 %v272
    %1184 = vmatpush.msra.mxu0 %v269
    %1185 = vmatpush.msra.mxu0 %v266
    %1186 = vmatpush.msra.mxu0 %v263
    %1187 = vmatpush.msra.mxu0 %v260
    %1188 = vmatpush.msra.mxu0 %v257
    %1189 = vmatpush.msra.mxu0 %v254
    %1190 = vmatpush.msra.mxu0 %v251
    %1191 = vmatmul.f32.gmra.mxu0 %v1173
    %v1192 = vpop.f32.mrf.mxu0
    %v1193 = vadd.f32 %v448, %v1192
    %1194 = vdwg.mxu0
    %1195 = vmatpush.msra.mxu0 %v297
    %1196 = vmatpush.msra.mxu0 %v294
    %1197 = vmatpush.msra.mxu0 %v291
    %1198 = vmatpush.msra.mxu0 %v288
    %1199 = vmatpush.msra.mxu0 %v285
    %1200 = vmatpush.msra.mxu0 %v282
    %1201 = vmatpush.msra.mxu0 %v279
    %1202 = vmatpush.msra.mxu0 %v276
    %1203 = vmatpush.msra.mxu0 %v273
    %1204 = vmatpush.msra.mxu0 %v270
    %1205 = vmatpush.msra.mxu0 %v267
    %1206 = vmatpush.msra.mxu0 %v264
    %1207 = vmatpush.msra.mxu0 %v261
    %1208 = vmatpush.msra.mxu0 %v258
    %1209 = vmatpush.msra.mxu0 %v255
    %1210 = vmatpush.msra.mxu0 %v252
    %1211 = vmatmul.f32.gmra.mxu0 %v1173
    %v1212 = vpop.f32.mrf.mxu0
    %v1213 = vadd.f32 %v449, %v1212
    %1214 = vdwg.mxu0
    %1215 = vmatpush.msra.mxu0 %v298
    %1216 = vmatpush.msra.mxu0 %v295
    %1217 = vmatpush.msra.mxu0 %v292
    %1218 = vmatpush.msra.mxu0 %v289
    %1219 = vmatpush.msra.mxu0 %v286
    %1220 = vmatpush.msra.mxu0 %v283
    %1221 = vmatpush.msra.mxu0 %v280
    %1222 = vmatpush.msra.mxu0 %v277
    %1223 = vmatpush.msra.mxu0 %v274
    %1224 = vmatpush.msra.mxu0 %v271
    %1225 = vmatpush.msra.mxu0 %v268
    %1226 = vmatpush.msra.mxu0 %v265
    %1227 = vmatpush.msra.mxu0 %v262
    %1228 = vmatpush.msra.mxu0 %v259
    %1229 = vmatpush.msra.mxu0 %v256
    %1230 = vmatpush.msra.mxu0 %v253
    %1231 = vmatmul.f32.gmra.mxu0 %v1173
    %v1232 = vpop.f32.mrf.mxu0
    %v1233 = vadd.f32 %v450, %v1232
    %1234 = vdwg.mxu0
    %v1236 = vrot.slane %v1193, 4
    %v1237 = vrot.slane %v1193, 5
    %v1240 = vadd.f32 %v396, %v1236
    %v1241 = vadd.f32 %v399, %v1237
    %v1242 = vxor.u32 %v1240, 2147483648
    %v1243 = vxor.u32 %v1241, 2147483648
    %v1244 = vmul.f32 %v1242, 1.442695
    %v1245 = vpow.pop %v1244
    %v1246 = vmul.f32 %v1243, 1.442695
    %v1247 = vpow.pop %v1246
    %v1248 = vadd.f32 %v1245, 1.0
    %v1249 = vadd.f32 %v1247, 1.0
    %v1250 = vrcp.pop %v1248
    %v1251 = vmul.f32 %v1248, %v1250
    %v1252 = vsub.f32 1.0, %v1251
    %v1253 = vmul.f32 %v1250, %v1252
    %v1254 = vadd.f32 %v1250, %v1253
    %vm1255 = vweird.f32 %v1248
    %vm1256 = vweird.f32 %v1250
    %vm1257 = vmor %vm1255, %vm1256
    %v1258 = vsel %vm1257, %v1250, %v1254
    %v1259 = vand.u32 2147483647, %v1248
    %vm1260 = vcmp.eq.f32.partialorder %v1259, 8.507059e+37
    %v1261 = vand.u32 %v1248, 2147483648
    %v1262 = vor.u32 1.1754944e-38, %v1261
    %v1263 = vsel %vm1260, %v1262, %v1258
    %v1264 = vmul.f32 1.0, %v1263
    %v1265 = vrcp.pop %v1249
    %v1266 = vmul.f32 %v1249, %v1265
    %v1267 = vsub.f32 1.0, %v1266
    %v1268 = vmul.f32 %v1265, %v1267
    %v1269 = vadd.f32 %v1265, %v1268
    %vm1270 = vweird.f32 %v1249
    %vm1271 = vweird.f32 %v1265
    %vm1272 = vmor %vm1270, %vm1271
    %v1273 = vsel %vm1272, %v1265, %v1269
    %v1274 = vand.u32 2147483647, %v1249
    %vm1275 = vcmp.eq.f32.partialorder %v1274, 8.507059e+37
    %v1276 = vand.u32 %v1249, 2147483648
    %v1277 = vor.u32 1.1754944e-38, %v1276
    %v1278 = vsel %vm1275, %v1277, %v1273
    %v1279 = vmul.f32 1.0, %v1278
    %v1281 = vrot.slane %v1213, 4
    %v1282 = vrot.slane %v1213, 5
    %v1285 = vadd.f32 %v419, %v1281
    %v1286 = vadd.f32 %v422, %v1282
    %v1287 = vxor.u32 %v1285, 2147483648
    %v1288 = vxor.u32 %v1286, 2147483648
    %v1289 = vmul.f32 %v1287, 1.442695
    %v1290 = vpow.pop %v1289
    %v1291 = vmul.f32 %v1288, 1.442695
    %v1292 = vpow.pop %v1291
    %v1293 = vadd.f32 %v1290, 1.0
    %v1294 = vadd.f32 %v1292, 1.0
    %v1295 = vrcp.pop %v1293
    %v1296 = vmul.f32 %v1293, %v1295
    %v1297 = vsub.f32 1.0, %v1296
    %v1298 = vmul.f32 %v1295, %v1297
    %v1299 = vadd.f32 %v1295, %v1298
    %vm1300 = vweird.f32 %v1293
    %vm1301 = vweird.f32 %v1295
    %vm1302 = vmor %vm1300, %vm1301
    %v1303 = vsel %vm1302, %v1295, %v1299
    %v1304 = vand.u32 2147483647, %v1293
    %vm1305 = vcmp.eq.f32.partialorder %v1304, 8.507059e+37
    %v1306 = vand.u32 %v1293, 2147483648
    %v1307 = vor.u32 1.1754944e-38, %v1306
    %v1308 = vsel %vm1305, %v1307, %v1303
    %v1309 = vmul.f32 1.0, %v1308
    %v1310 = vrcp.pop %v1294
    %v1311 = vmul.f32 %v1294, %v1310
    %v1312 = vsub.f32 1.0, %v1311
    %v1313 = vmul.f32 %v1310, %v1312
    %v1314 = vadd.f32 %v1310, %v1313
    %vm1315 = vweird.f32 %v1294
    %vm1316 = vweird.f32 %v1310
    %vm1317 = vmor %vm1315, %vm1316
    %v1318 = vsel %vm1317, %v1310, %v1314
    %v1319 = vand.u32 2147483647, %v1294
    %vm1320 = vcmp.eq.f32.partialorder %v1319, 8.507059e+37
    %v1321 = vand.u32 %v1294, 2147483648
    %v1322 = vor.u32 1.1754944e-38, %v1321
    %v1323 = vsel %vm1320, %v1322, %v1318
    %v1324 = vmul.f32 1.0, %v1323
    %v1326 = vrot.slane %v1233, 4
    %v1327 = vrot.slane %v1233, 5
    %v1330 = vmul.f32 %v1264, %v1326
    %v1331 = vmul.f32 %v1279, %v1327
    %v1332 = vadd.f32 %v442, %v1330
    %v1333 = vadd.f32 %v445, %v1331
    %v1334 = vtanh.pop %v1332
    %v1335 = vtanh.pop %v1333
    %v1338 = vrot.slane %v1334, 1
    %v1339 = vrot.slane %v1335, 1
    %v1342 = vsub.f32 %v1167, %v1338
    %v1343 = vsub.f32 %v1168, %v1339
    %v1346 = vrot.slane %v1342, 7
    %v1347 = vrot.slane %v1343, 7
    %v1350 = vmul.f32 %v1309, %v1346
    %v1351 = vmul.f32 %v1324, %v1347
    %v1352 = vadd.f32 %v1334, %v1350
    %v1353 = vadd.f32 %v1335, %v1351
    %v1356 = vrot.slane %v1352, 4
    %v1357 = vrot.slane %v1353, 3
    %v1358 = vsel %vm621, %v1357, %v1356
    %1360 = vmatpush.msra.mxu0 %v296
    %1361 = vmatpush.msra.mxu0 %v293
    %1362 = vmatpush.msra.mxu0 %v290
    %1363 = vmatpush.msra.mxu0 %v287
    %1364 = vmatpush.msra.mxu0 %v284
    %1365 = vmatpush.msra.mxu0 %v281
    %1366 = vmatpush.msra.mxu0 %v278
    %1367 = vmatpush.msra.mxu0 %v275
    %1368 = vmatpush.msra.mxu0 %v272
    %1369 = vmatpush.msra.mxu0 %v269
    %1370 = vmatpush.msra.mxu0 %v266
    %1371 = vmatpush.msra.mxu0 %v263
    %1372 = vmatpush.msra.mxu0 %v260
    %1373 = vmatpush.msra.mxu0 %v257
    %1374 = vmatpush.msra.mxu0 %v254
    %1375 = vmatpush.msra.mxu0 %v251
    %1376 = vmatmul.f32.gmra.mxu0 %v1358
    %v1377 = vpop.f32.mrf.mxu0
    %v1378 = vadd.f32 %v448, %v1377
    %1379 = vdwg.mxu0
    %1380 = vmatpush.msra.mxu0 %v297
    %1381 = vmatpush.msra.mxu0 %v294
    %1382 = vmatpush.msra.mxu0 %v291
    %1383 = vmatpush.msra.mxu0 %v288
    %1384 = vmatpush.msra.mxu0 %v285
    %1385 = vmatpush.msra.mxu0 %v282
    %1386 = vmatpush.msra.mxu0 %v279
    %1387 = vmatpush.msra.mxu0 %v276
    %1388 = vmatpush.msra.mxu0 %v273
    %1389 = vmatpush.msra.mxu0 %v270
    %1390 = vmatpush.msra.mxu0 %v267
    %1391 = vmatpush.msra.mxu0 %v264
    %1392 = vmatpush.msra.mxu0 %v261
    %1393 = vmatpush.msra.mxu0 %v258
    %1394 = vmatpush.msra.mxu0 %v255
    %1395 = vmatpush.msra.mxu0 %v252
    %1396 = vmatmul.f32.gmra.mxu0 %v1358
    %v1397 = vpop.f32.mrf.mxu0
    %v1398 = vadd.f32 %v449, %v1397
    %1399 = vdwg.mxu0
    %1400 = vmatpush.msra.mxu0 %v298
    %1401 = vmatpush.msra.mxu0 %v295
    %1402 = vmatpush.msra.mxu0 %v292
    %1403 = vmatpush.msra.mxu0 %v289
    %1404 = vmatpush.msra.mxu0 %v286
    %1405 = vmatpush.msra.mxu0 %v283
    %1406 = vmatpush.msra.mxu0 %v280
    %1407 = vmatpush.msra.mxu0 %v277
    %1408 = vmatpush.msra.mxu0 %v274
    %1409 = vmatpush.msra.mxu0 %v271
    %1410 = vmatpush.msra.mxu0 %v268
    %1411 = vmatpush.msra.mxu0 %v265
    %1412 = vmatpush.msra.mxu0 %v262
    %1413 = vmatpush.msra.mxu0 %v259
    %1414 = vmatpush.msra.mxu0 %v256
    %1415 = vmatpush.msra.mxu0 %v253
    %1416 = vmatmul.f32.gmra.mxu0 %v1358
    %v1417 = vpop.f32.mrf.mxu0
    %v1418 = vadd.f32 %v450, %v1417
    %1419 = vdwg.mxu0
    %v1421 = vrot.slane %v1378, 3
    %v1422 = vrot.slane %v1378, 4
    %v1425 = vadd.f32 %v396, %v1421
    %v1426 = vadd.f32 %v399, %v1422
    %v1427 = vxor.u32 %v1425, 2147483648
    %v1428 = vxor.u32 %v1426, 2147483648
    %v1429 = vmul.f32 %v1427, 1.442695
    %v1430 = vpow.pop %v1429
    %v1431 = vmul.f32 %v1428, 1.442695
    %v1432 = vpow.pop %v1431
    %v1433 = vadd.f32 %v1430, 1.0
    %v1434 = vadd.f32 %v1432, 1.0
    %v1435 = vrcp.pop %v1433
    %v1436 = vmul.f32 %v1433, %v1435
    %v1437 = vsub.f32 1.0, %v1436
    %v1438 = vmul.f32 %v1435, %v1437
    %v1439 = vadd.f32 %v1435, %v1438
    %vm1440 = vweird.f32 %v1433
    %vm1441 = vweird.f32 %v1435
    %vm1442 = vmor %vm1440, %vm1441
    %v1443 = vsel %vm1442, %v1435, %v1439
    %v1444 = vand.u32 2147483647, %v1433
    %vm1445 = vcmp.eq.f32.partialorder %v1444, 8.507059e+37
    %v1446 = vand.u32 %v1433, 2147483648
    %v1447 = vor.u32 1.1754944e-38, %v1446
    %v1448 = vsel %vm1445, %v1447, %v1443
    %v1449 = vmul.f32 1.0, %v1448
    %v1450 = vrcp.pop %v1434
    %v1451 = vmul.f32 %v1434, %v1450
    %v1452 = vsub.f32 1.0, %v1451
    %v1453 = vmul.f32 %v1450, %v1452
    %v1454 = vadd.f32 %v1450, %v1453
    %vm1455 = vweird.f32 %v1434
    %vm1456 = vweird.f32 %v1450
    %vm1457 = vmor %vm1455, %vm1456
    %v1458 = vsel %vm1457, %v1450, %v1454
    %v1459 = vand.u32 2147483647, %v1434
    %vm1460 = vcmp.eq.f32.partialorder %v1459, 8.507059e+37
    %v1461 = vand.u32 %v1434, 2147483648
    %v1462 = vor.u32 1.1754944e-38, %v1461
    %v1463 = vsel %vm1460, %v1462, %v1458
    %v1464 = vmul.f32 1.0, %v1463
    %v1466 = vrot.slane %v1398, 3
    %v1467 = vrot.slane %v1398, 4
    %v1470 = vadd.f32 %v419, %v1466
    %v1471 = vadd.f32 %v422, %v1467
    %v1472 = vxor.u32 %v1470, 2147483648
    %v1473 = vxor.u32 %v1471, 2147483648
    %v1474 = vmul.f32 %v1472, 1.442695
    %v1475 = vpow.pop %v1474
    %v1476 = vmul.f32 %v1473, 1.442695
    %v1477 = vpow.pop %v1476
    %v1478 = vadd.f32 %v1475, 1.0
    %v1479 = vadd.f32 %v1477, 1.0
    %v1480 = vrcp.pop %v1478
    %v1481 = vmul.f32 %v1478, %v1480
    %v1482 = vsub.f32 1.0, %v1481
    %v1483 = vmul.f32 %v1480, %v1482
    %v1484 = vadd.f32 %v1480, %v1483
    %vm1485 = vweird.f32 %v1478
    %vm1486 = vweird.f32 %v1480
    %vm1487 = vmor %vm1485, %vm1486
    %v1488 = vsel %vm1487, %v1480, %v1484
    %v1489 = vand.u32 2147483647, %v1478
    %vm1490 = vcmp.eq.f32.partialorder %v1489, 8.507059e+37
    %v1491 = vand.u32 %v1478, 2147483648
    %v1492 = vor.u32 1.1754944e-38, %v1491
    %v1493 = vsel %vm1490, %v1492, %v1488
    %v1494 = vmul.f32 1.0, %v1493
    %v1495 = vrcp.pop %v1479
    %v1496 = vmul.f32 %v1479, %v1495
    %v1497 = vsub.f32 1.0, %v1496
    %v1498 = vmul.f32 %v1495, %v1497
    %v1499 = vadd.f32 %v1495, %v1498
    %vm1500 = vweird.f32 %v1479
    %vm1501 = vweird.f32 %v1495
    %vm1502 = vmor %vm1500, %vm1501
    %v1503 = vsel %vm1502, %v1495, %v1499
    %v1504 = vand.u32 2147483647, %v1479
    %vm1505 = vcmp.eq.f32.partialorder %v1504, 8.507059e+37
    %v1506 = vand.u32 %v1479, 2147483648
    %v1507 = vor.u32 1.1754944e-38, %v1506
    %v1508 = vsel %vm1505, %v1507, %v1503
    %v1509 = vmul.f32 1.0, %v1508
    %v1511 = vrot.slane %v1418, 3
    %v1512 = vrot.slane %v1418, 4
    %v1515 = vmul.f32 %v1449, %v1511
    %v1516 = vmul.f32 %v1464, %v1512
    %v1517 = vadd.f32 %v442, %v1515
    %v1518 = vadd.f32 %v445, %v1516
    %v1519 = vtanh.pop %v1517
    %v1520 = vtanh.pop %v1518
    %v1523 = vrot.slane %v1519, 1
    %v1524 = vrot.slane %v1520, 1
    %v1527 = vsub.f32 %v1352, %v1523
    %v1528 = vsub.f32 %v1353, %v1524
    %v1531 = vrot.slane %v1527, 7
    %v1532 = vrot.slane %v1528, 7
    %v1535 = vmul.f32 %v1494, %v1531
    %v1536 = vmul.f32 %v1509, %v1532
    %v1537 = vadd.f32 %v1519, %v1535
    %v1538 = vadd.f32 %v1520, %v1536
    %v1541 = vrot.slane %v1537, 5
    %v1542 = vrot.slane %v1538, 4
    %v1543 = vsel %vm621, %v1542, %v1541
    %1545 = vmatpush.msra.mxu0 %v296
    %1546 = vmatpush.msra.mxu0 %v293
    %1547 = vmatpush.msra.mxu0 %v290
    %1548 = vmatpush.msra.mxu0 %v287
    %1549 = vmatpush.msra.mxu0 %v284
    %1550 = vmatpush.msra.mxu0 %v281
    %1551 = vmatpush.msra.mxu0 %v278
    %1552 = vmatpush.msra.mxu0 %v275
    %1553 = vmatpush.msra.mxu0 %v272
    %1554 = vmatpush.msra.mxu0 %v269
    %1555 = vmatpush.msra.mxu0 %v266
    %1556 = vmatpush.msra.mxu0 %v263
    %1557 = vmatpush.msra.mxu0 %v260
    %1558 = vmatpush.msra.mxu0 %v257
    %1559 = vmatpush.msra.mxu0 %v254
    %1560 = vmatpush.msra.mxu0 %v251
    %1561 = vmatmul.f32.gmra.mxu0 %v1543
    %v1562 = vpop.f32.mrf.mxu0
    %v1563 = vadd.f32 %v448, %v1562
    %1564 = vdwg.mxu0
    %1565 = vmatpush.msra.mxu0 %v297
    %1566 = vmatpush.msra.mxu0 %v294
    %1567 = vmatpush.msra.mxu0 %v291
    %1568 = vmatpush.msra.mxu0 %v288
    %1569 = vmatpush.msra.mxu0 %v285
    %1570 = vmatpush.msra.mxu0 %v282
    %1571 = vmatpush.msra.mxu0 %v279
    %1572 = vmatpush.msra.mxu0 %v276
    %1573 = vmatpush.msra.mxu0 %v273
    %1574 = vmatpush.msra.mxu0 %v270
    %1575 = vmatpush.msra.mxu0 %v267
    %1576 = vmatpush.msra.mxu0 %v264
    %1577 = vmatpush.msra.mxu0 %v261
    %1578 = vmatpush.msra.mxu0 %v258
    %1579 = vmatpush.msra.mxu0 %v255
    %1580 = vmatpush.msra.mxu0 %v252
    %1581 = vmatmul.f32.gmra.mxu0 %v1543
    %v1582 = vpop.f32.mrf.mxu0
    %v1583 = vadd.f32 %v449, %v1582
    %1584 = vdwg.mxu0
    %1585 = vmatpush.msra.mxu0 %v298
    %1586 = vmatpush.msra.mxu0 %v295
    %1587 = vmatpush.msra.mxu0 %v292
    %1588 = vmatpush.msra.mxu0 %v289
    %1589 = vmatpush.msra.mxu0 %v286
    %1590 = vmatpush.msra.mxu0 %v283
    %1591 = vmatpush.msra.mxu0 %v280
    %1592 = vmatpush.msra.mxu0 %v277
    %1593 = vmatpush.msra.mxu0 %v274
    %1594 = vmatpush.msra.mxu0 %v271
    %1595 = vmatpush.msra.mxu0 %v268
    %1596 = vmatpush.msra.mxu0 %v265
    %1597 = vmatpush.msra.mxu0 %v262
    %1598 = vmatpush.msra.mxu0 %v259
    %1599 = vmatpush.msra.mxu0 %v256
    %1600 = vmatpush.msra.mxu0 %v253
    %1601 = vmatmul.f32.gmra.mxu0 %v1543
    %v1602 = vpop.f32.mrf.mxu0
    %v1603 = vadd.f32 %v450, %v1602
    %1604 = vdwg.mxu0
    %v1606 = vrot.slane %v1563, 2
    %v1607 = vrot.slane %v1563, 3
    %v1610 = vadd.f32 %v396, %v1606
    %v1611 = vadd.f32 %v399, %v1607
    %v1612 = vxor.u32 %v1610, 2147483648
    %v1613 = vxor.u32 %v1611, 2147483648
    %v1614 = vmul.f32 %v1612, 1.442695
    %v1615 = vpow.pop %v1614
    %v1616 = vmul.f32 %v1613, 1.442695
    %v1617 = vpow.pop %v1616
    %v1618 = vadd.f32 %v1615, 1.0
    %v1619 = vadd.f32 %v1617, 1.0
    %v1620 = vrcp.pop %v1618
    %v1621 = vmul.f32 %v1618, %v1620
    %v1622 = vsub.f32 1.0, %v1621
    %v1623 = vmul.f32 %v1620, %v1622
    %v1624 = vadd.f32 %v1620, %v1623
    %vm1625 = vweird.f32 %v1618
    %vm1626 = vweird.f32 %v1620
    %vm1627 = vmor %vm1625, %vm1626
    %v1628 = vsel %vm1627, %v1620, %v1624
    %v1629 = vand.u32 2147483647, %v1618
    %vm1630 = vcmp.eq.f32.partialorder %v1629, 8.507059e+37
    %v1631 = vand.u32 %v1618, 2147483648
    %v1632 = vor.u32 1.1754944e-38, %v1631
    %v1633 = vsel %vm1630, %v1632, %v1628
    %v1634 = vmul.f32 1.0, %v1633
    %v1635 = vrcp.pop %v1619
    %v1636 = vmul.f32 %v1619, %v1635
    %v1637 = vsub.f32 1.0, %v1636
    %v1638 = vmul.f32 %v1635, %v1637
    %v1639 = vadd.f32 %v1635, %v1638
    %vm1640 = vweird.f32 %v1619
    %vm1641 = vweird.f32 %v1635
    %vm1642 = vmor %vm1640, %vm1641
    %v1643 = vsel %vm1642, %v1635, %v1639
    %v1644 = vand.u32 2147483647, %v1619
    %vm1645 = vcmp.eq.f32.partialorder %v1644, 8.507059e+37
    %v1646 = vand.u32 %v1619, 2147483648
    %v1647 = vor.u32 1.1754944e-38, %v1646
    %v1648 = vsel %vm1645, %v1647, %v1643
    %v1649 = vmul.f32 1.0, %v1648
    %v1651 = vrot.slane %v1583, 2
    %v1652 = vrot.slane %v1583, 3
    %v1655 = vadd.f32 %v419, %v1651
    %v1656 = vadd.f32 %v422, %v1652
    %v1657 = vxor.u32 %v1655, 2147483648
    %v1658 = vxor.u32 %v1656, 2147483648
    %v1659 = vmul.f32 %v1657, 1.442695
    %v1660 = vpow.pop %v1659
    %v1661 = vmul.f32 %v1658, 1.442695
    %v1662 = vpow.pop %v1661
    %v1663 = vadd.f32 %v1660, 1.0
    %v1664 = vadd.f32 %v1662, 1.0
    %v1665 = vrcp.pop %v1663
    %v1666 = vmul.f32 %v1663, %v1665
    %v1667 = vsub.f32 1.0, %v1666
    %v1668 = vmul.f32 %v1665, %v1667
    %v1669 = vadd.f32 %v1665, %v1668
    %vm1670 = vweird.f32 %v1663
    %vm1671 = vweird.f32 %v1665
    %vm1672 = vmor %vm1670, %vm1671
    %v1673 = vsel %vm1672, %v1665, %v1669
    %v1674 = vand.u32 2147483647, %v1663
    %vm1675 = vcmp.eq.f32.partialorder %v1674, 8.507059e+37
    %v1676 = vand.u32 %v1663, 2147483648
    %v1677 = vor.u32 1.1754944e-38, %v1676
    %v1678 = vsel %vm1675, %v1677, %v1673
    %v1679 = vmul.f32 1.0, %v1678
    %v1680 = vrcp.pop %v1664
    %v1681 = vmul.f32 %v1664, %v1680
    %v1682 = vsub.f32 1.0, %v1681
    %v1683 = vmul.f32 %v1680, %v1682
    %v1684 = vadd.f32 %v1680, %v1683
    %vm1685 = vweird.f32 %v1664
    %vm1686 = vweird.f32 %v1680
    %vm1687 = vmor %vm1685, %vm1686
    %v1688 = vsel %vm1687, %v1680, %v1684
    %v1689 = vand.u32 2147483647, %v1664
    %vm1690 = vcmp.eq.f32.partialorder %v1689, 8.507059e+37
    %v1691 = vand.u32 %v1664, 2147483648
    %v1692 = vor.u32 1.1754944e-38, %v1691
    %v1693 = vsel %vm1690, %v1692, %v1688
    %v1694 = vmul.f32 1.0, %v1693
    %v1696 = vrot.slane %v1603, 2
    %v1697 = vrot.slane %v1603, 3
    %v1700 = vmul.f32 %v1634, %v1696
    %v1701 = vmul.f32 %v1649, %v1697
    %v1702 = vadd.f32 %v442, %v1700
    %v1703 = vadd.f32 %v445, %v1701
    %v1704 = vtanh.pop %v1702
    %v1705 = vtanh.pop %v1703
    %v1708 = vrot.slane %v1704, 1
    %v1709 = vrot.slane %v1705, 1
    %v1712 = vsub.f32 %v1537, %v1708
    %v1713 = vsub.f32 %v1538, %v1709
    %v1716 = vrot.slane %v1712, 7
    %v1717 = vrot.slane %v1713, 7
    %v1720 = vmul.f32 %v1679, %v1716
    %v1721 = vmul.f32 %v1694, %v1717
    %v1722 = vadd.f32 %v1704, %v1720
    %v1723 = vadd.f32 %v1705, %v1721
    %v1726 = vrot.slane %v1722, 6
    %v1727 = vrot.slane %v1723, 5
    %v1728 = vsel %vm621, %v1727, %v1726
    %1730 = vmatpush.msra.mxu0 %v296
    %1731 = vmatpush.msra.mxu0 %v293
    %1732 = vmatpush.msra.mxu0 %v290
    %1733 = vmatpush.msra.mxu0 %v287
    %1734 = vmatpush.msra.mxu0 %v284
    %1735 = vmatpush.msra.mxu0 %v281
    %1736 = vmatpush.msra.mxu0 %v278
    %1737 = vmatpush.msra.mxu0 %v275
    %1738 = vmatpush.msra.mxu0 %v272
    %1739 = vmatpush.msra.mxu0 %v269
    %1740 = vmatpush.msra.mxu0 %v266
    %1741 = vmatpush.msra.mxu0 %v263
    %1742 = vmatpush.msra.mxu0 %v260
    %1743 = vmatpush.msra.mxu0 %v257
    %1744 = vmatpush.msra.mxu0 %v254
    %1745 = vmatpush.msra.mxu0 %v251
    %1746 = vmatmul.f32.gmra.mxu0 %v1728
    %v1747 = vpop.f32.mrf.mxu0
    %v1748 = vadd.f32 %v448, %v1747
    %1749 = vdwg.mxu0
    %1750 = vmatpush.msra.mxu0 %v297
    %1751 = vmatpush.msra.mxu0 %v294
    %1752 = vmatpush.msra.mxu0 %v291
    %1753 = vmatpush.msra.mxu0 %v288
    %1754 = vmatpush.msra.mxu0 %v285
    %1755 = vmatpush.msra.mxu0 %v282
    %1756 = vmatpush.msra.mxu0 %v279
    %1757 = vmatpush.msra.mxu0 %v276
    %1758 = vmatpush.msra.mxu0 %v273
    %1759 = vmatpush.msra.mxu0 %v270
    %1760 = vmatpush.msra.mxu0 %v267
    %1761 = vmatpush.msra.mxu0 %v264
    %1762 = vmatpush.msra.mxu0 %v261
    %1763 = vmatpush.msra.mxu0 %v258
    %1764 = vmatpush.msra.mxu0 %v255
    %1765 = vmatpush.msra.mxu0 %v252
    %1766 = vmatmul.f32.gmra.mxu0 %v1728
    %v1767 = vpop.f32.mrf.mxu0
    %v1768 = vadd.f32 %v449, %v1767
    %1769 = vdwg.mxu0
    %1770 = vmatpush.msra.mxu0 %v298
    %1771 = vmatpush.msra.mxu0 %v295
    %1772 = vmatpush.msra.mxu0 %v292
    %1773 = vmatpush.msra.mxu0 %v289
    %1774 = vmatpush.msra.mxu0 %v286
    %1775 = vmatpush.msra.mxu0 %v283
    %1776 = vmatpush.msra.mxu0 %v280
    %1777 = vmatpush.msra.mxu0 %v277
    %1778 = vmatpush.msra.mxu0 %v274
    %1779 = vmatpush.msra.mxu0 %v271
    %1780 = vmatpush.msra.mxu0 %v268
    %1781 = vmatpush.msra.mxu0 %v265
    %1782 = vmatpush.msra.mxu0 %v262
    %1783 = vmatpush.msra.mxu0 %v259
    %1784 = vmatpush.msra.mxu0 %v256
    %1785 = vmatpush.msra.mxu0 %v253
    %1786 = vmatmul.f32.gmra.mxu0 %v1728
    %v1787 = vpop.f32.mrf.mxu0
    %v1788 = vadd.f32 %v450, %v1787
    %1789 = vdwg.mxu0
    %v1791 = vrot.slane %v1748, 1
    %v1792 = vrot.slane %v1748, 2
    %v1795 = vadd.f32 %v396, %v1791
    %v1796 = vadd.f32 %v399, %v1792
    %v1797 = vxor.u32 %v1795, 2147483648
    %v1798 = vxor.u32 %v1796, 2147483648
    %v1799 = vmul.f32 %v1797, 1.442695
    %v1800 = vpow.pop %v1799
    %v1801 = vmul.f32 %v1798, 1.442695
    %v1802 = vpow.pop %v1801
    %v1803 = vadd.f32 %v1800, 1.0
    %v1804 = vadd.f32 %v1802, 1.0
    %v1805 = vrcp.pop %v1803
    %v1806 = vmul.f32 %v1803, %v1805
    %v1807 = vsub.f32 1.0, %v1806
    %v1808 = vmul.f32 %v1805, %v1807
    %v1809 = vadd.f32 %v1805, %v1808
    %vm1810 = vweird.f32 %v1803
    %vm1811 = vweird.f32 %v1805
    %vm1812 = vmor %vm1810, %vm1811
    %v1813 = vsel %vm1812, %v1805, %v1809
    %v1814 = vand.u32 2147483647, %v1803
    %vm1815 = vcmp.eq.f32.partialorder %v1814, 8.507059e+37
    %v1816 = vand.u32 %v1803, 2147483648
    %v1817 = vor.u32 1.1754944e-38, %v1816
    %v1818 = vsel %vm1815, %v1817, %v1813
    %v1819 = vmul.f32 1.0, %v1818
    %v1820 = vrcp.pop %v1804
    %v1821 = vmul.f32 %v1804, %v1820
    %v1822 = vsub.f32 1.0, %v1821
    %v1823 = vmul.f32 %v1820, %v1822
    %v1824 = vadd.f32 %v1820, %v1823
    %vm1825 = vweird.f32 %v1804
    %vm1826 = vweird.f32 %v1820
    %vm1827 = vmor %vm1825, %vm1826
    %v1828 = vsel %vm1827, %v1820, %v1824
    %v1829 = vand.u32 2147483647, %v1804
    %vm1830 = vcmp.eq.f32.partialorder %v1829, 8.507059e+37
    %v1831 = vand.u32 %v1804, 2147483648
    %v1832 = vor.u32 1.1754944e-38, %v1831
    %v1833 = vsel %vm1830, %v1832, %v1828
    %v1834 = vmul.f32 1.0, %v1833
    %v1836 = vrot.slane %v1768, 1
    %v1837 = vrot.slane %v1768, 2
    %v1840 = vadd.f32 %v419, %v1836
    %v1841 = vadd.f32 %v422, %v1837
    %v1842 = vxor.u32 %v1840, 2147483648
    %v1843 = vxor.u32 %v1841, 2147483648
    %v1844 = vmul.f32 %v1842, 1.442695
    %v1845 = vpow.pop %v1844
    %v1846 = vmul.f32 %v1843, 1.442695
    %v1847 = vpow.pop %v1846
    %v1848 = vadd.f32 %v1845, 1.0
    %v1849 = vadd.f32 %v1847, 1.0
    %v1850 = vrcp.pop %v1848
    %v1851 = vmul.f32 %v1848, %v1850
    %v1852 = vsub.f32 1.0, %v1851
    %v1853 = vmul.f32 %v1850, %v1852
    %v1854 = vadd.f32 %v1850, %v1853
    %vm1855 = vweird.f32 %v1848
    %vm1856 = vweird.f32 %v1850
    %vm1857 = vmor %vm1855, %vm1856
    %v1858 = vsel %vm1857, %v1850, %v1854
    %v1859 = vand.u32 2147483647, %v1848
    %vm1860 = vcmp.eq.f32.partialorder %v1859, 8.507059e+37
    %v1861 = vand.u32 %v1848, 2147483648
    %v1862 = vor.u32 1.1754944e-38, %v1861
    %v1863 = vsel %vm1860, %v1862, %v1858
    %v1864 = vmul.f32 1.0, %v1863
    %v1865 = vrcp.pop %v1849
    %v1866 = vmul.f32 %v1849, %v1865
    %v1867 = vsub.f32 1.0, %v1866
    %v1868 = vmul.f32 %v1865, %v1867
    %v1869 = vadd.f32 %v1865, %v1868
    %vm1870 = vweird.f32 %v1849
    %vm1871 = vweird.f32 %v1865
    %vm1872 = vmor %vm1870, %vm1871
    %v1873 = vsel %vm1872, %v1865, %v1869
    %v1874 = vand.u32 2147483647, %v1849
    %vm1875 = vcmp.eq.f32.partialorder %v1874, 8.507059e+37
    %v1876 = vand.u32 %v1849, 2147483648
    %v1877 = vor.u32 1.1754944e-38, %v1876
    %v1878 = vsel %vm1875, %v1877, %v1873
    %v1879 = vmul.f32 1.0, %v1878
    %v1881 = vrot.slane %v1788, 1
    %v1882 = vrot.slane %v1788, 2
    %v1885 = vmul.f32 %v1819, %v1881
    %v1886 = vmul.f32 %v1834, %v1882
    %v1887 = vadd.f32 %v442, %v1885
    %v1888 = vadd.f32 %v445, %v1886
    %v1889 = vtanh.pop %v1887
    %v1890 = vtanh.pop %v1888
    %v1893 = vrot.slane %v1889, 1
    %v1894 = vrot.slane %v1890, 1
    %v1897 = vsub.f32 %v1722, %v1893
    %v1898 = vsub.f32 %v1723, %v1894
    %v1901 = vrot.slane %v1897, 7
    %v1902 = vrot.slane %v1898, 7
    %v1905 = vmul.f32 %v1864, %v1901
    %v1906 = vmul.f32 %v1879, %v1902
    %v1907 = vadd.f32 %v1889, %v1905
    %v1908 = vadd.f32 %v1890, %v1906
    %vm1909 = vcmask 1040384
    %v1910 = vsel %vm1909, %v616, %v798
    %vm1911 = vcmask 1041408
    %v1912 = vsel %vm1911, %v1910, %v982
    %vm1913 = vcmask 1042432
    %v1914 = vsel %vm1913, %v1912, %v1167
    %vm1915 = vcmask 1043456
    %v1916 = vsel %vm1915, %v1914, %v1352
    %vm1917 = vcmask 1044480
    %v1918 = vsel %vm1917, %v1916, %v1537
    %vm1919 = vcmask 1045504
    %v1920 = vsel %vm1919, %v1918, %v1722
    %vm1921 = vcmask 1046528
    %v1922 = vsel %vm1921, %v1920, %v1907
    %v1923 = vsel %vm1909, %v617, %v799
    %v1924 = vsel %vm1911, %v1923, %v983
    %v1925 = vsel %vm1913, %v1924, %v1168
    %v1926 = vsel %vm1915, %v1925, %v1353
    %v1927 = vsel %vm1917, %v1926, %v1538
    %v1928 = vsel %vm1919, %v1927, %v1723
    %v1929 = vsel %vm1921, %v1928, %v1908
    %v1930 = vadd.f32 %v201, %v1922
    %v1931 = vadd.f32 %v202, %v1929
    %1932 = vadd.xlane.f32.xlu0 %v1930
    %v1933 = vpop.xlane.xlu0 %1932
    %1934 = vadd.xlane.f32.xlu0 %v1931
    %v1935 = vpop.xlane.xlu0 %1934
    %v1936 = vrcp.pop 128.0
    %v1937 = vmul.f32 128.0, %v1936
    %v1938 = vsub.f32 1.0, %v1937
    %v1939 = vmul.f32 %v1936, %v1938
    %v1940 = vadd.f32 %v1936, %v1939
    %vm1941 = vweird.f32 %v1936
    %v1942 = vsel %vm1941, %v1936, %v1940
    %v1943 = vmul.f32 %v1933, %v1942
    %v1944 = vmul.f32 %v1935, %v1942
    %v1945 = vsub.f32 %v1930, %v1943
    %v1946 = vsub.f32 %v1931, %v1944
    %v1947 = vmul.f32 %v1945, %v1945
    %v1948 = vmul.f32 %v1946, %v1946
    %1949 = vadd.xlane.f32.xlu0 %v1947
    %v1950 = vpop.xlane.xlu0 %1949
    %1951 = vadd.xlane.f32.xlu0 %v1948
    %v1952 = vpop.xlane.xlu0 %1951
    %v1953 = vmul.f32 %v1950, %v1942
    %v1954 = vmul.f32 %v1952, %v1942
    %v1955 = vadd.f32 %v1953, 1e-12
    %v1956 = vadd.f32 %v1954, 1e-12
    %v1957 = vrsqrt.pop %v1955
    %v1958 = vmul.f32 %v1957, %v1955
    %v1959 = vmul.f32 %v1958, %v1957
    %v1960 = vmul.f32 0.5, %v1959
    %v1961 = vsub.f32 1.5, %v1960
    %v1962 = vmul.f32 %v1957, %v1961
    %vm1963 = vweird.f32 %v1955
    %vm1964 = vweird.f32 %v1957
    %vm1965 = vmor %vm1963, %vm1964
    %v1966 = vsel %vm1965, %v1957, %v1962
    %v1967 = vrsqrt.pop %v1956
    %v1968 = vmul.f32 %v1967, %v1956
    %v1969 = vmul.f32 %v1968, %v1967
    %v1970 = vmul.f32 0.5, %v1969
    %v1971 = vsub.f32 1.5, %v1970
    %v1972 = vmul.f32 %v1967, %v1971
    %vm1973 = vweird.f32 %v1956
    %vm1974 = vweird.f32 %v1967
    %vm1975 = vmor %vm1973, %vm1974
    %v1976 = vsel %vm1975, %v1967, %v1972
    %v1977 = vmul.f32 %v1945, %v1966
    %v1978 = vmul.f32 %v1946, %v1976
    %v1980 = vperm.slane %v301, 0
    %v1982 = vmul.f32 %v1980, %v1977
    %v1983 = vmul.f32 %v1980, %v1978
    %v1985 = vperm.slane %v302, 0
    %v1987 = vadd.f32 %v1982, %v1985
    %v1988 = vadd.f32 %v1983, %v1985
    %v1990 = vperm.slane %v351, 0
    %v1991 = vperm.slane %v351, 1
    %v1992 = vperm.slane %v351, 2
    %1996 = vmatpush.msra.mxu0 %v348
    %1997 = vmatpush.msra.mxu0 %v345
    %1998 = vmatpush.msra.mxu0 %v342
    %1999 = vmatpush.msra.mxu0 %v339
    %2000 = vmatpush.msra.mxu0 %v336
    %2001 = vmatpush.msra.mxu0 %v333
    %2002 = vmatpush.msra.mxu0 %v330
    %2003 = vmatpush.msra.mxu0 %v327
    %2004 = vmatpush.msra.mxu0 %v324
    %2005 = vmatpush.msra.mxu0 %v321
    %2006 = vmatpush.msra.mxu0 %v318
    %2007 = vmatpush.msra.mxu0 %v315
    %2008 = vmatpush.msra.mxu0 %v312
    %2009 = vmatpush.msra.mxu0 %v309
    %2010 = vmatpush.msra.mxu0 %v306
    %2011 = vmatpush.msra.mxu0 %v303
    %2012 = vmatmul.f32.gmra.mxu0 %v1987
    %v2013 = vpop.f32.mrf.mxu0
    %v2014 = vadd.f32 %v1990, %v2013
    %2015 = vmatmul.f32.gmra.mxu0 %v1988
    %v2016 = vpop.f32.mrf.mxu0
    %v2017 = vadd.f32 %v1990, %v2016
    %2018 = vdwg.mxu0
    %2019 = vmatpush.msra.mxu0 %v349
    %2020 = vmatpush.msra.mxu0 %v346
    %2021 = vmatpush.msra.mxu0 %v343
    %2022 = vmatpush.msra.mxu0 %v340
    %2023 = vmatpush.msra.mxu0 %v337
    %2024 = vmatpush.msra.mxu0 %v334
    %2025 = vmatpush.msra.mxu0 %v331
    %2026 = vmatpush.msra.mxu0 %v328
    %2027 = vmatpush.msra.mxu0 %v325
    %2028 = vmatpush.msra.mxu0 %v322
    %2029 = vmatpush.msra.mxu0 %v319
    %2030 = vmatpush.msra.mxu0 %v316
    %2031 = vmatpush.msra.mxu0 %v313
    %2032 = vmatpush.msra.mxu0 %v310
    %2033 = vmatpush.msra.mxu0 %v307
    %2034 = vmatpush.msra.mxu0 %v304
    %2035 = vmatmul.f32.gmra.mxu0 %v1987
    %v2036 = vpop.f32.mrf.mxu0
    %v2037 = vadd.f32 %v1991, %v2036
    %2038 = vmatmul.f32.gmra.mxu0 %v1988
    %v2039 = vpop.f32.mrf.mxu0
    %v2040 = vadd.f32 %v1991, %v2039
    %2041 = vdwg.mxu0
    %2042 = vmatpush.msra.mxu0 %v350
    %2043 = vmatpush.msra.mxu0 %v347
    %2044 = vmatpush.msra.mxu0 %v344
    %2045 = vmatpush.msra.mxu0 %v341
    %2046 = vmatpush.msra.mxu0 %v338
    %2047 = vmatpush.msra.mxu0 %v335
    %2048 = vmatpush.msra.mxu0 %v332
    %2049 = vmatpush.msra.mxu0 %v329
    %2050 = vmatpush.msra.mxu0 %v326
    %2051 = vmatpush.msra.mxu0 %v323
    %2052 = vmatpush.msra.mxu0 %v320
    %2053 = vmatpush.msra.mxu0 %v317
    %2054 = vmatpush.msra.mxu0 %v314
    %2055 = vmatpush.msra.mxu0 %v311
    %2056 = vmatpush.msra.mxu0 %v308
    %2057 = vmatpush.msra.mxu0 %v305
    %2058 = vmatmul.f32.gmra.mxu0 %v1987
    %v2059 = vpop.f32.mrf.mxu0
    %v2060 = vadd.f32 %v1992, %v2059
    %2061 = vmatmul.f32.gmra.mxu0 %v1988
    %v2062 = vpop.f32.mrf.mxu0
    %v2063 = vadd.f32 %v1992, %v2062
    %2064 = vdwg.mxu0
    %v2065 = vmul.f32 %v2014, 0.25
    %v2066 = vmul.f32 %v2017, 0.25
    %vm2067 = vcmask 130048
    %v2069 = vsel %vm2067, %v2065, 0
    %v2072 = vsel %vm2067, %v2037, 0
    %2074 = vmatpush.xpose.msra.mxu0 0.0
    %2075 = vmatpush.xpose.msra.mxu0 0.0
    %2076 = vmatpush.xpose.msra.mxu0 0.0
    %2077 = vmatpush.xpose.msra.mxu0 0.0
    %2078 = vmatpush.xpose.msra.mxu0 0.0
    %2079 = vmatpush.xpose.msra.mxu0 0.0
    %2080 = vmatpush.xpose.msra.mxu0 0.0
    %2081 = vmatpush.xpose.msra.mxu0 0.0
    %2082 = vmatpush.xpose.msra.mxu0 0.0
    %2083 = vmatpush.xpose.msra.mxu0 0.0
    %2084 = vmatpush.xpose.msra.mxu0 0.0
    %2085 = vmatpush.xpose.msra.mxu0 0.0
    %2086 = vmatpush.xpose.msra.mxu0 0.0
    %2087 = vmatpush.xpose.msra.mxu0 0.0
    %2088 = vmatpush.xpose.msra.mxu0 0.0
    %2089 = vmatpush.xpose.msra.mxu0 %v2072
    %2090 = vmatmul.f32.gmra.mxu0 %v2069
    %v2091 = vpop.f32.mrf.mxu0
    %v2092 = vadd.f32 0.0, %v2091
    %2093 = vdwg.mxu0
    %v2095 = vsel %vm2067, %v2066, 0
    %v2098 = vsel %vm2067, %v2040, 0
    %2100 = vmatpush.xpose.msra.mxu0 0.0
    %2101 = vmatpush.xpose.msra.mxu0 0.0
    %2102 = vmatpush.xpose.msra.mxu0 0.0
    %2103 = vmatpush.xpose.msra.mxu0 0.0
    %2104 = vmatpush.xpose.msra.mxu0 0.0
    %2105 = vmatpush.xpose.msra.mxu0 0.0
    %2106 = vmatpush.xpose.msra.mxu0 0.0
    %2107 = vmatpush.xpose.msra.mxu0 0.0
    %2108 = vmatpush.xpose.msra.mxu0 0.0
    %2109 = vmatpush.xpose.msra.mxu0 0.0
    %2110 = vmatpush.xpose.msra.mxu0 0.0
    %2111 = vmatpush.xpose.msra.mxu0 0.0
    %2112 = vmatpush.xpose.msra.mxu0 0.0
    %2113 = vmatpush.xpose.msra.mxu0 0.0
    %2114 = vmatpush.xpose.msra.mxu0 0.0
    %2115 = vmatpush.xpose.msra.mxu0 %v2098
    %2116 = vmatmul.f32.gmra.mxu0 %v2095
    %v2117 = vpop.f32.mrf.mxu0
    %v2118 = vadd.f32 0.0, %v2117
    %2119 = vdwg.mxu0
    %vm2120 = vcmask 64512
    %v2121 = vsel %vm2120, %v2092, -inf
    %2122 = vmax.xlane.f32.xlu0 %v2121
    %v2123 = vpop.xlane.xlu0 %2122
    %v2124 = vsel %vm2120, %v2118, -inf
    %2125 = vmax.xlane.f32.xlu0 %v2124
    %v2126 = vpop.xlane.xlu0 %2125
    %v2127 = vsub.f32 %v2092, %v2123
    %v2128 = vsub.f32 %v2118, %v2126
    %v2129 = vmul.f32 %v2127, 1.442695
    %v2130 = vpow.pop %v2129
    %v2131 = vmul.f32 %v2128, 1.442695
    %v2132 = vpow.pop %v2131
    %v2133 = vsel %vm2120, %v2130, 0.0
    %2134 = vadd.xlane.f32.xlu0 %v2133
    %v2135 = vpop.xlane.xlu0 %2134
    %v2136 = vsel %vm2120, %v2132, 0.0
    %2137 = vadd.xlane.f32.xlu0 %v2136
    %v2138 = vpop.xlane.xlu0 %2137
    %v2139 = vrcp.pop %v2135
    %v2140 = vrcp.pop %v2138
    %v2141 = vmul.f32 %v2130, %v2139
    %v2142 = vmul.f32 %v2132, %v2140
    %v2144 = vsel %vm2120, %v2141, 0
    %2146 = vmatpush.msra.mxu0 0.0
    %2147 = vmatpush.msra.mxu0 0.0
    %2148 = vmatpush.msra.mxu0 0.0
    %2149 = vmatpush.msra.mxu0 0.0
    %2150 = vmatpush.msra.mxu0 0.0
    %2151 = vmatpush.msra.mxu0 0.0
    %2152 = vmatpush.msra.mxu0 0.0
    %2153 = vmatpush.msra.mxu0 0.0
    %2154 = vmatpush.msra.mxu0 0.0
    %2155 = vmatpush.msra.mxu0 0.0
    %2156 = vmatpush.msra.mxu0 0.0
    %2157 = vmatpush.msra.mxu0 0.0
    %2158 = vmatpush.msra.mxu0 0.0
    %2159 = vmatpush.msra.mxu0 0.0
    %2160 = vmatpush.msra.mxu0 0.0
    %2161 = vmatpush.msra.mxu0 %v2060
    %2162 = vmatmul.f32.gmra.mxu0 %v2144
    %v2163 = vpop.f32.mrf.mxu0
    %v2164 = vadd.f32 0.0, %v2163
    %2165 = vdwg.mxu0
    %v2167 = vsel %vm2120, %v2142, 0
    %2169 = vmatpush.msra.mxu0 0.0
    %2170 = vmatpush.msra.mxu0 0.0
    %2171 = vmatpush.msra.mxu0 0.0
    %2172 = vmatpush.msra.mxu0 0.0
    %2173 = vmatpush.msra.mxu0 0.0
    %2174 = vmatpush.msra.mxu0 0.0
    %2175 = vmatpush.msra.mxu0 0.0
    %2176 = vmatpush.msra.mxu0 0.0
    %2177 = vmatpush.msra.mxu0 0.0
    %2178 = vmatpush.msra.mxu0 0.0
    %2179 = vmatpush.msra.mxu0 0.0
    %2180 = vmatpush.msra.mxu0 0.0
    %2181 = vmatpush.msra.mxu0 0.0
    %2182 = vmatpush.msra.mxu0 0.0
    %2183 = vmatpush.msra.mxu0 0.0
    %2184 = vmatpush.msra.mxu0 %v2063
    %2185 = vmatmul.f32.gmra.mxu0 %v2167
    %v2186 = vpop.f32.mrf.mxu0
    %v2187 = vadd.f32 0.0, %v2186
    %2188 = vdwg.mxu0
    %2189 = vrot.lane.b32.xlu0 %v2065, 112
    %v2190 = vpop.permute.xlu0 %2189
    %2191 = vrot.lane.b32.xlu0 %v2037, 112
    %v2192 = vpop.permute.xlu0 %2191
    %v2193 = vsel %vm2067, %v2190, 0
    %v2195 = vsel %vm2067, %v2192, 0
    %2197 = vmatpush.xpose.msra.mxu0 0.0
    %2198 = vmatpush.xpose.msra.mxu0 0.0
    %2199 = vmatpush.xpose.msra.mxu0 0.0
    %2200 = vmatpush.xpose.msra.mxu0 0.0
    %2201 = vmatpush.xpose.msra.mxu0 0.0
    %2202 = vmatpush.xpose.msra.mxu0 0.0
    %2203 = vmatpush.xpose.msra.mxu0 0.0
    %2204 = vmatpush.xpose.msra.mxu0 0.0
    %2205 = vmatpush.xpose.msra.mxu0 0.0
    %2206 = vmatpush.xpose.msra.mxu0 0.0
    %2207 = vmatpush.xpose.msra.mxu0 0.0
    %2208 = vmatpush.xpose.msra.mxu0 0.0
    %2209 = vmatpush.xpose.msra.mxu0 0.0
    %2210 = vmatpush.xpose.msra.mxu0 0.0
    %2211 = vmatpush.xpose.msra.mxu0 0.0
    %2212 = vmatpush.xpose.msra.mxu0 %v2195
    %2213 = vmatmul.f32.gmra.mxu0 %v2193
    %v2214 = vpop.f32.mrf.mxu0
    %v2215 = vadd.f32 0.0, %v2214
    %2216 = vdwg.mxu0
    %2217 = vrot.lane.b32.xlu0 %v2066, 112
    %v2218 = vpop.permute.xlu0 %2217
    %2219 = vrot.lane.b32.xlu0 %v2040, 112
    %v2220 = vpop.permute.xlu0 %2219
    %v2221 = vsel %vm2067, %v2218, 0
    %v2223 = vsel %vm2067, %v2220, 0
    %2225 = vmatpush.xpose.msra.mxu0 0.0
    %2226 = vmatpush.xpose.msra.mxu0 0.0
    %2227 = vmatpush.xpose.msra.mxu0 0.0
    %2228 = vmatpush.xpose.msra.mxu0 0.0
    %2229 = vmatpush.xpose.msra.mxu0 0.0
    %2230 = vmatpush.xpose.msra.mxu0 0.0
    %2231 = vmatpush.xpose.msra.mxu0 0.0
    %2232 = vmatpush.xpose.msra.mxu0 0.0
    %2233 = vmatpush.xpose.msra.mxu0 0.0
    %2234 = vmatpush.xpose.msra.mxu0 0.0
    %2235 = vmatpush.xpose.msra.mxu0 0.0
    %2236 = vmatpush.xpose.msra.mxu0 0.0
    %2237 = vmatpush.xpose.msra.mxu0 0.0
    %2238 = vmatpush.xpose.msra.mxu0 0.0
    %2239 = vmatpush.xpose.msra.mxu0 0.0
    %2240 = vmatpush.xpose.msra.mxu0 %v2223
    %2241 = vmatmul.f32.gmra.mxu0 %v2221
    %v2242 = vpop.f32.mrf.mxu0
    %v2243 = vadd.f32 0.0, %v2242
    %2244 = vdwg.mxu0
    %v2245 = vsel %vm2120, %v2215, -inf
    %2246 = vmax.xlane.f32.xlu0 %v2245
    %v2247 = vpop.xlane.xlu0 %2246
    %v2248 = vsel %vm2120, %v2243, -inf
    %2249 = vmax.xlane.f32.xlu0 %v2248
    %v2250 = vpop.xlane.xlu0 %2249
    %v2251 = vsub.f32 %v2215, %v2247
    %v2252 = vsub.f32 %v2243, %v2250
    %v2253 = vmul.f32 %v2251, 1.442695
    %v2254 = vpow.pop %v2253
    %v2255 = vmul.f32 %v2252, 1.442695
    %v2256 = vpow.pop %v2255
    %v2257 = vsel %vm2120, %v2254, 0.0
    %2258 = vadd.xlane.f32.xlu0 %v2257
    %v2259 = vpop.xlane.xlu0 %2258
    %v2260 = vsel %vm2120, %v2256, 0.0
    %2261 = vadd.xlane.f32.xlu0 %v2260
    %v2262 = vpop.xlane.xlu0 %2261
    %v2263 = vrcp.pop %v2259
    %v2264 = vrcp.pop %v2262
    %v2265 = vmul.f32 %v2254, %v2263
    %v2266 = vmul.f32 %v2256, %v2264
    %2268 = vrot.lane.b32.xlu0 %v2060, 112
    %v2269 = vpop.permute.xlu0 %2268
    %v2272 = vsel %vm2120, %v2265, 0
    %2274 = vmatpush.msra.mxu0 0.0
    %2275 = vmatpush.msra.mxu0 0.0
    %2276 = vmatpush.msra.mxu0 0.0
    %2277 = vmatpush.msra.mxu0 0.0
    %2278 = vmatpush.msra.mxu0 0.0
    %2279 = vmatpush.msra.mxu0 0.0
    %2280 = vmatpush.msra.mxu0 0.0
    %2281 = vmatpush.msra.mxu0 0.0
    %2282 = vmatpush.msra.mxu0 0.0
    %2283 = vmatpush.msra.mxu0 0.0
    %2284 = vmatpush.msra.mxu0 0.0
    %2285 = vmatpush.msra.mxu0 0.0
    %2286 = vmatpush.msra.mxu0 0.0
    %2287 = vmatpush.msra.mxu0 0.0
    %2288 = vmatpush.msra.mxu0 0.0
    %2289 = vmatpush.msra.mxu0 %v2269
    %2290 = vmatmul.f32.gmra.mxu0 %v2272
    %v2291 = vpop.f32.mrf.mxu0
    %v2292 = vadd.f32 0.0, %v2291
    %2293 = vdwg.mxu0
    %2295 = vrot.lane.b32.xlu0 %v2063, 112
    %v2296 = vpop.permute.xlu0 %2295
    %v2299 = vsel %vm2120, %v2266, 0
    %2301 = vmatpush.msra.mxu0 0.0
    %2302 = vmatpush.msra.mxu0 0.0
    %2303 = vmatpush.msra.mxu0 0.0
    %2304 = vmatpush.msra.mxu0 0.0
    %2305 = vmatpush.msra.mxu0 0.0
    %2306 = vmatpush.msra.mxu0 0.0
    %2307 = vmatpush.msra.mxu0 0.0
    %2308 = vmatpush.msra.mxu0 0.0
    %2309 = vmatpush.msra.mxu0 0.0
    %2310 = vmatpush.msra.mxu0 0.0
    %2311 = vmatpush.msra.mxu0 0.0
    %2312 = vmatpush.msra.mxu0 0.0
    %2313 = vmatpush.msra.mxu0 0.0
    %2314 = vmatpush.msra.mxu0 0.0
    %2315 = vmatpush.msra.mxu0 0.0
    %2316 = vmatpush.msra.mxu0 %v2296
    %2317 = vmatmul.f32.gmra.mxu0 %v2299
    %v2318 = vpop.f32.mrf.mxu0
    %v2319 = vadd.f32 0.0, %v2318
    %2320 = vdwg.mxu0
    %2321 = vrot.lane.b32.xlu0 %v2065, 96
    %v2322 = vpop.permute.xlu0 %2321
    %2323 = vrot.lane.b32.xlu0 %v2037, 96
    %v2324 = vpop.permute.xlu0 %2323
    %v2325 = vsel %vm2067, %v2322, 0
    %v2327 = vsel %vm2067, %v2324, 0
    %2329 = vmatpush.xpose.msra.mxu0 0.0
    %2330 = vmatpush.xpose.msra.mxu0 0.0
    %2331 = vmatpush.xpose.msra.mxu0 0.0
    %2332 = vmatpush.xpose.msra.mxu0 0.0
    %2333 = vmatpush.xpose.msra.mxu0 0.0
    %2334 = vmatpush.xpose.msra.mxu0 0.0
    %2335 = vmatpush.xpose.msra.mxu0 0.0
    %2336 = vmatpush.xpose.msra.mxu0 0.0
    %2337 = vmatpush.xpose.msra.mxu0 0.0
    %2338 = vmatpush.xpose.msra.mxu0 0.0
    %2339 = vmatpush.xpose.msra.mxu0 0.0
    %2340 = vmatpush.xpose.msra.mxu0 0.0
    %2341 = vmatpush.xpose.msra.mxu0 0.0
    %2342 = vmatpush.xpose.msra.mxu0 0.0
    %2343 = vmatpush.xpose.msra.mxu0 0.0
    %2344 = vmatpush.xpose.msra.mxu0 %v2327
    %2345 = vmatmul.f32.gmra.mxu0 %v2325
    %v2346 = vpop.f32.mrf.mxu0
    %v2347 = vadd.f32 0.0, %v2346
    %2348 = vdwg.mxu0
    %2349 = vrot.lane.b32.xlu0 %v2066, 96
    %v2350 = vpop.permute.xlu0 %2349
    %2351 = vrot.lane.b32.xlu0 %v2040, 96
    %v2352 = vpop.permute.xlu0 %2351
    %v2353 = vsel %vm2067, %v2350, 0
    %v2355 = vsel %vm2067, %v2352, 0
    %2357 = vmatpush.xpose.msra.mxu0 0.0
    %2358 = vmatpush.xpose.msra.mxu0 0.0
    %2359 = vmatpush.xpose.msra.mxu0 0.0
    %2360 = vmatpush.xpose.msra.mxu0 0.0
    %2361 = vmatpush.xpose.msra.mxu0 0.0
    %2362 = vmatpush.xpose.msra.mxu0 0.0
    %2363 = vmatpush.xpose.msra.mxu0 0.0
    %2364 = vmatpush.xpose.msra.mxu0 0.0
    %2365 = vmatpush.xpose.msra.mxu0 0.0
    %2366 = vmatpush.xpose.msra.mxu0 0.0
    %2367 = vmatpush.xpose.msra.mxu0 0.0
    %2368 = vmatpush.xpose.msra.mxu0 0.0
    %2369 = vmatpush.xpose.msra.mxu0 0.0
    %2370 = vmatpush.xpose.msra.mxu0 0.0
    %2371 = vmatpush.xpose.msra.mxu0 0.0
    %2372 = vmatpush.xpose.msra.mxu0 %v2355
    %2373 = vmatmul.f32.gmra.mxu0 %v2353
    %v2374 = vpop.f32.mrf.mxu0
    %v2375 = vadd.f32 0.0, %v2374
    %2376 = vdwg.mxu0
    %v2377 = vsel %vm2120, %v2347, -inf
    %2378 = vmax.xlane.f32.xlu0 %v2377
    %v2379 = vpop.xlane.xlu0 %2378
    %v2380 = vsel %vm2120, %v2375, -inf
    %2381 = vmax.xlane.f32.xlu0 %v2380
    %v2382 = vpop.xlane.xlu0 %2381
    %v2383 = vsub.f32 %v2347, %v2379
    %v2384 = vsub.f32 %v2375, %v2382
    %v2385 = vmul.f32 %v2383, 1.442695
    %v2386 = vpow.pop %v2385
    %v2387 = vmul.f32 %v2384, 1.442695
    %v2388 = vpow.pop %v2387
    %v2389 = vsel %vm2120, %v2386, 0.0
    %2390 = vadd.xlane.f32.xlu0 %v2389
    %v2391 = vpop.xlane.xlu0 %2390
    %v2392 = vsel %vm2120, %v2388, 0.0
    %2393 = vadd.xlane.f32.xlu0 %v2392
    %v2394 = vpop.xlane.xlu0 %2393
    %v2395 = vrcp.pop %v2391
    %v2396 = vrcp.pop %v2394
    %v2397 = vmul.f32 %v2386, %v2395
    %v2398 = vmul.f32 %v2388, %v2396
    %2399 = vrot.lane.b32.xlu0 %v2060, 96
    %v2400 = vpop.permute.xlu0 %2399
    %v2403 = vsel %vm2120, %v2397, 0
    %2405 = vmatpush.msra.mxu0 0.0
    %2406 = vmatpush.msra.mxu0 0.0
    %2407 = vmatpush.msra.mxu0 0.0
    %2408 = vmatpush.msra.mxu0 0.0
    %2409 = vmatpush.msra.mxu0 0.0
    %2410 = vmatpush.msra.mxu0 0.0
    %2411 = vmatpush.msra.mxu0 0.0
    %2412 = vmatpush.msra.mxu0 0.0
    %2413 = vmatpush.msra.mxu0 0.0
    %2414 = vmatpush.msra.mxu0 0.0
    %2415 = vmatpush.msra.mxu0 0.0
    %2416 = vmatpush.msra.mxu0 0.0
    %2417 = vmatpush.msra.mxu0 0.0
    %2418 = vmatpush.msra.mxu0 0.0
    %2419 = vmatpush.msra.mxu0 0.0
    %2420 = vmatpush.msra.mxu0 %v2400
    %2421 = vmatmul.f32.gmra.mxu0 %v2403
    %v2422 = vpop.f32.mrf.mxu0
    %v2423 = vadd.f32 0.0, %v2422
    %2424 = vdwg.mxu0
    %2425 = vrot.lane.b32.xlu0 %v2063, 96
    %v2426 = vpop.permute.xlu0 %2425
    %v2429 = vsel %vm2120, %v2398, 0
    %2431 = vmatpush.msra.mxu0 0.0
    %2432 = vmatpush.msra.mxu0 0.0
    %2433 = vmatpush.msra.mxu0 0.0
    %2434 = vmatpush.msra.mxu0 0.0
    %2435 = vmatpush.msra.mxu0 0.0
    %2436 = vmatpush.msra.mxu0 0.0
    %2437 = vmatpush.msra.mxu0 0.0
    %2438 = vmatpush.msra.mxu0 0.0
    %2439 = vmatpush.msra.mxu0 0.0
    %2440 = vmatpush.msra.mxu0 0.0
    %2441 = vmatpush.msra.mxu0 0.0
    %2442 = vmatpush.msra.mxu0 0.0
    %2443 = vmatpush.msra.mxu0 0.0
    %2444 = vmatpush.msra.mxu0 0.0
    %2445 = vmatpush.msra.mxu0 0.0
    %2446 = vmatpush.msra.mxu0 %v2426
    %2447 = vmatmul.f32.gmra.mxu0 %v2429
    %v2448 = vpop.f32.mrf.mxu0
    %v2449 = vadd.f32 0.0, %v2448
    %2450 = vdwg.mxu0
    %2451 = vrot.lane.b32.xlu0 %v2065, 80
    %v2452 = vpop.permute.xlu0 %2451
    %2453 = vrot.lane.b32.xlu0 %v2037, 80
    %v2454 = vpop.permute.xlu0 %2453
    %v2455 = vsel %vm2067, %v2452, 0
    %v2457 = vsel %vm2067, %v2454, 0
    %2459 = vmatpush.xpose.msra.mxu0 0.0
    %2460 = vmatpush.xpose.msra.mxu0 0.0
    %2461 = vmatpush.xpose.msra.mxu0 0.0
    %2462 = vmatpush.xpose.msra.mxu0 0.0
    %2463 = vmatpush.xpose.msra.mxu0 0.0
    %2464 = vmatpush.xpose.msra.mxu0 0.0
    %2465 = vmatpush.xpose.msra.mxu0 0.0
    %2466 = vmatpush.xpose.msra.mxu0 0.0
    %2467 = vmatpush.xpose.msra.mxu0 0.0
    %2468 = vmatpush.xpose.msra.mxu0 0.0
    %2469 = vmatpush.xpose.msra.mxu0 0.0
    %2470 = vmatpush.xpose.msra.mxu0 0.0
    %2471 = vmatpush.xpose.msra.mxu0 0.0
    %2472 = vmatpush.xpose.msra.mxu0 0.0
    %2473 = vmatpush.xpose.msra.mxu0 0.0
    %2474 = vmatpush.xpose.msra.mxu0 %v2457
    %2475 = vmatmul.f32.gmra.mxu0 %v2455
    %v2476 = vpop.f32.mrf.mxu0
    %v2477 = vadd.f32 0.0, %v2476
    %2478 = vdwg.mxu0
    %2479 = vrot.lane.b32.xlu0 %v2066, 80
    %v2480 = vpop.permute.xlu0 %2479
    %2481 = vrot.lane.b32.xlu0 %v2040, 80
    %v2482 = vpop.permute.xlu0 %2481
    %v2483 = vsel %vm2067, %v2480, 0
    %v2485 = vsel %vm2067, %v2482, 0
    %2487 = vmatpush.xpose.msra.mxu0 0.0
    %2488 = vmatpush.xpose.msra.mxu0 0.0
    %2489 = vmatpush.xpose.msra.mxu0 0.0
    %2490 = vmatpush.xpose.msra.mxu0 0.0
    %2491 = vmatpush.xpose.msra.mxu0 0.0
    %2492 = vmatpush.xpose.msra.mxu0 0.0
    %2493 = vmatpush.xpose.msra.mxu0 0.0
    %2494 = vmatpush.xpose.msra.mxu0 0.0
    %2495 = vmatpush.xpose.msra.mxu0 0.0
    %2496 = vmatpush.xpose.msra.mxu0 0.0
    %2497 = vmatpush.xpose.msra.mxu0 0.0
    %2498 = vmatpush.xpose.msra.mxu0 0.0
    %2499 = vmatpush.xpose.msra.mxu0 0.0
    %2500 = vmatpush.xpose.msra.mxu0 0.0
    %2501 = vmatpush.xpose.msra.mxu0 0.0
    %2502 = vmatpush.xpose.msra.mxu0 %v2485
    %2503 = vmatmul.f32.gmra.mxu0 %v2483
    %v2504 = vpop.f32.mrf.mxu0
    %v2505 = vadd.f32 0.0, %v2504
    %2506 = vdwg.mxu0
    %v2507 = vsel %vm2120, %v2477, -inf
    %2508 = vmax.xlane.f32.xlu0 %v2507
    %v2509 = vpop.xlane.xlu0 %2508
    %v2510 = vsel %vm2120, %v2505, -inf
    %2511 = vmax.xlane.f32.xlu0 %v2510
    %v2512 = vpop.xlane.xlu0 %2511
    %v2513 = vsub.f32 %v2477, %v2509
    %v2514 = vsub.f32 %v2505, %v2512
    %v2515 = vmul.f32 %v2513, 1.442695
    %v2516 = vpow.pop %v2515
    %v2517 = vmul.f32 %v2514, 1.442695
    %v2518 = vpow.pop %v2517
    %v2519 = vsel %vm2120, %v2516, 0.0
    %2520 = vadd.xlane.f32.xlu0 %v2519
    %v2521 = vpop.xlane.xlu0 %2520
    %v2522 = vsel %vm2120, %v2518, 0.0
    %2523 = vadd.xlane.f32.xlu0 %v2522
    %v2524 = vpop.xlane.xlu0 %2523
    %v2525 = vrcp.pop %v2521
    %v2526 = vrcp.pop %v2524
    %v2527 = vmul.f32 %v2516, %v2525
    %v2528 = vmul.f32 %v2518, %v2526
    %2529 = vrot.lane.b32.xlu0 %v2060, 80
    %v2530 = vpop.permute.xlu0 %2529
    %v2533 = vsel %vm2120, %v2527, 0
    %2535 = vmatpush.msra.mxu0 0.0
    %2536 = vmatpush.msra.mxu0 0.0
    %2537 = vmatpush.msra.mxu0 0.0
    %2538 = vmatpush.msra.mxu0 0.0
    %2539 = vmatpush.msra.mxu0 0.0
    %2540 = vmatpush.msra.mxu0 0.0
    %2541 = vmatpush.msra.mxu0 0.0
    %2542 = vmatpush.msra.mxu0 0.0
    %2543 = vmatpush.msra.mxu0 0.0
    %2544 = vmatpush.msra.mxu0 0.0
    %2545 = vmatpush.msra.mxu0 0.0
    %2546 = vmatpush.msra.mxu0 0.0
    %2547 = vmatpush.msra.mxu0 0.0
    %2548 = vmatpush.msra.mxu0 0.0
    %2549 = vmatpush.msra.mxu0 0.0
    %2550 = vmatpush.msra.mxu0 %v2530
    %2551 = vmatmul.f32.gmra.mxu0 %v2533
    %v2552 = vpop.f32.mrf.mxu0
    %v2553 = vadd.f32 0.0, %v2552
    %2554 = vdwg.mxu0
    %2555 = vrot.lane.b32.xlu0 %v2063, 80
    %v2556 = vpop.permute.xlu0 %2555
    %v2559 = vsel %vm2120, %v2528, 0
    %2561 = vmatpush.msra.mxu0 0.0
    %2562 = vmatpush.msra.mxu0 0.0
    %2563 = vmatpush.msra.mxu0 0.0
    %2564 = vmatpush.msra.mxu0 0.0
    %2565 = vmatpush.msra.mxu0 0.0
    %2566 = vmatpush.msra.mxu0 0.0
    %2567 = vmatpush.msra.mxu0 0.0
    %2568 = vmatpush.msra.mxu0 0.0
    %2569 = vmatpush.msra.mxu0 0.0
    %2570 = vmatpush.msra.mxu0 0.0
    %2571 = vmatpush.msra.mxu0 0.0
    %2572 = vmatpush.msra.mxu0 0.0
    %2573 = vmatpush.msra.mxu0 0.0
    %2574 = vmatpush.msra.mxu0 0.0
    %2575 = vmatpush.msra.mxu0 0.0
    %2576 = vmatpush.msra.mxu0 %v2556
    %2577 = vmatmul.f32.gmra.mxu0 %v2559
    %v2578 = vpop.f32.mrf.mxu0
    %v2579 = vadd.f32 0.0, %v2578
    %2580 = vdwg.mxu0
    %2581 = vrot.lane.b32.xlu0 %v2065, 64
    %v2582 = vpop.permute.xlu0 %2581
    %2583 = vrot.lane.b32.xlu0 %v2037, 64
    %v2584 = vpop.permute.xlu0 %2583
    %v2585 = vsel %vm2067, %v2582, 0
    %v2587 = vsel %vm2067, %v2584, 0
    %2589 = vmatpush.xpose.msra.mxu0 0.0
    %2590 = vmatpush.xpose.msra.mxu0 0.0
    %2591 = vmatpush.xpose.msra.mxu0 0.0
    %2592 = vmatpush.xpose.msra.mxu0 0.0
    %2593 = vmatpush.xpose.msra.mxu0 0.0
    %2594 = vmatpush.xpose.msra.mxu0 0.0
    %2595 = vmatpush.xpose.msra.mxu0 0.0
    %2596 = vmatpush.xpose.msra.mxu0 0.0
    %2597 = vmatpush.xpose.msra.mxu0 0.0
    %2598 = vmatpush.xpose.msra.mxu0 0.0
    %2599 = vmatpush.xpose.msra.mxu0 0.0
    %2600 = vmatpush.xpose.msra.mxu0 0.0
    %2601 = vmatpush.xpose.msra.mxu0 0.0
    %2602 = vmatpush.xpose.msra.mxu0 0.0
    %2603 = vmatpush.xpose.msra.mxu0 0.0
    %2604 = vmatpush.xpose.msra.mxu0 %v2587
    %2605 = vmatmul.f32.gmra.mxu0 %v2585
    %v2606 = vpop.f32.mrf.mxu0
    %v2607 = vadd.f32 0.0, %v2606
    %2608 = vdwg.mxu0
    %2609 = vrot.lane.b32.xlu0 %v2066, 64
    %v2610 = vpop.permute.xlu0 %2609
    %2611 = vrot.lane.b32.xlu0 %v2040, 64
    %v2612 = vpop.permute.xlu0 %2611
    %v2613 = vsel %vm2067, %v2610, 0
    %v2615 = vsel %vm2067, %v2612, 0
    %2617 = vmatpush.xpose.msra.mxu0 0.0
    %2618 = vmatpush.xpose.msra.mxu0 0.0
    %2619 = vmatpush.xpose.msra.mxu0 0.0
    %2620 = vmatpush.xpose.msra.mxu0 0.0
    %2621 = vmatpush.xpose.msra.mxu0 0.0
    %2622 = vmatpush.xpose.msra.mxu0 0.0
    %2623 = vmatpush.xpose.msra.mxu0 0.0
    %2624 = vmatpush.xpose.msra.mxu0 0.0
    %2625 = vmatpush.xpose.msra.mxu0 0.0
    %2626 = vmatpush.xpose.msra.mxu0 0.0
    %2627 = vmatpush.xpose.msra.mxu0 0.0
    %2628 = vmatpush.xpose.msra.mxu0 0.0
    %2629 = vmatpush.xpose.msra.mxu0 0.0
    %2630 = vmatpush.xpose.msra.mxu0 0.0
    %2631 = vmatpush.xpose.msra.mxu0 0.0
    %2632 = vmatpush.xpose.msra.mxu0 %v2615
    %2633 = vmatmul.f32.gmra.mxu0 %v2613
    %v2634 = vpop.f32.mrf.mxu0
    %v2635 = vadd.f32 0.0, %v2634
    %2636 = vdwg.mxu0
    %v2637 = vsel %vm2120, %v2607, -inf
    %2638 = vmax.xlane.f32.xlu0 %v2637
    %v2639 = vpop.xlane.xlu0 %2638
    %v2640 = vsel %vm2120, %v2635, -inf
    %2641 = vmax.xlane.f32.xlu0 %v2640
    %v2642 = vpop.xlane.xlu0 %2641
    %v2643 = vsub.f32 %v2607, %v2639
    %v2644 = vsub.f32 %v2635, %v2642
    %v2645 = vmul.f32 %v2643, 1.442695
    %v2646 = vpow.pop %v2645
    %v2647 = vmul.f32 %v2644, 1.442695
    %v2648 = vpow.pop %v2647
    %v2649 = vsel %vm2120, %v2646, 0.0
    %2650 = vadd.xlane.f32.xlu0 %v2649
    %v2651 = vpop.xlane.xlu0 %2650
    %v2652 = vsel %vm2120, %v2648, 0.0
    %2653 = vadd.xlane.f32.xlu0 %v2652
    %v2654 = vpop.xlane.xlu0 %2653
    %v2655 = vrcp.pop %v2651
    %v2656 = vrcp.pop %v2654
    %v2657 = vmul.f32 %v2646, %v2655
    %v2658 = vmul.f32 %v2648, %v2656
    %2659 = vrot.lane.b32.xlu0 %v2060, 64
    %v2660 = vpop.permute.xlu0 %2659
    %v2663 = vsel %vm2120, %v2657, 0
    %2665 = vmatpush.msra.mxu0 0.0
    %2666 = vmatpush.msra.mxu0 0.0
    %2667 = vmatpush.msra.mxu0 0.0
    %2668 = vmatpush.msra.mxu0 0.0
    %2669 = vmatpush.msra.mxu0 0.0
    %2670 = vmatpush.msra.mxu0 0.0
    %2671 = vmatpush.msra.mxu0 0.0
    %2672 = vmatpush.msra.mxu0 0.0
    %2673 = vmatpush.msra.mxu0 0.0
    %2674 = vmatpush.msra.mxu0 0.0
    %2675 = vmatpush.msra.mxu0 0.0
    %2676 = vmatpush.msra.mxu0 0.0
    %2677 = vmatpush.msra.mxu0 0.0
    %2678 = vmatpush.msra.mxu0 0.0
    %2679 = vmatpush.msra.mxu0 0.0
    %2680 = vmatpush.msra.mxu0 %v2660
    %2681 = vmatmul.f32.gmra.mxu0 %v2663
    %v2682 = vpop.f32.mrf.mxu0
    %v2683 = vadd.f32 0.0, %v2682
    %2684 = vdwg.mxu0
    %2685 = vrot.lane.b32.xlu0 %v2063, 64
    %v2686 = vpop.permute.xlu0 %2685
    %v2689 = vsel %vm2120, %v2658, 0
    %2691 = vmatpush.msra.mxu0 0.0
    %2692 = vmatpush.msra.mxu0 0.0
    %2693 = vmatpush.msra.mxu0 0.0
    %2694 = vmatpush.msra.mxu0 0.0
    %2695 = vmatpush.msra.mxu0 0.0
    %2696 = vmatpush.msra.mxu0 0.0
    %2697 = vmatpush.msra.mxu0 0.0
    %2698 = vmatpush.msra.mxu0 0.0
    %2699 = vmatpush.msra.mxu0 0.0
    %2700 = vmatpush.msra.mxu0 0.0
    %2701 = vmatpush.msra.mxu0 0.0
    %2702 = vmatpush.msra.mxu0 0.0
    %2703 = vmatpush.msra.mxu0 0.0
    %2704 = vmatpush.msra.mxu0 0.0
    %2705 = vmatpush.msra.mxu0 0.0
    %2706 = vmatpush.msra.mxu0 %v2686
    %2707 = vmatmul.f32.gmra.mxu0 %v2689
    %v2708 = vpop.f32.mrf.mxu0
    %v2709 = vadd.f32 0.0, %v2708
    %2710 = vdwg.mxu0
    %2711 = vrot.lane.b32.xlu0 %v2065, 48
    %v2712 = vpop.permute.xlu0 %2711
    %2713 = vrot.lane.b32.xlu0 %v2037, 48
    %v2714 = vpop.permute.xlu0 %2713
    %v2715 = vsel %vm2067, %v2712, 0
    %v2717 = vsel %vm2067, %v2714, 0
    %2719 = vmatpush.xpose.msra.mxu0 0.0
    %2720 = vmatpush.xpose.msra.mxu0 0.0
    %2721 = vmatpush.xpose.msra.mxu0 0.0
    %2722 = vmatpush.xpose.msra.mxu0 0.0
    %2723 = vmatpush.xpose.msra.mxu0 0.0
    %2724 = vmatpush.xpose.msra.mxu0 0.0
    %2725 = vmatpush.xpose.msra.mxu0 0.0
    %2726 = vmatpush.xpose.msra.mxu0 0.0
    %2727 = vmatpush.xpose.msra.mxu0 0.0
    %2728 = vmatpush.xpose.msra.mxu0 0.0
    %2729 = vmatpush.xpose.msra.mxu0 0.0
    %2730 = vmatpush.xpose.msra.mxu0 0.0
    %2731 = vmatpush.xpose.msra.mxu0 0.0
    %2732 = vmatpush.xpose.msra.mxu0 0.0
    %2733 = vmatpush.xpose.msra.mxu0 0.0
    %2734 = vmatpush.xpose.msra.mxu0 %v2717
    %2735 = vmatmul.f32.gmra.mxu0 %v2715
    %v2736 = vpop.f32.mrf.mxu0
    %v2737 = vadd.f32 0.0, %v2736
    %2738 = vdwg.mxu0
    %2739 = vrot.lane.b32.xlu0 %v2066, 48
    %v2740 = vpop.permute.xlu0 %2739
    %2741 = vrot.lane.b32.xlu0 %v2040, 48
    %v2742 = vpop.permute.xlu0 %2741
    %v2743 = vsel %vm2067, %v2740, 0
    %v2745 = vsel %vm2067, %v2742, 0
    %2747 = vmatpush.xpose.msra.mxu0 0.0
    %2748 = vmatpush.xpose.msra.mxu0 0.0
    %2749 = vmatpush.xpose.msra.mxu0 0.0
    %2750 = vmatpush.xpose.msra.mxu0 0.0
    %2751 = vmatpush.xpose.msra.mxu0 0.0
    %2752 = vmatpush.xpose.msra.mxu0 0.0
    %2753 = vmatpush.xpose.msra.mxu0 0.0
    %2754 = vmatpush.xpose.msra.mxu0 0.0
    %2755 = vmatpush.xpose.msra.mxu0 0.0
    %2756 = vmatpush.xpose.msra.mxu0 0.0
    %2757 = vmatpush.xpose.msra.mxu0 0.0
    %2758 = vmatpush.xpose.msra.mxu0 0.0
    %2759 = vmatpush.xpose.msra.mxu0 0.0
    %2760 = vmatpush.xpose.msra.mxu0 0.0
    %2761 = vmatpush.xpose.msra.mxu0 0.0
    %2762 = vmatpush.xpose.msra.mxu0 %v2745
    %2763 = vmatmul.f32.gmra.mxu0 %v2743
    %v2764 = vpop.f32.mrf.mxu0
    %v2765 = vadd.f32 0.0, %v2764
    %2766 = vdwg.mxu0
    %v2767 = vsel %vm2120, %v2737, -inf
    %2768 = vmax.xlane.f32.xlu0 %v2767
    %v2769 = vpop.xlane.xlu0 %2768
    %v2770 = vsel %vm2120, %v2765, -inf
    %2771 = vmax.xlane.f32.xlu0 %v2770
    %v2772 = vpop.xlane.xlu0 %2771
    %v2773 = vsub.f32 %v2737, %v2769
    %v2774 = vsub.f32 %v2765, %v2772
    %v2775 = vmul.f32 %v2773, 1.442695
    %v2776 = vpow.pop %v2775
    %v2777 = vmul.f32 %v2774, 1.442695
    %v2778 = vpow.pop %v2777
    %v2779 = vsel %vm2120, %v2776, 0.0
    %2780 = vadd.xlane.f32.xlu0 %v2779
    %v2781 = vpop.xlane.xlu0 %2780
    %v2782 = vsel %vm2120, %v2778, 0.0
    %2783 = vadd.xlane.f32.xlu0 %v2782
    %v2784 = vpop.xlane.xlu0 %2783
    %v2785 = vrcp.pop %v2781
    %v2786 = vrcp.pop %v2784
    %v2787 = vmul.f32 %v2776, %v2785
    %v2788 = vmul.f32 %v2778, %v2786
    %2789 = vrot.lane.b32.xlu0 %v2060, 48
    %v2790 = vpop.permute.xlu0 %2789
    %v2793 = vsel %vm2120, %v2787, 0
    %2795 = vmatpush.msra.mxu0 0.0
    %2796 = vmatpush.msra.mxu0 0.0
    %2797 = vmatpush.msra.mxu0 0.0
    %2798 = vmatpush.msra.mxu0 0.0
    %2799 = vmatpush.msra.mxu0 0.0
    %2800 = vmatpush.msra.mxu0 0.0
    %2801 = vmatpush.msra.mxu0 0.0
    %2802 = vmatpush.msra.mxu0 0.0
    %2803 = vmatpush.msra.mxu0 0.0
    %2804 = vmatpush.msra.mxu0 0.0
    %2805 = vmatpush.msra.mxu0 0.0
    %2806 = vmatpush.msra.mxu0 0.0
    %2807 = vmatpush.msra.mxu0 0.0
    %2808 = vmatpush.msra.mxu0 0.0
    %2809 = vmatpush.msra.mxu0 0.0
    %2810 = vmatpush.msra.mxu0 %v2790
    %2811 = vmatmul.f32.gmra.mxu0 %v2793
    %v2812 = vpop.f32.mrf.mxu0
    %v2813 = vadd.f32 0.0, %v2812
    %2814 = vdwg.mxu0
    %2815 = vrot.lane.b32.xlu0 %v2063, 48
    %v2816 = vpop.permute.xlu0 %2815
    %v2819 = vsel %vm2120, %v2788, 0
    %2821 = vmatpush.msra.mxu0 0.0
    %2822 = vmatpush.msra.mxu0 0.0
    %2823 = vmatpush.msra.mxu0 0.0
    %2824 = vmatpush.msra.mxu0 0.0
    %2825 = vmatpush.msra.mxu0 0.0
    %2826 = vmatpush.msra.mxu0 0.0
    %2827 = vmatpush.msra.mxu0 0.0
    %2828 = vmatpush.msra.mxu0 0.0
    %2829 = vmatpush.msra.mxu0 0.0
    %2830 = vmatpush.msra.mxu0 0.0
    %2831 = vmatpush.msra.mxu0 0.0
    %2832 = vmatpush.msra.mxu0 0.0
    %2833 = vmatpush.msra.mxu0 0.0
    %2834 = vmatpush.msra.mxu0 0.0
    %2835 = vmatpush.msra.mxu0 0.0
    %2836 = vmatpush.msra.mxu0 %v2816
    %2837 = vmatmul.f32.gmra.mxu0 %v2819
    %v2838 = vpop.f32.mrf.mxu0
    %v2839 = vadd.f32 0.0, %v2838
    %2840 = vdwg.mxu0
    %2841 = vrot.lane.b32.xlu0 %v2065, 32
    %v2842 = vpop.permute.xlu0 %2841
    %2843 = vrot.lane.b32.xlu0 %v2037, 32
    %v2844 = vpop.permute.xlu0 %2843
    %v2845 = vsel %vm2067, %v2842, 0
    %v2847 = vsel %vm2067, %v2844, 0
    %2849 = vmatpush.xpose.msra.mxu0 0.0
    %2850 = vmatpush.xpose.msra.mxu0 0.0
    %2851 = vmatpush.xpose.msra.mxu0 0.0
    %2852 = vmatpush.xpose.msra.mxu0 0.0
    %2853 = vmatpush.xpose.msra.mxu0 0.0
    %2854 = vmatpush.xpose.msra.mxu0 0.0
    %2855 = vmatpush.xpose.msra.mxu0 0.0
    %2856 = vmatpush.xpose.msra.mxu0 0.0
    %2857 = vmatpush.xpose.msra.mxu0 0.0
    %2858 = vmatpush.xpose.msra.mxu0 0.0
    %2859 = vmatpush.xpose.msra.mxu0 0.0
    %2860 = vmatpush.xpose.msra.mxu0 0.0
    %2861 = vmatpush.xpose.msra.mxu0 0.0
    %2862 = vmatpush.xpose.msra.mxu0 0.0
    %2863 = vmatpush.xpose.msra.mxu0 0.0
    %2864 = vmatpush.xpose.msra.mxu0 %v2847
    %2865 = vmatmul.f32.gmra.mxu0 %v2845
    %v2866 = vpop.f32.mrf.mxu0
    %v2867 = vadd.f32 0.0, %v2866
    %2868 = vdwg.mxu0
    %2869 = vrot.lane.b32.xlu0 %v2066, 32
    %v2870 = vpop.permute.xlu0 %2869
    %2871 = vrot.lane.b32.xlu0 %v2040, 32
    %v2872 = vpop.permute.xlu0 %2871
    %v2873 = vsel %vm2067, %v2870, 0
    %v2875 = vsel %vm2067, %v2872, 0
    %2877 = vmatpush.xpose.msra.mxu0 0.0
    %2878 = vmatpush.xpose.msra.mxu0 0.0
    %2879 = vmatpush.xpose.msra.mxu0 0.0
    %2880 = vmatpush.xpose.msra.mxu0 0.0
    %2881 = vmatpush.xpose.msra.mxu0 0.0
    %2882 = vmatpush.xpose.msra.mxu0 0.0
    %2883 = vmatpush.xpose.msra.mxu0 0.0
    %2884 = vmatpush.xpose.msra.mxu0 0.0
    %2885 = vmatpush.xpose.msra.mxu0 0.0
    %2886 = vmatpush.xpose.msra.mxu0 0.0
    %2887 = vmatpush.xpose.msra.mxu0 0.0
    %2888 = vmatpush.xpose.msra.mxu0 0.0
    %2889 = vmatpush.xpose.msra.mxu0 0.0
    %2890 = vmatpush.xpose.msra.mxu0 0.0
    %2891 = vmatpush.xpose.msra.mxu0 0.0
    %2892 = vmatpush.xpose.msra.mxu0 %v2875
    %2893 = vmatmul.f32.gmra.mxu0 %v2873
    %v2894 = vpop.f32.mrf.mxu0
    %v2895 = vadd.f32 0.0, %v2894
    %2896 = vdwg.mxu0
    %v2897 = vsel %vm2120, %v2867, -inf
    %2898 = vmax.xlane.f32.xlu0 %v2897
    %v2899 = vpop.xlane.xlu0 %2898
    %v2900 = vsel %vm2120, %v2895, -inf
    %2901 = vmax.xlane.f32.xlu0 %v2900
    %v2902 = vpop.xlane.xlu0 %2901
    %v2903 = vsub.f32 %v2867, %v2899
    %v2904 = vsub.f32 %v2895, %v2902
    %v2905 = vmul.f32 %v2903, 1.442695
    %v2906 = vpow.pop %v2905
    %v2907 = vmul.f32 %v2904, 1.442695
    %v2908 = vpow.pop %v2907
    %v2909 = vsel %vm2120, %v2906, 0.0
    %2910 = vadd.xlane.f32.xlu0 %v2909
    %v2911 = vpop.xlane.xlu0 %2910
    %v2912 = vsel %vm2120, %v2908, 0.0
    %2913 = vadd.xlane.f32.xlu0 %v2912
    %v2914 = vpop.xlane.xlu0 %2913
    %v2915 = vrcp.pop %v2911
    %v2916 = vrcp.pop %v2914
    %v2917 = vmul.f32 %v2906, %v2915
    %v2918 = vmul.f32 %v2908, %v2916
    %2919 = vrot.lane.b32.xlu0 %v2060, 32
    %v2920 = vpop.permute.xlu0 %2919
    %v2923 = vsel %vm2120, %v2917, 0
    %2925 = vmatpush.msra.mxu0 0.0
    %2926 = vmatpush.msra.mxu0 0.0
    %2927 = vmatpush.msra.mxu0 0.0
    %2928 = vmatpush.msra.mxu0 0.0
    %2929 = vmatpush.msra.mxu0 0.0
    %2930 = vmatpush.msra.mxu0 0.0
    %2931 = vmatpush.msra.mxu0 0.0
    %2932 = vmatpush.msra.mxu0 0.0
    %2933 = vmatpush.msra.mxu0 0.0
    %2934 = vmatpush.msra.mxu0 0.0
    %2935 = vmatpush.msra.mxu0 0.0
    %2936 = vmatpush.msra.mxu0 0.0
    %2937 = vmatpush.msra.mxu0 0.0
    %2938 = vmatpush.msra.mxu0 0.0
    %2939 = vmatpush.msra.mxu0 0.0
    %2940 = vmatpush.msra.mxu0 %v2920
    %2941 = vmatmul.f32.gmra.mxu0 %v2923
    %v2942 = vpop.f32.mrf.mxu0
    %v2943 = vadd.f32 0.0, %v2942
    %2944 = vdwg.mxu0
    %2945 = vrot.lane.b32.xlu0 %v2063, 32
    %v2946 = vpop.permute.xlu0 %2945
    %v2949 = vsel %vm2120, %v2918, 0
    %2951 = vmatpush.msra.mxu0 0.0
    %2952 = vmatpush.msra.mxu0 0.0
    %2953 = vmatpush.msra.mxu0 0.0
    %2954 = vmatpush.msra.mxu0 0.0
    %2955 = vmatpush.msra.mxu0 0.0
    %2956 = vmatpush.msra.mxu0 0.0
    %2957 = vmatpush.msra.mxu0 0.0
    %2958 = vmatpush.msra.mxu0 0.0
    %2959 = vmatpush.msra.mxu0 0.0
    %2960 = vmatpush.msra.mxu0 0.0
    %2961 = vmatpush.msra.mxu0 0.0
    %2962 = vmatpush.msra.mxu0 0.0
    %2963 = vmatpush.msra.mxu0 0.0
    %2964 = vmatpush.msra.mxu0 0.0
    %2965 = vmatpush.msra.mxu0 0.0
    %2966 = vmatpush.msra.mxu0 %v2946
    %2967 = vmatmul.f32.gmra.mxu0 %v2949
    %v2968 = vpop.f32.mrf.mxu0
    %v2969 = vadd.f32 0.0, %v2968
    %2970 = vdwg.mxu0
    %2971 = vrot.lane.b32.xlu0 %v2065, 16
    %v2972 = vpop.permute.xlu0 %2971
    %2973 = vrot.lane.b32.xlu0 %v2037, 16
    %v2974 = vpop.permute.xlu0 %2973
    %v2975 = vsel %vm2067, %v2972, 0
    %v2977 = vsel %vm2067, %v2974, 0
    %2979 = vmatpush.xpose.msra.mxu0 0.0
    %2980 = vmatpush.xpose.msra.mxu0 0.0
    %2981 = vmatpush.xpose.msra.mxu0 0.0
    %2982 = vmatpush.xpose.msra.mxu0 0.0
    %2983 = vmatpush.xpose.msra.mxu0 0.0
    %2984 = vmatpush.xpose.msra.mxu0 0.0
    %2985 = vmatpush.xpose.msra.mxu0 0.0
    %2986 = vmatpush.xpose.msra.mxu0 0.0
    %2987 = vmatpush.xpose.msra.mxu0 0.0
    %2988 = vmatpush.xpose.msra.mxu0 0.0
    %2989 = vmatpush.xpose.msra.mxu0 0.0
    %2990 = vmatpush.xpose.msra.mxu0 0.0
    %2991 = vmatpush.xpose.msra.mxu0 0.0
    %2992 = vmatpush.xpose.msra.mxu0 0.0
    %2993 = vmatpush.xpose.msra.mxu0 0.0
    %2994 = vmatpush.xpose.msra.mxu0 %v2977
    %2995 = vmatmul.f32.gmra.mxu0 %v2975
    %v2996 = vpop.f32.mrf.mxu0
    %v2997 = vadd.f32 0.0, %v2996
    %2998 = vdwg.mxu0
    %2999 = vrot.lane.b32.xlu0 %v2066, 16
    %v3000 = vpop.permute.xlu0 %2999
    %3001 = vrot.lane.b32.xlu0 %v2040, 16
    %v3002 = vpop.permute.xlu0 %3001
    %v3003 = vsel %vm2067, %v3000, 0
    %v3005 = vsel %vm2067, %v3002, 0
    %3007 = vmatpush.xpose.msra.mxu0 0.0
    %3008 = vmatpush.xpose.msra.mxu0 0.0
    %3009 = vmatpush.xpose.msra.mxu0 0.0
    %3010 = vmatpush.xpose.msra.mxu0 0.0
    %3011 = vmatpush.xpose.msra.mxu0 0.0
    %3012 = vmatpush.xpose.msra.mxu0 0.0
    %3013 = vmatpush.xpose.msra.mxu0 0.0
    %3014 = vmatpush.xpose.msra.mxu0 0.0
    %3015 = vmatpush.xpose.msra.mxu0 0.0
    %3016 = vmatpush.xpose.msra.mxu0 0.0
    %3017 = vmatpush.xpose.msra.mxu0 0.0
    %3018 = vmatpush.xpose.msra.mxu0 0.0
    %3019 = vmatpush.xpose.msra.mxu0 0.0
    %3020 = vmatpush.xpose.msra.mxu0 0.0
    %3021 = vmatpush.xpose.msra.mxu0 0.0
    %3022 = vmatpush.xpose.msra.mxu0 %v3005
    %3023 = vmatmul.f32.gmra.mxu0 %v3003
    %v3024 = vpop.f32.mrf.mxu0
    %v3025 = vadd.f32 0.0, %v3024
    %3026 = vdwg.mxu0
    %v3027 = vsel %vm2120, %v2997, -inf
    %3028 = vmax.xlane.f32.xlu0 %v3027
    %v3029 = vpop.xlane.xlu0 %3028
    %v3030 = vsel %vm2120, %v3025, -inf
    %3031 = vmax.xlane.f32.xlu0 %v3030
    %v3032 = vpop.xlane.xlu0 %3031
    %v3033 = vsub.f32 %v2997, %v3029
    %v3034 = vsub.f32 %v3025, %v3032
    %v3035 = vmul.f32 %v3033, 1.442695
    %v3036 = vpow.pop %v3035
    %v3037 = vmul.f32 %v3034, 1.442695
    %v3038 = vpow.pop %v3037
    %v3039 = vsel %vm2120, %v3036, 0.0
    %3040 = vadd.xlane.f32.xlu0 %v3039
    %v3041 = vpop.xlane.xlu0 %3040
    %v3042 = vsel %vm2120, %v3038, 0.0
    %3043 = vadd.xlane.f32.xlu0 %v3042
    %v3044 = vpop.xlane.xlu0 %3043
    %v3045 = vrcp.pop %v3041
    %v3046 = vrcp.pop %v3044
    %v3047 = vmul.f32 %v3036, %v3045
    %v3048 = vmul.f32 %v3038, %v3046
    %3049 = vrot.lane.b32.xlu0 %v2060, 16
    %v3050 = vpop.permute.xlu0 %3049
    %v3053 = vsel %vm2120, %v3047, 0
    %3055 = vmatpush.msra.mxu0 0.0
    %3056 = vmatpush.msra.mxu0 0.0
    %3057 = vmatpush.msra.mxu0 0.0
    %3058 = vmatpush.msra.mxu0 0.0
    %3059 = vmatpush.msra.mxu0 0.0
    %3060 = vmatpush.msra.mxu0 0.0
    %3061 = vmatpush.msra.mxu0 0.0
    %3062 = vmatpush.msra.mxu0 0.0
    %3063 = vmatpush.msra.mxu0 0.0
    %3064 = vmatpush.msra.mxu0 0.0
    %3065 = vmatpush.msra.mxu0 0.0
    %3066 = vmatpush.msra.mxu0 0.0
    %3067 = vmatpush.msra.mxu0 0.0
    %3068 = vmatpush.msra.mxu0 0.0
    %3069 = vmatpush.msra.mxu0 0.0
    %3070 = vmatpush.msra.mxu0 %v3050
    %3071 = vmatmul.f32.gmra.mxu0 %v3053
    %v3072 = vpop.f32.mrf.mxu0
    %v3073 = vadd.f32 0.0, %v3072
    %3074 = vdwg.mxu0
    %3075 = vrot.lane.b32.xlu0 %v2063, 16
    %v3076 = vpop.permute.xlu0 %3075
    %v3079 = vsel %vm2120, %v3048, 0
    %3081 = vmatpush.msra.mxu0 0.0
    %3082 = vmatpush.msra.mxu0 0.0
    %3083 = vmatpush.msra.mxu0 0.0
    %3084 = vmatpush.msra.mxu0 0.0
    %3085 = vmatpush.msra.mxu0 0.0
    %3086 = vmatpush.msra.mxu0 0.0
    %3087 = vmatpush.msra.mxu0 0.0
    %3088 = vmatpush.msra.mxu0 0.0
    %3089 = vmatpush.msra.mxu0 0.0
    %3090 = vmatpush.msra.mxu0 0.0
    %3091 = vmatpush.msra.mxu0 0.0
    %3092 = vmatpush.msra.mxu0 0.0
    %3093 = vmatpush.msra.mxu0 0.0
    %3094 = vmatpush.msra.mxu0 0.0
    %3095 = vmatpush.msra.mxu0 0.0
    %3096 = vmatpush.msra.mxu0 %v3076
    %3097 = vmatmul.f32.gmra.mxu0 %v3079
    %v3098 = vpop.f32.mrf.mxu0
    %v3099 = vadd.f32 0.0, %v3098
    %3100 = vdwg.mxu0
    %3103 = vrot.lane.b32.xlu0 %v2292, 16
    %v3104 = vpop.permute.xlu0 %3103
    %3105 = vrot.lane.b32.xlu0 %v2319, 16
    %v3106 = vpop.permute.xlu0 %3105
    %3111 = vrot.lane.b32.xlu0 %v2423, 32
    %v3112 = vpop.permute.xlu0 %3111
    %3113 = vrot.lane.b32.xlu0 %v2449, 32
    %v3114 = vpop.permute.xlu0 %3113
    %3119 = vrot.lane.b32.xlu0 %v2553, 48
    %v3120 = vpop.permute.xlu0 %3119
    %3121 = vrot.lane.b32.xlu0 %v2579, 48
    %v3122 = vpop.permute.xlu0 %3121
    %3127 = vrot.lane.b32.xlu0 %v2683, 64
    %v3128 = vpop.permute.xlu0 %3127
    %3129 = vrot.lane.b32.xlu0 %v2709, 64
    %v3130 = vpop.permute.xlu0 %3129
    %3135 = vrot.lane.b32.xlu0 %v2813, 80
    %v3136 = vpop.permute.xlu0 %3135
    %3137 = vrot.lane.b32.xlu0 %v2839, 80
    %v3138 = vpop.permute.xlu0 %3137
    %3143 = vrot.lane.b32.xlu0 %v2943, 96
    %v3144 = vpop.permute.xlu0 %3143
    %3145 = vrot.lane.b32.xlu0 %v2969, 96
    %v3146 = vpop.permute.xlu0 %3145
    %3151 = vrot.lane.b32.xlu0 %v3073, 112
    %v3152 = vpop.permute.xlu0 %3151
    %3153 = vrot.lane.b32.xlu0 %v3099, 112
    %v3154 = vpop.permute.xlu0 %3153
    %v3157 = vsel %vm2067, %v2164, %v3104
    %v3158 = vsel %vm2067, %v2187, %v3106
    %vm3159 = vcmask 261120
    %v3160 = vsel %vm3159, %v3157, %v3112
    %v3161 = vsel %vm3159, %v3158, %v3114
    %vm3162 = vcmask 392192
    %v3163 = vsel %vm3162, %v3160, %v3120
    %v3164 = vsel %vm3162, %v3161, %v3122
    %vm3165 = vcmask 523264
    %v3166 = vsel %vm3165, %v3163, %v3128
    %v3167 = vsel %vm3165, %v3164, %v3130
    %vm3168 = vcmask 654336
    %v3169 = vsel %vm3168, %v3166, %v3136
    %v3170 = vsel %vm3168, %v3167, %v3138
    %vm3171 = vcmask 785408
    %v3172 = vsel %vm3171, %v3169, %v3144
    %v3173 = vsel %vm3171, %v3170, %v3146
    %vm3174 = vcmask 916480
    %v3175 = vsel %vm3174, %v3172, %v3152
    %v3176 = vsel %vm3174, %v3173, %v3154
    %v3178 = vperm.slane %v368, 0
    %3180 = vmatpush.msra.mxu0 %v367
    %3181 = vmatpush.msra.mxu0 %v366
    %3182 = vmatpush.msra.mxu0 %v365
    %3183 = vmatpush.msra.mxu0 %v364
    %3184 = vmatpush.msra.mxu0 %v363
    %3185 = vmatpush.msra.mxu0 %v362
    %3186 = vmatpush.msra.mxu0 %v361
    %3187 = vmatpush.msra.mxu0 %v360
    %3188 = vmatpush.msra.mxu0 %v359
    %3189 = vmatpush.msra.mxu0 %v358
    %3190 = vmatpush.msra.mxu0 %v357
    %3191 = vmatpush.msra.mxu0 %v356
    %3192 = vmatpush.msra.mxu0 %v355
    %3193 = vmatpush.msra.mxu0 %v354
    %3194 = vmatpush.msra.mxu0 %v353
    %3195 = vmatpush.msra.mxu0 %v352
    %3196 = vmatmul.f32.gmra.mxu0 %v3175
    %v3197 = vpop.f32.mrf.mxu0
    %v3198 = vadd.f32 %v3178, %v3197
    %3199 = vmatmul.f32.gmra.mxu0 %v3176
    %v3200 = vpop.f32.mrf.mxu0
    %v3201 = vadd.f32 %v3178, %v3200
    %3202 = vdwg.mxu0
    %v3203 = vadd.f32 %v1987, %v3198
    %v3204 = vadd.f32 %v1988, %v3201
    %3205 = vadd.xlane.f32.xlu0 %v3203
    %v3206 = vpop.xlane.xlu0 %3205
    %3207 = vadd.xlane.f32.xlu0 %v3204
    %v3208 = vpop.xlane.xlu0 %3207
    %v3209 = vmul.f32 %v3206, %v1942
    %v3210 = vmul.f32 %v3208, %v1942
    %v3211 = vsub.f32 %v3203, %v3209
    %v3212 = vsub.f32 %v3204, %v3210
    %v3213 = vmul.f32 %v3211, %v3211
    %v3214 = vmul.f32 %v3212, %v3212
    %3215 = vadd.xlane.f32.xlu0 %v3213
    %v3216 = vpop.xlane.xlu0 %3215
    %3217 = vadd.xlane.f32.xlu0 %v3214
    %v3218 = vpop.xlane.xlu0 %3217
    %v3219 = vmul.f32 %v3216, %v1942
    %v3220 = vmul.f32 %v3218, %v1942
    %v3221 = vadd.f32 %v3219, 1e-12
    %v3222 = vadd.f32 %v3220, 1e-12
    %v3223 = vrsqrt.pop %v3221
    %v3224 = vmul.f32 %v3223, %v3221
    %v3225 = vmul.f32 %v3224, %v3223
    %v3226 = vmul.f32 0.5, %v3225
    %v3227 = vsub.f32 1.5, %v3226
    %v3228 = vmul.f32 %v3223, %v3227
    %vm3229 = vweird.f32 %v3221
    %vm3230 = vweird.f32 %v3223
    %vm3231 = vmor %vm3229, %vm3230
    %v3232 = vsel %vm3231, %v3223, %v3228
    %v3233 = vrsqrt.pop %v3222
    %v3234 = vmul.f32 %v3233, %v3222
    %v3235 = vmul.f32 %v3234, %v3233
    %v3236 = vmul.f32 0.5, %v3235
    %v3237 = vsub.f32 1.5, %v3236
    %v3238 = vmul.f32 %v3233, %v3237
    %vm3239 = vweird.f32 %v3222
    %vm3240 = vweird.f32 %v3233
    %vm3241 = vmor %vm3239, %vm3240
    %v3242 = vsel %vm3241, %v3233, %v3238
    %v3243 = vmul.f32 %v3211, %v3232
    %v3244 = vmul.f32 %v3212, %v3242
    %v3246 = vperm.slane %v369, 0
    %v3248 = vmul.f32 %v3246, %v3243
    %v3249 = vmul.f32 %v3246, %v3244
    %v3251 = vperm.slane %v370, 0
    %v3253 = vadd.f32 %v3248, %v3251
    %v3254 = vadd.f32 %v3249, %v3251
    %s3255 = scalar_lea.vmem [#allocation5], 384
    %v3256 = vld [vmem:[%s3255] sm:$0xff]
    %v3257 = vld [vmem:[%s3255 + $0x8] sm:$0xff]
    %v3258 = vld [vmem:[%s3255 + $0x10] sm:$0xff]
    %v3259 = vld [vmem:[%s3255 + $0x18] sm:$0xff]
    %v3260 = vld [vmem:[%s3255 + $0x20] sm:$0xff]
    %v3261 = vld [vmem:[%s3255 + $0x28] sm:$0xff]
    %v3262 = vld [vmem:[%s3255 + $0x30] sm:$0xff]
    %v3263 = vld [vmem:[%s3255 + $0x38] sm:$0xff]
    %v3264 = vld [vmem:[%s3255 + $0x40] sm:$0xff]
    %v3265 = vld [vmem:[%s3255 + $0x48] sm:$0xff]
    %v3266 = vld [vmem:[%s3255 + $0x50] sm:$0xff]
    %v3267 = vld [vmem:[%s3255 + $0x58] sm:$0xff]
    %v3268 = vld [vmem:[%s3255 + $0x60] sm:$0xff]
    %v3269 = vld [vmem:[%s3255 + $0x68] sm:$0xff]
    %v3270 = vld [vmem:[%s3255 + $0x70] sm:$0xff]
    %v3271 = vld [vmem:[%s3255 + $0x78] sm:$0xff]
    %v3272 = vld [vmem:[%s3255 + $0x80] sm:$0xff]
    %v3273 = vld [vmem:[%s3255 + $0x88] sm:$0xff]
    %v3274 = vld [vmem:[%s3255 + $0x90] sm:$0xff]
    %v3275 = vld [vmem:[%s3255 + $0x98] sm:$0xff]
    %v3276 = vld [vmem:[%s3255 + $0xa0] sm:$0xff]
    %v3277 = vld [vmem:[%s3255 + $0xa8] sm:$0xff]
    %v3278 = vld [vmem:[%s3255 + $0xb0] sm:$0xff]
    %v3279 = vld [vmem:[%s3255 + $0xb8] sm:$0xff]
    %v3280 = vld [vmem:[%s3255 + $0xc0] sm:$0xff]
    %v3281 = vld [vmem:[%s3255 + $0xc8] sm:$0xff]
    %v3282 = vld [vmem:[%s3255 + $0xd0] sm:$0xff]
    %v3283 = vld [vmem:[%s3255 + $0xd8] sm:$0xff]
    %v3284 = vld [vmem:[%s3255 + $0xe0] sm:$0xff]
    %v3285 = vld [vmem:[%s3255 + $0xe8] sm:$0xff]
    %v3286 = vld [vmem:[%s3255 + $0xf0] sm:$0xff]
    %v3287 = vld [vmem:[%s3255 + $0xf8] sm:$0xff]
    %v3288 = vld [vmem:[%s3255 + $0x100] sm:$0xff]
    %v3289 = vld [vmem:[%s3255 + $0x108] sm:$0xff]
    %v3290 = vld [vmem:[%s3255 + $0x110] sm:$0xff]
    %v3291 = vld [vmem:[%s3255 + $0x118] sm:$0xff]
    %v3292 = vld [vmem:[%s3255 + $0x120] sm:$0xff]
    %v3293 = vld [vmem:[%s3255 + $0x128] sm:$0xff]
    %v3294 = vld [vmem:[%s3255 + $0x130] sm:$0xff]
    %v3295 = vld [vmem:[%s3255 + $0x138] sm:$0xff]
    %v3296 = vld [vmem:[%s3255 + $0x140] sm:$0xff]
    %v3297 = vld [vmem:[%s3255 + $0x148] sm:$0xff]
    %v3298 = vld [vmem:[%s3255 + $0x150] sm:$0xff]
    %v3299 = vld [vmem:[%s3255 + $0x158] sm:$0xff]
    %v3300 = vld [vmem:[%s3255 + $0x160] sm:$0xff]
    %v3301 = vld [vmem:[%s3255 + $0x168] sm:$0xff]
    %v3302 = vld [vmem:[%s3255 + $0x170] sm:$0xff]
    %v3303 = vld [vmem:[%s3255 + $0x178] sm:$0xff]
    %s3304 = scalar_lea.vmem [#allocation7], 384
    %v3305 = vld [vmem:[%s3304] sm:$0xff]
    %v3306 = vld [vmem:[%s3304 + $0x8] sm:$0xff]
    %v3307 = vld [vmem:[%s3304 + $0x10] sm:$0xff]
    %v3308 = vld [vmem:[%s3304 + $0x18] sm:$0xff]
    %v3309 = vld [vmem:[%s3304 + $0x20] sm:$0xff]
    %v3310 = vld [vmem:[%s3304 + $0x28] sm:$0xff]
    %v3311 = vld [vmem:[%s3304 + $0x30] sm:$0xff]
    %v3312 = vld [vmem:[%s3304 + $0x38] sm:$0xff]
    %v3313 = vld [vmem:[%s3304 + $0x40] sm:$0xff]
    %v3314 = vld [vmem:[%s3304 + $0x48] sm:$0xff]
    %v3315 = vld [vmem:[%s3304 + $0x50] sm:$0xff]
    %v3316 = vld [vmem:[%s3304 + $0x58] sm:$0xff]
    %v3317 = vld [vmem:[%s3304 + $0x60] sm:$0xff]
    %v3318 = vld [vmem:[%s3304 + $0x68] sm:$0xff]
    %v3319 = vld [vmem:[%s3304 + $0x70] sm:$0xff]
    %v3320 = vld [vmem:[%s3304 + $0x78] sm:$0xff]
    %v3321 = vld [vmem:[%s3304 + $0x80] sm:$0xff]
    %v3322 = vld [vmem:[%s3304 + $0x88] sm:$0xff]
    %v3323 = vld [vmem:[%s3304 + $0x90] sm:$0xff]
    %v3324 = vld [vmem:[%s3304 + $0x98] sm:$0xff]
    %v3325 = vld [vmem:[%s3304 + $0xa0] sm:$0xff]
    %v3326 = vld [vmem:[%s3304 + $0xa8] sm:$0xff]
    %v3327 = vld [vmem:[%s3304 + $0xb0] sm:$0xff]
    %v3328 = vld [vmem:[%s3304 + $0xb8] sm:$0xff]
    %v3329 = vld [vmem:[%s3304 + $0xc0] sm:$0xff]
    %v3330 = vld [vmem:[%s3304 + $0xc8] sm:$0xff]
    %v3331 = vld [vmem:[%s3304 + $0xd0] sm:$0xff]
    %v3332 = vld [vmem:[%s3304 + $0xd8] sm:$0xff]
    %v3333 = vld [vmem:[%s3304 + $0xe0] sm:$0xff]
    %v3334 = vld [vmem:[%s3304 + $0xe8] sm:$0xff]
    %v3335 = vld [vmem:[%s3304 + $0xf0] sm:$0xff]
    %v3336 = vld [vmem:[%s3304 + $0xf8] sm:$0xff]
    %v3337 = vld [vmem:[%s3304 + $0x100] sm:$0xff]
    %v3338 = vld [vmem:[%s3304 + $0x108] sm:$0xff]
    %v3339 = vld [vmem:[%s3304 + $0x110] sm:$0xff]
    %v3340 = vld [vmem:[%s3304 + $0x118] sm:$0xff]
    %v3341 = vld [vmem:[%s3304 + $0x120] sm:$0xff]
    %v3342 = vld [vmem:[%s3304 + $0x128] sm:$0xff]
    %v3343 = vld [vmem:[%s3304 + $0x130] sm:$0xff]
    %v3344 = vld [vmem:[%s3304 + $0x138] sm:$0xff]
    %v3345 = vld [vmem:[%s3304 + $0x140] sm:$0xff]
    %v3346 = vld [vmem:[%s3304 + $0x148] sm:$0xff]
    %v3347 = vld [vmem:[%s3304 + $0x150] sm:$0xff]
    %v3348 = vld [vmem:[%s3304 + $0x158] sm:$0xff]
    %v3349 = vld [vmem:[%s3304 + $0x160] sm:$0xff]
    %v3350 = vld [vmem:[%s3304 + $0x168] sm:$0xff]
    %v3351 = vld [vmem:[%s3304 + $0x170] sm:$0xff]
    %v3352 = vld [vmem:[%s3304 + $0x178] sm:$0xff]
    %s3353 = scalar_lea.vmem [#allocation8], 3
    %v3354 = vld [vmem:[%s3353] sm:$0x7]
    %s3355 = scalar_lea.vmem [#allocation10], 3
    %v3356 = vld [vmem:[%s3355] sm:$0x7]
    %s3357 = scalar_lea.vmem %s5, 1
    %v3358 = vld [vmem:[%s3357] sm:$0x1]
    %s3359 = scalar_lea.vmem [#allocation11], 1
    %v3360 = vld [vmem:[%s3359] sm:$0x1]
    %s3361 = scalar_lea.vmem [#allocation13], 384
    %v3362 = vld [vmem:[%s3361] sm:$0xff]
    %v3363 = vld [vmem:[%s3361 + $0x8] sm:$0xff]
    %v3364 = vld [vmem:[%s3361 + $0x10] sm:$0xff]
    %v3365 = vld [vmem:[%s3361 + $0x18] sm:$0xff]
    %v3366 = vld [vmem:[%s3361 + $0x20] sm:$0xff]
    %v3367 = vld [vmem:[%s3361 + $0x28] sm:$0xff]
    %v3368 = vld [vmem:[%s3361 + $0x30] sm:$0xff]
    %v3369 = vld [vmem:[%s3361 + $0x38] sm:$0xff]
    %v3370 = vld [vmem:[%s3361 + $0x40] sm:$0xff]
    %v3371 = vld [vmem:[%s3361 + $0x48] sm:$0xff]
    %v3372 = vld [vmem:[%s3361 + $0x50] sm:$0xff]
    %v3373 = vld [vmem:[%s3361 + $0x58] sm:$0xff]
    %v3374 = vld [vmem:[%s3361 + $0x60] sm:$0xff]
    %v3375 = vld [vmem:[%s3361 + $0x68] sm:$0xff]
    %v3376 = vld [vmem:[%s3361 + $0x70] sm:$0xff]
    %v3377 = vld [vmem:[%s3361 + $0x78] sm:$0xff]
    %v3378 = vld [vmem:[%s3361 + $0x80] sm:$0xff]
    %v3379 = vld [vmem:[%s3361 + $0x88] sm:$0xff]
    %v3380 = vld [vmem:[%s3361 + $0x90] sm:$0xff]
    %v3381 = vld [vmem:[%s3361 + $0x98] sm:$0xff]
    %v3382 = vld [vmem:[%s3361 + $0xa0] sm:$0xff]
    %v3383 = vld [vmem:[%s3361 + $0xa8] sm:$0xff]
    %v3384 = vld [vmem:[%s3361 + $0xb0] sm:$0xff]
    %v3385 = vld [vmem:[%s3361 + $0xb8] sm:$0xff]
    %v3386 = vld [vmem:[%s3361 + $0xc0] sm:$0xff]
    %v3387 = vld [vmem:[%s3361 + $0xc8] sm:$0xff]
    %v3388 = vld [vmem:[%s3361 + $0xd0] sm:$0xff]
    %v3389 = vld [vmem:[%s3361 + $0xd8] sm:$0xff]
    %v3390 = vld [vmem:[%s3361 + $0xe0] sm:$0xff]
    %v3391 = vld [vmem:[%s3361 + $0xe8] sm:$0xff]
    %v3392 = vld [vmem:[%s3361 + $0xf0] sm:$0xff]
    %v3393 = vld [vmem:[%s3361 + $0xf8] sm:$0xff]
    %v3394 = vld [vmem:[%s3361 + $0x100] sm:$0xff]
    %v3395 = vld [vmem:[%s3361 + $0x108] sm:$0xff]
    %v3396 = vld [vmem:[%s3361 + $0x110] sm:$0xff]
    %v3397 = vld [vmem:[%s3361 + $0x118] sm:$0xff]
    %v3398 = vld [vmem:[%s3361 + $0x120] sm:$0xff]
    %v3399 = vld [vmem:[%s3361 + $0x128] sm:$0xff]
    %v3400 = vld [vmem:[%s3361 + $0x130] sm:$0xff]
    %v3401 = vld [vmem:[%s3361 + $0x138] sm:$0xff]
    %v3402 = vld [vmem:[%s3361 + $0x140] sm:$0xff]
    %v3403 = vld [vmem:[%s3361 + $0x148] sm:$0xff]
    %v3404 = vld [vmem:[%s3361 + $0x150] sm:$0xff]
    %v3405 = vld [vmem:[%s3361 + $0x158] sm:$0xff]
    %v3406 = vld [vmem:[%s3361 + $0x160] sm:$0xff]
    %v3407 = vld [vmem:[%s3361 + $0x168] sm:$0xff]
    %v3408 = vld [vmem:[%s3361 + $0x170] sm:$0xff]
    %v3409 = vld [vmem:[%s3361 + $0x178] sm:$0xff]
    %s3410 = scalar_lea.vmem [#allocation14], 3
    %v3411 = vld [vmem:[%s3410] sm:$0x7]
    %s3412 = scalar_lea.vmem [#allocation16], 128
    %v3413 = vld [vmem:[%s3412] sm:$0xff]
    %v3414 = vld [vmem:[%s3412 + $0x8] sm:$0xff]
    %v3415 = vld [vmem:[%s3412 + $0x10] sm:$0xff]
    %v3416 = vld [vmem:[%s3412 + $0x18] sm:$0xff]
    %v3417 = vld [vmem:[%s3412 + $0x20] sm:$0xff]
    %v3418 = vld [vmem:[%s3412 + $0x28] sm:$0xff]
    %v3419 = vld [vmem:[%s3412 + $0x30] sm:$0xff]
    %v3420 = vld [vmem:[%s3412 + $0x38] sm:$0xff]
    %v3421 = vld [vmem:[%s3412 + $0x40] sm:$0xff]
    %v3422 = vld [vmem:[%s3412 + $0x48] sm:$0xff]
    %v3423 = vld [vmem:[%s3412 + $0x50] sm:$0xff]
    %v3424 = vld [vmem:[%s3412 + $0x58] sm:$0xff]
    %v3425 = vld [vmem:[%s3412 + $0x60] sm:$0xff]
    %v3426 = vld [vmem:[%s3412 + $0x68] sm:$0xff]
    %v3427 = vld [vmem:[%s3412 + $0x70] sm:$0xff]
    %v3428 = vld [vmem:[%s3412 + $0x78] sm:$0xff]
    %s3429 = scalar_lea.vmem %s10, 1
    %v3430 = vld [vmem:[%s3429] sm:$0x1]
    %s3431 = scalar_lea.vmem %s11, 1
    %v3432 = vld [vmem:[%s3431] sm:$0x1]
    %s3433 = scalar_lea.vmem [#allocation17], 1
    %v3434 = vld [vmem:[%s3433] sm:$0x1]
    %v3436 = vperm.slane %v3354, 0
    %v3437 = vperm.slane %v3354, 1
    %v3438 = vperm.slane %v3354, 2
    %3442 = vmatpush.msra.mxu0 %v3301
    %3443 = vmatpush.msra.mxu0 %v3298
    %3444 = vmatpush.msra.mxu0 %v3295
    %3445 = vmatpush.msra.mxu0 %v3292
    %3446 = vmatpush.msra.mxu0 %v3289
    %3447 = vmatpush.msra.mxu0 %v3286
    %3448 = vmatpush.msra.mxu0 %v3283
    %3449 = vmatpush.msra.mxu0 %v3280
    %3450 = vmatpush.msra.mxu0 %v3277
    %3451 = vmatpush.msra.mxu0 %v3274
    %3452 = vmatpush.msra.mxu0 %v3271
    %3453 = vmatpush.msra.mxu0 %v3268
    %3454 = vmatpush.msra.mxu0 %v3265
    %3455 = vmatpush.msra.mxu0 %v3262
    %3456 = vmatpush.msra.mxu0 %v3259
    %3457 = vmatpush.msra.mxu0 %v3256
    %3458 = vmatmul.f32.gmra.mxu0 %v3253
    %v3459 = vpop.f32.mrf.mxu0
    %v3460 = vadd.f32 %v3436, %v3459
    %3461 = vmatmul.f32.gmra.mxu0 %v3254
    %v3462 = vpop.f32.mrf.mxu0
    %v3463 = vadd.f32 %v3436, %v3462
    %3464 = vdwg.mxu0
    %3465 = vmatpush.msra.mxu0 %v3302
    %3466 = vmatpush.msra.mxu0 %v3299
    %3467 = vmatpush.msra.mxu0 %v3296
    %3468 = vmatpush.msra.mxu0 %v3293
    %3469 = vmatpush.msra.mxu0 %v3290
    %3470 = vmatpush.msra.mxu0 %v3287
    %3471 = vmatpush.msra.mxu0 %v3284
    %3472 = vmatpush.msra.mxu0 %v3281
    %3473 = vmatpush.msra.mxu0 %v3278
    %3474 = vmatpush.msra.mxu0 %v3275
    %3475 = vmatpush.msra.mxu0 %v3272
    %3476 = vmatpush.msra.mxu0 %v3269
    %3477 = vmatpush.msra.mxu0 %v3266
    %3478 = vmatpush.msra.mxu0 %v3263
    %3479 = vmatpush.msra.mxu0 %v3260
    %3480 = vmatpush.msra.mxu0 %v3257
    %3481 = vmatmul.f32.gmra.mxu0 %v3253
    %v3482 = vpop.f32.mrf.mxu0
    %v3483 = vadd.f32 %v3437, %v3482
    %3484 = vmatmul.f32.gmra.mxu0 %v3254
    %v3485 = vpop.f32.mrf.mxu0
    %v3486 = vadd.f32 %v3437, %v3485
    %3487 = vdwg.mxu0
    %3488 = vmatpush.msra.mxu0 %v3303
    %3489 = vmatpush.msra.mxu0 %v3300
    %3490 = vmatpush.msra.mxu0 %v3297
    %3491 = vmatpush.msra.mxu0 %v3294
    %3492 = vmatpush.msra.mxu0 %v3291
    %3493 = vmatpush.msra.mxu0 %v3288
    %3494 = vmatpush.msra.mxu0 %v3285
    %3495 = vmatpush.msra.mxu0 %v3282
    %3496 = vmatpush.msra.mxu0 %v3279
    %3497 = vmatpush.msra.mxu0 %v3276
    %3498 = vmatpush.msra.mxu0 %v3273
    %3499 = vmatpush.msra.mxu0 %v3270
    %3500 = vmatpush.msra.mxu0 %v3267
    %3501 = vmatpush.msra.mxu0 %v3264
    %3502 = vmatpush.msra.mxu0 %v3261
    %3503 = vmatpush.msra.mxu0 %v3258
    %3504 = vmatmul.f32.gmra.mxu0 %v3253
    %v3505 = vpop.f32.mrf.mxu0
    %v3506 = vadd.f32 %v3438, %v3505
    %3507 = vmatmul.f32.gmra.mxu0 %v3254
    %v3508 = vpop.f32.mrf.mxu0
    %v3509 = vadd.f32 %v3438, %v3508
    %3510 = vdwg.mxu0
    %v3512 = vperm.slane %v3356, 0
    %v3513 = vperm.slane %v3356, 1
    %v3514 = vperm.slane %v3356, 2
    %3518 = vmatpush.msra.mxu0 %v3350
    %3519 = vmatpush.msra.mxu0 %v3347
    %3520 = vmatpush.msra.mxu0 %v3344
    %3521 = vmatpush.msra.mxu0 %v3341
    %3522 = vmatpush.msra.mxu0 %v3338
    %3523 = vmatpush.msra.mxu0 %v3335
    %3524 = vmatpush.msra.mxu0 %v3332
    %3525 = vmatpush.msra.mxu0 %v3329
    %3526 = vmatpush.msra.mxu0 %v3326
    %3527 = vmatpush.msra.mxu0 %v3323
    %3528 = vmatpush.msra.mxu0 %v3320
    %3529 = vmatpush.msra.mxu0 %v3317
    %3530 = vmatpush.msra.mxu0 %v3314
    %3531 = vmatpush.msra.mxu0 %v3311
    %3532 = vmatpush.msra.mxu0 %v3308
    %3533 = vmatpush.msra.mxu0 %v3305
    %3534 = vmatmul.f32.gmra.mxu0 0.0
    %v3535 = vpop.f32.mrf.mxu0
    %v3536 = vadd.f32 %v3512, %v3535
    %3537 = vdwg.mxu0
    %3538 = vmatpush.msra.mxu0 %v3351
    %3539 = vmatpush.msra.mxu0 %v3348
    %3540 = vmatpush.msra.mxu0 %v3345
    %3541 = vmatpush.msra.mxu0 %v3342
    %3542 = vmatpush.msra.mxu0 %v3339
    %3543 = vmatpush.msra.mxu0 %v3336
    %3544 = vmatpush.msra.mxu0 %v3333
    %3545 = vmatpush.msra.mxu0 %v3330
    %3546 = vmatpush.msra.mxu0 %v3327
    %3547 = vmatpush.msra.mxu0 %v3324
    %3548 = vmatpush.msra.mxu0 %v3321
    %3549 = vmatpush.msra.mxu0 %v3318
    %3550 = vmatpush.msra.mxu0 %v3315
    %3551 = vmatpush.msra.mxu0 %v3312
    %3552 = vmatpush.msra.mxu0 %v3309
    %3553 = vmatpush.msra.mxu0 %v3306
    %3554 = vmatmul.f32.gmra.mxu0 0.0
    %v3555 = vpop.f32.mrf.mxu0
    %v3556 = vadd.f32 %v3513, %v3555
    %3557 = vdwg.mxu0
    %3558 = vmatpush.msra.mxu0 %v3352
    %3559 = vmatpush.msra.mxu0 %v3349
    %3560 = vmatpush.msra.mxu0 %v3346
    %3561 = vmatpush.msra.mxu0 %v3343
    %3562 = vmatpush.msra.mxu0 %v3340
    %3563 = vmatpush.msra.mxu0 %v3337
    %3564 = vmatpush.msra.mxu0 %v3334
    %3565 = vmatpush.msra.mxu0 %v3331
    %3566 = vmatpush.msra.mxu0 %v3328
    %3567 = vmatpush.msra.mxu0 %v3325
    %3568 = vmatpush.msra.mxu0 %v3322
    %3569 = vmatpush.msra.mxu0 %v3319
    %3570 = vmatpush.msra.mxu0 %v3316
    %3571 = vmatpush.msra.mxu0 %v3313
    %3572 = vmatpush.msra.mxu0 %v3310
    %3573 = vmatpush.msra.mxu0 %v3307
    %3574 = vmatmul.f32.gmra.mxu0 0.0
    %v3575 = vpop.f32.mrf.mxu0
    %v3576 = vadd.f32 %v3514, %v3575
    %3577 = vdwg.mxu0
    %v3579 = vrot.slane %v3536, 1
    %v3582 = vadd.f32 %v3460, %v3536
    %v3583 = vadd.f32 %v3463, %v3579
    %v3584 = vxor.u32 %v3582, 2147483648
    %v3585 = vxor.u32 %v3583, 2147483648
    %v3586 = vmul.f32 %v3584, 1.442695
    %v3587 = vpow.pop %v3586
    %v3588 = vmul.f32 %v3585, 1.442695
    %v3589 = vpow.pop %v3588
    %v3590 = vadd.f32 %v3587, 1.0
    %v3591 = vadd.f32 %v3589, 1.0
    %v3592 = vrcp.pop %v3590
    %v3593 = vmul.f32 %v3590, %v3592
    %v3594 = vsub.f32 1.0, %v3593
    %v3595 = vmul.f32 %v3592, %v3594
    %v3596 = vadd.f32 %v3592, %v3595
    %vm3597 = vweird.f32 %v3590
    %vm3598 = vweird.f32 %v3592
    %vm3599 = vmor %vm3597, %vm3598
    %v3600 = vsel %vm3599, %v3592, %v3596
    %v3601 = vand.u32 2147483647, %v3590
    %vm3602 = vcmp.eq.f32.partialorder %v3601, 8.507059e+37
    %v3603 = vand.u32 %v3590, 2147483648
    %v3604 = vor.u32 1.1754944e-38, %v3603
    %v3605 = vsel %vm3602, %v3604, %v3600
    %v3606 = vmul.f32 1.0, %v3605
    %v3607 = vrcp.pop %v3591
    %v3608 = vmul.f32 %v3591, %v3607
    %v3609 = vsub.f32 1.0, %v3608
    %v3610 = vmul.f32 %v3607, %v3609
    %v3611 = vadd.f32 %v3607, %v3610
    %vm3612 = vweird.f32 %v3591
    %vm3613 = vweird.f32 %v3607
    %vm3614 = vmor %vm3612, %vm3613
    %v3615 = vsel %vm3614, %v3607, %v3611
    %v3616 = vand.u32 2147483647, %v3591
    %vm3617 = vcmp.eq.f32.partialorder %v3616, 8.507059e+37
    %v3618 = vand.u32 %v3591, 2147483648
    %v3619 = vor.u32 1.1754944e-38, %v3618
    %v3620 = vsel %vm3617, %v3619, %v3615
    %v3621 = vmul.f32 1.0, %v3620
    %v3623 = vrot.slane %v3556, 1
    %v3626 = vadd.f32 %v3483, %v3556
    %v3627 = vadd.f32 %v3486, %v3623
    %v3628 = vxor.u32 %v3626, 2147483648
    %v3629 = vxor.u32 %v3627, 2147483648
    %v3630 = vmul.f32 %v3628, 1.442695
    %v3631 = vpow.pop %v3630
    %v3632 = vmul.f32 %v3629, 1.442695
    %v3633 = vpow.pop %v3632
    %v3634 = vadd.f32 %v3631, 1.0
    %v3635 = vadd.f32 %v3633, 1.0
    %v3636 = vrcp.pop %v3634
    %v3637 = vmul.f32 %v3634, %v3636
    %v3638 = vsub.f32 1.0, %v3637
    %v3639 = vmul.f32 %v3636, %v3638
    %v3640 = vadd.f32 %v3636, %v3639
    %vm3641 = vweird.f32 %v3634
    %vm3642 = vweird.f32 %v3636
    %vm3643 = vmor %vm3641, %vm3642
    %v3644 = vsel %vm3643, %v3636, %v3640
    %v3645 = vand.u32 2147483647, %v3634
    %vm3646 = vcmp.eq.f32.partialorder %v3645, 8.507059e+37
    %v3647 = vand.u32 %v3634, 2147483648
    %v3648 = vor.u32 1.1754944e-38, %v3647
    %v3649 = vsel %vm3646, %v3648, %v3644
    %v3650 = vmul.f32 1.0, %v3649
    %v3651 = vrcp.pop %v3635
    %v3652 = vmul.f32 %v3635, %v3651
    %v3653 = vsub.f32 1.0, %v3652
    %v3654 = vmul.f32 %v3651, %v3653
    %v3655 = vadd.f32 %v3651, %v3654
    %vm3656 = vweird.f32 %v3635
    %vm3657 = vweird.f32 %v3651
    %vm3658 = vmor %vm3656, %vm3657
    %v3659 = vsel %vm3658, %v3651, %v3655
    %v3660 = vand.u32 2147483647, %v3635
    %vm3661 = vcmp.eq.f32.partialorder %v3660, 8.507059e+37
    %v3662 = vand.u32 %v3635, 2147483648
    %v3663 = vor.u32 1.1754944e-38, %v3662
    %v3664 = vsel %vm3661, %v3663, %v3659
    %v3665 = vmul.f32 1.0, %v3664
    %v3667 = vrot.slane %v3576, 1
    %v3670 = vmul.f32 %v3606, %v3576
    %v3671 = vmul.f32 %v3621, %v3667
    %v3672 = vadd.f32 %v3506, %v3670
    %v3673 = vadd.f32 %v3509, %v3671
    %v3674 = vtanh.pop %v3672
    %v3675 = vtanh.pop %v3673
    %v3676 = vsub.f32 0.0, %v3674
    %v3677 = vsub.f32 0.0, %v3675
    %v3678 = vmul.f32 %v3650, %v3676
    %v3679 = vmul.f32 %v3665, %v3677
    %v3680 = vadd.f32 %v3674, %v3678
    %v3681 = vadd.f32 %v3675, %v3679
    %v3684 = vrot.slane %v3681, 7
    %v3685 = vsel %vm621, %v3684, %v3680
    %3687 = vmatpush.msra.mxu0 %v3350
    %3688 = vmatpush.msra.mxu0 %v3347
    %3689 = vmatpush.msra.mxu0 %v3344
    %3690 = vmatpush.msra.mxu0 %v3341
    %3691 = vmatpush.msra.mxu0 %v3338
    %3692 = vmatpush.msra.mxu0 %v3335
    %3693 = vmatpush.msra.mxu0 %v3332
    %3694 = vmatpush.msra.mxu0 %v3329
    %3695 = vmatpush.msra.mxu0 %v3326
    %3696 = vmatpush.msra.mxu0 %v3323
    %3697 = vmatpush.msra.mxu0 %v3320
    %3698 = vmatpush.msra.mxu0 %v3317
    %3699 = vmatpush.msra.mxu0 %v3314
    %3700 = vmatpush.msra.mxu0 %v3311
    %3701 = vmatpush.msra.mxu0 %v3308
    %3702 = vmatpush.msra.mxu0 %v3305
    %3703 = vmatmul.f32.gmra.mxu0 %v3685
    %v3704 = vpop.f32.mrf.mxu0
    %v3705 = vadd.f32 %v3512, %v3704
    %3706 = vdwg.mxu0
    %3707 = vmatpush.msra.mxu0 %v3351
    %3708 = vmatpush.msra.mxu0 %v3348
    %3709 = vmatpush.msra.mxu0 %v3345
    %3710 = vmatpush.msra.mxu0 %v3342
    %3711 = vmatpush.msra.mxu0 %v3339
    %3712 = vmatpush.msra.mxu0 %v3336
    %3713 = vmatpush.msra.mxu0 %v3333
    %3714 = vmatpush.msra.mxu0 %v3330
    %3715 = vmatpush.msra.mxu0 %v3327
    %3716 = vmatpush.msra.mxu0 %v3324
    %3717 = vmatpush.msra.mxu0 %v3321
    %3718 = vmatpush.msra.mxu0 %v3318
    %3719 = vmatpush.msra.mxu0 %v3315
    %3720 = vmatpush.msra.mxu0 %v3312
    %3721 = vmatpush.msra.mxu0 %v3309
    %3722 = vmatpush.msra.mxu0 %v3306
    %3723 = vmatmul.f32.gmra.mxu0 %v3685
    %v3724 = vpop.f32.mrf.mxu0
    %v3725 = vadd.f32 %v3513, %v3724
    %3726 = vdwg.mxu0
    %3727 = vmatpush.msra.mxu0 %v3352
    %3728 = vmatpush.msra.mxu0 %v3349
    %3729 = vmatpush.msra.mxu0 %v3346
    %3730 = vmatpush.msra.mxu0 %v3343
    %3731 = vmatpush.msra.mxu0 %v3340
    %3732 = vmatpush.msra.mxu0 %v3337
    %3733 = vmatpush.msra.mxu0 %v3334
    %3734 = vmatpush.msra.mxu0 %v3331
    %3735 = vmatpush.msra.mxu0 %v3328
    %3736 = vmatpush.msra.mxu0 %v3325
    %3737 = vmatpush.msra.mxu0 %v3322
    %3738 = vmatpush.msra.mxu0 %v3319
    %3739 = vmatpush.msra.mxu0 %v3316
    %3740 = vmatpush.msra.mxu0 %v3313
    %3741 = vmatpush.msra.mxu0 %v3310
    %3742 = vmatpush.msra.mxu0 %v3307
    %3743 = vmatmul.f32.gmra.mxu0 %v3685
    %v3744 = vpop.f32.mrf.mxu0
    %v3745 = vadd.f32 %v3514, %v3744
    %3746 = vdwg.mxu0
    %v3748 = vrot.slane %v3705, 7
    %v3751 = vadd.f32 %v3460, %v3748
    %v3752 = vadd.f32 %v3463, %v3705
    %v3753 = vxor.u32 %v3751, 2147483648
    %v3754 = vxor.u32 %v3752, 2147483648
    %v3755 = vmul.f32 %v3753, 1.442695
    %v3756 = vpow.pop %v3755
    %v3757 = vmul.f32 %v3754, 1.442695
    %v3758 = vpow.pop %v3757
    %v3759 = vadd.f32 %v3756, 1.0
    %v3760 = vadd.f32 %v3758, 1.0
    %v3761 = vrcp.pop %v3759
    %v3762 = vmul.f32 %v3759, %v3761
    %v3763 = vsub.f32 1.0, %v3762
    %v3764 = vmul.f32 %v3761, %v3763
    %v3765 = vadd.f32 %v3761, %v3764
    %vm3766 = vweird.f32 %v3759
    %vm3767 = vweird.f32 %v3761
    %vm3768 = vmor %vm3766, %vm3767
    %v3769 = vsel %vm3768, %v3761, %v3765
    %v3770 = vand.u32 2147483647, %v3759
    %vm3771 = vcmp.eq.f32.partialorder %v3770, 8.507059e+37
    %v3772 = vand.u32 %v3759, 2147483648
    %v3773 = vor.u32 1.1754944e-38, %v3772
    %v3774 = vsel %vm3771, %v3773, %v3769
    %v3775 = vmul.f32 1.0, %v3774
    %v3776 = vrcp.pop %v3760
    %v3777 = vmul.f32 %v3760, %v3776
    %v3778 = vsub.f32 1.0, %v3777
    %v3779 = vmul.f32 %v3776, %v3778
    %v3780 = vadd.f32 %v3776, %v3779
    %vm3781 = vweird.f32 %v3760
    %vm3782 = vweird.f32 %v3776
    %vm3783 = vmor %vm3781, %vm3782
    %v3784 = vsel %vm3783, %v3776, %v3780
    %v3785 = vand.u32 2147483647, %v3760
    %vm3786 = vcmp.eq.f32.partialorder %v3785, 8.507059e+37
    %v3787 = vand.u32 %v3760, 2147483648
    %v3788 = vor.u32 1.1754944e-38, %v3787
    %v3789 = vsel %vm3786, %v3788, %v3784
    %v3790 = vmul.f32 1.0, %v3789
    %v3792 = vrot.slane %v3725, 7
    %v3795 = vadd.f32 %v3483, %v3792
    %v3796 = vadd.f32 %v3486, %v3725
    %v3797 = vxor.u32 %v3795, 2147483648
    %v3798 = vxor.u32 %v3796, 2147483648
    %v3799 = vmul.f32 %v3797, 1.442695
    %v3800 = vpow.pop %v3799
    %v3801 = vmul.f32 %v3798, 1.442695
    %v3802 = vpow.pop %v3801
    %v3803 = vadd.f32 %v3800, 1.0
    %v3804 = vadd.f32 %v3802, 1.0
    %v3805 = vrcp.pop %v3803
    %v3806 = vmul.f32 %v3803, %v3805
    %v3807 = vsub.f32 1.0, %v3806
    %v3808 = vmul.f32 %v3805, %v3807
    %v3809 = vadd.f32 %v3805, %v3808
    %vm3810 = vweird.f32 %v3803
    %vm3811 = vweird.f32 %v3805
    %vm3812 = vmor %vm3810, %vm3811
    %v3813 = vsel %vm3812, %v3805, %v3809
    %v3814 = vand.u32 2147483647, %v3803
    %vm3815 = vcmp.eq.f32.partialorder %v3814, 8.507059e+37
    %v3816 = vand.u32 %v3803, 2147483648
    %v3817 = vor.u32 1.1754944e-38, %v3816
    %v3818 = vsel %vm3815, %v3817, %v3813
    %v3819 = vmul.f32 1.0, %v3818
    %v3820 = vrcp.pop %v3804
    %v3821 = vmul.f32 %v3804, %v3820
    %v3822 = vsub.f32 1.0, %v3821
    %v3823 = vmul.f32 %v3820, %v3822
    %v3824 = vadd.f32 %v3820, %v3823
    %vm3825 = vweird.f32 %v3804
    %vm3826 = vweird.f32 %v3820
    %vm3827 = vmor %vm3825, %vm3826
    %v3828 = vsel %vm3827, %v3820, %v3824
    %v3829 = vand.u32 2147483647, %v3804
    %vm3830 = vcmp.eq.f32.partialorder %v3829, 8.507059e+37
    %v3831 = vand.u32 %v3804, 2147483648
    %v3832 = vor.u32 1.1754944e-38, %v3831
    %v3833 = vsel %vm3830, %v3832, %v3828
    %v3834 = vmul.f32 1.0, %v3833
    %v3836 = vrot.slane %v3745, 7
    %v3839 = vmul.f32 %v3775, %v3836
    %v3840 = vmul.f32 %v3790, %v3745
    %v3841 = vadd.f32 %v3506, %v3839
    %v3842 = vadd.f32 %v3509, %v3840
    %v3843 = vtanh.pop %v3841
    %v3844 = vtanh.pop %v3842
    %v3847 = vrot.slane %v3843, 1
    %v3848 = vrot.slane %v3844, 1
    %v3851 = vsub.f32 %v3680, %v3847
    %v3852 = vsub.f32 %v3681, %v3848
    %v3855 = vrot.slane %v3851, 7
    %v3856 = vrot.slane %v3852, 7
    %v3859 = vmul.f32 %v3819, %v3855
    %v3860 = vmul.f32 %v3834, %v3856
    %v3861 = vadd.f32 %v3843, %v3859
    %v3862 = vadd.f32 %v3844, %v3860
    %v3865 = vrot.slane %v3861, 1
    %v3866 = vsel %vm621, %v3862, %v3865
    %3868 = vmatpush.msra.mxu0 %v3350
    %3869 = vmatpush.msra.mxu0 %v3347
    %3870 = vmatpush.msra.mxu0 %v3344
    %3871 = vmatpush.msra.mxu0 %v3341
    %3872 = vmatpush.msra.mxu0 %v3338
    %3873 = vmatpush.msra.mxu0 %v3335
    %3874 = vmatpush.msra.mxu0 %v3332
    %3875 = vmatpush.msra.mxu0 %v3329
    %3876 = vmatpush.msra.mxu0 %v3326
    %3877 = vmatpush.msra.mxu0 %v3323
    %3878 = vmatpush.msra.mxu0 %v3320
    %3879 = vmatpush.msra.mxu0 %v3317
    %3880 = vmatpush.msra.mxu0 %v3314
    %3881 = vmatpush.msra.mxu0 %v3311
    %3882 = vmatpush.msra.mxu0 %v3308
    %3883 = vmatpush.msra.mxu0 %v3305
    %3884 = vmatmul.f32.gmra.mxu0 %v3866
    %v3885 = vpop.f32.mrf.mxu0
    %v3886 = vadd.f32 %v3512, %v3885
    %3887 = vdwg.mxu0
    %3888 = vmatpush.msra.mxu0 %v3351
    %3889 = vmatpush.msra.mxu0 %v3348
    %3890 = vmatpush.msra.mxu0 %v3345
    %3891 = vmatpush.msra.mxu0 %v3342
    %3892 = vmatpush.msra.mxu0 %v3339
    %3893 = vmatpush.msra.mxu0 %v3336
    %3894 = vmatpush.msra.mxu0 %v3333
    %3895 = vmatpush.msra.mxu0 %v3330
    %3896 = vmatpush.msra.mxu0 %v3327
    %3897 = vmatpush.msra.mxu0 %v3324
    %3898 = vmatpush.msra.mxu0 %v3321
    %3899 = vmatpush.msra.mxu0 %v3318
    %3900 = vmatpush.msra.mxu0 %v3315
    %3901 = vmatpush.msra.mxu0 %v3312
    %3902 = vmatpush.msra.mxu0 %v3309
    %3903 = vmatpush.msra.mxu0 %v3306
    %3904 = vmatmul.f32.gmra.mxu0 %v3866
    %v3905 = vpop.f32.mrf.mxu0
    %v3906 = vadd.f32 %v3513, %v3905
    %3907 = vdwg.mxu0
    %3908 = vmatpush.msra.mxu0 %v3352
    %3909 = vmatpush.msra.mxu0 %v3349
    %3910 = vmatpush.msra.mxu0 %v3346
    %3911 = vmatpush.msra.mxu0 %v3343
    %3912 = vmatpush.msra.mxu0 %v3340
    %3913 = vmatpush.msra.mxu0 %v3337
    %3914 = vmatpush.msra.mxu0 %v3334
    %3915 = vmatpush.msra.mxu0 %v3331
    %3916 = vmatpush.msra.mxu0 %v3328
    %3917 = vmatpush.msra.mxu0 %v3325
    %3918 = vmatpush.msra.mxu0 %v3322
    %3919 = vmatpush.msra.mxu0 %v3319
    %3920 = vmatpush.msra.mxu0 %v3316
    %3921 = vmatpush.msra.mxu0 %v3313
    %3922 = vmatpush.msra.mxu0 %v3310
    %3923 = vmatpush.msra.mxu0 %v3307
    %3924 = vmatmul.f32.gmra.mxu0 %v3866
    %v3925 = vpop.f32.mrf.mxu0
    %v3926 = vadd.f32 %v3514, %v3925
    %3927 = vdwg.mxu0
    %v3929 = vrot.slane %v3886, 6
    %v3930 = vrot.slane %v3886, 7
    %v3933 = vadd.f32 %v3460, %v3929
    %v3934 = vadd.f32 %v3463, %v3930
    %v3935 = vxor.u32 %v3933, 2147483648
    %v3936 = vxor.u32 %v3934, 2147483648
    %v3937 = vmul.f32 %v3935, 1.442695
    %v3938 = vpow.pop %v3937
    %v3939 = vmul.f32 %v3936, 1.442695
    %v3940 = vpow.pop %v3939
    %v3941 = vadd.f32 %v3938, 1.0
    %v3942 = vadd.f32 %v3940, 1.0
    %v3943 = vrcp.pop %v3941
    %v3944 = vmul.f32 %v3941, %v3943
    %v3945 = vsub.f32 1.0, %v3944
    %v3946 = vmul.f32 %v3943, %v3945
    %v3947 = vadd.f32 %v3943, %v3946
    %vm3948 = vweird.f32 %v3941
    %vm3949 = vweird.f32 %v3943
    %vm3950 = vmor %vm3948, %vm3949
    %v3951 = vsel %vm3950, %v3943, %v3947
    %v3952 = vand.u32 2147483647, %v3941
    %vm3953 = vcmp.eq.f32.partialorder %v3952, 8.507059e+37
    %v3954 = vand.u32 %v3941, 2147483648
    %v3955 = vor.u32 1.1754944e-38, %v3954
    %v3956 = vsel %vm3953, %v3955, %v3951
    %v3957 = vmul.f32 1.0, %v3956
    %v3958 = vrcp.pop %v3942
    %v3959 = vmul.f32 %v3942, %v3958
    %v3960 = vsub.f32 1.0, %v3959
    %v3961 = vmul.f32 %v3958, %v3960
    %v3962 = vadd.f32 %v3958, %v3961
    %vm3963 = vweird.f32 %v3942
    %vm3964 = vweird.f32 %v3958
    %vm3965 = vmor %vm3963, %vm3964
    %v3966 = vsel %vm3965, %v3958, %v3962
    %v3967 = vand.u32 2147483647, %v3942
    %vm3968 = vcmp.eq.f32.partialorder %v3967, 8.507059e+37
    %v3969 = vand.u32 %v3942, 2147483648
    %v3970 = vor.u32 1.1754944e-38, %v3969
    %v3971 = vsel %vm3968, %v3970, %v3966
    %v3972 = vmul.f32 1.0, %v3971
    %v3974 = vrot.slane %v3906, 6
    %v3975 = vrot.slane %v3906, 7
    %v3978 = vadd.f32 %v3483, %v3974
    %v3979 = vadd.f32 %v3486, %v3975
    %v3980 = vxor.u32 %v3978, 2147483648
    %v3981 = vxor.u32 %v3979, 2147483648
    %v3982 = vmul.f32 %v3980, 1.442695
    %v3983 = vpow.pop %v3982
    %v3984 = vmul.f32 %v3981, 1.442695
    %v3985 = vpow.pop %v3984
    %v3986 = vadd.f32 %v3983, 1.0
    %v3987 = vadd.f32 %v3985, 1.0
    %v3988 = vrcp.pop %v3986
    %v3989 = vmul.f32 %v3986, %v3988
    %v3990 = vsub.f32 1.0, %v3989
    %v3991 = vmul.f32 %v3988, %v3990
    %v3992 = vadd.f32 %v3988, %v3991
    %vm3993 = vweird.f32 %v3986
    %vm3994 = vweird.f32 %v3988
    %vm3995 = vmor %vm3993, %vm3994
    %v3996 = vsel %vm3995, %v3988, %v3992
    %v3997 = vand.u32 2147483647, %v3986
    %vm3998 = vcmp.eq.f32.partialorder %v3997, 8.507059e+37
    %v3999 = vand.u32 %v3986, 2147483648
    %v4000 = vor.u32 1.1754944e-38, %v3999
    %v4001 = vsel %vm3998, %v4000, %v3996
    %v4002 = vmul.f32 1.0, %v4001
    %v4003 = vrcp.pop %v3987
    %v4004 = vmul.f32 %v3987, %v4003
    %v4005 = vsub.f32 1.0, %v4004
    %v4006 = vmul.f32 %v4003, %v4005
    %v4007 = vadd.f32 %v4003, %v4006
    %vm4008 = vweird.f32 %v3987
    %vm4009 = vweird.f32 %v4003
    %vm4010 = vmor %vm4008, %vm4009
    %v4011 = vsel %vm4010, %v4003, %v4007
    %v4012 = vand.u32 2147483647, %v3987
    %vm4013 = vcmp.eq.f32.partialorder %v4012, 8.507059e+37
    %v4014 = vand.u32 %v3987, 2147483648
    %v4015 = vor.u32 1.1754944e-38, %v4014
    %v4016 = vsel %vm4013, %v4015, %v4011
    %v4017 = vmul.f32 1.0, %v4016
    %v4019 = vrot.slane %v3926, 6
    %v4020 = vrot.slane %v3926, 7
    %v4023 = vmul.f32 %v3957, %v4019
    %v4024 = vmul.f32 %v3972, %v4020
    %v4025 = vadd.f32 %v3506, %v4023
    %v4026 = vadd.f32 %v3509, %v4024
    %v4027 = vtanh.pop %v4025
    %v4028 = vtanh.pop %v4026
    %v4031 = vrot.slane %v4027, 1
    %v4032 = vrot.slane %v4028, 1
    %v4035 = vsub.f32 %v3861, %v4031
    %v4036 = vsub.f32 %v3862, %v4032
    %v4039 = vrot.slane %v4035, 7
    %v4040 = vrot.slane %v4036, 7
    %v4043 = vmul.f32 %v4002, %v4039
    %v4044 = vmul.f32 %v4017, %v4040
    %v4045 = vadd.f32 %v4027, %v4043
    %v4046 = vadd.f32 %v4028, %v4044
    %v4049 = vrot.slane %v4045, 2
    %v4050 = vrot.slane %v4046, 1
    %v4051 = vsel %vm621, %v4050, %v4049
    %4053 = vmatpush.msra.mxu0 %v3350
    %4054 = vmatpush.msra.mxu0 %v3347
    %4055 = vmatpush.msra.mxu0 %v3344
    %4056 = vmatpush.msra.mxu0 %v3341
    %4057 = vmatpush.msra.mxu0 %v3338
    %4058 = vmatpush.msra.mxu0 %v3335
    %4059 = vmatpush.msra.mxu0 %v3332
    %4060 = vmatpush.msra.mxu0 %v3329
    %4061 = vmatpush.msra.mxu0 %v3326
    %4062 = vmatpush.msra.mxu0 %v3323
    %4063 = vmatpush.msra.mxu0 %v3320
    %4064 = vmatpush.msra.mxu0 %v3317
    %4065 = vmatpush.msra.mxu0 %v3314
    %4066 = vmatpush.msra.mxu0 %v3311
    %4067 = vmatpush.msra.mxu0 %v3308
    %4068 = vmatpush.msra.mxu0 %v3305
    %4069 = vmatmul.f32.gmra.mxu0 %v4051
    %v4070 = vpop.f32.mrf.mxu0
    %v4071 = vadd.f32 %v3512, %v4070
    %4072 = vdwg.mxu0
    %4073 = vmatpush.msra.mxu0 %v3351
    %4074 = vmatpush.msra.mxu0 %v3348
    %4075 = vmatpush.msra.mxu0 %v3345
    %4076 = vmatpush.msra.mxu0 %v3342
    %4077 = vmatpush.msra.mxu0 %v3339
    %4078 = vmatpush.msra.mxu0 %v3336
    %4079 = vmatpush.msra.mxu0 %v3333
    %4080 = vmatpush.msra.mxu0 %v3330
    %4081 = vmatpush.msra.mxu0 %v3327
    %4082 = vmatpush.msra.mxu0 %v3324
    %4083 = vmatpush.msra.mxu0 %v3321
    %4084 = vmatpush.msra.mxu0 %v3318
    %4085 = vmatpush.msra.mxu0 %v3315
    %4086 = vmatpush.msra.mxu0 %v3312
    %4087 = vmatpush.msra.mxu0 %v3309
    %4088 = vmatpush.msra.mxu0 %v3306
    %4089 = vmatmul.f32.gmra.mxu0 %v4051
    %v4090 = vpop.f32.mrf.mxu0
    %v4091 = vadd.f32 %v3513, %v4090
    %4092 = vdwg.mxu0
    %4093 = vmatpush.msra.mxu0 %v3352
    %4094 = vmatpush.msra.mxu0 %v3349
    %4095 = vmatpush.msra.mxu0 %v3346
    %4096 = vmatpush.msra.mxu0 %v3343
    %4097 = vmatpush.msra.mxu0 %v3340
    %4098 = vmatpush.msra.mxu0 %v3337
    %4099 = vmatpush.msra.mxu0 %v3334
    %4100 = vmatpush.msra.mxu0 %v3331
    %4101 = vmatpush.msra.mxu0 %v3328
    %4102 = vmatpush.msra.mxu0 %v3325
    %4103 = vmatpush.msra.mxu0 %v3322
    %4104 = vmatpush.msra.mxu0 %v3319
    %4105 = vmatpush.msra.mxu0 %v3316
    %4106 = vmatpush.msra.mxu0 %v3313
    %4107 = vmatpush.msra.mxu0 %v3310
    %4108 = vmatpush.msra.mxu0 %v3307
    %4109 = vmatmul.f32.gmra.mxu0 %v4051
    %v4110 = vpop.f32.mrf.mxu0
    %v4111 = vadd.f32 %v3514, %v4110
    %4112 = vdwg.mxu0
    %v4114 = vrot.slane %v4071, 5
    %v4115 = vrot.slane %v4071, 6
    %v4118 = vadd.f32 %v3460, %v4114
    %v4119 = vadd.f32 %v3463, %v4115
    %v4120 = vxor.u32 %v4118, 2147483648
    %v4121 = vxor.u32 %v4119, 2147483648
    %v4122 = vmul.f32 %v4120, 1.442695
    %v4123 = vpow.pop %v4122
    %v4124 = vmul.f32 %v4121, 1.442695
    %v4125 = vpow.pop %v4124
    %v4126 = vadd.f32 %v4123, 1.0
    %v4127 = vadd.f32 %v4125, 1.0
    %v4128 = vrcp.pop %v4126
    %v4129 = vmul.f32 %v4126, %v4128
    %v4130 = vsub.f32 1.0, %v4129
    %v4131 = vmul.f32 %v4128, %v4130
    %v4132 = vadd.f32 %v4128, %v4131
    %vm4133 = vweird.f32 %v4126
    %vm4134 = vweird.f32 %v4128
    %vm4135 = vmor %vm4133, %vm4134
    %v4136 = vsel %vm4135, %v4128, %v4132
    %v4137 = vand.u32 2147483647, %v4126
    %vm4138 = vcmp.eq.f32.partialorder %v4137, 8.507059e+37
    %v4139 = vand.u32 %v4126, 2147483648
    %v4140 = vor.u32 1.1754944e-38, %v4139
    %v4141 = vsel %vm4138, %v4140, %v4136
    %v4142 = vmul.f32 1.0, %v4141
    %v4143 = vrcp.pop %v4127
    %v4144 = vmul.f32 %v4127, %v4143
    %v4145 = vsub.f32 1.0, %v4144
    %v4146 = vmul.f32 %v4143, %v4145
    %v4147 = vadd.f32 %v4143, %v4146
    %vm4148 = vweird.f32 %v4127
    %vm4149 = vweird.f32 %v4143
    %vm4150 = vmor %vm4148, %vm4149
    %v4151 = vsel %vm4150, %v4143, %v4147
    %v4152 = vand.u32 2147483647, %v4127
    %vm4153 = vcmp.eq.f32.partialorder %v4152, 8.507059e+37
    %v4154 = vand.u32 %v4127, 2147483648
    %v4155 = vor.u32 1.1754944e-38, %v4154
    %v4156 = vsel %vm4153, %v4155, %v4151
    %v4157 = vmul.f32 1.0, %v4156
    %v4159 = vrot.slane %v4091, 5
    %v4160 = vrot.slane %v4091, 6
    %v4163 = vadd.f32 %v3483, %v4159
    %v4164 = vadd.f32 %v3486, %v4160
    %v4165 = vxor.u32 %v4163, 2147483648
    %v4166 = vxor.u32 %v4164, 2147483648
    %v4167 = vmul.f32 %v4165, 1.442695
    %v4168 = vpow.pop %v4167
    %v4169 = vmul.f32 %v4166, 1.442695
    %v4170 = vpow.pop %v4169
    %v4171 = vadd.f32 %v4168, 1.0
    %v4172 = vadd.f32 %v4170, 1.0
    %v4173 = vrcp.pop %v4171
    %v4174 = vmul.f32 %v4171, %v4173
    %v4175 = vsub.f32 1.0, %v4174
    %v4176 = vmul.f32 %v4173, %v4175
    %v4177 = vadd.f32 %v4173, %v4176
    %vm4178 = vweird.f32 %v4171
    %vm4179 = vweird.f32 %v4173
    %vm4180 = vmor %vm4178, %vm4179
    %v4181 = vsel %vm4180, %v4173, %v4177
    %v4182 = vand.u32 2147483647, %v4171
    %vm4183 = vcmp.eq.f32.partialorder %v4182, 8.507059e+37
    %v4184 = vand.u32 %v4171, 2147483648
    %v4185 = vor.u32 1.1754944e-38, %v4184
    %v4186 = vsel %vm4183, %v4185, %v4181
    %v4187 = vmul.f32 1.0, %v4186
    %v4188 = vrcp.pop %v4172
    %v4189 = vmul.f32 %v4172, %v4188
    %v4190 = vsub.f32 1.0, %v4189
    %v4191 = vmul.f32 %v4188, %v4190
    %v4192 = vadd.f32 %v4188, %v4191
    %vm4193 = vweird.f32 %v4172
    %vm4194 = vweird.f32 %v4188
    %vm4195 = vmor %vm4193, %vm4194
    %v4196 = vsel %vm4195, %v4188, %v4192
    %v4197 = vand.u32 2147483647, %v4172
    %vm4198 = vcmp.eq.f32.partialorder %v4197, 8.507059e+37
    %v4199 = vand.u32 %v4172, 2147483648
    %v4200 = vor.u32 1.1754944e-38, %v4199
    %v4201 = vsel %vm4198, %v4200, %v4196
    %v4202 = vmul.f32 1.0, %v4201
    %v4204 = vrot.slane %v4111, 5
    %v4205 = vrot.slane %v4111, 6
    %v4208 = vmul.f32 %v4142, %v4204
    %v4209 = vmul.f32 %v4157, %v4205
    %v4210 = vadd.f32 %v3506, %v4208
    %v4211 = vadd.f32 %v3509, %v4209
    %v4212 = vtanh.pop %v4210
    %v4213 = vtanh.pop %v4211
    %v4216 = vrot.slane %v4212, 1
    %v4217 = vrot.slane %v4213, 1
    %v4220 = vsub.f32 %v4045, %v4216
    %v4221 = vsub.f32 %v4046, %v4217
    %v4224 = vrot.slane %v4220, 7
    %v4225 = vrot.slane %v4221, 7
    %v4228 = vmul.f32 %v4187, %v4224
    %v4229 = vmul.f32 %v4202, %v4225
    %v4230 = vadd.f32 %v4212, %v4228
    %v4231 = vadd.f32 %v4213, %v4229
    %v4234 = vrot.slane %v4230, 3
    %v4235 = vrot.slane %v4231, 2
    %v4236 = vsel %vm621, %v4235, %v4234
    %4238 = vmatpush.msra.mxu0 %v3350
    %4239 = vmatpush.msra.mxu0 %v3347
    %4240 = vmatpush.msra.mxu0 %v3344
    %4241 = vmatpush.msra.mxu0 %v3341
    %4242 = vmatpush.msra.mxu0 %v3338
    %4243 = vmatpush.msra.mxu0 %v3335
    %4244 = vmatpush.msra.mxu0 %v3332
    %4245 = vmatpush.msra.mxu0 %v3329
    %4246 = vmatpush.msra.mxu0 %v3326
    %4247 = vmatpush.msra.mxu0 %v3323
    %4248 = vmatpush.msra.mxu0 %v3320
    %4249 = vmatpush.msra.mxu0 %v3317
    %4250 = vmatpush.msra.mxu0 %v3314
    %4251 = vmatpush.msra.mxu0 %v3311
    %4252 = vmatpush.msra.mxu0 %v3308
    %4253 = vmatpush.msra.mxu0 %v3305
    %4254 = vmatmul.f32.gmra.mxu0 %v4236
    %v4255 = vpop.f32.mrf.mxu0
    %v4256 = vadd.f32 %v3512, %v4255
    %4257 = vdwg.mxu0
    %4258 = vmatpush.msra.mxu0 %v3351
    %4259 = vmatpush.msra.mxu0 %v3348
    %4260 = vmatpush.msra.mxu0 %v3345
    %4261 = vmatpush.msra.mxu0 %v3342
    %4262 = vmatpush.msra.mxu0 %v3339
    %4263 = vmatpush.msra.mxu0 %v3336
    %4264 = vmatpush.msra.mxu0 %v3333
    %4265 = vmatpush.msra.mxu0 %v3330
    %4266 = vmatpush.msra.mxu0 %v3327
    %4267 = vmatpush.msra.mxu0 %v3324
    %4268 = vmatpush.msra.mxu0 %v3321
    %4269 = vmatpush.msra.mxu0 %v3318
    %4270 = vmatpush.msra.mxu0 %v3315
    %4271 = vmatpush.msra.mxu0 %v3312
    %4272 = vmatpush.msra.mxu0 %v3309
    %4273 = vmatpush.msra.mxu0 %v3306
    %4274 = vmatmul.f32.gmra.mxu0 %v4236
    %v4275 = vpop.f32.mrf.mxu0
    %v4276 = vadd.f32 %v3513, %v4275
    %4277 = vdwg.mxu0
    %4278 = vmatpush.msra.mxu0 %v3352
    %4279 = vmatpush.msra.mxu0 %v3349
    %4280 = vmatpush.msra.mxu0 %v3346
    %4281 = vmatpush.msra.mxu0 %v3343
    %4282 = vmatpush.msra.mxu0 %v3340
    %4283 = vmatpush.msra.mxu0 %v3337
    %4284 = vmatpush.msra.mxu0 %v3334
    %4285 = vmatpush.msra.mxu0 %v3331
    %4286 = vmatpush.msra.mxu0 %v3328
    %4287 = vmatpush.msra.mxu0 %v3325
    %4288 = vmatpush.msra.mxu0 %v3322
    %4289 = vmatpush.msra.mxu0 %v3319
    %4290 = vmatpush.msra.mxu0 %v3316
    %4291 = vmatpush.msra.mxu0 %v3313
    %4292 = vmatpush.msra.mxu0 %v3310
    %4293 = vmatpush.msra.mxu0 %v3307
    %4294 = vmatmul.f32.gmra.mxu0 %v4236
    %v4295 = vpop.f32.mrf.mxu0
    %v4296 = vadd.f32 %v3514, %v4295
    %4297 = vdwg.mxu0
    %v4299 = vrot.slane %v4256, 4
    %v4300 = vrot.slane %v4256, 5
    %v4303 = vadd.f32 %v3460, %v4299
    %v4304 = vadd.f32 %v3463, %v4300
    %v4305 = vxor.u32 %v4303, 2147483648
    %v4306 = vxor.u32 %v4304, 2147483648
    %v4307 = vmul.f32 %v4305, 1.442695
    %v4308 = vpow.pop %v4307
    %v4309 = vmul.f32 %v4306, 1.442695
    %v4310 = vpow.pop %v4309
    %v4311 = vadd.f32 %v4308, 1.0
    %v4312 = vadd.f32 %v4310, 1.0
    %v4313 = vrcp.pop %v4311
    %v4314 = vmul.f32 %v4311, %v4313
    %v4315 = vsub.f32 1.0, %v4314
    %v4316 = vmul.f32 %v4313, %v4315
    %v4317 = vadd.f32 %v4313, %v4316
    %vm4318 = vweird.f32 %v4311
    %vm4319 = vweird.f32 %v4313
    %vm4320 = vmor %vm4318, %vm4319
    %v4321 = vsel %vm4320, %v4313, %v4317
    %v4322 = vand.u32 2147483647, %v4311
    %vm4323 = vcmp.eq.f32.partialorder %v4322, 8.507059e+37
    %v4324 = vand.u32 %v4311, 2147483648
    %v4325 = vor.u32 1.1754944e-38, %v4324
    %v4326 = vsel %vm4323, %v4325, %v4321
    %v4327 = vmul.f32 1.0, %v4326
    %v4328 = vrcp.pop %v4312
    %v4329 = vmul.f32 %v4312, %v4328
    %v4330 = vsub.f32 1.0, %v4329
    %v4331 = vmul.f32 %v4328, %v4330
    %v4332 = vadd.f32 %v4328, %v4331
    %vm4333 = vweird.f32 %v4312
    %vm4334 = vweird.f32 %v4328
    %vm4335 = vmor %vm4333, %vm4334
    %v4336 = vsel %vm4335, %v4328, %v4332
    %v4337 = vand.u32 2147483647, %v4312
    %vm4338 = vcmp.eq.f32.partialorder %v4337, 8.507059e+37
    %v4339 = vand.u32 %v4312, 2147483648
    %v4340 = vor.u32 1.1754944e-38, %v4339
    %v4341 = vsel %vm4338, %v4340, %v4336
    %v4342 = vmul.f32 1.0, %v4341
    %v4344 = vrot.slane %v4276, 4
    %v4345 = vrot.slane %v4276, 5
    %v4348 = vadd.f32 %v3483, %v4344
    %v4349 = vadd.f32 %v3486, %v4345
    %v4350 = vxor.u32 %v4348, 2147483648
    %v4351 = vxor.u32 %v4349, 2147483648
    %v4352 = vmul.f32 %v4350, 1.442695
    %v4353 = vpow.pop %v4352
    %v4354 = vmul.f32 %v4351, 1.442695
    %v4355 = vpow.pop %v4354
    %v4356 = vadd.f32 %v4353, 1.0
    %v4357 = vadd.f32 %v4355, 1.0
    %v4358 = vrcp.pop %v4356
    %v4359 = vmul.f32 %v4356, %v4358
    %v4360 = vsub.f32 1.0, %v4359
    %v4361 = vmul.f32 %v4358, %v4360
    %v4362 = vadd.f32 %v4358, %v4361
    %vm4363 = vweird.f32 %v4356
    %vm4364 = vweird.f32 %v4358
    %vm4365 = vmor %vm4363, %vm4364
    %v4366 = vsel %vm4365, %v4358, %v4362
    %v4367 = vand.u32 2147483647, %v4356
    %vm4368 = vcmp.eq.f32.partialorder %v4367, 8.507059e+37
    %v4369 = vand.u32 %v4356, 2147483648
    %v4370 = vor.u32 1.1754944e-38, %v4369
    %v4371 = vsel %vm4368, %v4370, %v4366
    %v4372 = vmul.f32 1.0, %v4371
    %v4373 = vrcp.pop %v4357
    %v4374 = vmul.f32 %v4357, %v4373
    %v4375 = vsub.f32 1.0, %v4374
    %v4376 = vmul.f32 %v4373, %v4375
    %v4377 = vadd.f32 %v4373, %v4376
    %vm4378 = vweird.f32 %v4357
    %vm4379 = vweird.f32 %v4373
    %vm4380 = vmor %vm4378, %vm4379
    %v4381 = vsel %vm4380, %v4373, %v4377
    %v4382 = vand.u32 2147483647, %v4357
    %vm4383 = vcmp.eq.f32.partialorder %v4382, 8.507059e+37
    %v4384 = vand.u32 %v4357, 2147483648
    %v4385 = vor.u32 1.1754944e-38, %v4384
    %v4386 = vsel %vm4383, %v4385, %v4381
    %v4387 = vmul.f32 1.0, %v4386
    %v4389 = vrot.slane %v4296, 4
    %v4390 = vrot.slane %v4296, 5
    %v4393 = vmul.f32 %v4327, %v4389
    %v4394 = vmul.f32 %v4342, %v4390
    %v4395 = vadd.f32 %v3506, %v4393
    %v4396 = vadd.f32 %v3509, %v4394
    %v4397 = vtanh.pop %v4395
    %v4398 = vtanh.pop %v4396
    %v4401 = vrot.slane %v4397, 1
    %v4402 = vrot.slane %v4398, 1
    %v4405 = vsub.f32 %v4230, %v4401
    %v4406 = vsub.f32 %v4231, %v4402
    %v4409 = vrot.slane %v4405, 7
    %v4410 = vrot.slane %v4406, 7
    %v4413 = vmul.f32 %v4372, %v4409
    %v4414 = vmul.f32 %v4387, %v4410
    %v4415 = vadd.f32 %v4397, %v4413
    %v4416 = vadd.f32 %v4398, %v4414
    %v4419 = vrot.slane %v4415, 4
    %v4420 = vrot.slane %v4416, 3
    %v4421 = vsel %vm621, %v4420, %v4419
    %4423 = vmatpush.msra.mxu0 %v3350
    %4424 = vmatpush.msra.mxu0 %v3347
    %4425 = vmatpush.msra.mxu0 %v3344
    %4426 = vmatpush.msra.mxu0 %v3341
    %4427 = vmatpush.msra.mxu0 %v3338
    %4428 = vmatpush.msra.mxu0 %v3335
    %4429 = vmatpush.msra.mxu0 %v3332
    %4430 = vmatpush.msra.mxu0 %v3329
    %4431 = vmatpush.msra.mxu0 %v3326
    %4432 = vmatpush.msra.mxu0 %v3323
    %4433 = vmatpush.msra.mxu0 %v3320
    %4434 = vmatpush.msra.mxu0 %v3317
    %4435 = vmatpush.msra.mxu0 %v3314
    %4436 = vmatpush.msra.mxu0 %v3311
    %4437 = vmatpush.msra.mxu0 %v3308
    %4438 = vmatpush.msra.mxu0 %v3305
    %4439 = vmatmul.f32.gmra.mxu0 %v4421
    %v4440 = vpop.f32.mrf.mxu0
    %v4441 = vadd.f32 %v3512, %v4440
    %4442 = vdwg.mxu0
    %4443 = vmatpush.msra.mxu0 %v3351
    %4444 = vmatpush.msra.mxu0 %v3348
    %4445 = vmatpush.msra.mxu0 %v3345
    %4446 = vmatpush.msra.mxu0 %v3342
    %4447 = vmatpush.msra.mxu0 %v3339
    %4448 = vmatpush.msra.mxu0 %v3336
    %4449 = vmatpush.msra.mxu0 %v3333
    %4450 = vmatpush.msra.mxu0 %v3330
    %4451 = vmatpush.msra.mxu0 %v3327
    %4452 = vmatpush.msra.mxu0 %v3324
    %4453 = vmatpush.msra.mxu0 %v3321
    %4454 = vmatpush.msra.mxu0 %v3318
    %4455 = vmatpush.msra.mxu0 %v3315
    %4456 = vmatpush.msra.mxu0 %v3312
    %4457 = vmatpush.msra.mxu0 %v3309
    %4458 = vmatpush.msra.mxu0 %v3306
    %4459 = vmatmul.f32.gmra.mxu0 %v4421
    %v4460 = vpop.f32.mrf.mxu0
    %v4461 = vadd.f32 %v3513, %v4460
    %4462 = vdwg.mxu0
    %4463 = vmatpush.msra.mxu0 %v3352
    %4464 = vmatpush.msra.mxu0 %v3349
    %4465 = vmatpush.msra.mxu0 %v3346
    %4466 = vmatpush.msra.mxu0 %v3343
    %4467 = vmatpush.msra.mxu0 %v3340
    %4468 = vmatpush.msra.mxu0 %v3337
    %4469 = vmatpush.msra.mxu0 %v3334
    %4470 = vmatpush.msra.mxu0 %v3331
    %4471 = vmatpush.msra.mxu0 %v3328
    %4472 = vmatpush.msra.mxu0 %v3325
    %4473 = vmatpush.msra.mxu0 %v3322
    %4474 = vmatpush.msra.mxu0 %v3319
    %4475 = vmatpush.msra.mxu0 %v3316
    %4476 = vmatpush.msra.mxu0 %v3313
    %4477 = vmatpush.msra.mxu0 %v3310
    %4478 = vmatpush.msra.mxu0 %v3307
    %4479 = vmatmul.f32.gmra.mxu0 %v4421
    %v4480 = vpop.f32.mrf.mxu0
    %v4481 = vadd.f32 %v3514, %v4480
    %4482 = vdwg.mxu0
    %v4484 = vrot.slane %v4441, 3
    %v4485 = vrot.slane %v4441, 4
    %v4488 = vadd.f32 %v3460, %v4484
    %v4489 = vadd.f32 %v3463, %v4485
    %v4490 = vxor.u32 %v4488, 2147483648
    %v4491 = vxor.u32 %v4489, 2147483648
    %v4492 = vmul.f32 %v4490, 1.442695
    %v4493 = vpow.pop %v4492
    %v4494 = vmul.f32 %v4491, 1.442695
    %v4495 = vpow.pop %v4494
    %v4496 = vadd.f32 %v4493, 1.0
    %v4497 = vadd.f32 %v4495, 1.0
    %v4498 = vrcp.pop %v4496
    %v4499 = vmul.f32 %v4496, %v4498
    %v4500 = vsub.f32 1.0, %v4499
    %v4501 = vmul.f32 %v4498, %v4500
    %v4502 = vadd.f32 %v4498, %v4501
    %vm4503 = vweird.f32 %v4496
    %vm4504 = vweird.f32 %v4498
    %vm4505 = vmor %vm4503, %vm4504
    %v4506 = vsel %vm4505, %v4498, %v4502
    %v4507 = vand.u32 2147483647, %v4496
    %vm4508 = vcmp.eq.f32.partialorder %v4507, 8.507059e+37
    %v4509 = vand.u32 %v4496, 2147483648
    %v4510 = vor.u32 1.1754944e-38, %v4509
    %v4511 = vsel %vm4508, %v4510, %v4506
    %v4512 = vmul.f32 1.0, %v4511
    %v4513 = vrcp.pop %v4497
    %v4514 = vmul.f32 %v4497, %v4513
    %v4515 = vsub.f32 1.0, %v4514
    %v4516 = vmul.f32 %v4513, %v4515
    %v4517 = vadd.f32 %v4513, %v4516
    %vm4518 = vweird.f32 %v4497
    %vm4519 = vweird.f32 %v4513
    %vm4520 = vmor %vm4518, %vm4519
    %v4521 = vsel %vm4520, %v4513, %v4517
    %v4522 = vand.u32 2147483647, %v4497
    %vm4523 = vcmp.eq.f32.partialorder %v4522, 8.507059e+37
    %v4524 = vand.u32 %v4497, 2147483648
    %v4525 = vor.u32 1.1754944e-38, %v4524
    %v4526 = vsel %vm4523, %v4525, %v4521
    %v4527 = vmul.f32 1.0, %v4526
    %v4529 = vrot.slane %v4461, 3
    %v4530 = vrot.slane %v4461, 4
    %v4533 = vadd.f32 %v3483, %v4529
    %v4534 = vadd.f32 %v3486, %v4530
    %v4535 = vxor.u32 %v4533, 2147483648
    %v4536 = vxor.u32 %v4534, 2147483648
    %v4537 = vmul.f32 %v4535, 1.442695
    %v4538 = vpow.pop %v4537
    %v4539 = vmul.f32 %v4536, 1.442695
    %v4540 = vpow.pop %v4539
    %v4541 = vadd.f32 %v4538, 1.0
    %v4542 = vadd.f32 %v4540, 1.0
    %v4543 = vrcp.pop %v4541
    %v4544 = vmul.f32 %v4541, %v4543
    %v4545 = vsub.f32 1.0, %v4544
    %v4546 = vmul.f32 %v4543, %v4545
    %v4547 = vadd.f32 %v4543, %v4546
    %vm4548 = vweird.f32 %v4541
    %vm4549 = vweird.f32 %v4543
    %vm4550 = vmor %vm4548, %vm4549
    %v4551 = vsel %vm4550, %v4543, %v4547
    %v4552 = vand.u32 2147483647, %v4541
    %vm4553 = vcmp.eq.f32.partialorder %v4552, 8.507059e+37
    %v4554 = vand.u32 %v4541, 2147483648
    %v4555 = vor.u32 1.1754944e-38, %v4554
    %v4556 = vsel %vm4553, %v4555, %v4551
    %v4557 = vmul.f32 1.0, %v4556
    %v4558 = vrcp.pop %v4542
    %v4559 = vmul.f32 %v4542, %v4558
    %v4560 = vsub.f32 1.0, %v4559
    %v4561 = vmul.f32 %v4558, %v4560
    %v4562 = vadd.f32 %v4558, %v4561
    %vm4563 = vweird.f32 %v4542
    %vm4564 = vweird.f32 %v4558
    %vm4565 = vmor %vm4563, %vm4564
    %v4566 = vsel %vm4565, %v4558, %v4562
    %v4567 = vand.u32 2147483647, %v4542
    %vm4568 = vcmp.eq.f32.partialorder %v4567, 8.507059e+37
    %v4569 = vand.u32 %v4542, 2147483648
    %v4570 = vor.u32 1.1754944e-38, %v4569
    %v4571 = vsel %vm4568, %v4570, %v4566
    %v4572 = vmul.f32 1.0, %v4571
    %v4574 = vrot.slane %v4481, 3
    %v4575 = vrot.slane %v4481, 4
    %v4578 = vmul.f32 %v4512, %v4574
    %v4579 = vmul.f32 %v4527, %v4575
    %v4580 = vadd.f32 %v3506, %v4578
    %v4581 = vadd.f32 %v3509, %v4579
    %v4582 = vtanh.pop %v4580
    %v4583 = vtanh.pop %v4581
    %v4586 = vrot.slane %v4582, 1
    %v4587 = vrot.slane %v4583, 1
    %v4590 = vsub.f32 %v4415, %v4586
    %v4591 = vsub.f32 %v4416, %v4587
    %v4594 = vrot.slane %v4590, 7
    %v4595 = vrot.slane %v4591, 7
    %v4598 = vmul.f32 %v4557, %v4594
    %v4599 = vmul.f32 %v4572, %v4595
    %v4600 = vadd.f32 %v4582, %v4598
    %v4601 = vadd.f32 %v4583, %v4599
    %v4604 = vrot.slane %v4600, 5
    %v4605 = vrot.slane %v4601, 4
    %v4606 = vsel %vm621, %v4605, %v4604
    %4608 = vmatpush.msra.mxu0 %v3350
    %4609 = vmatpush.msra.mxu0 %v3347
    %4610 = vmatpush.msra.mxu0 %v3344
    %4611 = vmatpush.msra.mxu0 %v3341
    %4612 = vmatpush.msra.mxu0 %v3338
    %4613 = vmatpush.msra.mxu0 %v3335
    %4614 = vmatpush.msra.mxu0 %v3332
    %4615 = vmatpush.msra.mxu0 %v3329
    %4616 = vmatpush.msra.mxu0 %v3326
    %4617 = vmatpush.msra.mxu0 %v3323
    %4618 = vmatpush.msra.mxu0 %v3320
    %4619 = vmatpush.msra.mxu0 %v3317
    %4620 = vmatpush.msra.mxu0 %v3314
    %4621 = vmatpush.msra.mxu0 %v3311
    %4622 = vmatpush.msra.mxu0 %v3308
    %4623 = vmatpush.msra.mxu0 %v3305
    %4624 = vmatmul.f32.gmra.mxu0 %v4606
    %v4625 = vpop.f32.mrf.mxu0
    %v4626 = vadd.f32 %v3512, %v4625
    %4627 = vdwg.mxu0
    %4628 = vmatpush.msra.mxu0 %v3351
    %4629 = vmatpush.msra.mxu0 %v3348
    %4630 = vmatpush.msra.mxu0 %v3345
    %4631 = vmatpush.msra.mxu0 %v3342
    %4632 = vmatpush.msra.mxu0 %v3339
    %4633 = vmatpush.msra.mxu0 %v3336
    %4634 = vmatpush.msra.mxu0 %v3333
    %4635 = vmatpush.msra.mxu0 %v3330
    %4636 = vmatpush.msra.mxu0 %v3327
    %4637 = vmatpush.msra.mxu0 %v3324
    %4638 = vmatpush.msra.mxu0 %v3321
    %4639 = vmatpush.msra.mxu0 %v3318
    %4640 = vmatpush.msra.mxu0 %v3315
    %4641 = vmatpush.msra.mxu0 %v3312
    %4642 = vmatpush.msra.mxu0 %v3309
    %4643 = vmatpush.msra.mxu0 %v3306
    %4644 = vmatmul.f32.gmra.mxu0 %v4606
    %v4645 = vpop.f32.mrf.mxu0
    %v4646 = vadd.f32 %v3513, %v4645
    %4647 = vdwg.mxu0
    %4648 = vmatpush.msra.mxu0 %v3352
    %4649 = vmatpush.msra.mxu0 %v3349
    %4650 = vmatpush.msra.mxu0 %v3346
    %4651 = vmatpush.msra.mxu0 %v3343
    %4652 = vmatpush.msra.mxu0 %v3340
    %4653 = vmatpush.msra.mxu0 %v3337
    %4654 = vmatpush.msra.mxu0 %v3334
    %4655 = vmatpush.msra.mxu0 %v3331
    %4656 = vmatpush.msra.mxu0 %v3328
    %4657 = vmatpush.msra.mxu0 %v3325
    %4658 = vmatpush.msra.mxu0 %v3322
    %4659 = vmatpush.msra.mxu0 %v3319
    %4660 = vmatpush.msra.mxu0 %v3316
    %4661 = vmatpush.msra.mxu0 %v3313
    %4662 = vmatpush.msra.mxu0 %v3310
    %4663 = vmatpush.msra.mxu0 %v3307
    %4664 = vmatmul.f32.gmra.mxu0 %v4606
    %v4665 = vpop.f32.mrf.mxu0
    %v4666 = vadd.f32 %v3514, %v4665
    %4667 = vdwg.mxu0
    %v4669 = vrot.slane %v4626, 2
    %v4670 = vrot.slane %v4626, 3
    %v4673 = vadd.f32 %v3460, %v4669
    %v4674 = vadd.f32 %v3463, %v4670
    %v4675 = vxor.u32 %v4673, 2147483648
    %v4676 = vxor.u32 %v4674, 2147483648
    %v4677 = vmul.f32 %v4675, 1.442695
    %v4678 = vpow.pop %v4677
    %v4679 = vmul.f32 %v4676, 1.442695
    %v4680 = vpow.pop %v4679
    %v4681 = vadd.f32 %v4678, 1.0
    %v4682 = vadd.f32 %v4680, 1.0
    %v4683 = vrcp.pop %v4681
    %v4684 = vmul.f32 %v4681, %v4683
    %v4685 = vsub.f32 1.0, %v4684
    %v4686 = vmul.f32 %v4683, %v4685
    %v4687 = vadd.f32 %v4683, %v4686
    %vm4688 = vweird.f32 %v4681
    %vm4689 = vweird.f32 %v4683
    %vm4690 = vmor %vm4688, %vm4689
    %v4691 = vsel %vm4690, %v4683, %v4687
    %v4692 = vand.u32 2147483647, %v4681
    %vm4693 = vcmp.eq.f32.partialorder %v4692, 8.507059e+37
    %v4694 = vand.u32 %v4681, 2147483648
    %v4695 = vor.u32 1.1754944e-38, %v4694
    %v4696 = vsel %vm4693, %v4695, %v4691
    %v4697 = vmul.f32 1.0, %v4696
    %v4698 = vrcp.pop %v4682
    %v4699 = vmul.f32 %v4682, %v4698
    %v4700 = vsub.f32 1.0, %v4699
    %v4701 = vmul.f32 %v4698, %v4700
    %v4702 = vadd.f32 %v4698, %v4701
    %vm4703 = vweird.f32 %v4682
    %vm4704 = vweird.f32 %v4698
    %vm4705 = vmor %vm4703, %vm4704
    %v4706 = vsel %vm4705, %v4698, %v4702
    %v4707 = vand.u32 2147483647, %v4682
    %vm4708 = vcmp.eq.f32.partialorder %v4707, 8.507059e+37
    %v4709 = vand.u32 %v4682, 2147483648
    %v4710 = vor.u32 1.1754944e-38, %v4709
    %v4711 = vsel %vm4708, %v4710, %v4706
    %v4712 = vmul.f32 1.0, %v4711
    %v4714 = vrot.slane %v4646, 2
    %v4715 = vrot.slane %v4646, 3
    %v4718 = vadd.f32 %v3483, %v4714
    %v4719 = vadd.f32 %v3486, %v4715
    %v4720 = vxor.u32 %v4718, 2147483648
    %v4721 = vxor.u32 %v4719, 2147483648
    %v4722 = vmul.f32 %v4720, 1.442695
    %v4723 = vpow.pop %v4722
    %v4724 = vmul.f32 %v4721, 1.442695
    %v4725 = vpow.pop %v4724
    %v4726 = vadd.f32 %v4723, 1.0
    %v4727 = vadd.f32 %v4725, 1.0
    %v4728 = vrcp.pop %v4726
    %v4729 = vmul.f32 %v4726, %v4728
    %v4730 = vsub.f32 1.0, %v4729
    %v4731 = vmul.f32 %v4728, %v4730
    %v4732 = vadd.f32 %v4728, %v4731
    %vm4733 = vweird.f32 %v4726
    %vm4734 = vweird.f32 %v4728
    %vm4735 = vmor %vm4733, %vm4734
    %v4736 = vsel %vm4735, %v4728, %v4732
    %v4737 = vand.u32 2147483647, %v4726
    %vm4738 = vcmp.eq.f32.partialorder %v4737, 8.507059e+37
    %v4739 = vand.u32 %v4726, 2147483648
    %v4740 = vor.u32 1.1754944e-38, %v4739
    %v4741 = vsel %vm4738, %v4740, %v4736
    %v4742 = vmul.f32 1.0, %v4741
    %v4743 = vrcp.pop %v4727
    %v4744 = vmul.f32 %v4727, %v4743
    %v4745 = vsub.f32 1.0, %v4744
    %v4746 = vmul.f32 %v4743, %v4745
    %v4747 = vadd.f32 %v4743, %v4746
    %vm4748 = vweird.f32 %v4727
    %vm4749 = vweird.f32 %v4743
    %vm4750 = vmor %vm4748, %vm4749
    %v4751 = vsel %vm4750, %v4743, %v4747
    %v4752 = vand.u32 2147483647, %v4727
    %vm4753 = vcmp.eq.f32.partialorder %v4752, 8.507059e+37
    %v4754 = vand.u32 %v4727, 2147483648
    %v4755 = vor.u32 1.1754944e-38, %v4754
    %v4756 = vsel %vm4753, %v4755, %v4751
    %v4757 = vmul.f32 1.0, %v4756
    %v4759 = vrot.slane %v4666, 2
    %v4760 = vrot.slane %v4666, 3
    %v4763 = vmul.f32 %v4697, %v4759
    %v4764 = vmul.f32 %v4712, %v4760
    %v4765 = vadd.f32 %v3506, %v4763
    %v4766 = vadd.f32 %v3509, %v4764
    %v4767 = vtanh.pop %v4765
    %v4768 = vtanh.pop %v4766
    %v4771 = vrot.slane %v4767, 1
    %v4772 = vrot.slane %v4768, 1
    %v4775 = vsub.f32 %v4600, %v4771
    %v4776 = vsub.f32 %v4601, %v4772
    %v4779 = vrot.slane %v4775, 7
    %v4780 = vrot.slane %v4776, 7
    %v4783 = vmul.f32 %v4742, %v4779
    %v4784 = vmul.f32 %v4757, %v4780
    %v4785 = vadd.f32 %v4767, %v4783
    %v4786 = vadd.f32 %v4768, %v4784
    %v4789 = vrot.slane %v4785, 6
    %v4790 = vrot.slane %v4786, 5
    %v4791 = vsel %vm621, %v4790, %v4789
    %4793 = vmatpush.msra.mxu0 %v3350
    %4794 = vmatpush.msra.mxu0 %v3347
    %4795 = vmatpush.msra.mxu0 %v3344
    %4796 = vmatpush.msra.mxu0 %v3341
    %4797 = vmatpush.msra.mxu0 %v3338
    %4798 = vmatpush.msra.mxu0 %v3335
    %4799 = vmatpush.msra.mxu0 %v3332
    %4800 = vmatpush.msra.mxu0 %v3329
    %4801 = vmatpush.msra.mxu0 %v3326
    %4802 = vmatpush.msra.mxu0 %v3323
    %4803 = vmatpush.msra.mxu0 %v3320
    %4804 = vmatpush.msra.mxu0 %v3317
    %4805 = vmatpush.msra.mxu0 %v3314
    %4806 = vmatpush.msra.mxu0 %v3311
    %4807 = vmatpush.msra.mxu0 %v3308
    %4808 = vmatpush.msra.mxu0 %v3305
    %4809 = vmatmul.f32.gmra.mxu0 %v4791
    %v4810 = vpop.f32.mrf.mxu0
    %v4811 = vadd.f32 %v3512, %v4810
    %4812 = vdwg.mxu0
    %4813 = vmatpush.msra.mxu0 %v3351
    %4814 = vmatpush.msra.mxu0 %v3348
    %4815 = vmatpush.msra.mxu0 %v3345
    %4816 = vmatpush.msra.mxu0 %v3342
    %4817 = vmatpush.msra.mxu0 %v3339
    %4818 = vmatpush.msra.mxu0 %v3336
    %4819 = vmatpush.msra.mxu0 %v3333
    %4820 = vmatpush.msra.mxu0 %v3330
    %4821 = vmatpush.msra.mxu0 %v3327
    %4822 = vmatpush.msra.mxu0 %v3324
    %4823 = vmatpush.msra.mxu0 %v3321
    %4824 = vmatpush.msra.mxu0 %v3318
    %4825 = vmatpush.msra.mxu0 %v3315
    %4826 = vmatpush.msra.mxu0 %v3312
    %4827 = vmatpush.msra.mxu0 %v3309
    %4828 = vmatpush.msra.mxu0 %v3306
    %4829 = vmatmul.f32.gmra.mxu0 %v4791
    %v4830 = vpop.f32.mrf.mxu0
    %v4831 = vadd.f32 %v3513, %v4830
    %4832 = vdwg.mxu0
    %4833 = vmatpush.msra.mxu0 %v3352
    %4834 = vmatpush.msra.mxu0 %v3349
    %4835 = vmatpush.msra.mxu0 %v3346
    %4836 = vmatpush.msra.mxu0 %v3343
    %4837 = vmatpush.msra.mxu0 %v3340
    %4838 = vmatpush.msra.mxu0 %v3337
    %4839 = vmatpush.msra.mxu0 %v3334
    %4840 = vmatpush.msra.mxu0 %v3331
    %4841 = vmatpush.msra.mxu0 %v3328
    %4842 = vmatpush.msra.mxu0 %v3325
    %4843 = vmatpush.msra.mxu0 %v3322
    %4844 = vmatpush.msra.mxu0 %v3319
    %4845 = vmatpush.msra.mxu0 %v3316
    %4846 = vmatpush.msra.mxu0 %v3313
    %4847 = vmatpush.msra.mxu0 %v3310
    %4848 = vmatpush.msra.mxu0 %v3307
    %4849 = vmatmul.f32.gmra.mxu0 %v4791
    %v4850 = vpop.f32.mrf.mxu0
    %v4851 = vadd.f32 %v3514, %v4850
    %4852 = vdwg.mxu0
    %v4854 = vrot.slane %v4811, 1
    %v4855 = vrot.slane %v4811, 2
    %v4858 = vadd.f32 %v3460, %v4854
    %v4859 = vadd.f32 %v3463, %v4855
    %v4860 = vxor.u32 %v4858, 2147483648
    %v4861 = vxor.u32 %v4859, 2147483648
    %v4862 = vmul.f32 %v4860, 1.442695
    %v4863 = vpow.pop %v4862
    %v4864 = vmul.f32 %v4861, 1.442695
    %v4865 = vpow.pop %v4864
    %v4866 = vadd.f32 %v4863, 1.0
    %v4867 = vadd.f32 %v4865, 1.0
    %v4868 = vrcp.pop %v4866
    %v4869 = vmul.f32 %v4866, %v4868
    %v4870 = vsub.f32 1.0, %v4869
    %v4871 = vmul.f32 %v4868, %v4870
    %v4872 = vadd.f32 %v4868, %v4871
    %vm4873 = vweird.f32 %v4866
    %vm4874 = vweird.f32 %v4868
    %vm4875 = vmor %vm4873, %vm4874
    %v4876 = vsel %vm4875, %v4868, %v4872
    %v4877 = vand.u32 2147483647, %v4866
    %vm4878 = vcmp.eq.f32.partialorder %v4877, 8.507059e+37
    %v4879 = vand.u32 %v4866, 2147483648
    %v4880 = vor.u32 1.1754944e-38, %v4879
    %v4881 = vsel %vm4878, %v4880, %v4876
    %v4882 = vmul.f32 1.0, %v4881
    %v4883 = vrcp.pop %v4867
    %v4884 = vmul.f32 %v4867, %v4883
    %v4885 = vsub.f32 1.0, %v4884
    %v4886 = vmul.f32 %v4883, %v4885
    %v4887 = vadd.f32 %v4883, %v4886
    %vm4888 = vweird.f32 %v4867
    %vm4889 = vweird.f32 %v4883
    %vm4890 = vmor %vm4888, %vm4889
    %v4891 = vsel %vm4890, %v4883, %v4887
    %v4892 = vand.u32 2147483647, %v4867
    %vm4893 = vcmp.eq.f32.partialorder %v4892, 8.507059e+37
    %v4894 = vand.u32 %v4867, 2147483648
    %v4895 = vor.u32 1.1754944e-38, %v4894
    %v4896 = vsel %vm4893, %v4895, %v4891
    %v4897 = vmul.f32 1.0, %v4896
    %v4899 = vrot.slane %v4831, 1
    %v4900 = vrot.slane %v4831, 2
    %v4903 = vadd.f32 %v3483, %v4899
    %v4904 = vadd.f32 %v3486, %v4900
    %v4905 = vxor.u32 %v4903, 2147483648
    %v4906 = vxor.u32 %v4904, 2147483648
    %v4907 = vmul.f32 %v4905, 1.442695
    %v4908 = vpow.pop %v4907
    %v4909 = vmul.f32 %v4906, 1.442695
    %v4910 = vpow.pop %v4909
    %v4911 = vadd.f32 %v4908, 1.0
    %v4912 = vadd.f32 %v4910, 1.0
    %v4913 = vrcp.pop %v4911
    %v4914 = vmul.f32 %v4911, %v4913
    %v4915 = vsub.f32 1.0, %v4914
    %v4916 = vmul.f32 %v4913, %v4915
    %v4917 = vadd.f32 %v4913, %v4916
    %vm4918 = vweird.f32 %v4911
    %vm4919 = vweird.f32 %v4913
    %vm4920 = vmor %vm4918, %vm4919
    %v4921 = vsel %vm4920, %v4913, %v4917
    %v4922 = vand.u32 2147483647, %v4911
    %vm4923 = vcmp.eq.f32.partialorder %v4922, 8.507059e+37
    %v4924 = vand.u32 %v4911, 2147483648
    %v4925 = vor.u32 1.1754944e-38, %v4924
    %v4926 = vsel %vm4923, %v4925, %v4921
    %v4927 = vmul.f32 1.0, %v4926
    %v4928 = vrcp.pop %v4912
    %v4929 = vmul.f32 %v4912, %v4928
    %v4930 = vsub.f32 1.0, %v4929
    %v4931 = vmul.f32 %v4928, %v4930
    %v4932 = vadd.f32 %v4928, %v4931
    %vm4933 = vweird.f32 %v4912
    %vm4934 = vweird.f32 %v4928
    %vm4935 = vmor %vm4933, %vm4934
    %v4936 = vsel %vm4935, %v4928, %v4932
    %v4937 = vand.u32 2147483647, %v4912
    %vm4938 = vcmp.eq.f32.partialorder %v4937, 8.507059e+37
    %v4939 = vand.u32 %v4912, 2147483648
    %v4940 = vor.u32 1.1754944e-38, %v4939
    %v4941 = vsel %vm4938, %v4940, %v4936
    %v4942 = vmul.f32 1.0, %v4941
    %v4944 = vrot.slane %v4851, 1
    %v4945 = vrot.slane %v4851, 2
    %v4948 = vmul.f32 %v4882, %v4944
    %v4949 = vmul.f32 %v4897, %v4945
    %v4950 = vadd.f32 %v3506, %v4948
    %v4951 = vadd.f32 %v3509, %v4949
    %v4952 = vtanh.pop %v4950
    %v4953 = vtanh.pop %v4951
    %v4956 = vrot.slane %v4952, 1
    %v4957 = vrot.slane %v4953, 1
    %v4960 = vsub.f32 %v4785, %v4956
    %v4961 = vsub.f32 %v4786, %v4957
    %v4964 = vrot.slane %v4960, 7
    %v4965 = vrot.slane %v4961, 7
    %v4968 = vmul.f32 %v4927, %v4964
    %v4969 = vmul.f32 %v4942, %v4965
    %v4970 = vadd.f32 %v4952, %v4968
    %v4971 = vadd.f32 %v4953, %v4969
    %v4972 = vsel %vm1909, %v3680, %v3861
    %v4973 = vsel %vm1911, %v4972, %v4045
    %v4974 = vsel %vm1913, %v4973, %v4230
    %v4975 = vsel %vm1915, %v4974, %v4415
    %v4976 = vsel %vm1917, %v4975, %v4600
    %v4977 = vsel %vm1919, %v4976, %v4785
    %v4978 = vsel %vm1921, %v4977, %v4970
    %v4979 = vsel %vm1909, %v3681, %v3862
    %v4980 = vsel %vm1911, %v4979, %v4046
    %v4981 = vsel %vm1913, %v4980, %v4231
    %v4982 = vsel %vm1915, %v4981, %v4416
    %v4983 = vsel %vm1917, %v4982, %v4601
    %v4984 = vsel %vm1919, %v4983, %v4786
    %v4985 = vsel %vm1921, %v4984, %v4971
    %v4986 = vadd.f32 %v3253, %v4978
    %v4987 = vadd.f32 %v3254, %v4985
    %4988 = vadd.xlane.f32.xlu0 %v4986
    %v4989 = vpop.xlane.xlu0 %4988
    %4990 = vadd.xlane.f32.xlu0 %v4987
    %v4991 = vpop.xlane.xlu0 %4990
    %v4992 = vmul.f32 %v4989, %v1942
    %v4993 = vmul.f32 %v4991, %v1942
    %v4994 = vsub.f32 %v4986, %v4992
    %v4995 = vsub.f32 %v4987, %v4993
    %v4996 = vmul.f32 %v4994, %v4994
    %v4997 = vmul.f32 %v4995, %v4995
    %4998 = vadd.xlane.f32.xlu0 %v4996
    %v4999 = vpop.xlane.xlu0 %4998
    %5000 = vadd.xlane.f32.xlu0 %v4997
    %v5001 = vpop.xlane.xlu0 %5000
    %v5002 = vmul.f32 %v4999, %v1942
    %v5003 = vmul.f32 %v5001, %v1942
    %v5004 = vadd.f32 %v5002, 1e-12
    %v5005 = vadd.f32 %v5003, 1e-12
    %v5006 = vrsqrt.pop %v5004
    %v5007 = vmul.f32 %v5006, %v5004
    %v5008 = vmul.f32 %v5007, %v5006
    %v5009 = vmul.f32 0.5, %v5008
    %v5010 = vsub.f32 1.5, %v5009
    %v5011 = vmul.f32 %v5006, %v5010
    %vm5012 = vweird.f32 %v5004
    %vm5013 = vweird.f32 %v5006
    %vm5014 = vmor %vm5012, %vm5013
    %v5015 = vsel %vm5014, %v5006, %v5011
    %v5016 = vrsqrt.pop %v5005
    %v5017 = vmul.f32 %v5016, %v5005
    %v5018 = vmul.f32 %v5017, %v5016
    %v5019 = vmul.f32 0.5, %v5018
    %v5020 = vsub.f32 1.5, %v5019
    %v5021 = vmul.f32 %v5016, %v5020
    %vm5022 = vweird.f32 %v5005
    %vm5023 = vweird.f32 %v5016
    %vm5024 = vmor %vm5022, %vm5023
    %v5025 = vsel %vm5024, %v5016, %v5021
    %v5026 = vmul.f32 %v4994, %v5015
    %v5027 = vmul.f32 %v4995, %v5025
    %v5029 = vperm.slane %v3358, 0
    %v5031 = vmul.f32 %v5029, %v5026
    %v5032 = vmul.f32 %v5029, %v5027
    %v5034 = vperm.slane %v3360, 0
    %v5036 = vadd.f32 %v5031, %v5034
    %v5037 = vadd.f32 %v5032, %v5034
    %v5039 = vperm.slane %v3411, 0
    %v5040 = vperm.slane %v3411, 1
    %v5041 = vperm.slane %v3411, 2
    %5045 = vmatpush.msra.mxu0 %v3407
    %5046 = vmatpush.msra.mxu0 %v3404
    %5047 = vmatpush.msra.mxu0 %v3401
    %5048 = vmatpush.msra.mxu0 %v3398
    %5049 = vmatpush.msra.mxu0 %v3395
    %5050 = vmatpush.msra.mxu0 %v3392
    %5051 = vmatpush.msra.mxu0 %v3389
    %5052 = vmatpush.msra.mxu0 %v3386
    %5053 = vmatpush.msra.mxu0 %v3383
    %5054 = vmatpush.msra.mxu0 %v3380
    %5055 = vmatpush.msra.mxu0 %v3377
    %5056 = vmatpush.msra.mxu0 %v3374
    %5057 = vmatpush.msra.mxu0 %v3371
    %5058 = vmatpush.msra.mxu0 %v3368
    %5059 = vmatpush.msra.mxu0 %v3365
    %5060 = vmatpush.msra.mxu0 %v3362
    %5061 = vmatmul.f32.gmra.mxu0 %v5036
    %v5062 = vpop.f32.mrf.mxu0
    %v5063 = vadd.f32 %v5039, %v5062
    %5064 = vmatmul.f32.gmra.mxu0 %v5037
    %v5065 = vpop.f32.mrf.mxu0
    %v5066 = vadd.f32 %v5039, %v5065
    %5067 = vdwg.mxu0
    %5068 = vmatpush.msra.mxu0 %v3408
    %5069 = vmatpush.msra.mxu0 %v3405
    %5070 = vmatpush.msra.mxu0 %v3402
    %5071 = vmatpush.msra.mxu0 %v3399
    %5072 = vmatpush.msra.mxu0 %v3396
    %5073 = vmatpush.msra.mxu0 %v3393
    %5074 = vmatpush.msra.mxu0 %v3390
    %5075 = vmatpush.msra.mxu0 %v3387
    %5076 = vmatpush.msra.mxu0 %v3384
    %5077 = vmatpush.msra.mxu0 %v3381
    %5078 = vmatpush.msra.mxu0 %v3378
    %5079 = vmatpush.msra.mxu0 %v3375
    %5080 = vmatpush.msra.mxu0 %v3372
    %5081 = vmatpush.msra.mxu0 %v3369
    %5082 = vmatpush.msra.mxu0 %v3366
    %5083 = vmatpush.msra.mxu0 %v3363
    %5084 = vmatmul.f32.gmra.mxu0 %v5036
    %v5085 = vpop.f32.mrf.mxu0
    %v5086 = vadd.f32 %v5040, %v5085
    %5087 = vmatmul.f32.gmra.mxu0 %v5037
    %v5088 = vpop.f32.mrf.mxu0
    %v5089 = vadd.f32 %v5040, %v5088
    %5090 = vdwg.mxu0
    %5091 = vmatpush.msra.mxu0 %v3409
    %5092 = vmatpush.msra.mxu0 %v3406
    %5093 = vmatpush.msra.mxu0 %v3403
    %5094 = vmatpush.msra.mxu0 %v3400
    %5095 = vmatpush.msra.mxu0 %v3397
    %5096 = vmatpush.msra.mxu0 %v3394
    %5097 = vmatpush.msra.mxu0 %v3391
    %5098 = vmatpush.msra.mxu0 %v3388
    %5099 = vmatpush.msra.mxu0 %v3385
    %5100 = vmatpush.msra.mxu0 %v3382
    %5101 = vmatpush.msra.mxu0 %v3379
    %5102 = vmatpush.msra.mxu0 %v3376
    %5103 = vmatpush.msra.mxu0 %v3373
    %5104 = vmatpush.msra.mxu0 %v3370
    %5105 = vmatpush.msra.mxu0 %v3367
    %5106 = vmatpush.msra.mxu0 %v3364
    %5107 = vmatmul.f32.gmra.mxu0 %v5036
    %v5108 = vpop.f32.mrf.mxu0
    %v5109 = vadd.f32 %v5041, %v5108
    %5110 = vmatmul.f32.gmra.mxu0 %v5037
    %v5111 = vpop.f32.mrf.mxu0
    %v5112 = vadd.f32 %v5041, %v5111
    %5113 = vdwg.mxu0
    %v5114 = vmul.f32 %v5063, 0.25
    %v5115 = vmul.f32 %v5066, 0.25
    %v5117 = vsel %vm2067, %v5114, 0
    %v5120 = vsel %vm2067, %v5086, 0
    %5122 = vmatpush.xpose.msra.mxu0 0.0
    %5123 = vmatpush.xpose.msra.mxu0 0.0
    %5124 = vmatpush.xpose.msra.mxu0 0.0
    %5125 = vmatpush.xpose.msra.mxu0 0.0
    %5126 = vmatpush.xpose.msra.mxu0 0.0
    %5127 = vmatpush.xpose.msra.mxu0 0.0
    %5128 = vmatpush.xpose.msra.mxu0 0.0
    %5129 = vmatpush.xpose.msra.mxu0 0.0
    %5130 = vmatpush.xpose.msra.mxu0 0.0
    %5131 = vmatpush.xpose.msra.mxu0 0.0
    %5132 = vmatpush.xpose.msra.mxu0 0.0
    %5133 = vmatpush.xpose.msra.mxu0 0.0
    %5134 = vmatpush.xpose.msra.mxu0 0.0
    %5135 = vmatpush.xpose.msra.mxu0 0.0
    %5136 = vmatpush.xpose.msra.mxu0 0.0
    %5137 = vmatpush.xpose.msra.mxu0 %v5120
    %5138 = vmatmul.f32.gmra.mxu0 %v5117
    %v5139 = vpop.f32.mrf.mxu0
    %v5140 = vadd.f32 0.0, %v5139
    %5141 = vdwg.mxu0
    %v5143 = vsel %vm2067, %v5115, 0
    %v5146 = vsel %vm2067, %v5089, 0
    %5148 = vmatpush.xpose.msra.mxu0 0.0
    %5149 = vmatpush.xpose.msra.mxu0 0.0
    %5150 = vmatpush.xpose.msra.mxu0 0.0
    %5151 = vmatpush.xpose.msra.mxu0 0.0
    %5152 = vmatpush.xpose.msra.mxu0 0.0
    %5153 = vmatpush.xpose.msra.mxu0 0.0
    %5154 = vmatpush.xpose.msra.mxu0 0.0
    %5155 = vmatpush.xpose.msra.mxu0 0.0
    %5156 = vmatpush.xpose.msra.mxu0 0.0
    %5157 = vmatpush.xpose.msra.mxu0 0.0
    %5158 = vmatpush.xpose.msra.mxu0 0.0
    %5159 = vmatpush.xpose.msra.mxu0 0.0
    %5160 = vmatpush.xpose.msra.mxu0 0.0
    %5161 = vmatpush.xpose.msra.mxu0 0.0
    %5162 = vmatpush.xpose.msra.mxu0 0.0
    %5163 = vmatpush.xpose.msra.mxu0 %v5146
    %5164 = vmatmul.f32.gmra.mxu0 %v5143
    %v5165 = vpop.f32.mrf.mxu0
    %v5166 = vadd.f32 0.0, %v5165
    %5167 = vdwg.mxu0
    %v5168 = vsel %vm2120, %v5140, -inf
    %5169 = vmax.xlane.f32.xlu0 %v5168
    %v5170 = vpop.xlane.xlu0 %5169
    %v5171 = vsel %vm2120, %v5166, -inf
    %5172 = vmax.xlane.f32.xlu0 %v5171
    %v5173 = vpop.xlane.xlu0 %5172
    %v5174 = vsub.f32 %v5140, %v5170
    %v5175 = vsub.f32 %v5166, %v5173
    %v5176 = vmul.f32 %v5174, 1.442695
    %v5177 = vpow.pop %v5176
    %v5178 = vmul.f32 %v5175, 1.442695
    %v5179 = vpow.pop %v5178
    %v5180 = vsel %vm2120, %v5177, 0.0
    %5181 = vadd.xlane.f32.xlu0 %v5180
    %v5182 = vpop.xlane.xlu0 %5181
    %v5183 = vsel %vm2120, %v5179, 0.0
    %5184 = vadd.xlane.f32.xlu0 %v5183
    %v5185 = vpop.xlane.xlu0 %5184
    %v5186 = vrcp.pop %v5182
    %v5187 = vrcp.pop %v5185
    %v5188 = vmul.f32 %v5177, %v5186
    %v5189 = vmul.f32 %v5179, %v5187
    %v5191 = vsel %vm2120, %v5188, 0
    %5193 = vmatpush.msra.mxu0 0.0
    %5194 = vmatpush.msra.mxu0 0.0
    %5195 = vmatpush.msra.mxu0 0.0
    %5196 = vmatpush.msra.mxu0 0.0
    %5197 = vmatpush.msra.mxu0 0.0
    %5198 = vmatpush.msra.mxu0 0.0
    %5199 = vmatpush.msra.mxu0 0.0
    %5200 = vmatpush.msra.mxu0 0.0
    %5201 = vmatpush.msra.mxu0 0.0
    %5202 = vmatpush.msra.mxu0 0.0
    %5203 = vmatpush.msra.mxu0 0.0
    %5204 = vmatpush.msra.mxu0 0.0
    %5205 = vmatpush.msra.mxu0 0.0
    %5206 = vmatpush.msra.mxu0 0.0
    %5207 = vmatpush.msra.mxu0 0.0
    %5208 = vmatpush.msra.mxu0 %v5109
    %5209 = vmatmul.f32.gmra.mxu0 %v5191
    %v5210 = vpop.f32.mrf.mxu0
    %v5211 = vadd.f32 0.0, %v5210
    %5212 = vdwg.mxu0
    %v5214 = vsel %vm2120, %v5189, 0
    %5216 = vmatpush.msra.mxu0 0.0
    %5217 = vmatpush.msra.mxu0 0.0
    %5218 = vmatpush.msra.mxu0 0.0
    %5219 = vmatpush.msra.mxu0 0.0
    %5220 = vmatpush.msra.mxu0 0.0
    %5221 = vmatpush.msra.mxu0 0.0
    %5222 = vmatpush.msra.mxu0 0.0
    %5223 = vmatpush.msra.mxu0 0.0
    %5224 = vmatpush.msra.mxu0 0.0
    %5225 = vmatpush.msra.mxu0 0.0
    %5226 = vmatpush.msra.mxu0 0.0
    %5227 = vmatpush.msra.mxu0 0.0
    %5228 = vmatpush.msra.mxu0 0.0
    %5229 = vmatpush.msra.mxu0 0.0
    %5230 = vmatpush.msra.mxu0 0.0
    %5231 = vmatpush.msra.mxu0 %v5112
    %5232 = vmatmul.f32.gmra.mxu0 %v5214
    %v5233 = vpop.f32.mrf.mxu0
    %v5234 = vadd.f32 0.0, %v5233
    %5235 = vdwg.mxu0
    %5236 = vrot.lane.b32.xlu0 %v5114, 112
    %v5237 = vpop.permute.xlu0 %5236
    %5238 = vrot.lane.b32.xlu0 %v5086, 112
    %v5239 = vpop.permute.xlu0 %5238
    %v5240 = vsel %vm2067, %v5237, 0
    %v5242 = vsel %vm2067, %v5239, 0
    %5244 = vmatpush.xpose.msra.mxu0 0.0
    %5245 = vmatpush.xpose.msra.mxu0 0.0
    %5246 = vmatpush.xpose.msra.mxu0 0.0
    %5247 = vmatpush.xpose.msra.mxu0 0.0
    %5248 = vmatpush.xpose.msra.mxu0 0.0
    %5249 = vmatpush.xpose.msra.mxu0 0.0
    %5250 = vmatpush.xpose.msra.mxu0 0.0
    %5251 = vmatpush.xpose.msra.mxu0 0.0
    %5252 = vmatpush.xpose.msra.mxu0 0.0
    %5253 = vmatpush.xpose.msra.mxu0 0.0
    %5254 = vmatpush.xpose.msra.mxu0 0.0
    %5255 = vmatpush.xpose.msra.mxu0 0.0
    %5256 = vmatpush.xpose.msra.mxu0 0.0
    %5257 = vmatpush.xpose.msra.mxu0 0.0
    %5258 = vmatpush.xpose.msra.mxu0 0.0
    %5259 = vmatpush.xpose.msra.mxu0 %v5242
    %5260 = vmatmul.f32.gmra.mxu0 %v5240
    %v5261 = vpop.f32.mrf.mxu0
    %v5262 = vadd.f32 0.0, %v5261
    %5263 = vdwg.mxu0
    %5264 = vrot.lane.b32.xlu0 %v5115, 112
    %v5265 = vpop.permute.xlu0 %5264
    %5266 = vrot.lane.b32.xlu0 %v5089, 112
    %v5267 = vpop.permute.xlu0 %5266
    %v5268 = vsel %vm2067, %v5265, 0
    %v5270 = vsel %vm2067, %v5267, 0
    %5272 = vmatpush.xpose.msra.mxu0 0.0
    %5273 = vmatpush.xpose.msra.mxu0 0.0
    %5274 = vmatpush.xpose.msra.mxu0 0.0
    %5275 = vmatpush.xpose.msra.mxu0 0.0
    %5276 = vmatpush.xpose.msra.mxu0 0.0
    %5277 = vmatpush.xpose.msra.mxu0 0.0
    %5278 = vmatpush.xpose.msra.mxu0 0.0
    %5279 = vmatpush.xpose.msra.mxu0 0.0
    %5280 = vmatpush.xpose.msra.mxu0 0.0
    %5281 = vmatpush.xpose.msra.mxu0 0.0
    %5282 = vmatpush.xpose.msra.mxu0 0.0
    %5283 = vmatpush.xpose.msra.mxu0 0.0
    %5284 = vmatpush.xpose.msra.mxu0 0.0
    %5285 = vmatpush.xpose.msra.mxu0 0.0
    %5286 = vmatpush.xpose.msra.mxu0 0.0
    %5287 = vmatpush.xpose.msra.mxu0 %v5270
    %5288 = vmatmul.f32.gmra.mxu0 %v5268
    %v5289 = vpop.f32.mrf.mxu0
    %v5290 = vadd.f32 0.0, %v5289
    %5291 = vdwg.mxu0
    %v5292 = vsel %vm2120, %v5262, -inf
    %5293 = vmax.xlane.f32.xlu0 %v5292
    %v5294 = vpop.xlane.xlu0 %5293
    %v5295 = vsel %vm2120, %v5290, -inf
    %5296 = vmax.xlane.f32.xlu0 %v5295
    %v5297 = vpop.xlane.xlu0 %5296
    %v5298 = vsub.f32 %v5262, %v5294
    %v5299 = vsub.f32 %v5290, %v5297
    %v5300 = vmul.f32 %v5298, 1.442695
    %v5301 = vpow.pop %v5300
    %v5302 = vmul.f32 %v5299, 1.442695
    %v5303 = vpow.pop %v5302
    %v5304 = vsel %vm2120, %v5301, 0.0
    %5305 = vadd.xlane.f32.xlu0 %v5304
    %v5306 = vpop.xlane.xlu0 %5305
    %v5307 = vsel %vm2120, %v5303, 0.0
    %5308 = vadd.xlane.f32.xlu0 %v5307
    %v5309 = vpop.xlane.xlu0 %5308
    %v5310 = vrcp.pop %v5306
    %v5311 = vrcp.pop %v5309
    %v5312 = vmul.f32 %v5301, %v5310
    %v5313 = vmul.f32 %v5303, %v5311
    %5315 = vrot.lane.b32.xlu0 %v5109, 112
    %v5316 = vpop.permute.xlu0 %5315
    %v5319 = vsel %vm2120, %v5312, 0
    %5321 = vmatpush.msra.mxu0 0.0
    %5322 = vmatpush.msra.mxu0 0.0
    %5323 = vmatpush.msra.mxu0 0.0
    %5324 = vmatpush.msra.mxu0 0.0
    %5325 = vmatpush.msra.mxu0 0.0
    %5326 = vmatpush.msra.mxu0 0.0
    %5327 = vmatpush.msra.mxu0 0.0
    %5328 = vmatpush.msra.mxu0 0.0
    %5329 = vmatpush.msra.mxu0 0.0
    %5330 = vmatpush.msra.mxu0 0.0
    %5331 = vmatpush.msra.mxu0 0.0
    %5332 = vmatpush.msra.mxu0 0.0
    %5333 = vmatpush.msra.mxu0 0.0
    %5334 = vmatpush.msra.mxu0 0.0
    %5335 = vmatpush.msra.mxu0 0.0
    %5336 = vmatpush.msra.mxu0 %v5316
    %5337 = vmatmul.f32.gmra.mxu0 %v5319
    %v5338 = vpop.f32.mrf.mxu0
    %v5339 = vadd.f32 0.0, %v5338
    %5340 = vdwg.mxu0
    %5342 = vrot.lane.b32.xlu0 %v5112, 112
    %v5343 = vpop.permute.xlu0 %5342
    %v5346 = vsel %vm2120, %v5313, 0
    %5348 = vmatpush.msra.mxu0 0.0
    %5349 = vmatpush.msra.mxu0 0.0
    %5350 = vmatpush.msra.mxu0 0.0
    %5351 = vmatpush.msra.mxu0 0.0
    %5352 = vmatpush.msra.mxu0 0.0
    %5353 = vmatpush.msra.mxu0 0.0
    %5354 = vmatpush.msra.mxu0 0.0
    %5355 = vmatpush.msra.mxu0 0.0
    %5356 = vmatpush.msra.mxu0 0.0
    %5357 = vmatpush.msra.mxu0 0.0
    %5358 = vmatpush.msra.mxu0 0.0
    %5359 = vmatpush.msra.mxu0 0.0
    %5360 = vmatpush.msra.mxu0 0.0
    %5361 = vmatpush.msra.mxu0 0.0
    %5362 = vmatpush.msra.mxu0 0.0
    %5363 = vmatpush.msra.mxu0 %v5343
    %5364 = vmatmul.f32.gmra.mxu0 %v5346
    %v5365 = vpop.f32.mrf.mxu0
    %v5366 = vadd.f32 0.0, %v5365
    %5367 = vdwg.mxu0
    %5368 = vrot.lane.b32.xlu0 %v5114, 96
    %v5369 = vpop.permute.xlu0 %5368
    %5370 = vrot.lane.b32.xlu0 %v5086, 96
    %v5371 = vpop.permute.xlu0 %5370
    %v5372 = vsel %vm2067, %v5369, 0
    %v5374 = vsel %vm2067, %v5371, 0
    %5376 = vmatpush.xpose.msra.mxu0 0.0
    %5377 = vmatpush.xpose.msra.mxu0 0.0
    %5378 = vmatpush.xpose.msra.mxu0 0.0
    %5379 = vmatpush.xpose.msra.mxu0 0.0
    %5380 = vmatpush.xpose.msra.mxu0 0.0
    %5381 = vmatpush.xpose.msra.mxu0 0.0
    %5382 = vmatpush.xpose.msra.mxu0 0.0
    %5383 = vmatpush.xpose.msra.mxu0 0.0
    %5384 = vmatpush.xpose.msra.mxu0 0.0
    %5385 = vmatpush.xpose.msra.mxu0 0.0
    %5386 = vmatpush.xpose.msra.mxu0 0.0
    %5387 = vmatpush.xpose.msra.mxu0 0.0
    %5388 = vmatpush.xpose.msra.mxu0 0.0
    %5389 = vmatpush.xpose.msra.mxu0 0.0
    %5390 = vmatpush.xpose.msra.mxu0 0.0
    %5391 = vmatpush.xpose.msra.mxu0 %v5374
    %5392 = vmatmul.f32.gmra.mxu0 %v5372
    %v5393 = vpop.f32.mrf.mxu0
    %v5394 = vadd.f32 0.0, %v5393
    %5395 = vdwg.mxu0
    %5396 = vrot.lane.b32.xlu0 %v5115, 96
    %v5397 = vpop.permute.xlu0 %5396
    %5398 = vrot.lane.b32.xlu0 %v5089, 96
    %v5399 = vpop.permute.xlu0 %5398
    %v5400 = vsel %vm2067, %v5397, 0
    %v5402 = vsel %vm2067, %v5399, 0
    %5404 = vmatpush.xpose.msra.mxu0 0.0
    %5405 = vmatpush.xpose.msra.mxu0 0.0
    %5406 = vmatpush.xpose.msra.mxu0 0.0
    %5407 = vmatpush.xpose.msra.mxu0 0.0
    %5408 = vmatpush.xpose.msra.mxu0 0.0
    %5409 = vmatpush.xpose.msra.mxu0 0.0
    %5410 = vmatpush.xpose.msra.mxu0 0.0
    %5411 = vmatpush.xpose.msra.mxu0 0.0
    %5412 = vmatpush.xpose.msra.mxu0 0.0
    %5413 = vmatpush.xpose.msra.mxu0 0.0
    %5414 = vmatpush.xpose.msra.mxu0 0.0
    %5415 = vmatpush.xpose.msra.mxu0 0.0
    %5416 = vmatpush.xpose.msra.mxu0 0.0
    %5417 = vmatpush.xpose.msra.mxu0 0.0
    %5418 = vmatpush.xpose.msra.mxu0 0.0
    %5419 = vmatpush.xpose.msra.mxu0 %v5402
    %5420 = vmatmul.f32.gmra.mxu0 %v5400
    %v5421 = vpop.f32.mrf.mxu0
    %v5422 = vadd.f32 0.0, %v5421
    %5423 = vdwg.mxu0
    %v5424 = vsel %vm2120, %v5394, -inf
    %5425 = vmax.xlane.f32.xlu0 %v5424
    %v5426 = vpop.xlane.xlu0 %5425
    %v5427 = vsel %vm2120, %v5422, -inf
    %5428 = vmax.xlane.f32.xlu0 %v5427
    %v5429 = vpop.xlane.xlu0 %5428
    %v5430 = vsub.f32 %v5394, %v5426
    %v5431 = vsub.f32 %v5422, %v5429
    %v5432 = vmul.f32 %v5430, 1.442695
    %v5433 = vpow.pop %v5432
    %v5434 = vmul.f32 %v5431, 1.442695
    %v5435 = vpow.pop %v5434
    %v5436 = vsel %vm2120, %v5433, 0.0
    %5437 = vadd.xlane.f32.xlu0 %v5436
    %v5438 = vpop.xlane.xlu0 %5437
    %v5439 = vsel %vm2120, %v5435, 0.0
    %5440 = vadd.xlane.f32.xlu0 %v5439
    %v5441 = vpop.xlane.xlu0 %5440
    %v5442 = vrcp.pop %v5438
    %v5443 = vrcp.pop %v5441
    %v5444 = vmul.f32 %v5433, %v5442
    %v5445 = vmul.f32 %v5435, %v5443
    %5446 = vrot.lane.b32.xlu0 %v5109, 96
    %v5447 = vpop.permute.xlu0 %5446
    %v5450 = vsel %vm2120, %v5444, 0
    %5452 = vmatpush.msra.mxu0 0.0
    %5453 = vmatpush.msra.mxu0 0.0
    %5454 = vmatpush.msra.mxu0 0.0
    %5455 = vmatpush.msra.mxu0 0.0
    %5456 = vmatpush.msra.mxu0 0.0
    %5457 = vmatpush.msra.mxu0 0.0
    %5458 = vmatpush.msra.mxu0 0.0
    %5459 = vmatpush.msra.mxu0 0.0
    %5460 = vmatpush.msra.mxu0 0.0
    %5461 = vmatpush.msra.mxu0 0.0
    %5462 = vmatpush.msra.mxu0 0.0
    %5463 = vmatpush.msra.mxu0 0.0
    %5464 = vmatpush.msra.mxu0 0.0
    %5465 = vmatpush.msra.mxu0 0.0
    %5466 = vmatpush.msra.mxu0 0.0
    %5467 = vmatpush.msra.mxu0 %v5447
    %5468 = vmatmul.f32.gmra.mxu0 %v5450
    %v5469 = vpop.f32.mrf.mxu0
    %v5470 = vadd.f32 0.0, %v5469
    %5471 = vdwg.mxu0
    %5472 = vrot.lane.b32.xlu0 %v5112, 96
    %v5473 = vpop.permute.xlu0 %5472
    %v5476 = vsel %vm2120, %v5445, 0
    %5478 = vmatpush.msra.mxu0 0.0
    %5479 = vmatpush.msra.mxu0 0.0
    %5480 = vmatpush.msra.mxu0 0.0
    %5481 = vmatpush.msra.mxu0 0.0
    %5482 = vmatpush.msra.mxu0 0.0
    %5483 = vmatpush.msra.mxu0 0.0
    %5484 = vmatpush.msra.mxu0 0.0
    %5485 = vmatpush.msra.mxu0 0.0
    %5486 = vmatpush.msra.mxu0 0.0
    %5487 = vmatpush.msra.mxu0 0.0
    %5488 = vmatpush.msra.mxu0 0.0
    %5489 = vmatpush.msra.mxu0 0.0
    %5490 = vmatpush.msra.mxu0 0.0
    %5491 = vmatpush.msra.mxu0 0.0
    %5492 = vmatpush.msra.mxu0 0.0
    %5493 = vmatpush.msra.mxu0 %v5473
    %5494 = vmatmul.f32.gmra.mxu0 %v5476
    %v5495 = vpop.f32.mrf.mxu0
    %v5496 = vadd.f32 0.0, %v5495
    %5497 = vdwg.mxu0
    %5498 = vrot.lane.b32.xlu0 %v5114, 80
    %v5499 = vpop.permute.xlu0 %5498
    %5500 = vrot.lane.b32.xlu0 %v5086, 80
    %v5501 = vpop.permute.xlu0 %5500
    %v5502 = vsel %vm2067, %v5499, 0
    %v5504 = vsel %vm2067, %v5501, 0
    %5506 = vmatpush.xpose.msra.mxu0 0.0
    %5507 = vmatpush.xpose.msra.mxu0 0.0
    %5508 = vmatpush.xpose.msra.mxu0 0.0
    %5509 = vmatpush.xpose.msra.mxu0 0.0
    %5510 = vmatpush.xpose.msra.mxu0 0.0
    %5511 = vmatpush.xpose.msra.mxu0 0.0
    %5512 = vmatpush.xpose.msra.mxu0 0.0
    %5513 = vmatpush.xpose.msra.mxu0 0.0
    %5514 = vmatpush.xpose.msra.mxu0 0.0
    %5515 = vmatpush.xpose.msra.mxu0 0.0
    %5516 = vmatpush.xpose.msra.mxu0 0.0
    %5517 = vmatpush.xpose.msra.mxu0 0.0
    %5518 = vmatpush.xpose.msra.mxu0 0.0
    %5519 = vmatpush.xpose.msra.mxu0 0.0
    %5520 = vmatpush.xpose.msra.mxu0 0.0
    %5521 = vmatpush.xpose.msra.mxu0 %v5504
    %5522 = vmatmul.f32.gmra.mxu0 %v5502
    %v5523 = vpop.f32.mrf.mxu0
    %v5524 = vadd.f32 0.0, %v5523
    %5525 = vdwg.mxu0
    %5526 = vrot.lane.b32.xlu0 %v5115, 80
    %v5527 = vpop.permute.xlu0 %5526
    %5528 = vrot.lane.b32.xlu0 %v5089, 80
    %v5529 = vpop.permute.xlu0 %5528
    %v5530 = vsel %vm2067, %v5527, 0
    %v5532 = vsel %vm2067, %v5529, 0
    %5534 = vmatpush.xpose.msra.mxu0 0.0
    %5535 = vmatpush.xpose.msra.mxu0 0.0
    %5536 = vmatpush.xpose.msra.mxu0 0.0
    %5537 = vmatpush.xpose.msra.mxu0 0.0
    %5538 = vmatpush.xpose.msra.mxu0 0.0
    %5539 = vmatpush.xpose.msra.mxu0 0.0
    %5540 = vmatpush.xpose.msra.mxu0 0.0
    %5541 = vmatpush.xpose.msra.mxu0 0.0
    %5542 = vmatpush.xpose.msra.mxu0 0.0
    %5543 = vmatpush.xpose.msra.mxu0 0.0
    %5544 = vmatpush.xpose.msra.mxu0 0.0
    %5545 = vmatpush.xpose.msra.mxu0 0.0
    %5546 = vmatpush.xpose.msra.mxu0 0.0
    %5547 = vmatpush.xpose.msra.mxu0 0.0
    %5548 = vmatpush.xpose.msra.mxu0 0.0
    %5549 = vmatpush.xpose.msra.mxu0 %v5532
    %5550 = vmatmul.f32.gmra.mxu0 %v5530
    %v5551 = vpop.f32.mrf.mxu0
    %v5552 = vadd.f32 0.0, %v5551
    %5553 = vdwg.mxu0
    %v5554 = vsel %vm2120, %v5524, -inf
    %5555 = vmax.xlane.f32.xlu0 %v5554
    %v5556 = vpop.xlane.xlu0 %5555
    %v5557 = vsel %vm2120, %v5552, -inf
    %5558 = vmax.xlane.f32.xlu0 %v5557
    %v5559 = vpop.xlane.xlu0 %5558
    %v5560 = vsub.f32 %v5524, %v5556
    %v5561 = vsub.f32 %v5552, %v5559
    %v5562 = vmul.f32 %v5560, 1.442695
    %v5563 = vpow.pop %v5562
    %v5564 = vmul.f32 %v5561, 1.442695
    %v5565 = vpow.pop %v5564
    %v5566 = vsel %vm2120, %v5563, 0.0
    %5567 = vadd.xlane.f32.xlu0 %v5566
    %v5568 = vpop.xlane.xlu0 %5567
    %v5569 = vsel %vm2120, %v5565, 0.0
    %5570 = vadd.xlane.f32.xlu0 %v5569
    %v5571 = vpop.xlane.xlu0 %5570
    %v5572 = vrcp.pop %v5568
    %v5573 = vrcp.pop %v5571
    %v5574 = vmul.f32 %v5563, %v5572
    %v5575 = vmul.f32 %v5565, %v5573
    %5576 = vrot.lane.b32.xlu0 %v5109, 80
    %v5577 = vpop.permute.xlu0 %5576
    %v5580 = vsel %vm2120, %v5574, 0
    %5582 = vmatpush.msra.mxu0 0.0
    %5583 = vmatpush.msra.mxu0 0.0
    %5584 = vmatpush.msra.mxu0 0.0
    %5585 = vmatpush.msra.mxu0 0.0
    %5586 = vmatpush.msra.mxu0 0.0
    %5587 = vmatpush.msra.mxu0 0.0
    %5588 = vmatpush.msra.mxu0 0.0
    %5589 = vmatpush.msra.mxu0 0.0
    %5590 = vmatpush.msra.mxu0 0.0
    %5591 = vmatpush.msra.mxu0 0.0
    %5592 = vmatpush.msra.mxu0 0.0
    %5593 = vmatpush.msra.mxu0 0.0
    %5594 = vmatpush.msra.mxu0 0.0
    %5595 = vmatpush.msra.mxu0 0.0
    %5596 = vmatpush.msra.mxu0 0.0
    %5597 = vmatpush.msra.mxu0 %v5577
    %5598 = vmatmul.f32.gmra.mxu0 %v5580
    %v5599 = vpop.f32.mrf.mxu0
    %v5600 = vadd.f32 0.0, %v5599
    %5601 = vdwg.mxu0
    %5602 = vrot.lane.b32.xlu0 %v5112, 80
    %v5603 = vpop.permute.xlu0 %5602
    %v5606 = vsel %vm2120, %v5575, 0
    %5608 = vmatpush.msra.mxu0 0.0
    %5609 = vmatpush.msra.mxu0 0.0
    %5610 = vmatpush.msra.mxu0 0.0
    %5611 = vmatpush.msra.mxu0 0.0
    %5612 = vmatpush.msra.mxu0 0.0
    %5613 = vmatpush.msra.mxu0 0.0
    %5614 = vmatpush.msra.mxu0 0.0
    %5615 = vmatpush.msra.mxu0 0.0
    %5616 = vmatpush.msra.mxu0 0.0
    %5617 = vmatpush.msra.mxu0 0.0
    %5618 = vmatpush.msra.mxu0 0.0
    %5619 = vmatpush.msra.mxu0 0.0
    %5620 = vmatpush.msra.mxu0 0.0
    %5621 = vmatpush.msra.mxu0 0.0
    %5622 = vmatpush.msra.mxu0 0.0
    %5623 = vmatpush.msra.mxu0 %v5603
    %5624 = vmatmul.f32.gmra.mxu0 %v5606
    %v5625 = vpop.f32.mrf.mxu0
    %v5626 = vadd.f32 0.0, %v5625
    %5627 = vdwg.mxu0
    %5628 = vrot.lane.b32.xlu0 %v5114, 64
    %v5629 = vpop.permute.xlu0 %5628
    %5630 = vrot.lane.b32.xlu0 %v5086, 64
    %v5631 = vpop.permute.xlu0 %5630
    %v5632 = vsel %vm2067, %v5629, 0
    %v5634 = vsel %vm2067, %v5631, 0
    %5636 = vmatpush.xpose.msra.mxu0 0.0
    %5637 = vmatpush.xpose.msra.mxu0 0.0
    %5638 = vmatpush.xpose.msra.mxu0 0.0
    %5639 = vmatpush.xpose.msra.mxu0 0.0
    %5640 = vmatpush.xpose.msra.mxu0 0.0
    %5641 = vmatpush.xpose.msra.mxu0 0.0
    %5642 = vmatpush.xpose.msra.mxu0 0.0
    %5643 = vmatpush.xpose.msra.mxu0 0.0
    %5644 = vmatpush.xpose.msra.mxu0 0.0
    %5645 = vmatpush.xpose.msra.mxu0 0.0
    %5646 = vmatpush.xpose.msra.mxu0 0.0
    %5647 = vmatpush.xpose.msra.mxu0 0.0
    %5648 = vmatpush.xpose.msra.mxu0 0.0
    %5649 = vmatpush.xpose.msra.mxu0 0.0
    %5650 = vmatpush.xpose.msra.mxu0 0.0
    %5651 = vmatpush.xpose.msra.mxu0 %v5634
    %5652 = vmatmul.f32.gmra.mxu0 %v5632
    %v5653 = vpop.f32.mrf.mxu0
    %v5654 = vadd.f32 0.0, %v5653
    %5655 = vdwg.mxu0
    %5656 = vrot.lane.b32.xlu0 %v5115, 64
    %v5657 = vpop.permute.xlu0 %5656
    %5658 = vrot.lane.b32.xlu0 %v5089, 64
    %v5659 = vpop.permute.xlu0 %5658
    %v5660 = vsel %vm2067, %v5657, 0
    %v5662 = vsel %vm2067, %v5659, 0
    %5664 = vmatpush.xpose.msra.mxu0 0.0
    %5665 = vmatpush.xpose.msra.mxu0 0.0
    %5666 = vmatpush.xpose.msra.mxu0 0.0
    %5667 = vmatpush.xpose.msra.mxu0 0.0
    %5668 = vmatpush.xpose.msra.mxu0 0.0
    %5669 = vmatpush.xpose.msra.mxu0 0.0
    %5670 = vmatpush.xpose.msra.mxu0 0.0
    %5671 = vmatpush.xpose.msra.mxu0 0.0
    %5672 = vmatpush.xpose.msra.mxu0 0.0
    %5673 = vmatpush.xpose.msra.mxu0 0.0
    %5674 = vmatpush.xpose.msra.mxu0 0.0
    %5675 = vmatpush.xpose.msra.mxu0 0.0
    %5676 = vmatpush.xpose.msra.mxu0 0.0
    %5677 = vmatpush.xpose.msra.mxu0 0.0
    %5678 = vmatpush.xpose.msra.mxu0 0.0
    %5679 = vmatpush.xpose.msra.mxu0 %v5662
    %5680 = vmatmul.f32.gmra.mxu0 %v5660
    %v5681 = vpop.f32.mrf.mxu0
    %v5682 = vadd.f32 0.0, %v5681
    %5683 = vdwg.mxu0
    %v5684 = vsel %vm2120, %v5654, -inf
    %5685 = vmax.xlane.f32.xlu0 %v5684
    %v5686 = vpop.xlane.xlu0 %5685
    %v5687 = vsel %vm2120, %v5682, -inf
    %5688 = vmax.xlane.f32.xlu0 %v5687
    %v5689 = vpop.xlane.xlu0 %5688
    %v5690 = vsub.f32 %v5654, %v5686
    %v5691 = vsub.f32 %v5682, %v5689
    %v5692 = vmul.f32 %v5690, 1.442695
    %v5693 = vpow.pop %v5692
    %v5694 = vmul.f32 %v5691, 1.442695
    %v5695 = vpow.pop %v5694
    %v5696 = vsel %vm2120, %v5693, 0.0
    %5697 = vadd.xlane.f32.xlu0 %v5696
    %v5698 = vpop.xlane.xlu0 %5697
    %v5699 = vsel %vm2120, %v5695, 0.0
    %5700 = vadd.xlane.f32.xlu0 %v5699
    %v5701 = vpop.xlane.xlu0 %5700
    %v5702 = vrcp.pop %v5698
    %v5703 = vrcp.pop %v5701
    %v5704 = vmul.f32 %v5693, %v5702
    %v5705 = vmul.f32 %v5695, %v5703
    %5706 = vrot.lane.b32.xlu0 %v5109, 64
    %v5707 = vpop.permute.xlu0 %5706
    %v5710 = vsel %vm2120, %v5704, 0
    %5712 = vmatpush.msra.mxu0 0.0
    %5713 = vmatpush.msra.mxu0 0.0
    %5714 = vmatpush.msra.mxu0 0.0
    %5715 = vmatpush.msra.mxu0 0.0
    %5716 = vmatpush.msra.mxu0 0.0
    %5717 = vmatpush.msra.mxu0 0.0
    %5718 = vmatpush.msra.mxu0 0.0
    %5719 = vmatpush.msra.mxu0 0.0
    %5720 = vmatpush.msra.mxu0 0.0
    %5721 = vmatpush.msra.mxu0 0.0
    %5722 = vmatpush.msra.mxu0 0.0
    %5723 = vmatpush.msra.mxu0 0.0
    %5724 = vmatpush.msra.mxu0 0.0
    %5725 = vmatpush.msra.mxu0 0.0
    %5726 = vmatpush.msra.mxu0 0.0
    %5727 = vmatpush.msra.mxu0 %v5707
    %5728 = vmatmul.f32.gmra.mxu0 %v5710
    %v5729 = vpop.f32.mrf.mxu0
    %v5730 = vadd.f32 0.0, %v5729
    %5731 = vdwg.mxu0
    %5732 = vrot.lane.b32.xlu0 %v5112, 64
    %v5733 = vpop.permute.xlu0 %5732
    %v5736 = vsel %vm2120, %v5705, 0
    %5738 = vmatpush.msra.mxu0 0.0
    %5739 = vmatpush.msra.mxu0 0.0
    %5740 = vmatpush.msra.mxu0 0.0
    %5741 = vmatpush.msra.mxu0 0.0
    %5742 = vmatpush.msra.mxu0 0.0
    %5743 = vmatpush.msra.mxu0 0.0
    %5744 = vmatpush.msra.mxu0 0.0
    %5745 = vmatpush.msra.mxu0 0.0
    %5746 = vmatpush.msra.mxu0 0.0
    %5747 = vmatpush.msra.mxu0 0.0
    %5748 = vmatpush.msra.mxu0 0.0
    %5749 = vmatpush.msra.mxu0 0.0
    %5750 = vmatpush.msra.mxu0 0.0
    %5751 = vmatpush.msra.mxu0 0.0
    %5752 = vmatpush.msra.mxu0 0.0
    %5753 = vmatpush.msra.mxu0 %v5733
    %5754 = vmatmul.f32.gmra.mxu0 %v5736
    %v5755 = vpop.f32.mrf.mxu0
    %v5756 = vadd.f32 0.0, %v5755
    %5757 = vdwg.mxu0
    %5758 = vrot.lane.b32.xlu0 %v5114, 48
    %v5759 = vpop.permute.xlu0 %5758
    %5760 = vrot.lane.b32.xlu0 %v5086, 48
    %v5761 = vpop.permute.xlu0 %5760
    %v5762 = vsel %vm2067, %v5759, 0
    %v5764 = vsel %vm2067, %v5761, 0
    %5766 = vmatpush.xpose.msra.mxu0 0.0
    %5767 = vmatpush.xpose.msra.mxu0 0.0
    %5768 = vmatpush.xpose.msra.mxu0 0.0
    %5769 = vmatpush.xpose.msra.mxu0 0.0
    %5770 = vmatpush.xpose.msra.mxu0 0.0
    %5771 = vmatpush.xpose.msra.mxu0 0.0
    %5772 = vmatpush.xpose.msra.mxu0 0.0
    %5773 = vmatpush.xpose.msra.mxu0 0.0
    %5774 = vmatpush.xpose.msra.mxu0 0.0
    %5775 = vmatpush.xpose.msra.mxu0 0.0
    %5776 = vmatpush.xpose.msra.mxu0 0.0
    %5777 = vmatpush.xpose.msra.mxu0 0.0
    %5778 = vmatpush.xpose.msra.mxu0 0.0
    %5779 = vmatpush.xpose.msra.mxu0 0.0
    %5780 = vmatpush.xpose.msra.mxu0 0.0
    %5781 = vmatpush.xpose.msra.mxu0 %v5764
    %5782 = vmatmul.f32.gmra.mxu0 %v5762
    %v5783 = vpop.f32.mrf.mxu0
    %v5784 = vadd.f32 0.0, %v5783
    %5785 = vdwg.mxu0
    %5786 = vrot.lane.b32.xlu0 %v5115, 48
    %v5787 = vpop.permute.xlu0 %5786
    %5788 = vrot.lane.b32.xlu0 %v5089, 48
    %v5789 = vpop.permute.xlu0 %5788
    %v5790 = vsel %vm2067, %v5787, 0
    %v5792 = vsel %vm2067, %v5789, 0
    %5794 = vmatpush.xpose.msra.mxu0 0.0
    %5795 = vmatpush.xpose.msra.mxu0 0.0
    %5796 = vmatpush.xpose.msra.mxu0 0.0
    %5797 = vmatpush.xpose.msra.mxu0 0.0
    %5798 = vmatpush.xpose.msra.mxu0 0.0
    %5799 = vmatpush.xpose.msra.mxu0 0.0
    %5800 = vmatpush.xpose.msra.mxu0 0.0
    %5801 = vmatpush.xpose.msra.mxu0 0.0
    %5802 = vmatpush.xpose.msra.mxu0 0.0
    %5803 = vmatpush.xpose.msra.mxu0 0.0
    %5804 = vmatpush.xpose.msra.mxu0 0.0
    %5805 = vmatpush.xpose.msra.mxu0 0.0
    %5806 = vmatpush.xpose.msra.mxu0 0.0
    %5807 = vmatpush.xpose.msra.mxu0 0.0
    %5808 = vmatpush.xpose.msra.mxu0 0.0
    %5809 = vmatpush.xpose.msra.mxu0 %v5792
    %5810 = vmatmul.f32.gmra.mxu0 %v5790
    %v5811 = vpop.f32.mrf.mxu0
    %v5812 = vadd.f32 0.0, %v5811
    %5813 = vdwg.mxu0
    %v5814 = vsel %vm2120, %v5784, -inf
    %5815 = vmax.xlane.f32.xlu0 %v5814
    %v5816 = vpop.xlane.xlu0 %5815
    %v5817 = vsel %vm2120, %v5812, -inf
    %5818 = vmax.xlane.f32.xlu0 %v5817
    %v5819 = vpop.xlane.xlu0 %5818
    %v5820 = vsub.f32 %v5784, %v5816
    %v5821 = vsub.f32 %v5812, %v5819
    %v5822 = vmul.f32 %v5820, 1.442695
    %v5823 = vpow.pop %v5822
    %v5824 = vmul.f32 %v5821, 1.442695
    %v5825 = vpow.pop %v5824
    %v5826 = vsel %vm2120, %v5823, 0.0
    %5827 = vadd.xlane.f32.xlu0 %v5826
    %v5828 = vpop.xlane.xlu0 %5827
    %v5829 = vsel %vm2120, %v5825, 0.0
    %5830 = vadd.xlane.f32.xlu0 %v5829
    %v5831 = vpop.xlane.xlu0 %5830
    %v5832 = vrcp.pop %v5828
    %v5833 = vrcp.pop %v5831
    %v5834 = vmul.f32 %v5823, %v5832
    %v5835 = vmul.f32 %v5825, %v5833
    %5836 = vrot.lane.b32.xlu0 %v5109, 48
    %v5837 = vpop.permute.xlu0 %5836
    %v5840 = vsel %vm2120, %v5834, 0
    %5842 = vmatpush.msra.mxu0 0.0
    %5843 = vmatpush.msra.mxu0 0.0
    %5844 = vmatpush.msra.mxu0 0.0
    %5845 = vmatpush.msra.mxu0 0.0
    %5846 = vmatpush.msra.mxu0 0.0
    %5847 = vmatpush.msra.mxu0 0.0
    %5848 = vmatpush.msra.mxu0 0.0
    %5849 = vmatpush.msra.mxu0 0.0
    %5850 = vmatpush.msra.mxu0 0.0
    %5851 = vmatpush.msra.mxu0 0.0
    %5852 = vmatpush.msra.mxu0 0.0
    %5853 = vmatpush.msra.mxu0 0.0
    %5854 = vmatpush.msra.mxu0 0.0
    %5855 = vmatpush.msra.mxu0 0.0
    %5856 = vmatpush.msra.mxu0 0.0
    %5857 = vmatpush.msra.mxu0 %v5837
    %5858 = vmatmul.f32.gmra.mxu0 %v5840
    %v5859 = vpop.f32.mrf.mxu0
    %v5860 = vadd.f32 0.0, %v5859
    %5861 = vdwg.mxu0
    %5862 = vrot.lane.b32.xlu0 %v5112, 48
    %v5863 = vpop.permute.xlu0 %5862
    %v5866 = vsel %vm2120, %v5835, 0
    %5868 = vmatpush.msra.mxu0 0.0
    %5869 = vmatpush.msra.mxu0 0.0
    %5870 = vmatpush.msra.mxu0 0.0
    %5871 = vmatpush.msra.mxu0 0.0
    %5872 = vmatpush.msra.mxu0 0.0
    %5873 = vmatpush.msra.mxu0 0.0
    %5874 = vmatpush.msra.mxu0 0.0
    %5875 = vmatpush.msra.mxu0 0.0
    %5876 = vmatpush.msra.mxu0 0.0
    %5877 = vmatpush.msra.mxu0 0.0
    %5878 = vmatpush.msra.mxu0 0.0
    %5879 = vmatpush.msra.mxu0 0.0
    %5880 = vmatpush.msra.mxu0 0.0
    %5881 = vmatpush.msra.mxu0 0.0
    %5882 = vmatpush.msra.mxu0 0.0
    %5883 = vmatpush.msra.mxu0 %v5863
    %5884 = vmatmul.f32.gmra.mxu0 %v5866
    %v5885 = vpop.f32.mrf.mxu0
    %v5886 = vadd.f32 0.0, %v5885
    %5887 = vdwg.mxu0
    %5888 = vrot.lane.b32.xlu0 %v5114, 32
    %v5889 = vpop.permute.xlu0 %5888
    %5890 = vrot.lane.b32.xlu0 %v5086, 32
    %v5891 = vpop.permute.xlu0 %5890
    %v5892 = vsel %vm2067, %v5889, 0
    %v5894 = vsel %vm2067, %v5891, 0
    %5896 = vmatpush.xpose.msra.mxu0 0.0
    %5897 = vmatpush.xpose.msra.mxu0 0.0
    %5898 = vmatpush.xpose.msra.mxu0 0.0
    %5899 = vmatpush.xpose.msra.mxu0 0.0
    %5900 = vmatpush.xpose.msra.mxu0 0.0
    %5901 = vmatpush.xpose.msra.mxu0 0.0
    %5902 = vmatpush.xpose.msra.mxu0 0.0
    %5903 = vmatpush.xpose.msra.mxu0 0.0
    %5904 = vmatpush.xpose.msra.mxu0 0.0
    %5905 = vmatpush.xpose.msra.mxu0 0.0
    %5906 = vmatpush.xpose.msra.mxu0 0.0
    %5907 = vmatpush.xpose.msra.mxu0 0.0
    %5908 = vmatpush.xpose.msra.mxu0 0.0
    %5909 = vmatpush.xpose.msra.mxu0 0.0
    %5910 = vmatpush.xpose.msra.mxu0 0.0
    %5911 = vmatpush.xpose.msra.mxu0 %v5894
    %5912 = vmatmul.f32.gmra.mxu0 %v5892
    %v5913 = vpop.f32.mrf.mxu0
    %v5914 = vadd.f32 0.0, %v5913
    %5915 = vdwg.mxu0
    %5916 = vrot.lane.b32.xlu0 %v5115, 32
    %v5917 = vpop.permute.xlu0 %5916
    %5918 = vrot.lane.b32.xlu0 %v5089, 32
    %v5919 = vpop.permute.xlu0 %5918
    %v5920 = vsel %vm2067, %v5917, 0
    %v5922 = vsel %vm2067, %v5919, 0
    %5924 = vmatpush.xpose.msra.mxu0 0.0
    %5925 = vmatpush.xpose.msra.mxu0 0.0
    %5926 = vmatpush.xpose.msra.mxu0 0.0
    %5927 = vmatpush.xpose.msra.mxu0 0.0
    %5928 = vmatpush.xpose.msra.mxu0 0.0
    %5929 = vmatpush.xpose.msra.mxu0 0.0
    %5930 = vmatpush.xpose.msra.mxu0 0.0
    %5931 = vmatpush.xpose.msra.mxu0 0.0
    %5932 = vmatpush.xpose.msra.mxu0 0.0
    %5933 = vmatpush.xpose.msra.mxu0 0.0
    %5934 = vmatpush.xpose.msra.mxu0 0.0
    %5935 = vmatpush.xpose.msra.mxu0 0.0
    %5936 = vmatpush.xpose.msra.mxu0 0.0
    %5937 = vmatpush.xpose.msra.mxu0 0.0
    %5938 = vmatpush.xpose.msra.mxu0 0.0
    %5939 = vmatpush.xpose.msra.mxu0 %v5922
    %5940 = vmatmul.f32.gmra.mxu0 %v5920
    %v5941 = vpop.f32.mrf.mxu0
    %v5942 = vadd.f32 0.0, %v5941
    %5943 = vdwg.mxu0
    %v5944 = vsel %vm2120, %v5914, -inf
    %5945 = vmax.xlane.f32.xlu0 %v5944
    %v5946 = vpop.xlane.xlu0 %5945
    %v5947 = vsel %vm2120, %v5942, -inf
    %5948 = vmax.xlane.f32.xlu0 %v5947
    %v5949 = vpop.xlane.xlu0 %5948
    %v5950 = vsub.f32 %v5914, %v5946
    %v5951 = vsub.f32 %v5942, %v5949
    %v5952 = vmul.f32 %v5950, 1.442695
    %v5953 = vpow.pop %v5952
    %v5954 = vmul.f32 %v5951, 1.442695
    %v5955 = vpow.pop %v5954
    %v5956 = vsel %vm2120, %v5953, 0.0
    %5957 = vadd.xlane.f32.xlu0 %v5956
    %v5958 = vpop.xlane.xlu0 %5957
    %v5959 = vsel %vm2120, %v5955, 0.0
    %5960 = vadd.xlane.f32.xlu0 %v5959
    %v5961 = vpop.xlane.xlu0 %5960
    %v5962 = vrcp.pop %v5958
    %v5963 = vrcp.pop %v5961
    %v5964 = vmul.f32 %v5953, %v5962
    %v5965 = vmul.f32 %v5955, %v5963
    %5966 = vrot.lane.b32.xlu0 %v5109, 32
    %v5967 = vpop.permute.xlu0 %5966
    %v5970 = vsel %vm2120, %v5964, 0
    %5972 = vmatpush.msra.mxu0 0.0
    %5973 = vmatpush.msra.mxu0 0.0
    %5974 = vmatpush.msra.mxu0 0.0
    %5975 = vmatpush.msra.mxu0 0.0
    %5976 = vmatpush.msra.mxu0 0.0
    %5977 = vmatpush.msra.mxu0 0.0
    %5978 = vmatpush.msra.mxu0 0.0
    %5979 = vmatpush.msra.mxu0 0.0
    %5980 = vmatpush.msra.mxu0 0.0
    %5981 = vmatpush.msra.mxu0 0.0
    %5982 = vmatpush.msra.mxu0 0.0
    %5983 = vmatpush.msra.mxu0 0.0
    %5984 = vmatpush.msra.mxu0 0.0
    %5985 = vmatpush.msra.mxu0 0.0
    %5986 = vmatpush.msra.mxu0 0.0
    %5987 = vmatpush.msra.mxu0 %v5967
    %5988 = vmatmul.f32.gmra.mxu0 %v5970
    %v5989 = vpop.f32.mrf.mxu0
    %v5990 = vadd.f32 0.0, %v5989
    %5991 = vdwg.mxu0
    %5992 = vrot.lane.b32.xlu0 %v5112, 32
    %v5993 = vpop.permute.xlu0 %5992
    %v5996 = vsel %vm2120, %v5965, 0
    %5998 = vmatpush.msra.mxu0 0.0
    %5999 = vmatpush.msra.mxu0 0.0
    %6000 = vmatpush.msra.mxu0 0.0
    %6001 = vmatpush.msra.mxu0 0.0
    %6002 = vmatpush.msra.mxu0 0.0
    %6003 = vmatpush.msra.mxu0 0.0
    %6004 = vmatpush.msra.mxu0 0.0
    %6005 = vmatpush.msra.mxu0 0.0
    %6006 = vmatpush.msra.mxu0 0.0
    %6007 = vmatpush.msra.mxu0 0.0
    %6008 = vmatpush.msra.mxu0 0.0
    %6009 = vmatpush.msra.mxu0 0.0
    %6010 = vmatpush.msra.mxu0 0.0
    %6011 = vmatpush.msra.mxu0 0.0
    %6012 = vmatpush.msra.mxu0 0.0
    %6013 = vmatpush.msra.mxu0 %v5993
    %6014 = vmatmul.f32.gmra.mxu0 %v5996
    %v6015 = vpop.f32.mrf.mxu0
    %v6016 = vadd.f32 0.0, %v6015
    %6017 = vdwg.mxu0
    %6018 = vrot.lane.b32.xlu0 %v5114, 16
    %v6019 = vpop.permute.xlu0 %6018
    %6020 = vrot.lane.b32.xlu0 %v5086, 16
    %v6021 = vpop.permute.xlu0 %6020
    %v6022 = vsel %vm2067, %v6019, 0
    %v6024 = vsel %vm2067, %v6021, 0
    %6026 = vmatpush.xpose.msra.mxu0 0.0
    %6027 = vmatpush.xpose.msra.mxu0 0.0
    %6028 = vmatpush.xpose.msra.mxu0 0.0
    %6029 = vmatpush.xpose.msra.mxu0 0.0
    %6030 = vmatpush.xpose.msra.mxu0 0.0
    %6031 = vmatpush.xpose.msra.mxu0 0.0
    %6032 = vmatpush.xpose.msra.mxu0 0.0
    %6033 = vmatpush.xpose.msra.mxu0 0.0
    %6034 = vmatpush.xpose.msra.mxu0 0.0
    %6035 = vmatpush.xpose.msra.mxu0 0.0
    %6036 = vmatpush.xpose.msra.mxu0 0.0
    %6037 = vmatpush.xpose.msra.mxu0 0.0
    %6038 = vmatpush.xpose.msra.mxu0 0.0
    %6039 = vmatpush.xpose.msra.mxu0 0.0
    %6040 = vmatpush.xpose.msra.mxu0 0.0
    %6041 = vmatpush.xpose.msra.mxu0 %v6024
    %6042 = vmatmul.f32.gmra.mxu0 %v6022
    %v6043 = vpop.f32.mrf.mxu0
    %v6044 = vadd.f32 0.0, %v6043
    %6045 = vdwg.mxu0
    %6046 = vrot.lane.b32.xlu0 %v5115, 16
    %v6047 = vpop.permute.xlu0 %6046
    %6048 = vrot.lane.b32.xlu0 %v5089, 16
    %v6049 = vpop.permute.xlu0 %6048
    %v6050 = vsel %vm2067, %v6047, 0
    %v6052 = vsel %vm2067, %v6049, 0
    %6054 = vmatpush.xpose.msra.mxu0 0.0
    %6055 = vmatpush.xpose.msra.mxu0 0.0
    %6056 = vmatpush.xpose.msra.mxu0 0.0
    %6057 = vmatpush.xpose.msra.mxu0 0.0
    %6058 = vmatpush.xpose.msra.mxu0 0.0
    %6059 = vmatpush.xpose.msra.mxu0 0.0
    %6060 = vmatpush.xpose.msra.mxu0 0.0
    %6061 = vmatpush.xpose.msra.mxu0 0.0
    %6062 = vmatpush.xpose.msra.mxu0 0.0
    %6063 = vmatpush.xpose.msra.mxu0 0.0
    %6064 = vmatpush.xpose.msra.mxu0 0.0
    %6065 = vmatpush.xpose.msra.mxu0 0.0
    %6066 = vmatpush.xpose.msra.mxu0 0.0
    %6067 = vmatpush.xpose.msra.mxu0 0.0
    %6068 = vmatpush.xpose.msra.mxu0 0.0
    %6069 = vmatpush.xpose.msra.mxu0 %v6052
    %6070 = vmatmul.f32.gmra.mxu0 %v6050
    %v6071 = vpop.f32.mrf.mxu0
    %v6072 = vadd.f32 0.0, %v6071
    %6073 = vdwg.mxu0
    %v6074 = vsel %vm2120, %v6044, -inf
    %6075 = vmax.xlane.f32.xlu0 %v6074
    %v6076 = vpop.xlane.xlu0 %6075
    %v6077 = vsel %vm2120, %v6072, -inf
    %6078 = vmax.xlane.f32.xlu0 %v6077
    %v6079 = vpop.xlane.xlu0 %6078
    %v6080 = vsub.f32 %v6044, %v6076
    %v6081 = vsub.f32 %v6072, %v6079
    %v6082 = vmul.f32 %v6080, 1.442695
    %v6083 = vpow.pop %v6082
    %v6084 = vmul.f32 %v6081, 1.442695
    %v6085 = vpow.pop %v6084
    %v6086 = vsel %vm2120, %v6083, 0.0
    %6087 = vadd.xlane.f32.xlu0 %v6086
    %v6088 = vpop.xlane.xlu0 %6087
    %v6089 = vsel %vm2120, %v6085, 0.0
    %6090 = vadd.xlane.f32.xlu0 %v6089
    %v6091 = vpop.xlane.xlu0 %6090
    %v6092 = vrcp.pop %v6088
    %v6093 = vrcp.pop %v6091
    %v6094 = vmul.f32 %v6083, %v6092
    %v6095 = vmul.f32 %v6085, %v6093
    %6096 = vrot.lane.b32.xlu0 %v5109, 16
    %v6097 = vpop.permute.xlu0 %6096
    %v6100 = vsel %vm2120, %v6094, 0
    %6102 = vmatpush.msra.mxu0 0.0
    %6103 = vmatpush.msra.mxu0 0.0
    %6104 = vmatpush.msra.mxu0 0.0
    %6105 = vmatpush.msra.mxu0 0.0
    %6106 = vmatpush.msra.mxu0 0.0
    %6107 = vmatpush.msra.mxu0 0.0
    %6108 = vmatpush.msra.mxu0 0.0
    %6109 = vmatpush.msra.mxu0 0.0
    %6110 = vmatpush.msra.mxu0 0.0
    %6111 = vmatpush.msra.mxu0 0.0
    %6112 = vmatpush.msra.mxu0 0.0
    %6113 = vmatpush.msra.mxu0 0.0
    %6114 = vmatpush.msra.mxu0 0.0
    %6115 = vmatpush.msra.mxu0 0.0
    %6116 = vmatpush.msra.mxu0 0.0
    %6117 = vmatpush.msra.mxu0 %v6097
    %6118 = vmatmul.f32.gmra.mxu0 %v6100
    %v6119 = vpop.f32.mrf.mxu0
    %v6120 = vadd.f32 0.0, %v6119
    %6121 = vdwg.mxu0
    %6122 = vrot.lane.b32.xlu0 %v5112, 16
    %v6123 = vpop.permute.xlu0 %6122
    %v6126 = vsel %vm2120, %v6095, 0
    %6128 = vmatpush.msra.mxu0 0.0
    %6129 = vmatpush.msra.mxu0 0.0
    %6130 = vmatpush.msra.mxu0 0.0
    %6131 = vmatpush.msra.mxu0 0.0
    %6132 = vmatpush.msra.mxu0 0.0
    %6133 = vmatpush.msra.mxu0 0.0
    %6134 = vmatpush.msra.mxu0 0.0
    %6135 = vmatpush.msra.mxu0 0.0
    %6136 = vmatpush.msra.mxu0 0.0
    %6137 = vmatpush.msra.mxu0 0.0
    %6138 = vmatpush.msra.mxu0 0.0
    %6139 = vmatpush.msra.mxu0 0.0
    %6140 = vmatpush.msra.mxu0 0.0
    %6141 = vmatpush.msra.mxu0 0.0
    %6142 = vmatpush.msra.mxu0 0.0
    %6143 = vmatpush.msra.mxu0 %v6123
    %6144 = vmatmul.f32.gmra.mxu0 %v6126
    %v6145 = vpop.f32.mrf.mxu0
    %v6146 = vadd.f32 0.0, %v6145
    %6147 = vdwg.mxu0
    %6150 = vrot.lane.b32.xlu0 %v5339, 16
    %v6151 = vpop.permute.xlu0 %6150
    %6152 = vrot.lane.b32.xlu0 %v5366, 16
    %v6153 = vpop.permute.xlu0 %6152
    %6158 = vrot.lane.b32.xlu0 %v5470, 32
    %v6159 = vpop.permute.xlu0 %6158
    %6160 = vrot.lane.b32.xlu0 %v5496, 32
    %v6161 = vpop.permute.xlu0 %6160
    %6166 = vrot.lane.b32.xlu0 %v5600, 48
    %v6167 = vpop.permute.xlu0 %6166
    %6168 = vrot.lane.b32.xlu0 %v5626, 48
    %v6169 = vpop.permute.xlu0 %6168
    %6174 = vrot.lane.b32.xlu0 %v5730, 64
    %v6175 = vpop.permute.xlu0 %6174
    %6176 = vrot.lane.b32.xlu0 %v5756, 64
    %v6177 = vpop.permute.xlu0 %6176
    %6182 = vrot.lane.b32.xlu0 %v5860, 80
    %v6183 = vpop.permute.xlu0 %6182
    %6184 = vrot.lane.b32.xlu0 %v5886, 80
    %v6185 = vpop.permute.xlu0 %6184
    %6190 = vrot.lane.b32.xlu0 %v5990, 96
    %v6191 = vpop.permute.xlu0 %6190
    %6192 = vrot.lane.b32.xlu0 %v6016, 96
    %v6193 = vpop.permute.xlu0 %6192
    %6198 = vrot.lane.b32.xlu0 %v6120, 112
    %v6199 = vpop.permute.xlu0 %6198
    %6200 = vrot.lane.b32.xlu0 %v6146, 112
    %v6201 = vpop.permute.xlu0 %6200
    %v6204 = vsel %vm2067, %v5211, %v6151
    %v6205 = vsel %vm2067, %v5234, %v6153
    %v6206 = vsel %vm3159, %v6204, %v6159
    %v6207 = vsel %vm3159, %v6205, %v6161
    %v6208 = vsel %vm3162, %v6206, %v6167
    %v6209 = vsel %vm3162, %v6207, %v6169
    %v6210 = vsel %vm3165, %v6208, %v6175
    %v6211 = vsel %vm3165, %v6209, %v6177
    %v6212 = vsel %vm3168, %v6210, %v6183
    %v6213 = vsel %vm3168, %v6211, %v6185
    %v6214 = vsel %vm3171, %v6212, %v6191
    %v6215 = vsel %vm3171, %v6213, %v6193
    %v6216 = vsel %vm3174, %v6214, %v6199
    %v6217 = vsel %vm3174, %v6215, %v6201
    %v6219 = vperm.slane %v3430, 0
    %6221 = vmatpush.msra.mxu0 %v3428
    %6222 = vmatpush.msra.mxu0 %v3427
    %6223 = vmatpush.msra.mxu0 %v3426
    %6224 = vmatpush.msra.mxu0 %v3425
    %6225 = vmatpush.msra.mxu0 %v3424
    %6226 = vmatpush.msra.mxu0 %v3423
    %6227 = vmatpush.msra.mxu0 %v3422
    %6228 = vmatpush.msra.mxu0 %v3421
    %6229 = vmatpush.msra.mxu0 %v3420
    %6230 = vmatpush.msra.mxu0 %v3419
    %6231 = vmatpush.msra.mxu0 %v3418
    %6232 = vmatpush.msra.mxu0 %v3417
    %6233 = vmatpush.msra.mxu0 %v3416
    %6234 = vmatpush.msra.mxu0 %v3415
    %6235 = vmatpush.msra.mxu0 %v3414
    %6236 = vmatpush.msra.mxu0 %v3413
    %6237 = vmatmul.f32.gmra.mxu0 %v6216
    %v6238 = vpop.f32.mrf.mxu0
    %v6239 = vadd.f32 %v6219, %v6238
    %6240 = vmatmul.f32.gmra.mxu0 %v6217
    %v6241 = vpop.f32.mrf.mxu0
    %v6242 = vadd.f32 %v6219, %v6241
    %6243 = vdwg.mxu0
    %v6244 = vadd.f32 %v5036, %v6239
    %v6245 = vadd.f32 %v5037, %v6242
    %6246 = vadd.xlane.f32.xlu0 %v6244
    %v6247 = vpop.xlane.xlu0 %6246
    %6248 = vadd.xlane.f32.xlu0 %v6245
    %v6249 = vpop.xlane.xlu0 %6248
    %v6250 = vmul.f32 %v6247, %v1942
    %v6251 = vmul.f32 %v6249, %v1942
    %v6252 = vsub.f32 %v6244, %v6250
    %v6253 = vsub.f32 %v6245, %v6251
    %v6254 = vmul.f32 %v6252, %v6252
    %v6255 = vmul.f32 %v6253, %v6253
    %6256 = vadd.xlane.f32.xlu0 %v6254
    %v6257 = vpop.xlane.xlu0 %6256
    %6258 = vadd.xlane.f32.xlu0 %v6255
    %v6259 = vpop.xlane.xlu0 %6258
    %v6260 = vmul.f32 %v6257, %v1942
    %v6261 = vmul.f32 %v6259, %v1942
    %v6262 = vadd.f32 %v6260, 1e-12
    %v6263 = vadd.f32 %v6261, 1e-12
    %v6264 = vrsqrt.pop %v6262
    %v6265 = vmul.f32 %v6264, %v6262
    %v6266 = vmul.f32 %v6265, %v6264
    %v6267 = vmul.f32 0.5, %v6266
    %v6268 = vsub.f32 1.5, %v6267
    %v6269 = vmul.f32 %v6264, %v6268
    %vm6270 = vweird.f32 %v6262
    %vm6271 = vweird.f32 %v6264
    %vm6272 = vmor %vm6270, %vm6271
    %v6273 = vsel %vm6272, %v6264, %v6269
    %v6274 = vrsqrt.pop %v6263
    %v6275 = vmul.f32 %v6274, %v6263
    %v6276 = vmul.f32 %v6275, %v6274
    %v6277 = vmul.f32 0.5, %v6276
    %v6278 = vsub.f32 1.5, %v6277
    %v6279 = vmul.f32 %v6274, %v6278
    %vm6280 = vweird.f32 %v6263
    %vm6281 = vweird.f32 %v6274
    %vm6282 = vmor %vm6280, %vm6281
    %v6283 = vsel %vm6282, %v6274, %v6279
    %v6284 = vmul.f32 %v6252, %v6273
    %v6285 = vmul.f32 %v6253, %v6283
    %v6287 = vperm.slane %v3432, 0
    %v6289 = vmul.f32 %v6287, %v6284
    %v6290 = vmul.f32 %v6287, %v6285
    %v6292 = vperm.slane %v3434, 0
    %v6294 = vadd.f32 %v6289, %v6292
    %v6295 = vadd.f32 %v6290, %v6292
    %s6296 = scalar_lea.vmem [#allocation5], 768
    %v6297 = vld [vmem:[%s6296] sm:$0xff]
    %v6298 = vld [vmem:[%s6296 + $0x8] sm:$0xff]
    %v6299 = vld [vmem:[%s6296 + $0x10] sm:$0xff]
    %v6300 = vld [vmem:[%s6296 + $0x18] sm:$0xff]
    %v6301 = vld [vmem:[%s6296 + $0x20] sm:$0xff]
    %v6302 = vld [vmem:[%s6296 + $0x28] sm:$0xff]
    %v6303 = vld [vmem:[%s6296 + $0x30] sm:$0xff]
    %v6304 = vld [vmem:[%s6296 + $0x38] sm:$0xff]
    %v6305 = vld [vmem:[%s6296 + $0x40] sm:$0xff]
    %v6306 = vld [vmem:[%s6296 + $0x48] sm:$0xff]
    %v6307 = vld [vmem:[%s6296 + $0x50] sm:$0xff]
    %v6308 = vld [vmem:[%s6296 + $0x58] sm:$0xff]
    %v6309 = vld [vmem:[%s6296 + $0x60] sm:$0xff]
    %v6310 = vld [vmem:[%s6296 + $0x68] sm:$0xff]
    %v6311 = vld [vmem:[%s6296 + $0x70] sm:$0xff]
    %v6312 = vld [vmem:[%s6296 + $0x78] sm:$0xff]
    %v6313 = vld [vmem:[%s6296 + $0x80] sm:$0xff]
    %v6314 = vld [vmem:[%s6296 + $0x88] sm:$0xff]
    %v6315 = vld [vmem:[%s6296 + $0x90] sm:$0xff]
    %v6316 = vld [vmem:[%s6296 + $0x98] sm:$0xff]
    %v6317 = vld [vmem:[%s6296 + $0xa0] sm:$0xff]
    %v6318 = vld [vmem:[%s6296 + $0xa8] sm:$0xff]
    %v6319 = vld [vmem:[%s6296 + $0xb0] sm:$0xff]
    %v6320 = vld [vmem:[%s6296 + $0xb8] sm:$0xff]
    %v6321 = vld [vmem:[%s6296 + $0xc0] sm:$0xff]
    %v6322 = vld [vmem:[%s6296 + $0xc8] sm:$0xff]
    %v6323 = vld [vmem:[%s6296 + $0xd0] sm:$0xff]
    %v6324 = vld [vmem:[%s6296 + $0xd8] sm:$0xff]
    %v6325 = vld [vmem:[%s6296 + $0xe0] sm:$0xff]
    %v6326 = vld [vmem:[%s6296 + $0xe8] sm:$0xff]
    %v6327 = vld [vmem:[%s6296 + $0xf0] sm:$0xff]
    %v6328 = vld [vmem:[%s6296 + $0xf8] sm:$0xff]
    %v6329 = vld [vmem:[%s6296 + $0x100] sm:$0xff]
    %v6330 = vld [vmem:[%s6296 + $0x108] sm:$0xff]
    %v6331 = vld [vmem:[%s6296 + $0x110] sm:$0xff]
    %v6332 = vld [vmem:[%s6296 + $0x118] sm:$0xff]
    %v6333 = vld [vmem:[%s6296 + $0x120] sm:$0xff]
    %v6334 = vld [vmem:[%s6296 + $0x128] sm:$0xff]
    %v6335 = vld [vmem:[%s6296 + $0x130] sm:$0xff]
    %v6336 = vld [vmem:[%s6296 + $0x138] sm:$0xff]
    %v6337 = vld [vmem:[%s6296 + $0x140] sm:$0xff]
    %v6338 = vld [vmem:[%s6296 + $0x148] sm:$0xff]
    %v6339 = vld [vmem:[%s6296 + $0x150] sm:$0xff]
    %v6340 = vld [vmem:[%s6296 + $0x158] sm:$0xff]
    %v6341 = vld [vmem:[%s6296 + $0x160] sm:$0xff]
    %v6342 = vld [vmem:[%s6296 + $0x168] sm:$0xff]
    %v6343 = vld [vmem:[%s6296 + $0x170] sm:$0xff]
    %v6344 = vld [vmem:[%s6296 + $0x178] sm:$0xff]
    %s6345 = scalar_lea.vmem [#allocation7], 768
    %v6346 = vld [vmem:[%s6345] sm:$0xff]
    %v6347 = vld [vmem:[%s6345 + $0x8] sm:$0xff]
    %v6348 = vld [vmem:[%s6345 + $0x10] sm:$0xff]
    %v6349 = vld [vmem:[%s6345 + $0x18] sm:$0xff]
    %v6350 = vld [vmem:[%s6345 + $0x20] sm:$0xff]
    %v6351 = vld [vmem:[%s6345 + $0x28] sm:$0xff]
    %v6352 = vld [vmem:[%s6345 + $0x30] sm:$0xff]
    %v6353 = vld [vmem:[%s6345 + $0x38] sm:$0xff]
    %v6354 = vld [vmem:[%s6345 + $0x40] sm:$0xff]
    %v6355 = vld [vmem:[%s6345 + $0x48] sm:$0xff]
    %v6356 = vld [vmem:[%s6345 + $0x50] sm:$0xff]
    %v6357 = vld [vmem:[%s6345 + $0x58] sm:$0xff]
    %v6358 = vld [vmem:[%s6345 + $0x60] sm:$0xff]
    %v6359 = vld [vmem:[%s6345 + $0x68] sm:$0xff]
    %v6360 = vld [vmem:[%s6345 + $0x70] sm:$0xff]
    %v6361 = vld [vmem:[%s6345 + $0x78] sm:$0xff]
    %v6362 = vld [vmem:[%s6345 + $0x80] sm:$0xff]
    %v6363 = vld [vmem:[%s6345 + $0x88] sm:$0xff]
    %v6364 = vld [vmem:[%s6345 + $0x90] sm:$0xff]
    %v6365 = vld [vmem:[%s6345 + $0x98] sm:$0xff]
    %v6366 = vld [vmem:[%s6345 + $0xa0] sm:$0xff]
    %v6367 = vld [vmem:[%s6345 + $0xa8] sm:$0xff]
    %v6368 = vld [vmem:[%s6345 + $0xb0] sm:$0xff]
    %v6369 = vld [vmem:[%s6345 + $0xb8] sm:$0xff]
    %v6370 = vld [vmem:[%s6345 + $0xc0] sm:$0xff]
    %v6371 = vld [vmem:[%s6345 + $0xc8] sm:$0xff]
    %v6372 = vld [vmem:[%s6345 + $0xd0] sm:$0xff]
    %v6373 = vld [vmem:[%s6345 + $0xd8] sm:$0xff]
    %v6374 = vld [vmem:[%s6345 + $0xe0] sm:$0xff]
    %v6375 = vld [vmem:[%s6345 + $0xe8] sm:$0xff]
    %v6376 = vld [vmem:[%s6345 + $0xf0] sm:$0xff]
    %v6377 = vld [vmem:[%s6345 + $0xf8] sm:$0xff]
    %v6378 = vld [vmem:[%s6345 + $0x100] sm:$0xff]
    %v6379 = vld [vmem:[%s6345 + $0x108] sm:$0xff]
    %v6380 = vld [vmem:[%s6345 + $0x110] sm:$0xff]
    %v6381 = vld [vmem:[%s6345 + $0x118] sm:$0xff]
    %v6382 = vld [vmem:[%s6345 + $0x120] sm:$0xff]
    %v6383 = vld [vmem:[%s6345 + $0x128] sm:$0xff]
    %v6384 = vld [vmem:[%s6345 + $0x130] sm:$0xff]
    %v6385 = vld [vmem:[%s6345 + $0x138] sm:$0xff]
    %v6386 = vld [vmem:[%s6345 + $0x140] sm:$0xff]
    %v6387 = vld [vmem:[%s6345 + $0x148] sm:$0xff]
    %v6388 = vld [vmem:[%s6345 + $0x150] sm:$0xff]
    %v6389 = vld [vmem:[%s6345 + $0x158] sm:$0xff]
    %v6390 = vld [vmem:[%s6345 + $0x160] sm:$0xff]
    %v6391 = vld [vmem:[%s6345 + $0x168] sm:$0xff]
    %v6392 = vld [vmem:[%s6345 + $0x170] sm:$0xff]
    %v6393 = vld [vmem:[%s6345 + $0x178] sm:$0xff]
    %s6394 = scalar_lea.vmem [#allocation8], 6
    %v6395 = vld [vmem:[%s6394] sm:$0x7]
    %s6396 = scalar_lea.vmem [#allocation10], 6
    %v6397 = vld [vmem:[%s6396] sm:$0x7]
    %s6398 = scalar_lea.vmem %s5, 2
    %v6399 = vld [vmem:[%s6398] sm:$0x1]
    %s6400 = scalar_lea.vmem [#allocation11], 2
    %v6401 = vld [vmem:[%s6400] sm:$0x1]
    %s6402 = scalar_lea.vmem [#allocation13], 768
    %v6403 = vld [vmem:[%s6402] sm:$0xff]
    %v6404 = vld [vmem:[%s6402 + $0x8] sm:$0xff]
    %v6405 = vld [vmem:[%s6402 + $0x10] sm:$0xff]
    %v6406 = vld [vmem:[%s6402 + $0x18] sm:$0xff]
    %v6407 = vld [vmem:[%s6402 + $0x20] sm:$0xff]
    %v6408 = vld [vmem:[%s6402 + $0x28] sm:$0xff]
    %v6409 = vld [vmem:[%s6402 + $0x30] sm:$0xff]
    %v6410 = vld [vmem:[%s6402 + $0x38] sm:$0xff]
    %v6411 = vld [vmem:[%s6402 + $0x40] sm:$0xff]
    %v6412 = vld [vmem:[%s6402 + $0x48] sm:$0xff]
    %v6413 = vld [vmem:[%s6402 + $0x50] sm:$0xff]
    %v6414 = vld [vmem:[%s6402 + $0x58] sm:$0xff]
    %v6415 = vld [vmem:[%s6402 + $0x60] sm:$0xff]
    %v6416 = vld [vmem:[%s6402 + $0x68] sm:$0xff]
    %v6417 = vld [vmem:[%s6402 + $0x70] sm:$0xff]
    %v6418 = vld [vmem:[%s6402 + $0x78] sm:$0xff]
    %v6419 = vld [vmem:[%s6402 + $0x80] sm:$0xff]
    %v6420 = vld [vmem:[%s6402 + $0x88] sm:$0xff]
    %v6421 = vld [vmem:[%s6402 + $0x90] sm:$0xff]
    %v6422 = vld [vmem:[%s6402 + $0x98] sm:$0xff]
    %v6423 = vld [vmem:[%s6402 + $0xa0] sm:$0xff]
    %v6424 = vld [vmem:[%s6402 + $0xa8] sm:$0xff]
    %v6425 = vld [vmem:[%s6402 + $0xb0] sm:$0xff]
    %v6426 = vld [vmem:[%s6402 + $0xb8] sm:$0xff]
    %v6427 = vld [vmem:[%s6402 + $0xc0] sm:$0xff]
    %v6428 = vld [vmem:[%s6402 + $0xc8] sm:$0xff]
    %v6429 = vld [vmem:[%s6402 + $0xd0] sm:$0xff]
    %v6430 = vld [vmem:[%s6402 + $0xd8] sm:$0xff]
    %v6431 = vld [vmem:[%s6402 + $0xe0] sm:$0xff]
    %v6432 = vld [vmem:[%s6402 + $0xe8] sm:$0xff]
    %v6433 = vld [vmem:[%s6402 + $0xf0] sm:$0xff]
    %v6434 = vld [vmem:[%s6402 + $0xf8] sm:$0xff]
    %v6435 = vld [vmem:[%s6402 + $0x100] sm:$0xff]
    %v6436 = vld [vmem:[%s6402 + $0x108] sm:$0xff]
    %v6437 = vld [vmem:[%s6402 + $0x110] sm:$0xff]
    %v6438 = vld [vmem:[%s6402 + $0x118] sm:$0xff]
    %v6439 = vld [vmem:[%s6402 + $0x120] sm:$0xff]
    %v6440 = vld [vmem:[%s6402 + $0x128] sm:$0xff]
    %v6441 = vld [vmem:[%s6402 + $0x130] sm:$0xff]
    %v6442 = vld [vmem:[%s6402 + $0x138] sm:$0xff]
    %v6443 = vld [vmem:[%s6402 + $0x140] sm:$0xff]
    %v6444 = vld [vmem:[%s6402 + $0x148] sm:$0xff]
    %v6445 = vld [vmem:[%s6402 + $0x150] sm:$0xff]
    %v6446 = vld [vmem:[%s6402 + $0x158] sm:$0xff]
    %v6447 = vld [vmem:[%s6402 + $0x160] sm:$0xff]
    %v6448 = vld [vmem:[%s6402 + $0x168] sm:$0xff]
    %v6449 = vld [vmem:[%s6402 + $0x170] sm:$0xff]
    %v6450 = vld [vmem:[%s6402 + $0x178] sm:$0xff]
    %s6451 = scalar_lea.vmem [#allocation14], 6
    %v6452 = vld [vmem:[%s6451] sm:$0x7]
    %s6453 = scalar_lea.vmem [#allocation16], 256
    %v6454 = vld [vmem:[%s6453] sm:$0xff]
    %v6455 = vld [vmem:[%s6453 + $0x8] sm:$0xff]
    %v6456 = vld [vmem:[%s6453 + $0x10] sm:$0xff]
    %v6457 = vld [vmem:[%s6453 + $0x18] sm:$0xff]
    %v6458 = vld [vmem:[%s6453 + $0x20] sm:$0xff]
    %v6459 = vld [vmem:[%s6453 + $0x28] sm:$0xff]
    %v6460 = vld [vmem:[%s6453 + $0x30] sm:$0xff]
    %v6461 = vld [vmem:[%s6453 + $0x38] sm:$0xff]
    %v6462 = vld [vmem:[%s6453 + $0x40] sm:$0xff]
    %v6463 = vld [vmem:[%s6453 + $0x48] sm:$0xff]
    %v6464 = vld [vmem:[%s6453 + $0x50] sm:$0xff]
    %v6465 = vld [vmem:[%s6453 + $0x58] sm:$0xff]
    %v6466 = vld [vmem:[%s6453 + $0x60] sm:$0xff]
    %v6467 = vld [vmem:[%s6453 + $0x68] sm:$0xff]
    %v6468 = vld [vmem:[%s6453 + $0x70] sm:$0xff]
    %v6469 = vld [vmem:[%s6453 + $0x78] sm:$0xff]
    %s6470 = scalar_lea.vmem %s10, 2
    %v6471 = vld [vmem:[%s6470] sm:$0x1]
    %s6472 = scalar_lea.vmem %s11, 2
    %v6473 = vld [vmem:[%s6472] sm:$0x1]
    %s6474 = scalar_lea.vmem [#allocation17], 2
    %v6475 = vld [vmem:[%s6474] sm:$0x1]
    %v6477 = vperm.slane %v6395, 0
    %v6478 = vperm.slane %v6395, 1
    %v6479 = vperm.slane %v6395, 2
    %6483 = vmatpush.msra.mxu0 %v6342
    %6484 = vmatpush.msra.mxu0 %v6339
    %6485 = vmatpush.msra.mxu0 %v6336
    %6486 = vmatpush.msra.mxu0 %v6333
    %6487 = vmatpush.msra.mxu0 %v6330
    %6488 = vmatpush.msra.mxu0 %v6327
    %6489 = vmatpush.msra.mxu0 %v6324
    %6490 = vmatpush.msra.mxu0 %v6321
    %6491 = vmatpush.msra.mxu0 %v6318
    %6492 = vmatpush.msra.mxu0 %v6315
    %6493 = vmatpush.msra.mxu0 %v6312
    %6494 = vmatpush.msra.mxu0 %v6309
    %6495 = vmatpush.msra.mxu0 %v6306
    %6496 = vmatpush.msra.mxu0 %v6303
    %6497 = vmatpush.msra.mxu0 %v6300
    %6498 = vmatpush.msra.mxu0 %v6297
    %6499 = vmatmul.f32.gmra.mxu0 %v6294
    %v6500 = vpop.f32.mrf.mxu0
    %v6501 = vadd.f32 %v6477, %v6500
    %6502 = vmatmul.f32.gmra.mxu0 %v6295
    %v6503 = vpop.f32.mrf.mxu0
    %v6504 = vadd.f32 %v6477, %v6503
    %6505 = vdwg.mxu0
    %6506 = vmatpush.msra.mxu0 %v6343
    %6507 = vmatpush.msra.mxu0 %v6340
    %6508 = vmatpush.msra.mxu0 %v6337
    %6509 = vmatpush.msra.mxu0 %v6334
    %6510 = vmatpush.msra.mxu0 %v6331
    %6511 = vmatpush.msra.mxu0 %v6328
    %6512 = vmatpush.msra.mxu0 %v6325
    %6513 = vmatpush.msra.mxu0 %v6322
    %6514 = vmatpush.msra.mxu0 %v6319
    %6515 = vmatpush.msra.mxu0 %v6316
    %6516 = vmatpush.msra.mxu0 %v6313
    %6517 = vmatpush.msra.mxu0 %v6310
    %6518 = vmatpush.msra.mxu0 %v6307
    %6519 = vmatpush.msra.mxu0 %v6304
    %6520 = vmatpush.msra.mxu0 %v6301
    %6521 = vmatpush.msra.mxu0 %v6298
    %6522 = vmatmul.f32.gmra.mxu0 %v6294
    %v6523 = vpop.f32.mrf.mxu0
    %v6524 = vadd.f32 %v6478, %v6523
    %6525 = vmatmul.f32.gmra.mxu0 %v6295
    %v6526 = vpop.f32.mrf.mxu0
    %v6527 = vadd.f32 %v6478, %v6526
    %6528 = vdwg.mxu0
    %6529 = vmatpush.msra.mxu0 %v6344
    %6530 = vmatpush.msra.mxu0 %v6341
    %6531 = vmatpush.msra.mxu0 %v6338
    %6532 = vmatpush.msra.mxu0 %v6335
    %6533 = vmatpush.msra.mxu0 %v6332
    %6534 = vmatpush.msra.mxu0 %v6329
    %6535 = vmatpush.msra.mxu0 %v6326
    %6536 = vmatpush.msra.mxu0 %v6323
    %6537 = vmatpush.msra.mxu0 %v6320
    %6538 = vmatpush.msra.mxu0 %v6317
    %6539 = vmatpush.msra.mxu0 %v6314
    %6540 = vmatpush.msra.mxu0 %v6311
    %6541 = vmatpush.msra.mxu0 %v6308
    %6542 = vmatpush.msra.mxu0 %v6305
    %6543 = vmatpush.msra.mxu0 %v6302
    %6544 = vmatpush.msra.mxu0 %v6299
    %6545 = vmatmul.f32.gmra.mxu0 %v6294
    %v6546 = vpop.f32.mrf.mxu0
    %v6547 = vadd.f32 %v6479, %v6546
    %6548 = vmatmul.f32.gmra.mxu0 %v6295
    %v6549 = vpop.f32.mrf.mxu0
    %v6550 = vadd.f32 %v6479, %v6549
    %6551 = vdwg.mxu0
    %v6553 = vperm.slane %v6397, 0
    %v6554 = vperm.slane %v6397, 1
    %v6555 = vperm.slane %v6397, 2
    %6559 = vmatpush.msra.mxu0 %v6391
    %6560 = vmatpush.msra.mxu0 %v6388
    %6561 = vmatpush.msra.mxu0 %v6385
    %6562 = vmatpush.msra.mxu0 %v6382
    %6563 = vmatpush.msra.mxu0 %v6379
    %6564 = vmatpush.msra.mxu0 %v6376
    %6565 = vmatpush.msra.mxu0 %v6373
    %6566 = vmatpush.msra.mxu0 %v6370
    %6567 = vmatpush.msra.mxu0 %v6367
    %6568 = vmatpush.msra.mxu0 %v6364
    %6569 = vmatpush.msra.mxu0 %v6361
    %6570 = vmatpush.msra.mxu0 %v6358
    %6571 = vmatpush.msra.mxu0 %v6355
    %6572 = vmatpush.msra.mxu0 %v6352
    %6573 = vmatpush.msra.mxu0 %v6349
    %6574 = vmatpush.msra.mxu0 %v6346
    %6575 = vmatmul.f32.gmra.mxu0 0.0
    %v6576 = vpop.f32.mrf.mxu0
    %v6577 = vadd.f32 %v6553, %v6576
    %6578 = vdwg.mxu0
    %6579 = vmatpush.msra.mxu0 %v6392
    %6580 = vmatpush.msra.mxu0 %v6389
    %6581 = vmatpush.msra.mxu0 %v6386
    %6582 = vmatpush.msra.mxu0 %v6383
    %6583 = vmatpush.msra.mxu0 %v6380
    %6584 = vmatpush.msra.mxu0 %v6377
    %6585 = vmatpush.msra.mxu0 %v6374
    %6586 = vmatpush.msra.mxu0 %v6371
    %6587 = vmatpush.msra.mxu0 %v6368
    %6588 = vmatpush.msra.mxu0 %v6365
    %6589 = vmatpush.msra.mxu0 %v6362
    %6590 = vmatpush.msra.mxu0 %v6359
    %6591 = vmatpush.msra.mxu0 %v6356
    %6592 = vmatpush.msra.mxu0 %v6353
    %6593 = vmatpush.msra.mxu0 %v6350
    %6594 = vmatpush.msra.mxu0 %v6347
    %6595 = vmatmul.f32.gmra.mxu0 0.0
    %v6596 = vpop.f32.mrf.mxu0
    %v6597 = vadd.f32 %v6554, %v6596
    %6598 = vdwg.mxu0
    %6599 = vmatpush.msra.mxu0 %v6393
    %6600 = vmatpush.msra.mxu0 %v6390
    %6601 = vmatpush.msra.mxu0 %v6387
    %6602 = vmatpush.msra.mxu0 %v6384
    %6603 = vmatpush.msra.mxu0 %v6381
    %6604 = vmatpush.msra.mxu0 %v6378
    %6605 = vmatpush.msra.mxu0 %v6375
    %6606 = vmatpush.msra.mxu0 %v6372
    %6607 = vmatpush.msra.mxu0 %v6369
    %6608 = vmatpush.msra.mxu0 %v6366
    %6609 = vmatpush.msra.mxu0 %v6363
    %6610 = vmatpush.msra.mxu0 %v6360
    %6611 = vmatpush.msra.mxu0 %v6357
    %6612 = vmatpush.msra.mxu0 %v6354
    %6613 = vmatpush.msra.mxu0 %v6351
    %6614 = vmatpush.msra.mxu0 %v6348
    %6615 = vmatmul.f32.gmra.mxu0 0.0
    %v6616 = vpop.f32.mrf.mxu0
    %v6617 = vadd.f32 %v6555, %v6616
    %6618 = vdwg.mxu0
    %v6620 = vrot.slane %v6577, 1
    %v6623 = vadd.f32 %v6501, %v6577
    %v6624 = vadd.f32 %v6504, %v6620
    %v6625 = vxor.u32 %v6623, 2147483648
    %v6626 = vxor.u32 %v6624, 2147483648
    %v6627 = vmul.f32 %v6625, 1.442695
    %v6628 = vpow.pop %v6627
    %v6629 = vmul.f32 %v6626, 1.442695
    %v6630 = vpow.pop %v6629
    %v6631 = vadd.f32 %v6628, 1.0
    %v6632 = vadd.f32 %v6630, 1.0
    %v6633 = vrcp.pop %v6631
    %v6634 = vmul.f32 %v6631, %v6633
    %v6635 = vsub.f32 1.0, %v6634
    %v6636 = vmul.f32 %v6633, %v6635
    %v6637 = vadd.f32 %v6633, %v6636
    %vm6638 = vweird.f32 %v6631
    %vm6639 = vweird.f32 %v6633
    %vm6640 = vmor %vm6638, %vm6639
    %v6641 = vsel %vm6640, %v6633, %v6637
    %v6642 = vand.u32 2147483647, %v6631
    %vm6643 = vcmp.eq.f32.partialorder %v6642, 8.507059e+37
    %v6644 = vand.u32 %v6631, 2147483648
    %v6645 = vor.u32 1.1754944e-38, %v6644
    %v6646 = vsel %vm6643, %v6645, %v6641
    %v6647 = vmul.f32 1.0, %v6646
    %v6648 = vrcp.pop %v6632
    %v6649 = vmul.f32 %v6632, %v6648
    %v6650 = vsub.f32 1.0, %v6649
    %v6651 = vmul.f32 %v6648, %v6650
    %v6652 = vadd.f32 %v6648, %v6651
    %vm6653 = vweird.f32 %v6632
    %vm6654 = vweird.f32 %v6648
    %vm6655 = vmor %vm6653, %vm6654
    %v6656 = vsel %vm6655, %v6648, %v6652
    %v6657 = vand.u32 2147483647, %v6632
    %vm6658 = vcmp.eq.f32.partialorder %v6657, 8.507059e+37
    %v6659 = vand.u32 %v6632, 2147483648
    %v6660 = vor.u32 1.1754944e-38, %v6659
    %v6661 = vsel %vm6658, %v6660, %v6656
    %v6662 = vmul.f32 1.0, %v6661
    %v6664 = vrot.slane %v6597, 1
    %v6667 = vadd.f32 %v6524, %v6597
    %v6668 = vadd.f32 %v6527, %v6664
    %v6669 = vxor.u32 %v6667, 2147483648
    %v6670 = vxor.u32 %v6668, 2147483648
    %v6671 = vmul.f32 %v6669, 1.442695
    %v6672 = vpow.pop %v6671
    %v6673 = vmul.f32 %v6670, 1.442695
    %v6674 = vpow.pop %v6673
    %v6675 = vadd.f32 %v6672, 1.0
    %v6676 = vadd.f32 %v6674, 1.0
    %v6677 = vrcp.pop %v6675
    %v6678 = vmul.f32 %v6675, %v6677
    %v6679 = vsub.f32 1.0, %v6678
    %v6680 = vmul.f32 %v6677, %v6679
    %v6681 = vadd.f32 %v6677, %v6680
    %vm6682 = vweird.f32 %v6675
    %vm6683 = vweird.f32 %v6677
    %vm6684 = vmor %vm6682, %vm6683
    %v6685 = vsel %vm6684, %v6677, %v6681
    %v6686 = vand.u32 2147483647, %v6675
    %vm6687 = vcmp.eq.f32.partialorder %v6686, 8.507059e+37
    %v6688 = vand.u32 %v6675, 2147483648
    %v6689 = vor.u32 1.1754944e-38, %v6688
    %v6690 = vsel %vm6687, %v6689, %v6685
    %v6691 = vmul.f32 1.0, %v6690
    %v6692 = vrcp.pop %v6676
    %v6693 = vmul.f32 %v6676, %v6692
    %v6694 = vsub.f32 1.0, %v6693
    %v6695 = vmul.f32 %v6692, %v6694
    %v6696 = vadd.f32 %v6692, %v6695
    %vm6697 = vweird.f32 %v6676
    %vm6698 = vweird.f32 %v6692
    %vm6699 = vmor %vm6697, %vm6698
    %v6700 = vsel %vm6699, %v6692, %v6696
    %v6701 = vand.u32 2147483647, %v6676
    %vm6702 = vcmp.eq.f32.partialorder %v6701, 8.507059e+37
    %v6703 = vand.u32 %v6676, 2147483648
    %v6704 = vor.u32 1.1754944e-38, %v6703
    %v6705 = vsel %vm6702, %v6704, %v6700
    %v6706 = vmul.f32 1.0, %v6705
    %v6708 = vrot.slane %v6617, 1
    %v6711 = vmul.f32 %v6647, %v6617
    %v6712 = vmul.f32 %v6662, %v6708
    %v6713 = vadd.f32 %v6547, %v6711
    %v6714 = vadd.f32 %v6550, %v6712
    %v6715 = vtanh.pop %v6713
    %v6716 = vtanh.pop %v6714
    %v6717 = vsub.f32 0.0, %v6715
    %v6718 = vsub.f32 0.0, %v6716
    %v6719 = vmul.f32 %v6691, %v6717
    %v6720 = vmul.f32 %v6706, %v6718
    %v6721 = vadd.f32 %v6715, %v6719
    %v6722 = vadd.f32 %v6716, %v6720
    %v6725 = vrot.slane %v6722, 7
    %v6726 = vsel %vm621, %v6725, %v6721
    %6728 = vmatpush.msra.mxu0 %v6391
    %6729 = vmatpush.msra.mxu0 %v6388
    %6730 = vmatpush.msra.mxu0 %v6385
    %6731 = vmatpush.msra.mxu0 %v6382
    %6732 = vmatpush.msra.mxu0 %v6379
    %6733 = vmatpush.msra.mxu0 %v6376
    %6734 = vmatpush.msra.mxu0 %v6373
    %6735 = vmatpush.msra.mxu0 %v6370
    %6736 = vmatpush.msra.mxu0 %v6367
    %6737 = vmatpush.msra.mxu0 %v6364
    %6738 = vmatpush.msra.mxu0 %v6361
    %6739 = vmatpush.msra.mxu0 %v6358
    %6740 = vmatpush.msra.mxu0 %v6355
    %6741 = vmatpush.msra.mxu0 %v6352
    %6742 = vmatpush.msra.mxu0 %v6349
    %6743 = vmatpush.msra.mxu0 %v6346
    %6744 = vmatmul.f32.gmra.mxu0 %v6726
    %v6745 = vpop.f32.mrf.mxu0
    %v6746 = vadd.f32 %v6553, %v6745
    %6747 = vdwg.mxu0
    %6748 = vmatpush.msra.mxu0 %v6392
    %6749 = vmatpush.msra.mxu0 %v6389
    %6750 = vmatpush.msra.mxu0 %v6386
    %6751 = vmatpush.msra.mxu0 %v6383
    %6752 = vmatpush.msra.mxu0 %v6380
    %6753 = vmatpush.msra.mxu0 %v6377
    %6754 = vmatpush.msra.mxu0 %v6374
    %6755 = vmatpush.msra.mxu0 %v6371
    %6756 = vmatpush.msra.mxu0 %v6368
    %6757 = vmatpush.msra.mxu0 %v6365
    %6758 = vmatpush.msra.mxu0 %v6362
    %6759 = vmatpush.msra.mxu0 %v6359
    %6760 = vmatpush.msra.mxu0 %v6356
    %6761 = vmatpush.msra.mxu0 %v6353
    %6762 = vmatpush.msra.mxu0 %v6350
    %6763 = vmatpush.msra.mxu0 %v6347
    %6764 = vmatmul.f32.gmra.mxu0 %v6726
    %v6765 = vpop.f32.mrf.mxu0
    %v6766 = vadd.f32 %v6554, %v6765
    %6767 = vdwg.mxu0
    %6768 = vmatpush.msra.mxu0 %v6393
    %6769 = vmatpush.msra.mxu0 %v6390
    %6770 = vmatpush.msra.mxu0 %v6387
    %6771 = vmatpush.msra.mxu0 %v6384
    %6772 = vmatpush.msra.mxu0 %v6381
    %6773 = vmatpush.msra.mxu0 %v6378
    %6774 = vmatpush.msra.mxu0 %v6375
    %6775 = vmatpush.msra.mxu0 %v6372
    %6776 = vmatpush.msra.mxu0 %v6369
    %6777 = vmatpush.msra.mxu0 %v6366
    %6778 = vmatpush.msra.mxu0 %v6363
    %6779 = vmatpush.msra.mxu0 %v6360
    %6780 = vmatpush.msra.mxu0 %v6357
    %6781 = vmatpush.msra.mxu0 %v6354
    %6782 = vmatpush.msra.mxu0 %v6351
    %6783 = vmatpush.msra.mxu0 %v6348
    %6784 = vmatmul.f32.gmra.mxu0 %v6726
    %v6785 = vpop.f32.mrf.mxu0
    %v6786 = vadd.f32 %v6555, %v6785
    %6787 = vdwg.mxu0
    %v6789 = vrot.slane %v6746, 7
    %v6792 = vadd.f32 %v6501, %v6789
    %v6793 = vadd.f32 %v6504, %v6746
    %v6794 = vxor.u32 %v6792, 2147483648
    %v6795 = vxor.u32 %v6793, 2147483648
    %v6796 = vmul.f32 %v6794, 1.442695
    %v6797 = vpow.pop %v6796
    %v6798 = vmul.f32 %v6795, 1.442695
    %v6799 = vpow.pop %v6798
    %v6800 = vadd.f32 %v6797, 1.0
    %v6801 = vadd.f32 %v6799, 1.0
    %v6802 = vrcp.pop %v6800
    %v6803 = vmul.f32 %v6800, %v6802
    %v6804 = vsub.f32 1.0, %v6803
    %v6805 = vmul.f32 %v6802, %v6804
    %v6806 = vadd.f32 %v6802, %v6805
    %vm6807 = vweird.f32 %v6800
    %vm6808 = vweird.f32 %v6802
    %vm6809 = vmor %vm6807, %vm6808
    %v6810 = vsel %vm6809, %v6802, %v6806
    %v6811 = vand.u32 2147483647, %v6800
    %vm6812 = vcmp.eq.f32.partialorder %v6811, 8.507059e+37
    %v6813 = vand.u32 %v6800, 2147483648
    %v6814 = vor.u32 1.1754944e-38, %v6813
    %v6815 = vsel %vm6812, %v6814, %v6810
    %v6816 = vmul.f32 1.0, %v6815
    %v6817 = vrcp.pop %v6801
    %v6818 = vmul.f32 %v6801, %v6817
    %v6819 = vsub.f32 1.0, %v6818
    %v6820 = vmul.f32 %v6817, %v6819
    %v6821 = vadd.f32 %v6817, %v6820
    %vm6822 = vweird.f32 %v6801
    %vm6823 = vweird.f32 %v6817
    %vm6824 = vmor %vm6822, %vm6823
    %v6825 = vsel %vm6824, %v6817, %v6821
    %v6826 = vand.u32 2147483647, %v6801
    %vm6827 = vcmp.eq.f32.partialorder %v6826, 8.507059e+37
    %v6828 = vand.u32 %v6801, 2147483648
    %v6829 = vor.u32 1.1754944e-38, %v6828
    %v6830 = vsel %vm6827, %v6829, %v6825
    %v6831 = vmul.f32 1.0, %v6830
    %v6833 = vrot.slane %v6766, 7
    %v6836 = vadd.f32 %v6524, %v6833
    %v6837 = vadd.f32 %v6527, %v6766
    %v6838 = vxor.u32 %v6836, 2147483648
    %v6839 = vxor.u32 %v6837, 2147483648
    %v6840 = vmul.f32 %v6838, 1.442695
    %v6841 = vpow.pop %v6840
    %v6842 = vmul.f32 %v6839, 1.442695
    %v6843 = vpow.pop %v6842
    %v6844 = vadd.f32 %v6841, 1.0
    %v6845 = vadd.f32 %v6843, 1.0
    %v6846 = vrcp.pop %v6844
    %v6847 = vmul.f32 %v6844, %v6846
    %v6848 = vsub.f32 1.0, %v6847
    %v6849 = vmul.f32 %v6846, %v6848
    %v6850 = vadd.f32 %v6846, %v6849
    %vm6851 = vweird.f32 %v6844
    %vm6852 = vweird.f32 %v6846
    %vm6853 = vmor %vm6851, %vm6852
    %v6854 = vsel %vm6853, %v6846, %v6850
    %v6855 = vand.u32 2147483647, %v6844
    %vm6856 = vcmp.eq.f32.partialorder %v6855, 8.507059e+37
    %v6857 = vand.u32 %v6844, 2147483648
    %v6858 = vor.u32 1.1754944e-38, %v6857
    %v6859 = vsel %vm6856, %v6858, %v6854
    %v6860 = vmul.f32 1.0, %v6859
    %v6861 = vrcp.pop %v6845
    %v6862 = vmul.f32 %v6845, %v6861
    %v6863 = vsub.f32 1.0, %v6862
    %v6864 = vmul.f32 %v6861, %v6863
    %v6865 = vadd.f32 %v6861, %v6864
    %vm6866 = vweird.f32 %v6845
    %vm6867 = vweird.f32 %v6861
    %vm6868 = vmor %vm6866, %vm6867
    %v6869 = vsel %vm6868, %v6861, %v6865
    %v6870 = vand.u32 2147483647, %v6845
    %vm6871 = vcmp.eq.f32.partialorder %v6870, 8.507059e+37
    %v6872 = vand.u32 %v6845, 2147483648
    %v6873 = vor.u32 1.1754944e-38, %v6872
    %v6874 = vsel %vm6871, %v6873, %v6869
    %v6875 = vmul.f32 1.0, %v6874
    %v6877 = vrot.slane %v6786, 7
    %v6880 = vmul.f32 %v6816, %v6877
    %v6881 = vmul.f32 %v6831, %v6786
    %v6882 = vadd.f32 %v6547, %v6880
    %v6883 = vadd.f32 %v6550, %v6881
    %v6884 = vtanh.pop %v6882
    %v6885 = vtanh.pop %v6883
    %v6888 = vrot.slane %v6884, 1
    %v6889 = vrot.slane %v6885, 1
    %v6892 = vsub.f32 %v6721, %v6888
    %v6893 = vsub.f32 %v6722, %v6889
    %v6896 = vrot.slane %v6892, 7
    %v6897 = vrot.slane %v6893, 7
    %v6900 = vmul.f32 %v6860, %v6896
    %v6901 = vmul.f32 %v6875, %v6897
    %v6902 = vadd.f32 %v6884, %v6900
    %v6903 = vadd.f32 %v6885, %v6901
    %v6906 = vrot.slane %v6902, 1
    %v6907 = vsel %vm621, %v6903, %v6906
    %6909 = vmatpush.msra.mxu0 %v6391
    %6910 = vmatpush.msra.mxu0 %v6388
    %6911 = vmatpush.msra.mxu0 %v6385
    %6912 = vmatpush.msra.mxu0 %v6382
    %6913 = vmatpush.msra.mxu0 %v6379
    %6914 = vmatpush.msra.mxu0 %v6376
    %6915 = vmatpush.msra.mxu0 %v6373
    %6916 = vmatpush.msra.mxu0 %v6370
    %6917 = vmatpush.msra.mxu0 %v6367
    %6918 = vmatpush.msra.mxu0 %v6364
    %6919 = vmatpush.msra.mxu0 %v6361
    %6920 = vmatpush.msra.mxu0 %v6358
    %6921 = vmatpush.msra.mxu0 %v6355
    %6922 = vmatpush.msra.mxu0 %v6352
    %6923 = vmatpush.msra.mxu0 %v6349
    %6924 = vmatpush.msra.mxu0 %v6346
    %6925 = vmatmul.f32.gmra.mxu0 %v6907
    %v6926 = vpop.f32.mrf.mxu0
    %v6927 = vadd.f32 %v6553, %v6926
    %6928 = vdwg.mxu0
    %6929 = vmatpush.msra.mxu0 %v6392
    %6930 = vmatpush.msra.mxu0 %v6389
    %6931 = vmatpush.msra.mxu0 %v6386
    %6932 = vmatpush.msra.mxu0 %v6383
    %6933 = vmatpush.msra.mxu0 %v6380
    %6934 = vmatpush.msra.mxu0 %v6377
    %6935 = vmatpush.msra.mxu0 %v6374
    %6936 = vmatpush.msra.mxu0 %v6371
    %6937 = vmatpush.msra.mxu0 %v6368
    %6938 = vmatpush.msra.mxu0 %v6365
    %6939 = vmatpush.msra.mxu0 %v6362
    %6940 = vmatpush.msra.mxu0 %v6359
    %6941 = vmatpush.msra.mxu0 %v6356
    %6942 = vmatpush.msra.mxu0 %v6353
    %6943 = vmatpush.msra.mxu0 %v6350
    %6944 = vmatpush.msra.mxu0 %v6347
    %6945 = vmatmul.f32.gmra.mxu0 %v6907
    %v6946 = vpop.f32.mrf.mxu0
    %v6947 = vadd.f32 %v6554, %v6946
    %6948 = vdwg.mxu0
    %6949 = vmatpush.msra.mxu0 %v6393
    %6950 = vmatpush.msra.mxu0 %v6390
    %6951 = vmatpush.msra.mxu0 %v6387
    %6952 = vmatpush.msra.mxu0 %v6384
    %6953 = vmatpush.msra.mxu0 %v6381
    %6954 = vmatpush.msra.mxu0 %v6378
    %6955 = vmatpush.msra.mxu0 %v6375
    %6956 = vmatpush.msra.mxu0 %v6372
    %6957 = vmatpush.msra.mxu0 %v6369
    %6958 = vmatpush.msra.mxu0 %v6366
    %6959 = vmatpush.msra.mxu0 %v6363
    %6960 = vmatpush.msra.mxu0 %v6360
    %6961 = vmatpush.msra.mxu0 %v6357
    %6962 = vmatpush.msra.mxu0 %v6354
    %6963 = vmatpush.msra.mxu0 %v6351
    %6964 = vmatpush.msra.mxu0 %v6348
    %6965 = vmatmul.f32.gmra.mxu0 %v6907
    %v6966 = vpop.f32.mrf.mxu0
    %v6967 = vadd.f32 %v6555, %v6966
    %6968 = vdwg.mxu0
    %v6970 = vrot.slane %v6927, 6
    %v6971 = vrot.slane %v6927, 7
    %v6974 = vadd.f32 %v6501, %v6970
    %v6975 = vadd.f32 %v6504, %v6971
    %v6976 = vxor.u32 %v6974, 2147483648
    %v6977 = vxor.u32 %v6975, 2147483648
    %v6978 = vmul.f32 %v6976, 1.442695
    %v6979 = vpow.pop %v6978
    %v6980 = vmul.f32 %v6977, 1.442695
    %v6981 = vpow.pop %v6980
    %v6982 = vadd.f32 %v6979, 1.0
    %v6983 = vadd.f32 %v6981, 1.0
    %v6984 = vrcp.pop %v6982
    %v6985 = vmul.f32 %v6982, %v6984
    %v6986 = vsub.f32 1.0, %v6985
    %v6987 = vmul.f32 %v6984, %v6986
    %v6988 = vadd.f32 %v6984, %v6987
    %vm6989 = vweird.f32 %v6982
    %vm6990 = vweird.f32 %v6984
    %vm6991 = vmor %vm6989, %vm6990
    %v6992 = vsel %vm6991, %v6984, %v6988
    %v6993 = vand.u32 2147483647, %v6982
    %vm6994 = vcmp.eq.f32.partialorder %v6993, 8.507059e+37
    %v6995 = vand.u32 %v6982, 2147483648
    %v6996 = vor.u32 1.1754944e-38, %v6995
    %v6997 = vsel %vm6994, %v6996, %v6992
    %v6998 = vmul.f32 1.0, %v6997
    %v6999 = vrcp.pop %v6983
    %v7000 = vmul.f32 %v6983, %v6999
    %v7001 = vsub.f32 1.0, %v7000
    %v7002 = vmul.f32 %v6999, %v7001
    %v7003 = vadd.f32 %v6999, %v7002
    %vm7004 = vweird.f32 %v6983
    %vm7005 = vweird.f32 %v6999
    %vm7006 = vmor %vm7004, %vm7005
    %v7007 = vsel %vm7006, %v6999, %v7003
    %v7008 = vand.u32 2147483647, %v6983
    %vm7009 = vcmp.eq.f32.partialorder %v7008, 8.507059e+37
    %v7010 = vand.u32 %v6983, 2147483648
    %v7011 = vor.u32 1.1754944e-38, %v7010
    %v7012 = vsel %vm7009, %v7011, %v7007
    %v7013 = vmul.f32 1.0, %v7012
    %v7015 = vrot.slane %v6947, 6
    %v7016 = vrot.slane %v6947, 7
    %v7019 = vadd.f32 %v6524, %v7015
    %v7020 = vadd.f32 %v6527, %v7016
    %v7021 = vxor.u32 %v7019, 2147483648
    %v7022 = vxor.u32 %v7020, 2147483648
    %v7023 = vmul.f32 %v7021, 1.442695
    %v7024 = vpow.pop %v7023
    %v7025 = vmul.f32 %v7022, 1.442695
    %v7026 = vpow.pop %v7025
    %v7027 = vadd.f32 %v7024, 1.0
    %v7028 = vadd.f32 %v7026, 1.0
    %v7029 = vrcp.pop %v7027
    %v7030 = vmul.f32 %v7027, %v7029
    %v7031 = vsub.f32 1.0, %v7030
    %v7032 = vmul.f32 %v7029, %v7031
    %v7033 = vadd.f32 %v7029, %v7032
    %vm7034 = vweird.f32 %v7027
    %vm7035 = vweird.f32 %v7029
    %vm7036 = vmor %vm7034, %vm7035
    %v7037 = vsel %vm7036, %v7029, %v7033
    %v7038 = vand.u32 2147483647, %v7027
    %vm7039 = vcmp.eq.f32.partialorder %v7038, 8.507059e+37
    %v7040 = vand.u32 %v7027, 2147483648
    %v7041 = vor.u32 1.1754944e-38, %v7040
    %v7042 = vsel %vm7039, %v7041, %v7037
    %v7043 = vmul.f32 1.0, %v7042
    %v7044 = vrcp.pop %v7028
    %v7045 = vmul.f32 %v7028, %v7044
    %v7046 = vsub.f32 1.0, %v7045
    %v7047 = vmul.f32 %v7044, %v7046
    %v7048 = vadd.f32 %v7044, %v7047
    %vm7049 = vweird.f32 %v7028
    %vm7050 = vweird.f32 %v7044
    %vm7051 = vmor %vm7049, %vm7050
    %v7052 = vsel %vm7051, %v7044, %v7048
    %v7053 = vand.u32 2147483647, %v7028
    %vm7054 = vcmp.eq.f32.partialorder %v7053, 8.507059e+37
    %v7055 = vand.u32 %v7028, 2147483648
    %v7056 = vor.u32 1.1754944e-38, %v7055
    %v7057 = vsel %vm7054, %v7056, %v7052
    %v7058 = vmul.f32 1.0, %v7057
    %v7060 = vrot.slane %v6967, 6
    %v7061 = vrot.slane %v6967, 7
    %v7064 = vmul.f32 %v6998, %v7060
    %v7065 = vmul.f32 %v7013, %v7061
    %v7066 = vadd.f32 %v6547, %v7064
    %v7067 = vadd.f32 %v6550, %v7065
    %v7068 = vtanh.pop %v7066
    %v7069 = vtanh.pop %v7067
    %v7072 = vrot.slane %v7068, 1
    %v7073 = vrot.slane %v7069, 1
    %v7076 = vsub.f32 %v6902, %v7072
    %v7077 = vsub.f32 %v6903, %v7073
    %v7080 = vrot.slane %v7076, 7
    %v7081 = vrot.slane %v7077, 7
    %v7084 = vmul.f32 %v7043, %v7080
    %v7085 = vmul.f32 %v7058, %v7081
    %v7086 = vadd.f32 %v7068, %v7084
    %v7087 = vadd.f32 %v7069, %v7085
    %v7090 = vrot.slane %v7086, 2
    %v7091 = vrot.slane %v7087, 1
    %v7092 = vsel %vm621, %v7091, %v7090
    %7094 = vmatpush.msra.mxu0 %v6391
    %7095 = vmatpush.msra.mxu0 %v6388
    %7096 = vmatpush.msra.mxu0 %v6385
    %7097 = vmatpush.msra.mxu0 %v6382
    %7098 = vmatpush.msra.mxu0 %v6379
    %7099 = vmatpush.msra.mxu0 %v6376
    %7100 = vmatpush.msra.mxu0 %v6373
    %7101 = vmatpush.msra.mxu0 %v6370
    %7102 = vmatpush.msra.mxu0 %v6367
    %7103 = vmatpush.msra.mxu0 %v6364
    %7104 = vmatpush.msra.mxu0 %v6361
    %7105 = vmatpush.msra.mxu0 %v6358
    %7106 = vmatpush.msra.mxu0 %v6355
    %7107 = vmatpush.msra.mxu0 %v6352
    %7108 = vmatpush.msra.mxu0 %v6349
    %7109 = vmatpush.msra.mxu0 %v6346
    %7110 = vmatmul.f32.gmra.mxu0 %v7092
    %v7111 = vpop.f32.mrf.mxu0
    %v7112 = vadd.f32 %v6553, %v7111
    %7113 = vdwg.mxu0
    %7114 = vmatpush.msra.mxu0 %v6392
    %7115 = vmatpush.msra.mxu0 %v6389
    %7116 = vmatpush.msra.mxu0 %v6386
    %7117 = vmatpush.msra.mxu0 %v6383
    %7118 = vmatpush.msra.mxu0 %v6380
    %7119 = vmatpush.msra.mxu0 %v6377
    %7120 = vmatpush.msra.mxu0 %v6374
    %7121 = vmatpush.msra.mxu0 %v6371
    %7122 = vmatpush.msra.mxu0 %v6368
    %7123 = vmatpush.msra.mxu0 %v6365
    %7124 = vmatpush.msra.mxu0 %v6362
    %7125 = vmatpush.msra.mxu0 %v6359
    %7126 = vmatpush.msra.mxu0 %v6356
    %7127 = vmatpush.msra.mxu0 %v6353
    %7128 = vmatpush.msra.mxu0 %v6350
    %7129 = vmatpush.msra.mxu0 %v6347
    %7130 = vmatmul.f32.gmra.mxu0 %v7092
    %v7131 = vpop.f32.mrf.mxu0
    %v7132 = vadd.f32 %v6554, %v7131
    %7133 = vdwg.mxu0
    %7134 = vmatpush.msra.mxu0 %v6393
    %7135 = vmatpush.msra.mxu0 %v6390
    %7136 = vmatpush.msra.mxu0 %v6387
    %7137 = vmatpush.msra.mxu0 %v6384
    %7138 = vmatpush.msra.mxu0 %v6381
    %7139 = vmatpush.msra.mxu0 %v6378
    %7140 = vmatpush.msra.mxu0 %v6375
    %7141 = vmatpush.msra.mxu0 %v6372
    %7142 = vmatpush.msra.mxu0 %v6369
    %7143 = vmatpush.msra.mxu0 %v6366
    %7144 = vmatpush.msra.mxu0 %v6363
    %7145 = vmatpush.msra.mxu0 %v6360
    %7146 = vmatpush.msra.mxu0 %v6357
    %7147 = vmatpush.msra.mxu0 %v6354
    %7148 = vmatpush.msra.mxu0 %v6351
    %7149 = vmatpush.msra.mxu0 %v6348
    %7150 = vmatmul.f32.gmra.mxu0 %v7092
    %v7151 = vpop.f32.mrf.mxu0
    %v7152 = vadd.f32 %v6555, %v7151
    %7153 = vdwg.mxu0
    %v7155 = vrot.slane %v7112, 5
    %v7156 = vrot.slane %v7112, 6
    %v7159 = vadd.f32 %v6501, %v7155
    %v7160 = vadd.f32 %v6504, %v7156
    %v7161 = vxor.u32 %v7159, 2147483648
    %v7162 = vxor.u32 %v7160, 2147483648
    %v7163 = vmul.f32 %v7161, 1.442695
    %v7164 = vpow.pop %v7163
    %v7165 = vmul.f32 %v7162, 1.442695
    %v7166 = vpow.pop %v7165
    %v7167 = vadd.f32 %v7164, 1.0
    %v7168 = vadd.f32 %v7166, 1.0
    %v7169 = vrcp.pop %v7167
    %v7170 = vmul.f32 %v7167, %v7169
    %v7171 = vsub.f32 1.0, %v7170
    %v7172 = vmul.f32 %v7169, %v7171
    %v7173 = vadd.f32 %v7169, %v7172
    %vm7174 = vweird.f32 %v7167
    %vm7175 = vweird.f32 %v7169
    %vm7176 = vmor %vm7174, %vm7175
    %v7177 = vsel %vm7176, %v7169, %v7173
    %v7178 = vand.u32 2147483647, %v7167
    %vm7179 = vcmp.eq.f32.partialorder %v7178, 8.507059e+37
    %v7180 = vand.u32 %v7167, 2147483648
    %v7181 = vor.u32 1.1754944e-38, %v7180
    %v7182 = vsel %vm7179, %v7181, %v7177
    %v7183 = vmul.f32 1.0, %v7182
    %v7184 = vrcp.pop %v7168
    %v7185 = vmul.f32 %v7168, %v7184
    %v7186 = vsub.f32 1.0, %v7185
    %v7187 = vmul.f32 %v7184, %v7186
    %v7188 = vadd.f32 %v7184, %v7187
    %vm7189 = vweird.f32 %v7168
    %vm7190 = vweird.f32 %v7184
    %vm7191 = vmor %vm7189, %vm7190
    %v7192 = vsel %vm7191, %v7184, %v7188
    %v7193 = vand.u32 2147483647, %v7168
    %vm7194 = vcmp.eq.f32.partialorder %v7193, 8.507059e+37
    %v7195 = vand.u32 %v7168, 2147483648
    %v7196 = vor.u32 1.1754944e-38, %v7195
    %v7197 = vsel %vm7194, %v7196, %v7192
    %v7198 = vmul.f32 1.0, %v7197
    %v7200 = vrot.slane %v7132, 5
    %v7201 = vrot.slane %v7132, 6
    %v7204 = vadd.f32 %v6524, %v7200
    %v7205 = vadd.f32 %v6527, %v7201
    %v7206 = vxor.u32 %v7204, 2147483648
    %v7207 = vxor.u32 %v7205, 2147483648
    %v7208 = vmul.f32 %v7206, 1.442695
    %v7209 = vpow.pop %v7208
    %v7210 = vmul.f32 %v7207, 1.442695
    %v7211 = vpow.pop %v7210
    %v7212 = vadd.f32 %v7209, 1.0
    %v7213 = vadd.f32 %v7211, 1.0
    %v7214 = vrcp.pop %v7212
    %v7215 = vmul.f32 %v7212, %v7214
    %v7216 = vsub.f32 1.0, %v7215
    %v7217 = vmul.f32 %v7214, %v7216
    %v7218 = vadd.f32 %v7214, %v7217
    %vm7219 = vweird.f32 %v7212
    %vm7220 = vweird.f32 %v7214
    %vm7221 = vmor %vm7219, %vm7220
    %v7222 = vsel %vm7221, %v7214, %v7218
    %v7223 = vand.u32 2147483647, %v7212
    %vm7224 = vcmp.eq.f32.partialorder %v7223, 8.507059e+37
    %v7225 = vand.u32 %v7212, 2147483648
    %v7226 = vor.u32 1.1754944e-38, %v7225
    %v7227 = vsel %vm7224, %v7226, %v7222
    %v7228 = vmul.f32 1.0, %v7227
    %v7229 = vrcp.pop %v7213
    %v7230 = vmul.f32 %v7213, %v7229
    %v7231 = vsub.f32 1.0, %v7230
    %v7232 = vmul.f32 %v7229, %v7231
    %v7233 = vadd.f32 %v7229, %v7232
    %vm7234 = vweird.f32 %v7213
    %vm7235 = vweird.f32 %v7229
    %vm7236 = vmor %vm7234, %vm7235
    %v7237 = vsel %vm7236, %v7229, %v7233
    %v7238 = vand.u32 2147483647, %v7213
    %vm7239 = vcmp.eq.f32.partialorder %v7238, 8.507059e+37
    %v7240 = vand.u32 %v7213, 2147483648
    %v7241 = vor.u32 1.1754944e-38, %v7240
    %v7242 = vsel %vm7239, %v7241, %v7237
    %v7243 = vmul.f32 1.0, %v7242
    %v7245 = vrot.slane %v7152, 5
    %v7246 = vrot.slane %v7152, 6
    %v7249 = vmul.f32 %v7183, %v7245
    %v7250 = vmul.f32 %v7198, %v7246
    %v7251 = vadd.f32 %v6547, %v7249
    %v7252 = vadd.f32 %v6550, %v7250
    %v7253 = vtanh.pop %v7251
    %v7254 = vtanh.pop %v7252
    %v7257 = vrot.slane %v7253, 1
    %v7258 = vrot.slane %v7254, 1
    %v7261 = vsub.f32 %v7086, %v7257
    %v7262 = vsub.f32 %v7087, %v7258
    %v7265 = vrot.slane %v7261, 7
    %v7266 = vrot.slane %v7262, 7
    %v7269 = vmul.f32 %v7228, %v7265
    %v7270 = vmul.f32 %v7243, %v7266
    %v7271 = vadd.f32 %v7253, %v7269
    %v7272 = vadd.f32 %v7254, %v7270
    %v7275 = vrot.slane %v7271, 3
    %v7276 = vrot.slane %v7272, 2
    %v7277 = vsel %vm621, %v7276, %v7275
    %7279 = vmatpush.msra.mxu0 %v6391
    %7280 = vmatpush.msra.mxu0 %v6388
    %7281 = vmatpush.msra.mxu0 %v6385
    %7282 = vmatpush.msra.mxu0 %v6382
    %7283 = vmatpush.msra.mxu0 %v6379
    %7284 = vmatpush.msra.mxu0 %v6376
    %7285 = vmatpush.msra.mxu0 %v6373
    %7286 = vmatpush.msra.mxu0 %v6370
    %7287 = vmatpush.msra.mxu0 %v6367
    %7288 = vmatpush.msra.mxu0 %v6364
    %7289 = vmatpush.msra.mxu0 %v6361
    %7290 = vmatpush.msra.mxu0 %v6358
    %7291 = vmatpush.msra.mxu0 %v6355
    %7292 = vmatpush.msra.mxu0 %v6352
    %7293 = vmatpush.msra.mxu0 %v6349
    %7294 = vmatpush.msra.mxu0 %v6346
    %7295 = vmatmul.f32.gmra.mxu0 %v7277
    %v7296 = vpop.f32.mrf.mxu0
    %v7297 = vadd.f32 %v6553, %v7296
    %7298 = vdwg.mxu0
    %7299 = vmatpush.msra.mxu0 %v6392
    %7300 = vmatpush.msra.mxu0 %v6389
    %7301 = vmatpush.msra.mxu0 %v6386
    %7302 = vmatpush.msra.mxu0 %v6383
    %7303 = vmatpush.msra.mxu0 %v6380
    %7304 = vmatpush.msra.mxu0 %v6377
    %7305 = vmatpush.msra.mxu0 %v6374
    %7306 = vmatpush.msra.mxu0 %v6371
    %7307 = vmatpush.msra.mxu0 %v6368
    %7308 = vmatpush.msra.mxu0 %v6365
    %7309 = vmatpush.msra.mxu0 %v6362
    %7310 = vmatpush.msra.mxu0 %v6359
    %7311 = vmatpush.msra.mxu0 %v6356
    %7312 = vmatpush.msra.mxu0 %v6353
    %7313 = vmatpush.msra.mxu0 %v6350
    %7314 = vmatpush.msra.mxu0 %v6347
    %7315 = vmatmul.f32.gmra.mxu0 %v7277
    %v7316 = vpop.f32.mrf.mxu0
    %v7317 = vadd.f32 %v6554, %v7316
    %7318 = vdwg.mxu0
    %7319 = vmatpush.msra.mxu0 %v6393
    %7320 = vmatpush.msra.mxu0 %v6390
    %7321 = vmatpush.msra.mxu0 %v6387
    %7322 = vmatpush.msra.mxu0 %v6384
    %7323 = vmatpush.msra.mxu0 %v6381
    %7324 = vmatpush.msra.mxu0 %v6378
    %7325 = vmatpush.msra.mxu0 %v6375
    %7326 = vmatpush.msra.mxu0 %v6372
    %7327 = vmatpush.msra.mxu0 %v6369
    %7328 = vmatpush.msra.mxu0 %v6366
    %7329 = vmatpush.msra.mxu0 %v6363
    %7330 = vmatpush.msra.mxu0 %v6360
    %7331 = vmatpush.msra.mxu0 %v6357
    %7332 = vmatpush.msra.mxu0 %v6354
    %7333 = vmatpush.msra.mxu0 %v6351
    %7334 = vmatpush.msra.mxu0 %v6348
    %7335 = vmatmul.f32.gmra.mxu0 %v7277
    %v7336 = vpop.f32.mrf.mxu0
    %v7337 = vadd.f32 %v6555, %v7336
    %7338 = vdwg.mxu0
    %v7340 = vrot.slane %v7297, 4
    %v7341 = vrot.slane %v7297, 5
    %v7344 = vadd.f32 %v6501, %v7340
    %v7345 = vadd.f32 %v6504, %v7341
    %v7346 = vxor.u32 %v7344, 2147483648
    %v7347 = vxor.u32 %v7345, 2147483648
    %v7348 = vmul.f32 %v7346, 1.442695
    %v7349 = vpow.pop %v7348
    %v7350 = vmul.f32 %v7347, 1.442695
    %v7351 = vpow.pop %v7350
    %v7352 = vadd.f32 %v7349, 1.0
    %v7353 = vadd.f32 %v7351, 1.0
    %v7354 = vrcp.pop %v7352
    %v7355 = vmul.f32 %v7352, %v7354
    %v7356 = vsub.f32 1.0, %v7355
    %v7357 = vmul.f32 %v7354, %v7356
    %v7358 = vadd.f32 %v7354, %v7357
    %vm7359 = vweird.f32 %v7352
    %vm7360 = vweird.f32 %v7354
    %vm7361 = vmor %vm7359, %vm7360
    %v7362 = vsel %vm7361, %v7354, %v7358
    %v7363 = vand.u32 2147483647, %v7352
    %vm7364 = vcmp.eq.f32.partialorder %v7363, 8.507059e+37
    %v7365 = vand.u32 %v7352, 2147483648
    %v7366 = vor.u32 1.1754944e-38, %v7365
    %v7367 = vsel %vm7364, %v7366, %v7362
    %v7368 = vmul.f32 1.0, %v7367
    %v7369 = vrcp.pop %v7353
    %v7370 = vmul.f32 %v7353, %v7369
    %v7371 = vsub.f32 1.0, %v7370
    %v7372 = vmul.f32 %v7369, %v7371
    %v7373 = vadd.f32 %v7369, %v7372
    %vm7374 = vweird.f32 %v7353
    %vm7375 = vweird.f32 %v7369
    %vm7376 = vmor %vm7374, %vm7375
    %v7377 = vsel %vm7376, %v7369, %v7373
    %v7378 = vand.u32 2147483647, %v7353
    %vm7379 = vcmp.eq.f32.partialorder %v7378, 8.507059e+37
    %v7380 = vand.u32 %v7353, 2147483648
    %v7381 = vor.u32 1.1754944e-38, %v7380
    %v7382 = vsel %vm7379, %v7381, %v7377
    %v7383 = vmul.f32 1.0, %v7382
    %v7385 = vrot.slane %v7317, 4
    %v7386 = vrot.slane %v7317, 5
    %v7389 = vadd.f32 %v6524, %v7385
    %v7390 = vadd.f32 %v6527, %v7386
    %v7391 = vxor.u32 %v7389, 2147483648
    %v7392 = vxor.u32 %v7390, 2147483648
    %v7393 = vmul.f32 %v7391, 1.442695
    %v7394 = vpow.pop %v7393
    %v7395 = vmul.f32 %v7392, 1.442695
    %v7396 = vpow.pop %v7395
    %v7397 = vadd.f32 %v7394, 1.0
    %v7398 = vadd.f32 %v7396, 1.0
    %v7399 = vrcp.pop %v7397
    %v7400 = vmul.f32 %v7397, %v7399
    %v7401 = vsub.f32 1.0, %v7400
    %v7402 = vmul.f32 %v7399, %v7401
    %v7403 = vadd.f32 %v7399, %v7402
    %vm7404 = vweird.f32 %v7397
    %vm7405 = vweird.f32 %v7399
    %vm7406 = vmor %vm7404, %vm7405
    %v7407 = vsel %vm7406, %v7399, %v7403
    %v7408 = vand.u32 2147483647, %v7397
    %vm7409 = vcmp.eq.f32.partialorder %v7408, 8.507059e+37
    %v7410 = vand.u32 %v7397, 2147483648
    %v7411 = vor.u32 1.1754944e-38, %v7410
    %v7412 = vsel %vm7409, %v7411, %v7407
    %v7413 = vmul.f32 1.0, %v7412
    %v7414 = vrcp.pop %v7398
    %v7415 = vmul.f32 %v7398, %v7414
    %v7416 = vsub.f32 1.0, %v7415
    %v7417 = vmul.f32 %v7414, %v7416
    %v7418 = vadd.f32 %v7414, %v7417
    %vm7419 = vweird.f32 %v7398
    %vm7420 = vweird.f32 %v7414
    %vm7421 = vmor %vm7419, %vm7420
    %v7422 = vsel %vm7421, %v7414, %v7418
    %v7423 = vand.u32 2147483647, %v7398
    %vm7424 = vcmp.eq.f32.partialorder %v7423, 8.507059e+37
    %v7425 = vand.u32 %v7398, 2147483648
    %v7426 = vor.u32 1.1754944e-38, %v7425
    %v7427 = vsel %vm7424, %v7426, %v7422
    %v7428 = vmul.f32 1.0, %v7427
    %v7430 = vrot.slane %v7337, 4
    %v7431 = vrot.slane %v7337, 5
    %v7434 = vmul.f32 %v7368, %v7430
    %v7435 = vmul.f32 %v7383, %v7431
    %v7436 = vadd.f32 %v6547, %v7434
    %v7437 = vadd.f32 %v6550, %v7435
    %v7438 = vtanh.pop %v7436
    %v7439 = vtanh.pop %v7437
    %v7442 = vrot.slane %v7438, 1
    %v7443 = vrot.slane %v7439, 1
    %v7446 = vsub.f32 %v7271, %v7442
    %v7447 = vsub.f32 %v7272, %v7443
    %v7450 = vrot.slane %v7446, 7
    %v7451 = vrot.slane %v7447, 7
    %v7454 = vmul.f32 %v7413, %v7450
    %v7455 = vmul.f32 %v7428, %v7451
    %v7456 = vadd.f32 %v7438, %v7454
    %v7457 = vadd.f32 %v7439, %v7455
    %v7460 = vrot.slane %v7456, 4
    %v7461 = vrot.slane %v7457, 3
    %v7462 = vsel %vm621, %v7461, %v7460
    %7464 = vmatpush.msra.mxu0 %v6391
    %7465 = vmatpush.msra.mxu0 %v6388
    %7466 = vmatpush.msra.mxu0 %v6385
    %7467 = vmatpush.msra.mxu0 %v6382
    %7468 = vmatpush.msra.mxu0 %v6379
    %7469 = vmatpush.msra.mxu0 %v6376
    %7470 = vmatpush.msra.mxu0 %v6373
    %7471 = vmatpush.msra.mxu0 %v6370
    %7472 = vmatpush.msra.mxu0 %v6367
    %7473 = vmatpush.msra.mxu0 %v6364
    %7474 = vmatpush.msra.mxu0 %v6361
    %7475 = vmatpush.msra.mxu0 %v6358
    %7476 = vmatpush.msra.mxu0 %v6355
    %7477 = vmatpush.msra.mxu0 %v6352
    %7478 = vmatpush.msra.mxu0 %v6349
    %7479 = vmatpush.msra.mxu0 %v6346
    %7480 = vmatmul.f32.gmra.mxu0 %v7462
    %v7481 = vpop.f32.mrf.mxu0
    %v7482 = vadd.f32 %v6553, %v7481
    %7483 = vdwg.mxu0
    %7484 = vmatpush.msra.mxu0 %v6392
    %7485 = vmatpush.msra.mxu0 %v6389
    %7486 = vmatpush.msra.mxu0 %v6386
    %7487 = vmatpush.msra.mxu0 %v6383
    %7488 = vmatpush.msra.mxu0 %v6380
    %7489 = vmatpush.msra.mxu0 %v6377
    %7490 = vmatpush.msra.mxu0 %v6374
    %7491 = vmatpush.msra.mxu0 %v6371
    %7492 = vmatpush.msra.mxu0 %v6368
    %7493 = vmatpush.msra.mxu0 %v6365
    %7494 = vmatpush.msra.mxu0 %v6362
    %7495 = vmatpush.msra.mxu0 %v6359
    %7496 = vmatpush.msra.mxu0 %v6356
    %7497 = vmatpush.msra.mxu0 %v6353
    %7498 = vmatpush.msra.mxu0 %v6350
    %7499 = vmatpush.msra.mxu0 %v6347
    %7500 = vmatmul.f32.gmra.mxu0 %v7462
    %v7501 = vpop.f32.mrf.mxu0
    %v7502 = vadd.f32 %v6554, %v7501
    %7503 = vdwg.mxu0
    %7504 = vmatpush.msra.mxu0 %v6393
    %7505 = vmatpush.msra.mxu0 %v6390
    %7506 = vmatpush.msra.mxu0 %v6387
    %7507 = vmatpush.msra.mxu0 %v6384
    %7508 = vmatpush.msra.mxu0 %v6381
    %7509 = vmatpush.msra.mxu0 %v6378
    %7510 = vmatpush.msra.mxu0 %v6375
    %7511 = vmatpush.msra.mxu0 %v6372
    %7512 = vmatpush.msra.mxu0 %v6369
    %7513 = vmatpush.msra.mxu0 %v6366
    %7514 = vmatpush.msra.mxu0 %v6363
    %7515 = vmatpush.msra.mxu0 %v6360
    %7516 = vmatpush.msra.mxu0 %v6357
    %7517 = vmatpush.msra.mxu0 %v6354
    %7518 = vmatpush.msra.mxu0 %v6351
    %7519 = vmatpush.msra.mxu0 %v6348
    %7520 = vmatmul.f32.gmra.mxu0 %v7462
    %v7521 = vpop.f32.mrf.mxu0
    %v7522 = vadd.f32 %v6555, %v7521
    %7523 = vdwg.mxu0
    %v7525 = vrot.slane %v7482, 3
    %v7526 = vrot.slane %v7482, 4
    %v7529 = vadd.f32 %v6501, %v7525
    %v7530 = vadd.f32 %v6504, %v7526
    %v7531 = vxor.u32 %v7529, 2147483648
    %v7532 = vxor.u32 %v7530, 2147483648
    %v7533 = vmul.f32 %v7531, 1.442695
    %v7534 = vpow.pop %v7533
    %v7535 = vmul.f32 %v7532, 1.442695
    %v7536 = vpow.pop %v7535
    %v7537 = vadd.f32 %v7534, 1.0
    %v7538 = vadd.f32 %v7536, 1.0
    %v7539 = vrcp.pop %v7537
    %v7540 = vmul.f32 %v7537, %v7539
    %v7541 = vsub.f32 1.0, %v7540
    %v7542 = vmul.f32 %v7539, %v7541
    %v7543 = vadd.f32 %v7539, %v7542
    %vm7544 = vweird.f32 %v7537
    %vm7545 = vweird.f32 %v7539
    %vm7546 = vmor %vm7544, %vm7545
    %v7547 = vsel %vm7546, %v7539, %v7543
    %v7548 = vand.u32 2147483647, %v7537
    %vm7549 = vcmp.eq.f32.partialorder %v7548, 8.507059e+37
    %v7550 = vand.u32 %v7537, 2147483648
    %v7551 = vor.u32 1.1754944e-38, %v7550
    %v7552 = vsel %vm7549, %v7551, %v7547
    %v7553 = vmul.f32 1.0, %v7552
    %v7554 = vrcp.pop %v7538
    %v7555 = vmul.f32 %v7538, %v7554
    %v7556 = vsub.f32 1.0, %v7555
    %v7557 = vmul.f32 %v7554, %v7556
    %v7558 = vadd.f32 %v7554, %v7557
    %vm7559 = vweird.f32 %v7538
    %vm7560 = vweird.f32 %v7554
    %vm7561 = vmor %vm7559, %vm7560
    %v7562 = vsel %vm7561, %v7554, %v7558
    %v7563 = vand.u32 2147483647, %v7538
    %vm7564 = vcmp.eq.f32.partialorder %v7563, 8.507059e+37
    %v7565 = vand.u32 %v7538, 2147483648
    %v7566 = vor.u32 1.1754944e-38, %v7565
    %v7567 = vsel %vm7564, %v7566, %v7562
    %v7568 = vmul.f32 1.0, %v7567
    %v7570 = vrot.slane %v7502, 3
    %v7571 = vrot.slane %v7502, 4
    %v7574 = vadd.f32 %v6524, %v7570
    %v7575 = vadd.f32 %v6527, %v7571
    %v7576 = vxor.u32 %v7574, 2147483648
    %v7577 = vxor.u32 %v7575, 2147483648
    %v7578 = vmul.f32 %v7576, 1.442695
    %v7579 = vpow.pop %v7578
    %v7580 = vmul.f32 %v7577, 1.442695
    %v7581 = vpow.pop %v7580
    %v7582 = vadd.f32 %v7579, 1.0
    %v7583 = vadd.f32 %v7581, 1.0
    %v7584 = vrcp.pop %v7582
    %v7585 = vmul.f32 %v7582, %v7584
    %v7586 = vsub.f32 1.0, %v7585
    %v7587 = vmul.f32 %v7584, %v7586
    %v7588 = vadd.f32 %v7584, %v7587
    %vm7589 = vweird.f32 %v7582
    %vm7590 = vweird.f32 %v7584
    %vm7591 = vmor %vm7589, %vm7590
    %v7592 = vsel %vm7591, %v7584, %v7588
    %v7593 = vand.u32 2147483647, %v7582
    %vm7594 = vcmp.eq.f32.partialorder %v7593, 8.507059e+37
    %v7595 = vand.u32 %v7582, 2147483648
    %v7596 = vor.u32 1.1754944e-38, %v7595
    %v7597 = vsel %vm7594, %v7596, %v7592
    %v7598 = vmul.f32 1.0, %v7597
    %v7599 = vrcp.pop %v7583
    %v7600 = vmul.f32 %v7583, %v7599
    %v7601 = vsub.f32 1.0, %v7600
    %v7602 = vmul.f32 %v7599, %v7601
    %v7603 = vadd.f32 %v7599, %v7602
    %vm7604 = vweird.f32 %v7583
    %vm7605 = vweird.f32 %v7599
    %vm7606 = vmor %vm7604, %vm7605
    %v7607 = vsel %vm7606, %v7599, %v7603
    %v7608 = vand.u32 2147483647, %v7583
    %vm7609 = vcmp.eq.f32.partialorder %v7608, 8.507059e+37
    %v7610 = vand.u32 %v7583, 2147483648
    %v7611 = vor.u32 1.1754944e-38, %v7610
    %v7612 = vsel %vm7609, %v7611, %v7607
    %v7613 = vmul.f32 1.0, %v7612
    %v7615 = vrot.slane %v7522, 3
    %v7616 = vrot.slane %v7522, 4
    %v7619 = vmul.f32 %v7553, %v7615
    %v7620 = vmul.f32 %v7568, %v7616
    %v7621 = vadd.f32 %v6547, %v7619
    %v7622 = vadd.f32 %v6550, %v7620
    %v7623 = vtanh.pop %v7621
    %v7624 = vtanh.pop %v7622
    %v7627 = vrot.slane %v7623, 1
    %v7628 = vrot.slane %v7624, 1
    %v7631 = vsub.f32 %v7456, %v7627
    %v7632 = vsub.f32 %v7457, %v7628
    %v7635 = vrot.slane %v7631, 7
    %v7636 = vrot.slane %v7632, 7
    %v7639 = vmul.f32 %v7598, %v7635
    %v7640 = vmul.f32 %v7613, %v7636
    %v7641 = vadd.f32 %v7623, %v7639
    %v7642 = vadd.f32 %v7624, %v7640
    %v7645 = vrot.slane %v7641, 5
    %v7646 = vrot.slane %v7642, 4
    %v7647 = vsel %vm621, %v7646, %v7645
    %7649 = vmatpush.msra.mxu0 %v6391
    %7650 = vmatpush.msra.mxu0 %v6388
    %7651 = vmatpush.msra.mxu0 %v6385
    %7652 = vmatpush.msra.mxu0 %v6382
    %7653 = vmatpush.msra.mxu0 %v6379
    %7654 = vmatpush.msra.mxu0 %v6376
    %7655 = vmatpush.msra.mxu0 %v6373
    %7656 = vmatpush.msra.mxu0 %v6370
    %7657 = vmatpush.msra.mxu0 %v6367
    %7658 = vmatpush.msra.mxu0 %v6364
    %7659 = vmatpush.msra.mxu0 %v6361
    %7660 = vmatpush.msra.mxu0 %v6358
    %7661 = vmatpush.msra.mxu0 %v6355
    %7662 = vmatpush.msra.mxu0 %v6352
    %7663 = vmatpush.msra.mxu0 %v6349
    %7664 = vmatpush.msra.mxu0 %v6346
    %7665 = vmatmul.f32.gmra.mxu0 %v7647
    %v7666 = vpop.f32.mrf.mxu0
    %v7667 = vadd.f32 %v6553, %v7666
    %7668 = vdwg.mxu0
    %7669 = vmatpush.msra.mxu0 %v6392
    %7670 = vmatpush.msra.mxu0 %v6389
    %7671 = vmatpush.msra.mxu0 %v6386
    %7672 = vmatpush.msra.mxu0 %v6383
    %7673 = vmatpush.msra.mxu0 %v6380
    %7674 = vmatpush.msra.mxu0 %v6377
    %7675 = vmatpush.msra.mxu0 %v6374
    %7676 = vmatpush.msra.mxu0 %v6371
    %7677 = vmatpush.msra.mxu0 %v6368
    %7678 = vmatpush.msra.mxu0 %v6365
    %7679 = vmatpush.msra.mxu0 %v6362
    %7680 = vmatpush.msra.mxu0 %v6359
    %7681 = vmatpush.msra.mxu0 %v6356
    %7682 = vmatpush.msra.mxu0 %v6353
    %7683 = vmatpush.msra.mxu0 %v6350
    %7684 = vmatpush.msra.mxu0 %v6347
    %7685 = vmatmul.f32.gmra.mxu0 %v7647
    %v7686 = vpop.f32.mrf.mxu0
    %v7687 = vadd.f32 %v6554, %v7686
    %7688 = vdwg.mxu0
    %7689 = vmatpush.msra.mxu0 %v6393
    %7690 = vmatpush.msra.mxu0 %v6390
    %7691 = vmatpush.msra.mxu0 %v6387
    %7692 = vmatpush.msra.mxu0 %v6384
    %7693 = vmatpush.msra.mxu0 %v6381
    %7694 = vmatpush.msra.mxu0 %v6378
    %7695 = vmatpush.msra.mxu0 %v6375
    %7696 = vmatpush.msra.mxu0 %v6372
    %7697 = vmatpush.msra.mxu0 %v6369
    %7698 = vmatpush.msra.mxu0 %v6366
    %7699 = vmatpush.msra.mxu0 %v6363
    %7700 = vmatpush.msra.mxu0 %v6360
    %7701 = vmatpush.msra.mxu0 %v6357
    %7702 = vmatpush.msra.mxu0 %v6354
    %7703 = vmatpush.msra.mxu0 %v6351
    %7704 = vmatpush.msra.mxu0 %v6348
    %7705 = vmatmul.f32.gmra.mxu0 %v7647
    %v7706 = vpop.f32.mrf.mxu0
    %v7707 = vadd.f32 %v6555, %v7706
    %7708 = vdwg.mxu0
    %v7710 = vrot.slane %v7667, 2
    %v7711 = vrot.slane %v7667, 3
    %v7714 = vadd.f32 %v6501, %v7710
    %v7715 = vadd.f32 %v6504, %v7711
    %v7716 = vxor.u32 %v7714, 2147483648
    %v7717 = vxor.u32 %v7715, 2147483648
    %v7718 = vmul.f32 %v7716, 1.442695
    %v7719 = vpow.pop %v7718
    %v7720 = vmul.f32 %v7717, 1.442695
    %v7721 = vpow.pop %v7720
    %v7722 = vadd.f32 %v7719, 1.0
    %v7723 = vadd.f32 %v7721, 1.0
    %v7724 = vrcp.pop %v7722
    %v7725 = vmul.f32 %v7722, %v7724
    %v7726 = vsub.f32 1.0, %v7725
    %v7727 = vmul.f32 %v7724, %v7726
    %v7728 = vadd.f32 %v7724, %v7727
    %vm7729 = vweird.f32 %v7722
    %vm7730 = vweird.f32 %v7724
    %vm7731 = vmor %vm7729, %vm7730
    %v7732 = vsel %vm7731, %v7724, %v7728
    %v7733 = vand.u32 2147483647, %v7722
    %vm7734 = vcmp.eq.f32.partialorder %v7733, 8.507059e+37
    %v7735 = vand.u32 %v7722, 2147483648
    %v7736 = vor.u32 1.1754944e-38, %v7735
    %v7737 = vsel %vm7734, %v7736, %v7732
    %v7738 = vmul.f32 1.0, %v7737
    %v7739 = vrcp.pop %v7723
    %v7740 = vmul.f32 %v7723, %v7739
    %v7741 = vsub.f32 1.0, %v7740
    %v7742 = vmul.f32 %v7739, %v7741
    %v7743 = vadd.f32 %v7739, %v7742
    %vm7744 = vweird.f32 %v7723
    %vm7745 = vweird.f32 %v7739
    %vm7746 = vmor %vm7744, %vm7745
    %v7747 = vsel %vm7746, %v7739, %v7743
    %v7748 = vand.u32 2147483647, %v7723
    %vm7749 = vcmp.eq.f32.partialorder %v7748, 8.507059e+37
    %v7750 = vand.u32 %v7723, 2147483648
    %v7751 = vor.u32 1.1754944e-38, %v7750
    %v7752 = vsel %vm7749, %v7751, %v7747
    %v7753 = vmul.f32 1.0, %v7752
    %v7755 = vrot.slane %v7687, 2
    %v7756 = vrot.slane %v7687, 3
    %v7759 = vadd.f32 %v6524, %v7755
    %v7760 = vadd.f32 %v6527, %v7756
    %v7761 = vxor.u32 %v7759, 2147483648
    %v7762 = vxor.u32 %v7760, 2147483648
    %v7763 = vmul.f32 %v7761, 1.442695
    %v7764 = vpow.pop %v7763
    %v7765 = vmul.f32 %v7762, 1.442695
    %v7766 = vpow.pop %v7765
    %v7767 = vadd.f32 %v7764, 1.0
    %v7768 = vadd.f32 %v7766, 1.0
    %v7769 = vrcp.pop %v7767
    %v7770 = vmul.f32 %v7767, %v7769
    %v7771 = vsub.f32 1.0, %v7770
    %v7772 = vmul.f32 %v7769, %v7771
    %v7773 = vadd.f32 %v7769, %v7772
    %vm7774 = vweird.f32 %v7767
    %vm7775 = vweird.f32 %v7769
    %vm7776 = vmor %vm7774, %vm7775
    %v7777 = vsel %vm7776, %v7769, %v7773
    %v7778 = vand.u32 2147483647, %v7767
    %vm7779 = vcmp.eq.f32.partialorder %v7778, 8.507059e+37
    %v7780 = vand.u32 %v7767, 2147483648
    %v7781 = vor.u32 1.1754944e-38, %v7780
    %v7782 = vsel %vm7779, %v7781, %v7777
    %v7783 = vmul.f32 1.0, %v7782
    %v7784 = vrcp.pop %v7768
    %v7785 = vmul.f32 %v7768, %v7784
    %v7786 = vsub.f32 1.0, %v7785
    %v7787 = vmul.f32 %v7784, %v7786
    %v7788 = vadd.f32 %v7784, %v7787
    %vm7789 = vweird.f32 %v7768
    %vm7790 = vweird.f32 %v7784
    %vm7791 = vmor %vm7789, %vm7790
    %v7792 = vsel %vm7791, %v7784, %v7788
    %v7793 = vand.u32 2147483647, %v7768
    %vm7794 = vcmp.eq.f32.partialorder %v7793, 8.507059e+37
    %v7795 = vand.u32 %v7768, 2147483648
    %v7796 = vor.u32 1.1754944e-38, %v7795
    %v7797 = vsel %vm7794, %v7796, %v7792
    %v7798 = vmul.f32 1.0, %v7797
    %v7800 = vrot.slane %v7707, 2
    %v7801 = vrot.slane %v7707, 3
    %v7804 = vmul.f32 %v7738, %v7800
    %v7805 = vmul.f32 %v7753, %v7801
    %v7806 = vadd.f32 %v6547, %v7804
    %v7807 = vadd.f32 %v6550, %v7805
    %v7808 = vtanh.pop %v7806
    %v7809 = vtanh.pop %v7807
    %v7812 = vrot.slane %v7808, 1
    %v7813 = vrot.slane %v7809, 1
    %v7816 = vsub.f32 %v7641, %v7812
    %v7817 = vsub.f32 %v7642, %v7813
    %v7820 = vrot.slane %v7816, 7
    %v7821 = vrot.slane %v7817, 7
    %v7824 = vmul.f32 %v7783, %v7820
    %v7825 = vmul.f32 %v7798, %v7821
    %v7826 = vadd.f32 %v7808, %v7824
    %v7827 = vadd.f32 %v7809, %v7825
    %v7830 = vrot.slane %v7826, 6
    %v7831 = vrot.slane %v7827, 5
    %v7832 = vsel %vm621, %v7831, %v7830
    %7834 = vmatpush.msra.mxu0 %v6391
    %7835 = vmatpush.msra.mxu0 %v6388
    %7836 = vmatpush.msra.mxu0 %v6385
    %7837 = vmatpush.msra.mxu0 %v6382
    %7838 = vmatpush.msra.mxu0 %v6379
    %7839 = vmatpush.msra.mxu0 %v6376
    %7840 = vmatpush.msra.mxu0 %v6373
    %7841 = vmatpush.msra.mxu0 %v6370
    %7842 = vmatpush.msra.mxu0 %v6367
    %7843 = vmatpush.msra.mxu0 %v6364
    %7844 = vmatpush.msra.mxu0 %v6361
    %7845 = vmatpush.msra.mxu0 %v6358
    %7846 = vmatpush.msra.mxu0 %v6355
    %7847 = vmatpush.msra.mxu0 %v6352
    %7848 = vmatpush.msra.mxu0 %v6349
    %7849 = vmatpush.msra.mxu0 %v6346
    %7850 = vmatmul.f32.gmra.mxu0 %v7832
    %v7851 = vpop.f32.mrf.mxu0
    %v7852 = vadd.f32 %v6553, %v7851
    %7853 = vdwg.mxu0
    %7854 = vmatpush.msra.mxu0 %v6392
    %7855 = vmatpush.msra.mxu0 %v6389
    %7856 = vmatpush.msra.mxu0 %v6386
    %7857 = vmatpush.msra.mxu0 %v6383
    %7858 = vmatpush.msra.mxu0 %v6380
    %7859 = vmatpush.msra.mxu0 %v6377
    %7860 = vmatpush.msra.mxu0 %v6374
    %7861 = vmatpush.msra.mxu0 %v6371
    %7862 = vmatpush.msra.mxu0 %v6368
    %7863 = vmatpush.msra.mxu0 %v6365
    %7864 = vmatpush.msra.mxu0 %v6362
    %7865 = vmatpush.msra.mxu0 %v6359
    %7866 = vmatpush.msra.mxu0 %v6356
    %7867 = vmatpush.msra.mxu0 %v6353
    %7868 = vmatpush.msra.mxu0 %v6350
    %7869 = vmatpush.msra.mxu0 %v6347
    %7870 = vmatmul.f32.gmra.mxu0 %v7832
    %v7871 = vpop.f32.mrf.mxu0
    %v7872 = vadd.f32 %v6554, %v7871
    %7873 = vdwg.mxu0
    %7874 = vmatpush.msra.mxu0 %v6393
    %7875 = vmatpush.msra.mxu0 %v6390
    %7876 = vmatpush.msra.mxu0 %v6387
    %7877 = vmatpush.msra.mxu0 %v6384
    %7878 = vmatpush.msra.mxu0 %v6381
    %7879 = vmatpush.msra.mxu0 %v6378
    %7880 = vmatpush.msra.mxu0 %v6375
    %7881 = vmatpush.msra.mxu0 %v6372
    %7882 = vmatpush.msra.mxu0 %v6369
    %7883 = vmatpush.msra.mxu0 %v6366
    %7884 = vmatpush.msra.mxu0 %v6363
    %7885 = vmatpush.msra.mxu0 %v6360
    %7886 = vmatpush.msra.mxu0 %v6357
    %7887 = vmatpush.msra.mxu0 %v6354
    %7888 = vmatpush.msra.mxu0 %v6351
    %7889 = vmatpush.msra.mxu0 %v6348
    %7890 = vmatmul.f32.gmra.mxu0 %v7832
    %v7891 = vpop.f32.mrf.mxu0
    %v7892 = vadd.f32 %v6555, %v7891
    %7893 = vdwg.mxu0
    %v7895 = vrot.slane %v7852, 1
    %v7896 = vrot.slane %v7852, 2
    %v7899 = vadd.f32 %v6501, %v7895
    %v7900 = vadd.f32 %v6504, %v7896
    %v7901 = vxor.u32 %v7899, 2147483648
    %v7902 = vxor.u32 %v7900, 2147483648
    %v7903 = vmul.f32 %v7901, 1.442695
    %v7904 = vpow.pop %v7903
    %v7905 = vmul.f32 %v7902, 1.442695
    %v7906 = vpow.pop %v7905
    %v7907 = vadd.f32 %v7904, 1.0
    %v7908 = vadd.f32 %v7906, 1.0
    %v7909 = vrcp.pop %v7907
    %v7910 = vmul.f32 %v7907, %v7909
    %v7911 = vsub.f32 1.0, %v7910
    %v7912 = vmul.f32 %v7909, %v7911
    %v7913 = vadd.f32 %v7909, %v7912
    %vm7914 = vweird.f32 %v7907
    %vm7915 = vweird.f32 %v7909
    %vm7916 = vmor %vm7914, %vm7915
    %v7917 = vsel %vm7916, %v7909, %v7913
    %v7918 = vand.u32 2147483647, %v7907
    %vm7919 = vcmp.eq.f32.partialorder %v7918, 8.507059e+37
    %v7920 = vand.u32 %v7907, 2147483648
    %v7921 = vor.u32 1.1754944e-38, %v7920
    %v7922 = vsel %vm7919, %v7921, %v7917
    %v7923 = vmul.f32 1.0, %v7922
    %v7924 = vrcp.pop %v7908
    %v7925 = vmul.f32 %v7908, %v7924
    %v7926 = vsub.f32 1.0, %v7925
    %v7927 = vmul.f32 %v7924, %v7926
    %v7928 = vadd.f32 %v7924, %v7927
    %vm7929 = vweird.f32 %v7908
    %vm7930 = vweird.f32 %v7924
    %vm7931 = vmor %vm7929, %vm7930
    %v7932 = vsel %vm7931, %v7924, %v7928
    %v7933 = vand.u32 2147483647, %v7908
    %vm7934 = vcmp.eq.f32.partialorder %v7933, 8.507059e+37
    %v7935 = vand.u32 %v7908, 2147483648
    %v7936 = vor.u32 1.1754944e-38, %v7935
    %v7937 = vsel %vm7934, %v7936, %v7932
    %v7938 = vmul.f32 1.0, %v7937
    %v7940 = vrot.slane %v7872, 1
    %v7941 = vrot.slane %v7872, 2
    %v7944 = vadd.f32 %v6524, %v7940
    %v7945 = vadd.f32 %v6527, %v7941
    %v7946 = vxor.u32 %v7944, 2147483648
    %v7947 = vxor.u32 %v7945, 2147483648
    %v7948 = vmul.f32 %v7946, 1.442695
    %v7949 = vpow.pop %v7948
    %v7950 = vmul.f32 %v7947, 1.442695
    %v7951 = vpow.pop %v7950
    %v7952 = vadd.f32 %v7949, 1.0
    %v7953 = vadd.f32 %v7951, 1.0
    %v7954 = vrcp.pop %v7952
    %v7955 = vmul.f32 %v7952, %v7954
    %v7956 = vsub.f32 1.0, %v7955
    %v7957 = vmul.f32 %v7954, %v7956
    %v7958 = vadd.f32 %v7954, %v7957
    %vm7959 = vweird.f32 %v7952
    %vm7960 = vweird.f32 %v7954
    %vm7961 = vmor %vm7959, %vm7960
    %v7962 = vsel %vm7961, %v7954, %v7958
    %v7963 = vand.u32 2147483647, %v7952
    %vm7964 = vcmp.eq.f32.partialorder %v7963, 8.507059e+37
    %v7965 = vand.u32 %v7952, 2147483648
    %v7966 = vor.u32 1.1754944e-38, %v7965
    %v7967 = vsel %vm7964, %v7966, %v7962
    %v7968 = vmul.f32 1.0, %v7967
    %v7969 = vrcp.pop %v7953
    %v7970 = vmul.f32 %v7953, %v7969
    %v7971 = vsub.f32 1.0, %v7970
    %v7972 = vmul.f32 %v7969, %v7971
    %v7973 = vadd.f32 %v7969, %v7972
    %vm7974 = vweird.f32 %v7953
    %vm7975 = vweird.f32 %v7969
    %vm7976 = vmor %vm7974, %vm7975
    %v7977 = vsel %vm7976, %v7969, %v7973
    %v7978 = vand.u32 2147483647, %v7953
    %vm7979 = vcmp.eq.f32.partialorder %v7978, 8.507059e+37
    %v7980 = vand.u32 %v7953, 2147483648
    %v7981 = vor.u32 1.1754944e-38, %v7980
    %v7982 = vsel %vm7979, %v7981, %v7977
    %v7983 = vmul.f32 1.0, %v7982
    %v7985 = vrot.slane %v7892, 1
    %v7986 = vrot.slane %v7892, 2
    %v7989 = vmul.f32 %v7923, %v7985
    %v7990 = vmul.f32 %v7938, %v7986
    %v7991 = vadd.f32 %v6547, %v7989
    %v7992 = vadd.f32 %v6550, %v7990
    %v7993 = vtanh.pop %v7991
    %v7994 = vtanh.pop %v7992
    %v7997 = vrot.slane %v7993, 1
    %v7998 = vrot.slane %v7994, 1
    %v8001 = vsub.f32 %v7826, %v7997
    %v8002 = vsub.f32 %v7827, %v7998
    %v8005 = vrot.slane %v8001, 7
    %v8006 = vrot.slane %v8002, 7
    %v8009 = vmul.f32 %v7968, %v8005
    %v8010 = vmul.f32 %v7983, %v8006
    %v8011 = vadd.f32 %v7993, %v8009
    %v8012 = vadd.f32 %v7994, %v8010
    %v8013 = vsel %vm1909, %v6721, %v6902
    %v8014 = vsel %vm1911, %v8013, %v7086
    %v8015 = vsel %vm1913, %v8014, %v7271
    %v8016 = vsel %vm1915, %v8015, %v7456
    %v8017 = vsel %vm1917, %v8016, %v7641
    %v8018 = vsel %vm1919, %v8017, %v7826
    %v8019 = vsel %vm1921, %v8018, %v8011
    %v8020 = vsel %vm1909, %v6722, %v6903
    %v8021 = vsel %vm1911, %v8020, %v7087
    %v8022 = vsel %vm1913, %v8021, %v7272
    %v8023 = vsel %vm1915, %v8022, %v7457
    %v8024 = vsel %vm1917, %v8023, %v7642
    %v8025 = vsel %vm1919, %v8024, %v7827
    %v8026 = vsel %vm1921, %v8025, %v8012
    %v8027 = vadd.f32 %v6294, %v8019
    %v8028 = vadd.f32 %v6295, %v8026
    %8029 = vadd.xlane.f32.xlu0 %v8027
    %v8030 = vpop.xlane.xlu0 %8029
    %8031 = vadd.xlane.f32.xlu0 %v8028
    %v8032 = vpop.xlane.xlu0 %8031
    %v8033 = vmul.f32 %v8030, %v1942
    %v8034 = vmul.f32 %v8032, %v1942
    %v8035 = vsub.f32 %v8027, %v8033
    %v8036 = vsub.f32 %v8028, %v8034
    %v8037 = vmul.f32 %v8035, %v8035
    %v8038 = vmul.f32 %v8036, %v8036
    %8039 = vadd.xlane.f32.xlu0 %v8037
    %v8040 = vpop.xlane.xlu0 %8039
    %8041 = vadd.xlane.f32.xlu0 %v8038
    %v8042 = vpop.xlane.xlu0 %8041
    %v8043 = vmul.f32 %v8040, %v1942
    %v8044 = vmul.f32 %v8042, %v1942
    %v8045 = vadd.f32 %v8043, 1e-12
    %v8046 = vadd.f32 %v8044, 1e-12
    %v8047 = vrsqrt.pop %v8045
    %v8048 = vmul.f32 %v8047, %v8045
    %v8049 = vmul.f32 %v8048, %v8047
    %v8050 = vmul.f32 0.5, %v8049
    %v8051 = vsub.f32 1.5, %v8050
    %v8052 = vmul.f32 %v8047, %v8051
    %vm8053 = vweird.f32 %v8045
    %vm8054 = vweird.f32 %v8047
    %vm8055 = vmor %vm8053, %vm8054
    %v8056 = vsel %vm8055, %v8047, %v8052
    %v8057 = vrsqrt.pop %v8046
    %v8058 = vmul.f32 %v8057, %v8046
    %v8059 = vmul.f32 %v8058, %v8057
    %v8060 = vmul.f32 0.5, %v8059
    %v8061 = vsub.f32 1.5, %v8060
    %v8062 = vmul.f32 %v8057, %v8061
    %vm8063 = vweird.f32 %v8046
    %vm8064 = vweird.f32 %v8057
    %vm8065 = vmor %vm8063, %vm8064
    %v8066 = vsel %vm8065, %v8057, %v8062
    %v8067 = vmul.f32 %v8035, %v8056
    %v8068 = vmul.f32 %v8036, %v8066
    %v8070 = vperm.slane %v6399, 0
    %v8072 = vmul.f32 %v8070, %v8067
    %v8073 = vmul.f32 %v8070, %v8068
    %v8075 = vperm.slane %v6401, 0
    %v8077 = vadd.f32 %v8072, %v8075
    %v8078 = vadd.f32 %v8073, %v8075
    %v8080 = vperm.slane %v6452, 0
    %v8081 = vperm.slane %v6452, 1
    %v8082 = vperm.slane %v6452, 2
    %8086 = vmatpush.msra.mxu0 %v6448
    %8087 = vmatpush.msra.mxu0 %v6445
    %8088 = vmatpush.msra.mxu0 %v6442
    %8089 = vmatpush.msra.mxu0 %v6439
    %8090 = vmatpush.msra.mxu0 %v6436
    %8091 = vmatpush.msra.mxu0 %v6433
    %8092 = vmatpush.msra.mxu0 %v6430
    %8093 = vmatpush.msra.mxu0 %v6427
    %8094 = vmatpush.msra.mxu0 %v6424
    %8095 = vmatpush.msra.mxu0 %v6421
    %8096 = vmatpush.msra.mxu0 %v6418
    %8097 = vmatpush.msra.mxu0 %v6415
    %8098 = vmatpush.msra.mxu0 %v6412
    %8099 = vmatpush.msra.mxu0 %v6409
    %8100 = vmatpush.msra.mxu0 %v6406
    %8101 = vmatpush.msra.mxu0 %v6403
    %8102 = vmatmul.f32.gmra.mxu0 %v8077
    %v8103 = vpop.f32.mrf.mxu0
    %v8104 = vadd.f32 %v8080, %v8103
    %8105 = vmatmul.f32.gmra.mxu0 %v8078
    %v8106 = vpop.f32.mrf.mxu0
    %v8107 = vadd.f32 %v8080, %v8106
    %8108 = vdwg.mxu0
    %8109 = vmatpush.msra.mxu0 %v6449
    %8110 = vmatpush.msra.mxu0 %v6446
    %8111 = vmatpush.msra.mxu0 %v6443
    %8112 = vmatpush.msra.mxu0 %v6440
    %8113 = vmatpush.msra.mxu0 %v6437
    %8114 = vmatpush.msra.mxu0 %v6434
    %8115 = vmatpush.msra.mxu0 %v6431
    %8116 = vmatpush.msra.mxu0 %v6428
    %8117 = vmatpush.msra.mxu0 %v6425
    %8118 = vmatpush.msra.mxu0 %v6422
    %8119 = vmatpush.msra.mxu0 %v6419
    %8120 = vmatpush.msra.mxu0 %v6416
    %8121 = vmatpush.msra.mxu0 %v6413
    %8122 = vmatpush.msra.mxu0 %v6410
    %8123 = vmatpush.msra.mxu0 %v6407
    %8124 = vmatpush.msra.mxu0 %v6404
    %8125 = vmatmul.f32.gmra.mxu0 %v8077
    %v8126 = vpop.f32.mrf.mxu0
    %v8127 = vadd.f32 %v8081, %v8126
    %8128 = vmatmul.f32.gmra.mxu0 %v8078
    %v8129 = vpop.f32.mrf.mxu0
    %v8130 = vadd.f32 %v8081, %v8129
    %8131 = vdwg.mxu0
    %8132 = vmatpush.msra.mxu0 %v6450
    %8133 = vmatpush.msra.mxu0 %v6447
    %8134 = vmatpush.msra.mxu0 %v6444
    %8135 = vmatpush.msra.mxu0 %v6441
    %8136 = vmatpush.msra.mxu0 %v6438
    %8137 = vmatpush.msra.mxu0 %v6435
    %8138 = vmatpush.msra.mxu0 %v6432
    %8139 = vmatpush.msra.mxu0 %v6429
    %8140 = vmatpush.msra.mxu0 %v6426
    %8141 = vmatpush.msra.mxu0 %v6423
    %8142 = vmatpush.msra.mxu0 %v6420
    %8143 = vmatpush.msra.mxu0 %v6417
    %8144 = vmatpush.msra.mxu0 %v6414
    %8145 = vmatpush.msra.mxu0 %v6411
    %8146 = vmatpush.msra.mxu0 %v6408
    %8147 = vmatpush.msra.mxu0 %v6405
    %8148 = vmatmul.f32.gmra.mxu0 %v8077
    %v8149 = vpop.f32.mrf.mxu0
    %v8150 = vadd.f32 %v8082, %v8149
    %8151 = vmatmul.f32.gmra.mxu0 %v8078
    %v8152 = vpop.f32.mrf.mxu0
    %v8153 = vadd.f32 %v8082, %v8152
    %8154 = vdwg.mxu0
    %v8155 = vmul.f32 %v8104, 0.25
    %v8156 = vmul.f32 %v8107, 0.25
    %v8158 = vsel %vm2067, %v8155, 0
    %v8161 = vsel %vm2067, %v8127, 0
    %8163 = vmatpush.xpose.msra.mxu0 0.0
    %8164 = vmatpush.xpose.msra.mxu0 0.0
    %8165 = vmatpush.xpose.msra.mxu0 0.0
    %8166 = vmatpush.xpose.msra.mxu0 0.0
    %8167 = vmatpush.xpose.msra.mxu0 0.0
    %8168 = vmatpush.xpose.msra.mxu0 0.0
    %8169 = vmatpush.xpose.msra.mxu0 0.0
    %8170 = vmatpush.xpose.msra.mxu0 0.0
    %8171 = vmatpush.xpose.msra.mxu0 0.0
    %8172 = vmatpush.xpose.msra.mxu0 0.0
    %8173 = vmatpush.xpose.msra.mxu0 0.0
    %8174 = vmatpush.xpose.msra.mxu0 0.0
    %8175 = vmatpush.xpose.msra.mxu0 0.0
    %8176 = vmatpush.xpose.msra.mxu0 0.0
    %8177 = vmatpush.xpose.msra.mxu0 0.0
    %8178 = vmatpush.xpose.msra.mxu0 %v8161
    %8179 = vmatmul.f32.gmra.mxu0 %v8158
    %v8180 = vpop.f32.mrf.mxu0
    %v8181 = vadd.f32 0.0, %v8180
    %8182 = vdwg.mxu0
    %v8184 = vsel %vm2067, %v8156, 0
    %v8187 = vsel %vm2067, %v8130, 0
    %8189 = vmatpush.xpose.msra.mxu0 0.0
    %8190 = vmatpush.xpose.msra.mxu0 0.0
    %8191 = vmatpush.xpose.msra.mxu0 0.0
    %8192 = vmatpush.xpose.msra.mxu0 0.0
    %8193 = vmatpush.xpose.msra.mxu0 0.0
    %8194 = vmatpush.xpose.msra.mxu0 0.0
    %8195 = vmatpush.xpose.msra.mxu0 0.0
    %8196 = vmatpush.xpose.msra.mxu0 0.0
    %8197 = vmatpush.xpose.msra.mxu0 0.0
    %8198 = vmatpush.xpose.msra.mxu0 0.0
    %8199 = vmatpush.xpose.msra.mxu0 0.0
    %8200 = vmatpush.xpose.msra.mxu0 0.0
    %8201 = vmatpush.xpose.msra.mxu0 0.0
    %8202 = vmatpush.xpose.msra.mxu0 0.0
    %8203 = vmatpush.xpose.msra.mxu0 0.0
    %8204 = vmatpush.xpose.msra.mxu0 %v8187
    %8205 = vmatmul.f32.gmra.mxu0 %v8184
    %v8206 = vpop.f32.mrf.mxu0
    %v8207 = vadd.f32 0.0, %v8206
    %8208 = vdwg.mxu0
    %v8209 = vsel %vm2120, %v8181, -inf
    %8210 = vmax.xlane.f32.xlu0 %v8209
    %v8211 = vpop.xlane.xlu0 %8210
    %v8212 = vsel %vm2120, %v8207, -inf
    %8213 = vmax.xlane.f32.xlu0 %v8212
    %v8214 = vpop.xlane.xlu0 %8213
    %v8215 = vsub.f32 %v8181, %v8211
    %v8216 = vsub.f32 %v8207, %v8214
    %v8217 = vmul.f32 %v8215, 1.442695
    %v8218 = vpow.pop %v8217
    %v8219 = vmul.f32 %v8216, 1.442695
    %v8220 = vpow.pop %v8219
    %v8221 = vsel %vm2120, %v8218, 0.0
    %8222 = vadd.xlane.f32.xlu0 %v8221
    %v8223 = vpop.xlane.xlu0 %8222
    %v8224 = vsel %vm2120, %v8220, 0.0
    %8225 = vadd.xlane.f32.xlu0 %v8224
    %v8226 = vpop.xlane.xlu0 %8225
    %v8227 = vrcp.pop %v8223
    %v8228 = vrcp.pop %v8226
    %v8229 = vmul.f32 %v8218, %v8227
    %v8230 = vmul.f32 %v8220, %v8228
    %v8232 = vsel %vm2120, %v8229, 0
    %8234 = vmatpush.msra.mxu0 0.0
    %8235 = vmatpush.msra.mxu0 0.0
    %8236 = vmatpush.msra.mxu0 0.0
    %8237 = vmatpush.msra.mxu0 0.0
    %8238 = vmatpush.msra.mxu0 0.0
    %8239 = vmatpush.msra.mxu0 0.0
    %8240 = vmatpush.msra.mxu0 0.0
    %8241 = vmatpush.msra.mxu0 0.0
    %8242 = vmatpush.msra.mxu0 0.0
    %8243 = vmatpush.msra.mxu0 0.0
    %8244 = vmatpush.msra.mxu0 0.0
    %8245 = vmatpush.msra.mxu0 0.0
    %8246 = vmatpush.msra.mxu0 0.0
    %8247 = vmatpush.msra.mxu0 0.0
    %8248 = vmatpush.msra.mxu0 0.0
    %8249 = vmatpush.msra.mxu0 %v8150
    %8250 = vmatmul.f32.gmra.mxu0 %v8232
    %v8251 = vpop.f32.mrf.mxu0
    %v8252 = vadd.f32 0.0, %v8251
    %8253 = vdwg.mxu0
    %v8255 = vsel %vm2120, %v8230, 0
    %8257 = vmatpush.msra.mxu0 0.0
    %8258 = vmatpush.msra.mxu0 0.0
    %8259 = vmatpush.msra.mxu0 0.0
    %8260 = vmatpush.msra.mxu0 0.0
    %8261 = vmatpush.msra.mxu0 0.0
    %8262 = vmatpush.msra.mxu0 0.0
    %8263 = vmatpush.msra.mxu0 0.0
    %8264 = vmatpush.msra.mxu0 0.0
    %8265 = vmatpush.msra.mxu0 0.0
    %8266 = vmatpush.msra.mxu0 0.0
    %8267 = vmatpush.msra.mxu0 0.0
    %8268 = vmatpush.msra.mxu0 0.0
    %8269 = vmatpush.msra.mxu0 0.0
    %8270 = vmatpush.msra.mxu0 0.0
    %8271 = vmatpush.msra.mxu0 0.0
    %8272 = vmatpush.msra.mxu0 %v8153
    %8273 = vmatmul.f32.gmra.mxu0 %v8255
    %v8274 = vpop.f32.mrf.mxu0
    %v8275 = vadd.f32 0.0, %v8274
    %8276 = vdwg.mxu0
    %8277 = vrot.lane.b32.xlu0 %v8155, 112
    %v8278 = vpop.permute.xlu0 %8277
    %8279 = vrot.lane.b32.xlu0 %v8127, 112
    %v8280 = vpop.permute.xlu0 %8279
    %v8281 = vsel %vm2067, %v8278, 0
    %v8283 = vsel %vm2067, %v8280, 0
    %8285 = vmatpush.xpose.msra.mxu0 0.0
    %8286 = vmatpush.xpose.msra.mxu0 0.0
    %8287 = vmatpush.xpose.msra.mxu0 0.0
    %8288 = vmatpush.xpose.msra.mxu0 0.0
    %8289 = vmatpush.xpose.msra.mxu0 0.0
    %8290 = vmatpush.xpose.msra.mxu0 0.0
    %8291 = vmatpush.xpose.msra.mxu0 0.0
    %8292 = vmatpush.xpose.msra.mxu0 0.0
    %8293 = vmatpush.xpose.msra.mxu0 0.0
    %8294 = vmatpush.xpose.msra.mxu0 0.0
    %8295 = vmatpush.xpose.msra.mxu0 0.0
    %8296 = vmatpush.xpose.msra.mxu0 0.0
    %8297 = vmatpush.xpose.msra.mxu0 0.0
    %8298 = vmatpush.xpose.msra.mxu0 0.0
    %8299 = vmatpush.xpose.msra.mxu0 0.0
    %8300 = vmatpush.xpose.msra.mxu0 %v8283
    %8301 = vmatmul.f32.gmra.mxu0 %v8281
    %v8302 = vpop.f32.mrf.mxu0
    %v8303 = vadd.f32 0.0, %v8302
    %8304 = vdwg.mxu0
    %8305 = vrot.lane.b32.xlu0 %v8156, 112
    %v8306 = vpop.permute.xlu0 %8305
    %8307 = vrot.lane.b32.xlu0 %v8130, 112
    %v8308 = vpop.permute.xlu0 %8307
    %v8309 = vsel %vm2067, %v8306, 0
    %v8311 = vsel %vm2067, %v8308, 0
    %8313 = vmatpush.xpose.msra.mxu0 0.0
    %8314 = vmatpush.xpose.msra.mxu0 0.0
    %8315 = vmatpush.xpose.msra.mxu0 0.0
    %8316 = vmatpush.xpose.msra.mxu0 0.0
    %8317 = vmatpush.xpose.msra.mxu0 0.0
    %8318 = vmatpush.xpose.msra.mxu0 0.0
    %8319 = vmatpush.xpose.msra.mxu0 0.0
    %8320 = vmatpush.xpose.msra.mxu0 0.0
    %8321 = vmatpush.xpose.msra.mxu0 0.0
    %8322 = vmatpush.xpose.msra.mxu0 0.0
    %8323 = vmatpush.xpose.msra.mxu0 0.0
    %8324 = vmatpush.xpose.msra.mxu0 0.0
    %8325 = vmatpush.xpose.msra.mxu0 0.0
    %8326 = vmatpush.xpose.msra.mxu0 0.0
    %8327 = vmatpush.xpose.msra.mxu0 0.0
    %8328 = vmatpush.xpose.msra.mxu0 %v8311
    %8329 = vmatmul.f32.gmra.mxu0 %v8309
    %v8330 = vpop.f32.mrf.mxu0
    %v8331 = vadd.f32 0.0, %v8330
    %8332 = vdwg.mxu0
    %v8333 = vsel %vm2120, %v8303, -inf
    %8334 = vmax.xlane.f32.xlu0 %v8333
    %v8335 = vpop.xlane.xlu0 %8334
    %v8336 = vsel %vm2120, %v8331, -inf
    %8337 = vmax.xlane.f32.xlu0 %v8336
    %v8338 = vpop.xlane.xlu0 %8337
    %v8339 = vsub.f32 %v8303, %v8335
    %v8340 = vsub.f32 %v8331, %v8338
    %v8341 = vmul.f32 %v8339, 1.442695
    %v8342 = vpow.pop %v8341
    %v8343 = vmul.f32 %v8340, 1.442695
    %v8344 = vpow.pop %v8343
    %v8345 = vsel %vm2120, %v8342, 0.0
    %8346 = vadd.xlane.f32.xlu0 %v8345
    %v8347 = vpop.xlane.xlu0 %8346
    %v8348 = vsel %vm2120, %v8344, 0.0
    %8349 = vadd.xlane.f32.xlu0 %v8348
    %v8350 = vpop.xlane.xlu0 %8349
    %v8351 = vrcp.pop %v8347
    %v8352 = vrcp.pop %v8350
    %v8353 = vmul.f32 %v8342, %v8351
    %v8354 = vmul.f32 %v8344, %v8352
    %8356 = vrot.lane.b32.xlu0 %v8150, 112
    %v8357 = vpop.permute.xlu0 %8356
    %v8360 = vsel %vm2120, %v8353, 0
    %8362 = vmatpush.msra.mxu0 0.0
    %8363 = vmatpush.msra.mxu0 0.0
    %8364 = vmatpush.msra.mxu0 0.0
    %8365 = vmatpush.msra.mxu0 0.0
    %8366 = vmatpush.msra.mxu0 0.0
    %8367 = vmatpush.msra.mxu0 0.0
    %8368 = vmatpush.msra.mxu0 0.0
    %8369 = vmatpush.msra.mxu0 0.0
    %8370 = vmatpush.msra.mxu0 0.0
    %8371 = vmatpush.msra.mxu0 0.0
    %8372 = vmatpush.msra.mxu0 0.0
    %8373 = vmatpush.msra.mxu0 0.0
    %8374 = vmatpush.msra.mxu0 0.0
    %8375 = vmatpush.msra.mxu0 0.0
    %8376 = vmatpush.msra.mxu0 0.0
    %8377 = vmatpush.msra.mxu0 %v8357
    %8378 = vmatmul.f32.gmra.mxu0 %v8360
    %v8379 = vpop.f32.mrf.mxu0
    %v8380 = vadd.f32 0.0, %v8379
    %8381 = vdwg.mxu0
    %8383 = vrot.lane.b32.xlu0 %v8153, 112
    %v8384 = vpop.permute.xlu0 %8383
    %v8387 = vsel %vm2120, %v8354, 0
    %8389 = vmatpush.msra.mxu0 0.0
    %8390 = vmatpush.msra.mxu0 0.0
    %8391 = vmatpush.msra.mxu0 0.0
    %8392 = vmatpush.msra.mxu0 0.0
    %8393 = vmatpush.msra.mxu0 0.0
    %8394 = vmatpush.msra.mxu0 0.0
    %8395 = vmatpush.msra.mxu0 0.0
    %8396 = vmatpush.msra.mxu0 0.0
    %8397 = vmatpush.msra.mxu0 0.0
    %8398 = vmatpush.msra.mxu0 0.0
    %8399 = vmatpush.msra.mxu0 0.0
    %8400 = vmatpush.msra.mxu0 0.0
    %8401 = vmatpush.msra.mxu0 0.0
    %8402 = vmatpush.msra.mxu0 0.0
    %8403 = vmatpush.msra.mxu0 0.0
    %8404 = vmatpush.msra.mxu0 %v8384
    %8405 = vmatmul.f32.gmra.mxu0 %v8387
    %v8406 = vpop.f32.mrf.mxu0
    %v8407 = vadd.f32 0.0, %v8406
    %8408 = vdwg.mxu0
    %8409 = vrot.lane.b32.xlu0 %v8155, 96
    %v8410 = vpop.permute.xlu0 %8409
    %8411 = vrot.lane.b32.xlu0 %v8127, 96
    %v8412 = vpop.permute.xlu0 %8411
    %v8413 = vsel %vm2067, %v8410, 0
    %v8415 = vsel %vm2067, %v8412, 0
    %8417 = vmatpush.xpose.msra.mxu0 0.0
    %8418 = vmatpush.xpose.msra.mxu0 0.0
    %8419 = vmatpush.xpose.msra.mxu0 0.0
    %8420 = vmatpush.xpose.msra.mxu0 0.0
    %8421 = vmatpush.xpose.msra.mxu0 0.0
    %8422 = vmatpush.xpose.msra.mxu0 0.0
    %8423 = vmatpush.xpose.msra.mxu0 0.0
    %8424 = vmatpush.xpose.msra.mxu0 0.0
    %8425 = vmatpush.xpose.msra.mxu0 0.0
    %8426 = vmatpush.xpose.msra.mxu0 0.0
    %8427 = vmatpush.xpose.msra.mxu0 0.0
    %8428 = vmatpush.xpose.msra.mxu0 0.0
    %8429 = vmatpush.xpose.msra.mxu0 0.0
    %8430 = vmatpush.xpose.msra.mxu0 0.0
    %8431 = vmatpush.xpose.msra.mxu0 0.0
    %8432 = vmatpush.xpose.msra.mxu0 %v8415
    %8433 = vmatmul.f32.gmra.mxu0 %v8413
    %v8434 = vpop.f32.mrf.mxu0
    %v8435 = vadd.f32 0.0, %v8434
    %8436 = vdwg.mxu0
    %8437 = vrot.lane.b32.xlu0 %v8156, 96
    %v8438 = vpop.permute.xlu0 %8437
    %8439 = vrot.lane.b32.xlu0 %v8130, 96
    %v8440 = vpop.permute.xlu0 %8439
    %v8441 = vsel %vm2067, %v8438, 0
    %v8443 = vsel %vm2067, %v8440, 0
    %8445 = vmatpush.xpose.msra.mxu0 0.0
    %8446 = vmatpush.xpose.msra.mxu0 0.0
    %8447 = vmatpush.xpose.msra.mxu0 0.0
    %8448 = vmatpush.xpose.msra.mxu0 0.0
    %8449 = vmatpush.xpose.msra.mxu0 0.0
    %8450 = vmatpush.xpose.msra.mxu0 0.0
    %8451 = vmatpush.xpose.msra.mxu0 0.0
    %8452 = vmatpush.xpose.msra.mxu0 0.0
    %8453 = vmatpush.xpose.msra.mxu0 0.0
    %8454 = vmatpush.xpose.msra.mxu0 0.0
    %8455 = vmatpush.xpose.msra.mxu0 0.0
    %8456 = vmatpush.xpose.msra.mxu0 0.0
    %8457 = vmatpush.xpose.msra.mxu0 0.0
    %8458 = vmatpush.xpose.msra.mxu0 0.0
    %8459 = vmatpush.xpose.msra.mxu0 0.0
    %8460 = vmatpush.xpose.msra.mxu0 %v8443
    %8461 = vmatmul.f32.gmra.mxu0 %v8441
    %v8462 = vpop.f32.mrf.mxu0
    %v8463 = vadd.f32 0.0, %v8462
    %8464 = vdwg.mxu0
    %v8465 = vsel %vm2120, %v8435, -inf
    %8466 = vmax.xlane.f32.xlu0 %v8465
    %v8467 = vpop.xlane.xlu0 %8466
    %v8468 = vsel %vm2120, %v8463, -inf
    %8469 = vmax.xlane.f32.xlu0 %v8468
    %v8470 = vpop.xlane.xlu0 %8469
    %v8471 = vsub.f32 %v8435, %v8467
    %v8472 = vsub.f32 %v8463, %v8470
    %v8473 = vmul.f32 %v8471, 1.442695
    %v8474 = vpow.pop %v8473
    %v8475 = vmul.f32 %v8472, 1.442695
    %v8476 = vpow.pop %v8475
    %v8477 = vsel %vm2120, %v8474, 0.0
    %8478 = vadd.xlane.f32.xlu0 %v8477
    %v8479 = vpop.xlane.xlu0 %8478
    %v8480 = vsel %vm2120, %v8476, 0.0
    %8481 = vadd.xlane.f32.xlu0 %v8480
    %v8482 = vpop.xlane.xlu0 %8481
    %v8483 = vrcp.pop %v8479
    %v8484 = vrcp.pop %v8482
    %v8485 = vmul.f32 %v8474, %v8483
    %v8486 = vmul.f32 %v8476, %v8484
    %8487 = vrot.lane.b32.xlu0 %v8150, 96
    %v8488 = vpop.permute.xlu0 %8487
    %v8491 = vsel %vm2120, %v8485, 0
    %8493 = vmatpush.msra.mxu0 0.0
    %8494 = vmatpush.msra.mxu0 0.0
    %8495 = vmatpush.msra.mxu0 0.0
    %8496 = vmatpush.msra.mxu0 0.0
    %8497 = vmatpush.msra.mxu0 0.0
    %8498 = vmatpush.msra.mxu0 0.0
    %8499 = vmatpush.msra.mxu0 0.0
    %8500 = vmatpush.msra.mxu0 0.0
    %8501 = vmatpush.msra.mxu0 0.0
    %8502 = vmatpush.msra.mxu0 0.0
    %8503 = vmatpush.msra.mxu0 0.0
    %8504 = vmatpush.msra.mxu0 0.0
    %8505 = vmatpush.msra.mxu0 0.0
    %8506 = vmatpush.msra.mxu0 0.0
    %8507 = vmatpush.msra.mxu0 0.0
    %8508 = vmatpush.msra.mxu0 %v8488
    %8509 = vmatmul.f32.gmra.mxu0 %v8491
    %v8510 = vpop.f32.mrf.mxu0
    %v8511 = vadd.f32 0.0, %v8510
    %8512 = vdwg.mxu0
    %8513 = vrot.lane.b32.xlu0 %v8153, 96
    %v8514 = vpop.permute.xlu0 %8513
    %v8517 = vsel %vm2120, %v8486, 0
    %8519 = vmatpush.msra.mxu0 0.0
    %8520 = vmatpush.msra.mxu0 0.0
    %8521 = vmatpush.msra.mxu0 0.0
    %8522 = vmatpush.msra.mxu0 0.0
    %8523 = vmatpush.msra.mxu0 0.0
    %8524 = vmatpush.msra.mxu0 0.0
    %8525 = vmatpush.msra.mxu0 0.0
    %8526 = vmatpush.msra.mxu0 0.0
    %8527 = vmatpush.msra.mxu0 0.0
    %8528 = vmatpush.msra.mxu0 0.0
    %8529 = vmatpush.msra.mxu0 0.0
    %8530 = vmatpush.msra.mxu0 0.0
    %8531 = vmatpush.msra.mxu0 0.0
    %8532 = vmatpush.msra.mxu0 0.0
    %8533 = vmatpush.msra.mxu0 0.0
    %8534 = vmatpush.msra.mxu0 %v8514
    %8535 = vmatmul.f32.gmra.mxu0 %v8517
    %v8536 = vpop.f32.mrf.mxu0
    %v8537 = vadd.f32 0.0, %v8536
    %8538 = vdwg.mxu0
    %8539 = vrot.lane.b32.xlu0 %v8155, 80
    %v8540 = vpop.permute.xlu0 %8539
    %8541 = vrot.lane.b32.xlu0 %v8127, 80
    %v8542 = vpop.permute.xlu0 %8541
    %v8543 = vsel %vm2067, %v8540, 0
    %v8545 = vsel %vm2067, %v8542, 0
    %8547 = vmatpush.xpose.msra.mxu0 0.0
    %8548 = vmatpush.xpose.msra.mxu0 0.0
    %8549 = vmatpush.xpose.msra.mxu0 0.0
    %8550 = vmatpush.xpose.msra.mxu0 0.0
    %8551 = vmatpush.xpose.msra.mxu0 0.0
    %8552 = vmatpush.xpose.msra.mxu0 0.0
    %8553 = vmatpush.xpose.msra.mxu0 0.0
    %8554 = vmatpush.xpose.msra.mxu0 0.0
    %8555 = vmatpush.xpose.msra.mxu0 0.0
    %8556 = vmatpush.xpose.msra.mxu0 0.0
    %8557 = vmatpush.xpose.msra.mxu0 0.0
    %8558 = vmatpush.xpose.msra.mxu0 0.0
    %8559 = vmatpush.xpose.msra.mxu0 0.0
    %8560 = vmatpush.xpose.msra.mxu0 0.0
    %8561 = vmatpush.xpose.msra.mxu0 0.0
    %8562 = vmatpush.xpose.msra.mxu0 %v8545
    %8563 = vmatmul.f32.gmra.mxu0 %v8543
    %v8564 = vpop.f32.mrf.mxu0
    %v8565 = vadd.f32 0.0, %v8564
    %8566 = vdwg.mxu0
    %8567 = vrot.lane.b32.xlu0 %v8156, 80
    %v8568 = vpop.permute.xlu0 %8567
    %8569 = vrot.lane.b32.xlu0 %v8130, 80
    %v8570 = vpop.permute.xlu0 %8569
    %v8571 = vsel %vm2067, %v8568, 0
    %v8573 = vsel %vm2067, %v8570, 0
    %8575 = vmatpush.xpose.msra.mxu0 0.0
    %8576 = vmatpush.xpose.msra.mxu0 0.0
    %8577 = vmatpush.xpose.msra.mxu0 0.0
    %8578 = vmatpush.xpose.msra.mxu0 0.0
    %8579 = vmatpush.xpose.msra.mxu0 0.0
    %8580 = vmatpush.xpose.msra.mxu0 0.0
    %8581 = vmatpush.xpose.msra.mxu0 0.0
    %8582 = vmatpush.xpose.msra.mxu0 0.0
    %8583 = vmatpush.xpose.msra.mxu0 0.0
    %8584 = vmatpush.xpose.msra.mxu0 0.0
    %8585 = vmatpush.xpose.msra.mxu0 0.0
    %8586 = vmatpush.xpose.msra.mxu0 0.0
    %8587 = vmatpush.xpose.msra.mxu0 0.0
    %8588 = vmatpush.xpose.msra.mxu0 0.0
    %8589 = vmatpush.xpose.msra.mxu0 0.0
    %8590 = vmatpush.xpose.msra.mxu0 %v8573
    %8591 = vmatmul.f32.gmra.mxu0 %v8571
    %v8592 = vpop.f32.mrf.mxu0
    %v8593 = vadd.f32 0.0, %v8592
    %8594 = vdwg.mxu0
    %v8595 = vsel %vm2120, %v8565, -inf
    %8596 = vmax.xlane.f32.xlu0 %v8595
    %v8597 = vpop.xlane.xlu0 %8596
    %v8598 = vsel %vm2120, %v8593, -inf
    %8599 = vmax.xlane.f32.xlu0 %v8598
    %v8600 = vpop.xlane.xlu0 %8599
    %v8601 = vsub.f32 %v8565, %v8597
    %v8602 = vsub.f32 %v8593, %v8600
    %v8603 = vmul.f32 %v8601, 1.442695
    %v8604 = vpow.pop %v8603
    %v8605 = vmul.f32 %v8602, 1.442695
    %v8606 = vpow.pop %v8605
    %v8607 = vsel %vm2120, %v8604, 0.0
    %8608 = vadd.xlane.f32.xlu0 %v8607
    %v8609 = vpop.xlane.xlu0 %8608
    %v8610 = vsel %vm2120, %v8606, 0.0
    %8611 = vadd.xlane.f32.xlu0 %v8610
    %v8612 = vpop.xlane.xlu0 %8611
    %v8613 = vrcp.pop %v8609
    %v8614 = vrcp.pop %v8612
    %v8615 = vmul.f32 %v8604, %v8613
    %v8616 = vmul.f32 %v8606, %v8614
    %8617 = vrot.lane.b32.xlu0 %v8150, 80
    %v8618 = vpop.permute.xlu0 %8617
    %v8621 = vsel %vm2120, %v8615, 0
    %8623 = vmatpush.msra.mxu0 0.0
    %8624 = vmatpush.msra.mxu0 0.0
    %8625 = vmatpush.msra.mxu0 0.0
    %8626 = vmatpush.msra.mxu0 0.0
    %8627 = vmatpush.msra.mxu0 0.0
    %8628 = vmatpush.msra.mxu0 0.0
    %8629 = vmatpush.msra.mxu0 0.0
    %8630 = vmatpush.msra.mxu0 0.0
    %8631 = vmatpush.msra.mxu0 0.0
    %8632 = vmatpush.msra.mxu0 0.0
    %8633 = vmatpush.msra.mxu0 0.0
    %8634 = vmatpush.msra.mxu0 0.0
    %8635 = vmatpush.msra.mxu0 0.0
    %8636 = vmatpush.msra.mxu0 0.0
    %8637 = vmatpush.msra.mxu0 0.0
    %8638 = vmatpush.msra.mxu0 %v8618
    %8639 = vmatmul.f32.gmra.mxu0 %v8621
    %v8640 = vpop.f32.mrf.mxu0
    %v8641 = vadd.f32 0.0, %v8640
    %8642 = vdwg.mxu0
    %8643 = vrot.lane.b32.xlu0 %v8153, 80
    %v8644 = vpop.permute.xlu0 %8643
    %v8647 = vsel %vm2120, %v8616, 0
    %8649 = vmatpush.msra.mxu0 0.0
    %8650 = vmatpush.msra.mxu0 0.0
    %8651 = vmatpush.msra.mxu0 0.0
    %8652 = vmatpush.msra.mxu0 0.0
    %8653 = vmatpush.msra.mxu0 0.0
    %8654 = vmatpush.msra.mxu0 0.0
    %8655 = vmatpush.msra.mxu0 0.0
    %8656 = vmatpush.msra.mxu0 0.0
    %8657 = vmatpush.msra.mxu0 0.0
    %8658 = vmatpush.msra.mxu0 0.0
    %8659 = vmatpush.msra.mxu0 0.0
    %8660 = vmatpush.msra.mxu0 0.0
    %8661 = vmatpush.msra.mxu0 0.0
    %8662 = vmatpush.msra.mxu0 0.0
    %8663 = vmatpush.msra.mxu0 0.0
    %8664 = vmatpush.msra.mxu0 %v8644
    %8665 = vmatmul.f32.gmra.mxu0 %v8647
    %v8666 = vpop.f32.mrf.mxu0
    %v8667 = vadd.f32 0.0, %v8666
    %8668 = vdwg.mxu0
    %8669 = vrot.lane.b32.xlu0 %v8155, 64
    %v8670 = vpop.permute.xlu0 %8669
    %8671 = vrot.lane.b32.xlu0 %v8127, 64
    %v8672 = vpop.permute.xlu0 %8671
    %v8673 = vsel %vm2067, %v8670, 0
    %v8675 = vsel %vm2067, %v8672, 0
    %8677 = vmatpush.xpose.msra.mxu0 0.0
    %8678 = vmatpush.xpose.msra.mxu0 0.0
    %8679 = vmatpush.xpose.msra.mxu0 0.0
    %8680 = vmatpush.xpose.msra.mxu0 0.0
    %8681 = vmatpush.xpose.msra.mxu0 0.0
    %8682 = vmatpush.xpose.msra.mxu0 0.0
    %8683 = vmatpush.xpose.msra.mxu0 0.0
    %8684 = vmatpush.xpose.msra.mxu0 0.0
    %8685 = vmatpush.xpose.msra.mxu0 0.0
    %8686 = vmatpush.xpose.msra.mxu0 0.0
    %8687 = vmatpush.xpose.msra.mxu0 0.0
    %8688 = vmatpush.xpose.msra.mxu0 0.0
    %8689 = vmatpush.xpose.msra.mxu0 0.0
    %8690 = vmatpush.xpose.msra.mxu0 0.0
    %8691 = vmatpush.xpose.msra.mxu0 0.0
    %8692 = vmatpush.xpose.msra.mxu0 %v8675
    %8693 = vmatmul.f32.gmra.mxu0 %v8673
    %v8694 = vpop.f32.mrf.mxu0
    %v8695 = vadd.f32 0.0, %v8694
    %8696 = vdwg.mxu0
    %8697 = vrot.lane.b32.xlu0 %v8156, 64
    %v8698 = vpop.permute.xlu0 %8697
    %8699 = vrot.lane.b32.xlu0 %v8130, 64
    %v8700 = vpop.permute.xlu0 %8699
    %v8701 = vsel %vm2067, %v8698, 0
    %v8703 = vsel %vm2067, %v8700, 0
    %8705 = vmatpush.xpose.msra.mxu0 0.0
    %8706 = vmatpush.xpose.msra.mxu0 0.0
    %8707 = vmatpush.xpose.msra.mxu0 0.0
    %8708 = vmatpush.xpose.msra.mxu0 0.0
    %8709 = vmatpush.xpose.msra.mxu0 0.0
    %8710 = vmatpush.xpose.msra.mxu0 0.0
    %8711 = vmatpush.xpose.msra.mxu0 0.0
    %8712 = vmatpush.xpose.msra.mxu0 0.0
    %8713 = vmatpush.xpose.msra.mxu0 0.0
    %8714 = vmatpush.xpose.msra.mxu0 0.0
    %8715 = vmatpush.xpose.msra.mxu0 0.0
    %8716 = vmatpush.xpose.msra.mxu0 0.0
    %8717 = vmatpush.xpose.msra.mxu0 0.0
    %8718 = vmatpush.xpose.msra.mxu0 0.0
    %8719 = vmatpush.xpose.msra.mxu0 0.0
    %8720 = vmatpush.xpose.msra.mxu0 %v8703
    %8721 = vmatmul.f32.gmra.mxu0 %v8701
    %v8722 = vpop.f32.mrf.mxu0
    %v8723 = vadd.f32 0.0, %v8722
    %8724 = vdwg.mxu0
    %v8725 = vsel %vm2120, %v8695, -inf
    %8726 = vmax.xlane.f32.xlu0 %v8725
    %v8727 = vpop.xlane.xlu0 %8726
    %v8728 = vsel %vm2120, %v8723, -inf
    %8729 = vmax.xlane.f32.xlu0 %v8728
    %v8730 = vpop.xlane.xlu0 %8729
    %v8731 = vsub.f32 %v8695, %v8727
    %v8732 = vsub.f32 %v8723, %v8730
    %v8733 = vmul.f32 %v8731, 1.442695
    %v8734 = vpow.pop %v8733
    %v8735 = vmul.f32 %v8732, 1.442695
    %v8736 = vpow.pop %v8735
    %v8737 = vsel %vm2120, %v8734, 0.0
    %8738 = vadd.xlane.f32.xlu0 %v8737
    %v8739 = vpop.xlane.xlu0 %8738
    %v8740 = vsel %vm2120, %v8736, 0.0
    %8741 = vadd.xlane.f32.xlu0 %v8740
    %v8742 = vpop.xlane.xlu0 %8741
    %v8743 = vrcp.pop %v8739
    %v8744 = vrcp.pop %v8742
    %v8745 = vmul.f32 %v8734, %v8743
    %v8746 = vmul.f32 %v8736, %v8744
    %8747 = vrot.lane.b32.xlu0 %v8150, 64
    %v8748 = vpop.permute.xlu0 %8747
    %v8751 = vsel %vm2120, %v8745, 0
    %8753 = vmatpush.msra.mxu0 0.0
    %8754 = vmatpush.msra.mxu0 0.0
    %8755 = vmatpush.msra.mxu0 0.0
    %8756 = vmatpush.msra.mxu0 0.0
    %8757 = vmatpush.msra.mxu0 0.0
    %8758 = vmatpush.msra.mxu0 0.0
    %8759 = vmatpush.msra.mxu0 0.0
    %8760 = vmatpush.msra.mxu0 0.0
    %8761 = vmatpush.msra.mxu0 0.0
    %8762 = vmatpush.msra.mxu0 0.0
    %8763 = vmatpush.msra.mxu0 0.0
    %8764 = vmatpush.msra.mxu0 0.0
    %8765 = vmatpush.msra.mxu0 0.0
    %8766 = vmatpush.msra.mxu0 0.0
    %8767 = vmatpush.msra.mxu0 0.0
    %8768 = vmatpush.msra.mxu0 %v8748
    %8769 = vmatmul.f32.gmra.mxu0 %v8751
    %v8770 = vpop.f32.mrf.mxu0
    %v8771 = vadd.f32 0.0, %v8770
    %8772 = vdwg.mxu0
    %8773 = vrot.lane.b32.xlu0 %v8153, 64
    %v8774 = vpop.permute.xlu0 %8773
    %v8777 = vsel %vm2120, %v8746, 0
    %8779 = vmatpush.msra.mxu0 0.0
    %8780 = vmatpush.msra.mxu0 0.0
    %8781 = vmatpush.msra.mxu0 0.0
    %8782 = vmatpush.msra.mxu0 0.0
    %8783 = vmatpush.msra.mxu0 0.0
    %8784 = vmatpush.msra.mxu0 0.0
    %8785 = vmatpush.msra.mxu0 0.0
    %8786 = vmatpush.msra.mxu0 0.0
    %8787 = vmatpush.msra.mxu0 0.0
    %8788 = vmatpush.msra.mxu0 0.0
    %8789 = vmatpush.msra.mxu0 0.0
    %8790 = vmatpush.msra.mxu0 0.0
    %8791 = vmatpush.msra.mxu0 0.0
    %8792 = vmatpush.msra.mxu0 0.0
    %8793 = vmatpush.msra.mxu0 0.0
    %8794 = vmatpush.msra.mxu0 %v8774
    %8795 = vmatmul.f32.gmra.mxu0 %v8777
    %v8796 = vpop.f32.mrf.mxu0
    %v8797 = vadd.f32 0.0, %v8796
    %8798 = vdwg.mxu0
    %8799 = vrot.lane.b32.xlu0 %v8155, 48
    %v8800 = vpop.permute.xlu0 %8799
    %8801 = vrot.lane.b32.xlu0 %v8127, 48
    %v8802 = vpop.permute.xlu0 %8801
    %v8803 = vsel %vm2067, %v8800, 0
    %v8805 = vsel %vm2067, %v8802, 0
    %8807 = vmatpush.xpose.msra.mxu0 0.0
    %8808 = vmatpush.xpose.msra.mxu0 0.0
    %8809 = vmatpush.xpose.msra.mxu0 0.0
    %8810 = vmatpush.xpose.msra.mxu0 0.0
    %8811 = vmatpush.xpose.msra.mxu0 0.0
    %8812 = vmatpush.xpose.msra.mxu0 0.0
    %8813 = vmatpush.xpose.msra.mxu0 0.0
    %8814 = vmatpush.xpose.msra.mxu0 0.0
    %8815 = vmatpush.xpose.msra.mxu0 0.0
    %8816 = vmatpush.xpose.msra.mxu0 0.0
    %8817 = vmatpush.xpose.msra.mxu0 0.0
    %8818 = vmatpush.xpose.msra.mxu0 0.0
    %8819 = vmatpush.xpose.msra.mxu0 0.0
    %8820 = vmatpush.xpose.msra.mxu0 0.0
    %8821 = vmatpush.xpose.msra.mxu0 0.0
    %8822 = vmatpush.xpose.msra.mxu0 %v8805
    %8823 = vmatmul.f32.gmra.mxu0 %v8803
    %v8824 = vpop.f32.mrf.mxu0
    %v8825 = vadd.f32 0.0, %v8824
    %8826 = vdwg.mxu0
    %8827 = vrot.lane.b32.xlu0 %v8156, 48
    %v8828 = vpop.permute.xlu0 %8827
    %8829 = vrot.lane.b32.xlu0 %v8130, 48
    %v8830 = vpop.permute.xlu0 %8829
    %v8831 = vsel %vm2067, %v8828, 0
    %v8833 = vsel %vm2067, %v8830, 0
    %8835 = vmatpush.xpose.msra.mxu0 0.0
    %8836 = vmatpush.xpose.msra.mxu0 0.0
    %8837 = vmatpush.xpose.msra.mxu0 0.0
    %8838 = vmatpush.xpose.msra.mxu0 0.0
    %8839 = vmatpush.xpose.msra.mxu0 0.0
    %8840 = vmatpush.xpose.msra.mxu0 0.0
    %8841 = vmatpush.xpose.msra.mxu0 0.0
    %8842 = vmatpush.xpose.msra.mxu0 0.0
    %8843 = vmatpush.xpose.msra.mxu0 0.0
    %8844 = vmatpush.xpose.msra.mxu0 0.0
    %8845 = vmatpush.xpose.msra.mxu0 0.0
    %8846 = vmatpush.xpose.msra.mxu0 0.0
    %8847 = vmatpush.xpose.msra.mxu0 0.0
    %8848 = vmatpush.xpose.msra.mxu0 0.0
    %8849 = vmatpush.xpose.msra.mxu0 0.0
    %8850 = vmatpush.xpose.msra.mxu0 %v8833
    %8851 = vmatmul.f32.gmra.mxu0 %v8831
    %v8852 = vpop.f32.mrf.mxu0
    %v8853 = vadd.f32 0.0, %v8852
    %8854 = vdwg.mxu0
    %v8855 = vsel %vm2120, %v8825, -inf
    %8856 = vmax.xlane.f32.xlu0 %v8855
    %v8857 = vpop.xlane.xlu0 %8856
    %v8858 = vsel %vm2120, %v8853, -inf
    %8859 = vmax.xlane.f32.xlu0 %v8858
    %v8860 = vpop.xlane.xlu0 %8859
    %v8861 = vsub.f32 %v8825, %v8857
    %v8862 = vsub.f32 %v8853, %v8860
    %v8863 = vmul.f32 %v8861, 1.442695
    %v8864 = vpow.pop %v8863
    %v8865 = vmul.f32 %v8862, 1.442695
    %v8866 = vpow.pop %v8865
    %v8867 = vsel %vm2120, %v8864, 0.0
    %8868 = vadd.xlane.f32.xlu0 %v8867
    %v8869 = vpop.xlane.xlu0 %8868
    %v8870 = vsel %vm2120, %v8866, 0.0
    %8871 = vadd.xlane.f32.xlu0 %v8870
    %v8872 = vpop.xlane.xlu0 %8871
    %v8873 = vrcp.pop %v8869
    %v8874 = vrcp.pop %v8872
    %v8875 = vmul.f32 %v8864, %v8873
    %v8876 = vmul.f32 %v8866, %v8874
    %8877 = vrot.lane.b32.xlu0 %v8150, 48
    %v8878 = vpop.permute.xlu0 %8877
    %v8881 = vsel %vm2120, %v8875, 0
    %8883 = vmatpush.msra.mxu0 0.0
    %8884 = vmatpush.msra.mxu0 0.0
    %8885 = vmatpush.msra.mxu0 0.0
    %8886 = vmatpush.msra.mxu0 0.0
    %8887 = vmatpush.msra.mxu0 0.0
    %8888 = vmatpush.msra.mxu0 0.0
    %8889 = vmatpush.msra.mxu0 0.0
    %8890 = vmatpush.msra.mxu0 0.0
    %8891 = vmatpush.msra.mxu0 0.0
    %8892 = vmatpush.msra.mxu0 0.0
    %8893 = vmatpush.msra.mxu0 0.0
    %8894 = vmatpush.msra.mxu0 0.0
    %8895 = vmatpush.msra.mxu0 0.0
    %8896 = vmatpush.msra.mxu0 0.0
    %8897 = vmatpush.msra.mxu0 0.0
    %8898 = vmatpush.msra.mxu0 %v8878
    %8899 = vmatmul.f32.gmra.mxu0 %v8881
    %v8900 = vpop.f32.mrf.mxu0
    %v8901 = vadd.f32 0.0, %v8900
    %8902 = vdwg.mxu0
    %8903 = vrot.lane.b32.xlu0 %v8153, 48
    %v8904 = vpop.permute.xlu0 %8903
    %v8907 = vsel %vm2120, %v8876, 0
    %8909 = vmatpush.msra.mxu0 0.0
    %8910 = vmatpush.msra.mxu0 0.0
    %8911 = vmatpush.msra.mxu0 0.0
    %8912 = vmatpush.msra.mxu0 0.0
    %8913 = vmatpush.msra.mxu0 0.0
    %8914 = vmatpush.msra.mxu0 0.0
    %8915 = vmatpush.msra.mxu0 0.0
    %8916 = vmatpush.msra.mxu0 0.0
    %8917 = vmatpush.msra.mxu0 0.0
    %8918 = vmatpush.msra.mxu0 0.0
    %8919 = vmatpush.msra.mxu0 0.0
    %8920 = vmatpush.msra.mxu0 0.0
    %8921 = vmatpush.msra.mxu0 0.0
    %8922 = vmatpush.msra.mxu0 0.0
    %8923 = vmatpush.msra.mxu0 0.0
    %8924 = vmatpush.msra.mxu0 %v8904
    %8925 = vmatmul.f32.gmra.mxu0 %v8907
    %v8926 = vpop.f32.mrf.mxu0
    %v8927 = vadd.f32 0.0, %v8926
    %8928 = vdwg.mxu0
    %8929 = vrot.lane.b32.xlu0 %v8155, 32
    %v8930 = vpop.permute.xlu0 %8929
    %8931 = vrot.lane.b32.xlu0 %v8127, 32
    %v8932 = vpop.permute.xlu0 %8931
    %v8933 = vsel %vm2067, %v8930, 0
    %v8935 = vsel %vm2067, %v8932, 0
    %8937 = vmatpush.xpose.msra.mxu0 0.0
    %8938 = vmatpush.xpose.msra.mxu0 0.0
    %8939 = vmatpush.xpose.msra.mxu0 0.0
    %8940 = vmatpush.xpose.msra.mxu0 0.0
    %8941 = vmatpush.xpose.msra.mxu0 0.0
    %8942 = vmatpush.xpose.msra.mxu0 0.0
    %8943 = vmatpush.xpose.msra.mxu0 0.0
    %8944 = vmatpush.xpose.msra.mxu0 0.0
    %8945 = vmatpush.xpose.msra.mxu0 0.0
    %8946 = vmatpush.xpose.msra.mxu0 0.0
    %8947 = vmatpush.xpose.msra.mxu0 0.0
    %8948 = vmatpush.xpose.msra.mxu0 0.0
    %8949 = vmatpush.xpose.msra.mxu0 0.0
    %8950 = vmatpush.xpose.msra.mxu0 0.0
    %8951 = vmatpush.xpose.msra.mxu0 0.0
    %8952 = vmatpush.xpose.msra.mxu0 %v8935
    %8953 = vmatmul.f32.gmra.mxu0 %v8933
    %v8954 = vpop.f32.mrf.mxu0
    %v8955 = vadd.f32 0.0, %v8954
    %8956 = vdwg.mxu0
    %8957 = vrot.lane.b32.xlu0 %v8156, 32
    %v8958 = vpop.permute.xlu0 %8957
    %8959 = vrot.lane.b32.xlu0 %v8130, 32
    %v8960 = vpop.permute.xlu0 %8959
    %v8961 = vsel %vm2067, %v8958, 0
    %v8963 = vsel %vm2067, %v8960, 0
    %8965 = vmatpush.xpose.msra.mxu0 0.0
    %8966 = vmatpush.xpose.msra.mxu0 0.0
    %8967 = vmatpush.xpose.msra.mxu0 0.0
    %8968 = vmatpush.xpose.msra.mxu0 0.0
    %8969 = vmatpush.xpose.msra.mxu0 0.0
    %8970 = vmatpush.xpose.msra.mxu0 0.0
    %8971 = vmatpush.xpose.msra.mxu0 0.0
    %8972 = vmatpush.xpose.msra.mxu0 0.0
    %8973 = vmatpush.xpose.msra.mxu0 0.0
    %8974 = vmatpush.xpose.msra.mxu0 0.0
    %8975 = vmatpush.xpose.msra.mxu0 0.0
    %8976 = vmatpush.xpose.msra.mxu0 0.0
    %8977 = vmatpush.xpose.msra.mxu0 0.0
    %8978 = vmatpush.xpose.msra.mxu0 0.0
    %8979 = vmatpush.xpose.msra.mxu0 0.0
    %8980 = vmatpush.xpose.msra.mxu0 %v8963
    %8981 = vmatmul.f32.gmra.mxu0 %v8961
    %v8982 = vpop.f32.mrf.mxu0
    %v8983 = vadd.f32 0.0, %v8982
    %8984 = vdwg.mxu0
    %v8985 = vsel %vm2120, %v8955, -inf
    %8986 = vmax.xlane.f32.xlu0 %v8985
    %v8987 = vpop.xlane.xlu0 %8986
    %v8988 = vsel %vm2120, %v8983, -inf
    %8989 = vmax.xlane.f32.xlu0 %v8988
    %v8990 = vpop.xlane.xlu0 %8989
    %v8991 = vsub.f32 %v8955, %v8987
    %v8992 = vsub.f32 %v8983, %v8990
    %v8993 = vmul.f32 %v8991, 1.442695
    %v8994 = vpow.pop %v8993
    %v8995 = vmul.f32 %v8992, 1.442695
    %v8996 = vpow.pop %v8995
    %v8997 = vsel %vm2120, %v8994, 0.0
    %8998 = vadd.xlane.f32.xlu0 %v8997
    %v8999 = vpop.xlane.xlu0 %8998
    %v9000 = vsel %vm2120, %v8996, 0.0
    %9001 = vadd.xlane.f32.xlu0 %v9000
    %v9002 = vpop.xlane.xlu0 %9001
    %v9003 = vrcp.pop %v8999
    %v9004 = vrcp.pop %v9002
    %v9005 = vmul.f32 %v8994, %v9003
    %v9006 = vmul.f32 %v8996, %v9004
    %9007 = vrot.lane.b32.xlu0 %v8150, 32
    %v9008 = vpop.permute.xlu0 %9007
    %v9011 = vsel %vm2120, %v9005, 0
    %9013 = vmatpush.msra.mxu0 0.0
    %9014 = vmatpush.msra.mxu0 0.0
    %9015 = vmatpush.msra.mxu0 0.0
    %9016 = vmatpush.msra.mxu0 0.0
    %9017 = vmatpush.msra.mxu0 0.0
    %9018 = vmatpush.msra.mxu0 0.0
    %9019 = vmatpush.msra.mxu0 0.0
    %9020 = vmatpush.msra.mxu0 0.0
    %9021 = vmatpush.msra.mxu0 0.0
    %9022 = vmatpush.msra.mxu0 0.0
    %9023 = vmatpush.msra.mxu0 0.0
    %9024 = vmatpush.msra.mxu0 0.0
    %9025 = vmatpush.msra.mxu0 0.0
    %9026 = vmatpush.msra.mxu0 0.0
    %9027 = vmatpush.msra.mxu0 0.0
    %9028 = vmatpush.msra.mxu0 %v9008
    %9029 = vmatmul.f32.gmra.mxu0 %v9011
    %v9030 = vpop.f32.mrf.mxu0
    %v9031 = vadd.f32 0.0, %v9030
    %9032 = vdwg.mxu0
    %9033 = vrot.lane.b32.xlu0 %v8153, 32
    %v9034 = vpop.permute.xlu0 %9033
    %v9037 = vsel %vm2120, %v9006, 0
    %9039 = vmatpush.msra.mxu0 0.0
    %9040 = vmatpush.msra.mxu0 0.0
    %9041 = vmatpush.msra.mxu0 0.0
    %9042 = vmatpush.msra.mxu0 0.0
    %9043 = vmatpush.msra.mxu0 0.0
    %9044 = vmatpush.msra.mxu0 0.0
    %9045 = vmatpush.msra.mxu0 0.0
    %9046 = vmatpush.msra.mxu0 0.0
    %9047 = vmatpush.msra.mxu0 0.0
    %9048 = vmatpush.msra.mxu0 0.0
    %9049 = vmatpush.msra.mxu0 0.0
    %9050 = vmatpush.msra.mxu0 0.0
    %9051 = vmatpush.msra.mxu0 0.0
    %9052 = vmatpush.msra.mxu0 0.0
    %9053 = vmatpush.msra.mxu0 0.0
    %9054 = vmatpush.msra.mxu0 %v9034
    %9055 = vmatmul.f32.gmra.mxu0 %v9037
    %v9056 = vpop.f32.mrf.mxu0
    %v9057 = vadd.f32 0.0, %v9056
    %9058 = vdwg.mxu0
    %9059 = vrot.lane.b32.xlu0 %v8155, 16
    %v9060 = vpop.permute.xlu0 %9059
    %9061 = vrot.lane.b32.xlu0 %v8127, 16
    %v9062 = vpop.permute.xlu0 %9061
    %v9063 = vsel %vm2067, %v9060, 0
    %v9065 = vsel %vm2067, %v9062, 0
    %9067 = vmatpush.xpose.msra.mxu0 0.0
    %9068 = vmatpush.xpose.msra.mxu0 0.0
    %9069 = vmatpush.xpose.msra.mxu0 0.0
    %9070 = vmatpush.xpose.msra.mxu0 0.0
    %9071 = vmatpush.xpose.msra.mxu0 0.0
    %9072 = vmatpush.xpose.msra.mxu0 0.0
    %9073 = vmatpush.xpose.msra.mxu0 0.0
    %9074 = vmatpush.xpose.msra.mxu0 0.0
    %9075 = vmatpush.xpose.msra.mxu0 0.0
    %9076 = vmatpush.xpose.msra.mxu0 0.0
    %9077 = vmatpush.xpose.msra.mxu0 0.0
    %9078 = vmatpush.xpose.msra.mxu0 0.0
    %9079 = vmatpush.xpose.msra.mxu0 0.0
    %9080 = vmatpush.xpose.msra.mxu0 0.0
    %9081 = vmatpush.xpose.msra.mxu0 0.0
    %9082 = vmatpush.xpose.msra.mxu0 %v9065
    %9083 = vmatmul.f32.gmra.mxu0 %v9063
    %v9084 = vpop.f32.mrf.mxu0
    %v9085 = vadd.f32 0.0, %v9084
    %9086 = vdwg.mxu0
    %9087 = vrot.lane.b32.xlu0 %v8156, 16
    %v9088 = vpop.permute.xlu0 %9087
    %9089 = vrot.lane.b32.xlu0 %v8130, 16
    %v9090 = vpop.permute.xlu0 %9089
    %v9091 = vsel %vm2067, %v9088, 0
    %v9093 = vsel %vm2067, %v9090, 0
    %9095 = vmatpush.xpose.msra.mxu0 0.0
    %9096 = vmatpush.xpose.msra.mxu0 0.0
    %9097 = vmatpush.xpose.msra.mxu0 0.0
    %9098 = vmatpush.xpose.msra.mxu0 0.0
    %9099 = vmatpush.xpose.msra.mxu0 0.0
    %9100 = vmatpush.xpose.msra.mxu0 0.0
    %9101 = vmatpush.xpose.msra.mxu0 0.0
    %9102 = vmatpush.xpose.msra.mxu0 0.0
    %9103 = vmatpush.xpose.msra.mxu0 0.0
    %9104 = vmatpush.xpose.msra.mxu0 0.0
    %9105 = vmatpush.xpose.msra.mxu0 0.0
    %9106 = vmatpush.xpose.msra.mxu0 0.0
    %9107 = vmatpush.xpose.msra.mxu0 0.0
    %9108 = vmatpush.xpose.msra.mxu0 0.0
    %9109 = vmatpush.xpose.msra.mxu0 0.0
    %9110 = vmatpush.xpose.msra.mxu0 %v9093
    %9111 = vmatmul.f32.gmra.mxu0 %v9091
    %v9112 = vpop.f32.mrf.mxu0
    %v9113 = vadd.f32 0.0, %v9112
    %9114 = vdwg.mxu0
    %v9115 = vsel %vm2120, %v9085, -inf
    %9116 = vmax.xlane.f32.xlu0 %v9115
    %v9117 = vpop.xlane.xlu0 %9116
    %v9118 = vsel %vm2120, %v9113, -inf
    %9119 = vmax.xlane.f32.xlu0 %v9118
    %v9120 = vpop.xlane.xlu0 %9119
    %v9121 = vsub.f32 %v9085, %v9117
    %v9122 = vsub.f32 %v9113, %v9120
    %v9123 = vmul.f32 %v9121, 1.442695
    %v9124 = vpow.pop %v9123
    %v9125 = vmul.f32 %v9122, 1.442695
    %v9126 = vpow.pop %v9125
    %v9127 = vsel %vm2120, %v9124, 0.0
    %9128 = vadd.xlane.f32.xlu0 %v9127
    %v9129 = vpop.xlane.xlu0 %9128
    %v9130 = vsel %vm2120, %v9126, 0.0
    %9131 = vadd.xlane.f32.xlu0 %v9130
    %v9132 = vpop.xlane.xlu0 %9131
    %v9133 = vrcp.pop %v9129
    %v9134 = vrcp.pop %v9132
    %v9135 = vmul.f32 %v9124, %v9133
    %v9136 = vmul.f32 %v9126, %v9134
    %9137 = vrot.lane.b32.xlu0 %v8150, 16
    %v9138 = vpop.permute.xlu0 %9137
    %v9141 = vsel %vm2120, %v9135, 0
    %9143 = vmatpush.msra.mxu0 0.0
    %9144 = vmatpush.msra.mxu0 0.0
    %9145 = vmatpush.msra.mxu0 0.0
    %9146 = vmatpush.msra.mxu0 0.0
    %9147 = vmatpush.msra.mxu0 0.0
    %9148 = vmatpush.msra.mxu0 0.0
    %9149 = vmatpush.msra.mxu0 0.0
    %9150 = vmatpush.msra.mxu0 0.0
    %9151 = vmatpush.msra.mxu0 0.0
    %9152 = vmatpush.msra.mxu0 0.0
    %9153 = vmatpush.msra.mxu0 0.0
    %9154 = vmatpush.msra.mxu0 0.0
    %9155 = vmatpush.msra.mxu0 0.0
    %9156 = vmatpush.msra.mxu0 0.0
    %9157 = vmatpush.msra.mxu0 0.0
    %9158 = vmatpush.msra.mxu0 %v9138
    %9159 = vmatmul.f32.gmra.mxu0 %v9141
    %v9160 = vpop.f32.mrf.mxu0
    %v9161 = vadd.f32 0.0, %v9160
    %9162 = vdwg.mxu0
    %9163 = vrot.lane.b32.xlu0 %v8153, 16
    %v9164 = vpop.permute.xlu0 %9163
    %v9167 = vsel %vm2120, %v9136, 0
    %9169 = vmatpush.msra.mxu0 0.0
    %9170 = vmatpush.msra.mxu0 0.0
    %9171 = vmatpush.msra.mxu0 0.0
    %9172 = vmatpush.msra.mxu0 0.0
    %9173 = vmatpush.msra.mxu0 0.0
    %9174 = vmatpush.msra.mxu0 0.0
    %9175 = vmatpush.msra.mxu0 0.0
    %9176 = vmatpush.msra.mxu0 0.0
    %9177 = vmatpush.msra.mxu0 0.0
    %9178 = vmatpush.msra.mxu0 0.0
    %9179 = vmatpush.msra.mxu0 0.0
    %9180 = vmatpush.msra.mxu0 0.0
    %9181 = vmatpush.msra.mxu0 0.0
    %9182 = vmatpush.msra.mxu0 0.0
    %9183 = vmatpush.msra.mxu0 0.0
    %9184 = vmatpush.msra.mxu0 %v9164
    %9185 = vmatmul.f32.gmra.mxu0 %v9167
    %v9186 = vpop.f32.mrf.mxu0
    %v9187 = vadd.f32 0.0, %v9186
    %9188 = vdwg.mxu0
    %9191 = vrot.lane.b32.xlu0 %v8380, 16
    %v9192 = vpop.permute.xlu0 %9191
    %9193 = vrot.lane.b32.xlu0 %v8407, 16
    %v9194 = vpop.permute.xlu0 %9193
    %9199 = vrot.lane.b32.xlu0 %v8511, 32
    %v9200 = vpop.permute.xlu0 %9199
    %9201 = vrot.lane.b32.xlu0 %v8537, 32
    %v9202 = vpop.permute.xlu0 %9201
    %9207 = vrot.lane.b32.xlu0 %v8641, 48
    %v9208 = vpop.permute.xlu0 %9207
    %9209 = vrot.lane.b32.xlu0 %v8667, 48
    %v9210 = vpop.permute.xlu0 %9209
    %9215 = vrot.lane.b32.xlu0 %v8771, 64
    %v9216 = vpop.permute.xlu0 %9215
    %9217 = vrot.lane.b32.xlu0 %v8797, 64
    %v9218 = vpop.permute.xlu0 %9217
    %9223 = vrot.lane.b32.xlu0 %v8901, 80
    %v9224 = vpop.permute.xlu0 %9223
    %9225 = vrot.lane.b32.xlu0 %v8927, 80
    %v9226 = vpop.permute.xlu0 %9225
    %9231 = vrot.lane.b32.xlu0 %v9031, 96
    %v9232 = vpop.permute.xlu0 %9231
    %9233 = vrot.lane.b32.xlu0 %v9057, 96
    %v9234 = vpop.permute.xlu0 %9233
    %9239 = vrot.lane.b32.xlu0 %v9161, 112
    %v9240 = vpop.permute.xlu0 %9239
    %9241 = vrot.lane.b32.xlu0 %v9187, 112
    %v9242 = vpop.permute.xlu0 %9241
    %v9245 = vsel %vm2067, %v8252, %v9192
    %v9246 = vsel %vm2067, %v8275, %v9194
    %v9247 = vsel %vm3159, %v9245, %v9200
    %v9248 = vsel %vm3159, %v9246, %v9202
    %v9249 = vsel %vm3162, %v9247, %v9208
    %v9250 = vsel %vm3162, %v9248, %v9210
    %v9251 = vsel %vm3165, %v9249, %v9216
    %v9252 = vsel %vm3165, %v9250, %v9218
    %v9253 = vsel %vm3168, %v9251, %v9224
    %v9254 = vsel %vm3168, %v9252, %v9226
    %v9255 = vsel %vm3171, %v9253, %v9232
    %v9256 = vsel %vm3171, %v9254, %v9234
    %v9257 = vsel %vm3174, %v9255, %v9240
    %v9258 = vsel %vm3174, %v9256, %v9242
    %v9260 = vperm.slane %v6471, 0
    %9262 = vmatpush.msra.mxu0 %v6469
    %9263 = vmatpush.msra.mxu0 %v6468
    %9264 = vmatpush.msra.mxu0 %v6467
    %9265 = vmatpush.msra.mxu0 %v6466
    %9266 = vmatpush.msra.mxu0 %v6465
    %9267 = vmatpush.msra.mxu0 %v6464
    %9268 = vmatpush.msra.mxu0 %v6463
    %9269 = vmatpush.msra.mxu0 %v6462
    %9270 = vmatpush.msra.mxu0 %v6461
    %9271 = vmatpush.msra.mxu0 %v6460
    %9272 = vmatpush.msra.mxu0 %v6459
    %9273 = vmatpush.msra.mxu0 %v6458
    %9274 = vmatpush.msra.mxu0 %v6457
    %9275 = vmatpush.msra.mxu0 %v6456
    %9276 = vmatpush.msra.mxu0 %v6455
    %9277 = vmatpush.msra.mxu0 %v6454
    %9278 = vmatmul.f32.gmra.mxu0 %v9257
    %v9279 = vpop.f32.mrf.mxu0
    %v9280 = vadd.f32 %v9260, %v9279
    %9281 = vmatmul.f32.gmra.mxu0 %v9258
    %v9282 = vpop.f32.mrf.mxu0
    %v9283 = vadd.f32 %v9260, %v9282
    %9284 = vdwg.mxu0
    %v9285 = vadd.f32 %v8077, %v9280
    %v9286 = vadd.f32 %v8078, %v9283
    %9287 = vadd.xlane.f32.xlu0 %v9285
    %v9288 = vpop.xlane.xlu0 %9287
    %9289 = vadd.xlane.f32.xlu0 %v9286
    %v9290 = vpop.xlane.xlu0 %9289
    %v9291 = vmul.f32 %v9288, %v1942
    %v9292 = vmul.f32 %v9290, %v1942
    %v9293 = vsub.f32 %v9285, %v9291
    %v9294 = vsub.f32 %v9286, %v9292
    %v9295 = vmul.f32 %v9293, %v9293
    %v9296 = vmul.f32 %v9294, %v9294
    %9297 = vadd.xlane.f32.xlu0 %v9295
    %v9298 = vpop.xlane.xlu0 %9297
    %9299 = vadd.xlane.f32.xlu0 %v9296
    %v9300 = vpop.xlane.xlu0 %9299
    %v9301 = vmul.f32 %v9298, %v1942
    %v9302 = vmul.f32 %v9300, %v1942
    %v9303 = vadd.f32 %v9301, 1e-12
    %v9304 = vadd.f32 %v9302, 1e-12
    %v9305 = vrsqrt.pop %v9303
    %v9306 = vmul.f32 %v9305, %v9303
    %v9307 = vmul.f32 %v9306, %v9305
    %v9308 = vmul.f32 0.5, %v9307
    %v9309 = vsub.f32 1.5, %v9308
    %v9310 = vmul.f32 %v9305, %v9309
    %vm9311 = vweird.f32 %v9303
    %vm9312 = vweird.f32 %v9305
    %vm9313 = vmor %vm9311, %vm9312
    %v9314 = vsel %vm9313, %v9305, %v9310
    %v9315 = vrsqrt.pop %v9304
    %v9316 = vmul.f32 %v9315, %v9304
    %v9317 = vmul.f32 %v9316, %v9315
    %v9318 = vmul.f32 0.5, %v9317
    %v9319 = vsub.f32 1.5, %v9318
    %v9320 = vmul.f32 %v9315, %v9319
    %vm9321 = vweird.f32 %v9304
    %vm9322 = vweird.f32 %v9315
    %vm9323 = vmor %vm9321, %vm9322
    %v9324 = vsel %vm9323, %v9315, %v9320
    %v9325 = vmul.f32 %v9293, %v9314
    %v9326 = vmul.f32 %v9294, %v9324
    %v9328 = vperm.slane %v6473, 0
    %v9330 = vmul.f32 %v9328, %v9325
    %v9331 = vmul.f32 %v9328, %v9326
    %v9333 = vperm.slane %v6475, 0
    %v9335 = vadd.f32 %v9330, %v9333
    %v9336 = vadd.f32 %v9331, %v9333
    %9337 = vst [vmem:[#allocation19] sm:$0xff] %v9335
    %9338 = vst [vmem:[#allocation19 + $0x8] sm:$0xff] %v9336
    // Predicated region
    $region94: #{tpu_custom_call.1} parent=1 // pred_check
      _
    $region95: #{tpu_custom_call.1} parent=1 // pred_check_branch
      %9340 = sbr.rel (0) target = $region97
    $region96: #{tpu_custom_call.1} parent=1 // pred_region
      %9342 = vsyncadd [#allocation4], 0
      %s9343 = sshll.u32 [#allocation19], 4
      %s9344 = int_to_ptr.vmem [resolvable:$true] %s9343
      %s9345 = sshll.u32 %s13, 4
      %s9346 = int_to_ptr.hbm [resolvable:$true] %s9345
      %9351 = dma.vmem_to_hbm [thread:$0]  %s9344, 256, %s9346, [#allocation4], 128, 128, 8
    $region97: #{tpu_custom_call.1} parent=1 // pred_fallthru
      _
    // Predicated region
    $region98: #{tpu_custom_call.1} parent=1 // pred_check
      _
    $region99: #{tpu_custom_call.1} parent=1 // pred_check_branch
      %9353 = sbr.rel (0) target = $region101
    $region100: #{tpu_custom_call.1} parent=1 // pred_region
      %9355 = dma.done [#allocation4], 256
    $region101: #{tpu_custom_call.1} parent=1 // pred_fallthru
      _
    %9356 = vsyncpa [#allocation3], 1
    %9357 = vsyncpa [#allocation6], 1
    %9358 = vsyncpa [#allocation9], 1
    %9359 = vsyncpa [#allocation12], 1
    %9360 = vsyncpa [#allocation15], 1
    %9361 = vsyncpa [#allocation18], 1
    %9362 = vsyncpa [#allocation4], 1

</llo_original>
